<compile_context>
chip_gen: v5e
topology: v5e:2x2
jax: 0.10.0
libtpu: 0.0.40
codegen_flags: <defaults>
</compile_context>

<pallas_src>
import functools

import jax
import jax.numpy as jnp
import numpy as np
from jax.experimental import pallas as pl
from jax.experimental.pallas import tpu as pltpu


# ----------------------------- small helpers --------------------------------

def _round_up(x, m):
    return (x + m - 1) // m * m


def _largest_divisor(n, cap, multiple_of=1):
    """Largest d with d | n, d <= cap and multiple_of | d (None if none)."""
    best = None
    for d in range(1, min(n, cap) + 1):
        if n % d == 0 and d % multiple_of == 0:
            best = d
    return best


def _interp_matrix(out_size, in_size):
    """align_corners=True bilinear interpolation matrix M (out_size, in_size)."""
    m = np.zeros((out_size, in_size), dtype=np.float64)
    if in_size == 1:
        m[:, 0] = 1.0
        return m.astype(np.float32)
    if out_size == 1:
        m[0, 0] = 1.0  # PyTorch maps the single output to source index 0
        return m.astype(np.float32)
    scale = (in_size - 1) / (out_size - 1)
    for i in range(out_size):
        s = i * scale
        p0 = min(int(np.floor(s)), in_size - 1)
        p1 = min(p0 + 1, in_size - 1)
        f = s - p0
        m[i, p0] += 1.0 - f
        m[i, p1] += f
    return m.astype(np.float32)


# ------------------ Kernel 1: conv3x3 + BN + ReLU + conv1x1 ------------------

def _make_conv_fused_kernel(tr, w8, cin, cout, ncls_p):
    def kernel(x_ref, w1_ref, scale_ref, shift_ref, w2_ref, b2_ref,
               out_ref, acc_ref):
        r = pl.program_id(1)
        row0 = pl.multiple_of(r * tr, tr)

        # Implicit im2col: 9 shifted bf16 matmuls accumulated in an f32 VMEM
        # scratch (no (pixels, Cin*9) buffer is ever materialized).
        for tap in range(9):
            dy, dx = tap // 3, tap % 3
            patch = x_ref[0, pl.ds(row0 + dy, tr), pl.ds(dx, w8), :]
            patch = patch.reshape(tr * w8, cin)
            contrib = jnp.dot(patch, w1_ref[tap],
                              preferred_element_type=jnp.float32)
            if tap == 0:
                acc_ref[...] = contrib
            else:
                acc_ref[...] += contrib

        # Fused epilogue: BatchNorm (scale/shift) + ReLU in f32 on the accumulator.
        feat = jnp.maximum(acc_ref[...] * scale_ref[...] + shift_ref[...], 0.0)

        # Dropout2d(p=0.1) is identity at inference -> intentionally skipped.

        # 1x1 classification conv (n_classes padded to 128 lanes) + bias.
        logits = jnp.dot(feat.astype(w2_ref.dtype), w2_ref[...],
                         preferred_element_type=jnp.float32)
        logits = logits + b2_ref[...]
        out_ref[0] = logits.reshape(tr, w8, ncls_p).astype(out_ref.dtype)

    return kernel


def _conv_bn_relu_cls(x_nchw, w1, bn_gamma, bn_beta, bn_mean, bn_var, w2, b2,
                      *, eps=1e-5, compute_dtype=jnp.bfloat16):
    """Fused Conv3x3(no bias) + BN + ReLU + Conv1x1(+bias).

    Returns logits in padded channels-last layout (B, H, W8, NCLS_P) float32.
    """
    b, cin, h, w = x_nchw.shape
    cout = w1.shape[0]                 # 256
    ncls = w2.shape[0]
    ncls_p = _round_up(ncls, 128)      # lane-dense / unmasked stores
    w8 = _round_up(w, 8)               # sublane-aligned compute width

    # --- layout plumbing done once in the wrapper (channels-last) ---
    x = jnp.transpose(x_nchw, (0, 2, 3, 1)).astype(compute_dtype)
    # +1 zero halo on each side (conv padding=1), plus right-pad to W8.
    x = jnp.pad(x, ((0, 0), (1, 1), (1, 1 + (w8 - w)), (0, 0)))

    # (O, C, ky, kx) -> (9, C, O), tap index = ky*3 + kx
    w1_r = jnp.transpose(w1, (2, 3, 1, 0)).reshape(9, cin, cout).astype(compute_dtype)
    inv = bn_gamma / jnp.sqrt(bn_var + eps)
    scale = inv.astype(jnp.float32).reshape(1, cout)
    shift = (bn_beta - bn_mean * inv).astype(jnp.float32).reshape(1, cout)
    w2_r = jnp.zeros((cout, ncls_p), compute_dtype).at[:, :ncls].set(
        jnp.transpose(w2).astype(compute_dtype))
    b2_r = jnp.zeros((1, ncls_p), jnp.float32).at[0, :ncls].set(
        b2.astype(jnp.float32))

    tr = _largest_divisor(h, 32) or h      # row tile (accumulator stays small)
    grid = (b, h // tr)
    kernel = _make_conv_fused_kernel(tr, w8, cin, cout, ncls_p)

    flops = 2 * b * h * w8 * (9 * cin + ncls_p) * cout
    bytes_accessed = int(x.size * 2 + w1_r.size * 2 + w2_r.size * 2
                         + b * h * w8 * ncls_p * 4)
    cost = pl.CostEstimate(flops=int(flops), transcendentals=0,
                           bytes_accessed=bytes_accessed)

    out = pl.pallas_call(
        kernel,
        out_shape=jax.ShapeDtypeStruct((b, h, w8, ncls_p), jnp.float32),
        grid_spec=pltpu.PrefetchScalarGridSpec(
            num_scalar_prefetch=0,
            grid=grid,
            in_specs=[
                # padded activation plane: resident across the row-block axis
                pl.BlockSpec((1, h + 2, w8 + 2, cin), lambda bi, ri: (bi, 0, 0, 0)),
                # weights / BN params: constant index_map -> DMA'd once
                pl.BlockSpec((9, cin, cout), lambda bi, ri: (0, 0, 0)),
                pl.BlockSpec((1, cout), lambda bi, ri: (0, 0)),
                pl.BlockSpec((1, cout), lambda bi, ri: (0, 0)),
                pl.BlockSpec((cout, ncls_p), lambda bi, ri: (0, 0)),
                pl.BlockSpec((1, ncls_p), lambda bi, ri: (0, 0)),
            ],
            out_specs=pl.BlockSpec((1, tr, w8, ncls_p),
                                   lambda bi, ri: (bi, ri, 0, 0)),
            scratch_shapes=[pltpu.VMEM((tr * w8, cout), jnp.float32)],
        ),
        compiler_params=pltpu.CompilerParams(
            dimension_semantics=("parallel", "parallel"),
            vmem_limit_bytes=32 * 1024 * 1024,
        ),
        cost_estimate=cost,
    )(x, w1_r, scale, shift, w2_r, b2_r)
    return out


# ---------------- Kernel 2: bilinear resize (align_corners=True) ------------

def _make_resize_kernel(p, tho, h_in, w_in, w_out):
    # Batch the (dominant) width-interpolation matmul across all p planes of
    # the step when the row tile is sublane-aligned; otherwise fall back to
    # the simple per-plane schedule.
    batch_width = (p > 1) and (tho % 8 == 0)

    def kernel(y_ref, rh_ref, rwt_ref, out_ref):
        rh = rh_ref[...]        # (THo, Hin)
        rwt = rwt_ref[...]      # (Win, Wout)
        if batch_width:
            # Small per-plane height matmuls, stacked along sublanes, then
            # ONE tall lane-dense width matmul for all p planes.
            t = jnp.concatenate(
                [jnp.dot(rh, y_ref[i], preferred_element_type=jnp.float32)
                 for i in range(p)], axis=0)                  # (p*THo, Win)
            o = jnp.dot(t, rwt, preferred_element_type=jnp.float32)
            out_ref[...] = o.reshape(p, tho, w_out).astype(out_ref.dtype)
        else:
            for i in range(p):
                t = jnp.dot(rh, y_ref[i], preferred_element_type=jnp.float32)
                out_ref[i] = jnp.dot(t, rwt,
                                     preferred_element_type=jnp.float32
                                     ).astype(out_ref.dtype)
    return kernel


def _bilinear_resize_planes(planes, h_out, w_out):
    """planes: (N, Hin, Win) f32 -> (N, Hout, Wout) f32, align_corners=True."""
    n, h_in, w_in = planes.shape

    # Row tile of the output height (full height if no aligned divisor).
    tho = _largest_divisor(h_out, 128, multiple_of=8) or h_out

    # Plane-batch per grid step, capped so blocks stay comfortably in VMEM
    # (double-buffered output block + the fused intermediate).
    budget = 16 * 1024 * 1024
    per_plane_bytes = tho * w_out * 4 * 3 + h_in * max(w_in, w_out) * 4 * 2
    max_p = int(max(1, min(16, budget // max(per_plane_bytes, 1))))
    p = _largest_divisor(n, max_p) or 1
    if p < min(8, max_p):      # poor divisor structure -> pad to a bigger batch
        p = min(8, max_p)

    n_pad = _round_up(n, p)
    if n_pad != n:
        planes = jnp.pad(planes, ((0, n_pad - n), (0, 0), (0, 0)))

    rh = jnp.asarray(_interp_matrix(h_out, h_in))       # (Hout, Hin)
    rwt = jnp.asarray(_interp_matrix(w_out, w_in).T)    # (Win, Wout), pre-transposed

    grid = (n_pad // p, h_out // tho)
    kernel = _make_resize_kernel(p, tho, h_in, w_in, w_out)

    flops = 2 * n_pad * (h_out * h_in * w_in + h_out * w_out * w_in)
    bytes_accessed = int(4 * (n_pad * h_in * w_in + n_pad * h_out * w_out
                              + rh.size + rwt.size))
    cost = pl.CostEstimate(flops=int(flops), transcendentals=0,
                           bytes_accessed=bytes_accessed)

    out = pl.pallas_call(
        kernel,
        out_shape=jax.ShapeDtypeStruct((n_pad, h_out, w_out), jnp.float32),
        grid_spec=pltpu.PrefetchScalarGridSpec(
            num_scalar_prefetch=0,
            grid=grid,
            in_specs=[
                pl.BlockSpec((p, h_in, w_in), lambda ni, ri: (ni, 0, 0)),
                pl.BlockSpec((tho, h_in), lambda ni, ri: (ri, 0)),
                pl.BlockSpec((w_in, w_out), lambda ni, ri: (0, 0)),   # resident
            ],
            out_specs=pl.BlockSpec((p, tho, w_out), lambda ni, ri: (ni, ri, 0)),
        ),
        compiler_params=pltpu.CompilerParams(
            dimension_semantics=("parallel", "parallel"),
            vmem_limit_bytes=32 * 1024 * 1024,
        ),
        cost_estimate=cost,
    )(planes, rh, rwt)
    return out[:n]


# ------------------------------- forward ------------------------------------

def auxiliary_psp_forward(x, conv1_w, bn_gamma, bn_beta, bn_mean, bn_var,
                          cls_w, cls_b, *, height, width, eps=1e-5):
    """AuxiliaryPSPlayers forward (inference).

    x: (B, Cin, H, W) f32 NCHW. Returns (B, n_classes, height, width) f32.
    """
    b, _, h, w = x.shape
    ncls = cls_w.shape[0]

    logits_p = _conv_bn_relu_cls(x, conv1_w, bn_gamma, bn_beta, bn_mean,
                                 bn_var, cls_w, cls_b, eps=eps)
    logits = logits_p[:, :, :w, :ncls]                          # drop pads
    planes = jnp.transpose(logits, (0, 3, 1, 2)).reshape(b * ncls, h, w)
    up = _bilinear_resize_planes(planes, height, width)
    return up.reshape(b, ncls, height, width)


# ----------------------------- pure-JAX reference ---------------------------

def _reference_forward(x, conv1_w, bn_gamma, bn_beta, bn_mean, bn_var,
                       cls_w, cls_b, *, height, width, eps=1e-5):
    f32 = jnp.float32
    xb = x.astype(jnp.bfloat16).astype(f32)
    w1b = conv1_w.astype(jnp.bfloat16).astype(f32)
    y = jax.lax.conv_general_dilated(
        xb, w1b, window_strides=(1, 1), padding=((1, 1), (1, 1)),
        dimension_numbers=("NCHW", "OIHW", "NCHW"),
        preferred_element_type=f32)
    scale = bn_gamma / jnp.sqrt(bn_var + eps)
    shift = bn_beta - bn_mean * scale
    y = y * scale[None, :, None, None] + shift[None, :, None, None]
    y = jnp.maximum(y, 0.0)
    y = y.astype(jnp.bfloat16).astype(f32)   # kernel feeds the 1x1 conv in bf16
    w2b = cls_w.astype(jnp.bfloat16).astype(f32)
    logits = jnp.einsum("bchw,nc->bnhw", y, w2b,
                        preferred_element_type=f32)
    logits = logits + cls_b[None, :, None, None]
    rh = jnp.asarray(_interp_matrix(height, x.shape[2]))
    rw = jnp.asarray(_interp_matrix(width, x.shape[3]))
    t = jnp.einsum("oh,bnhw->bnow", rh, logits, preferred_element_type=f32)
    return jnp.einsum("pw,bnow->bnop", rw, t, preferred_element_type=f32)


# --------------------------------- main --------------------------------------

if __name__ == "__main__":
    key = jax.random.PRNGKey(0)
    ks = jax.random.split(key, 8)

    B, CIN, H, W = 2, 32, 16, 16
    N_CLASSES = 21
    H_OUT = W_OUT = 64

    x = jax.random.uniform(ks[0], (B, CIN, H, W), jnp.float32)
    conv1_w = jax.random.normal(ks[1], (256, CIN, 3, 3), jnp.float32) * 0.05
    bn_gamma = jax.random.uniform(ks[2], (256,), jnp.float32, 0.5, 1.5)
    bn_beta = jax.random.normal(ks[3], (256,), jnp.float32) * 0.1
    bn_mean = jax.random.normal(ks[4], (256,), jnp.float32) * 0.1
    bn_var = jax.random.uniform(ks[5], (256,), jnp.float32, 0.5, 1.5)
    cls_w = jax.random.normal(ks[6], (N_CLASSES, 256), jnp.float32) * 0.05
    cls_b = jax.random.normal(ks[7], (N_CLASSES,), jnp.float32) * 0.1

    fwd = jax.jit(functools.partial(auxiliary_psp_forward,
                                    height=H_OUT, width=W_OUT))
    out = jax.block_until_ready(
        fwd(x, conv1_w, bn_gamma, bn_beta, bn_mean, bn_var, cls_w, cls_b))
    assert out.shape == (B, N_CLASSES, H_OUT, W_OUT), out.shape

    ref = jax.block_until_ready(
        _reference_forward(x, conv1_w, bn_gamma, bn_beta, bn_mean, bn_var,
                           cls_w, cls_b, height=H_OUT, width=W_OUT))
    max_err = float(jnp.max(jnp.abs(out - ref)))
    if not (max_err < 2e-2):
        raise AssertionError(f"kernel mismatch vs reference: max_err={max_err}")

    print("KERNEL_OK")
</pallas_src>

<mosaic_0001>
module attributes {stable_mosaic.version = 11 : i64} {
  func.func @kernel(%arg0: i32, %arg1: i32, %arg2: memref<14x16x16xf32, #tpu.memory_space<vmem>>, %arg3: memref<64x16xf32, #tpu.memory_space<vmem>>, %arg4: memref<16x64xf32, #tpu.memory_space<vmem>>, %arg5: memref<14x64x64xf32, #tpu.memory_space<vmem>>) attributes {dimension_semantics = [#tpu.dimension_semantics<parallel>, #tpu.dimension_semantics<parallel>], iteration_bounds = array<i64: 3, 1>, scalar_prefetch = 0 : i64, scratch_operands = 0 : i64, tpu.core_type = #tpu.core_type<tc>, window_params = [{transform_indices = @transform_0, window_bounds = array<i64: 14, 16, 16>}, {transform_indices = @transform_1, window_bounds = array<i64: 64, 16>}, {pipeline_mode = #tpu.pipeline_mode<synchronous>, transform_indices = @transform_2, window_bounds = array<i64: 16, 64>}, {transform_indices = @transform_3, window_bounds = array<i64: 14, 64, 64>}]} {
    %c0 = arith.constant 0 : index
    %c0_0 = arith.constant 0 : index
    %0 = vector.load %arg3[%c0, %c0_0] : memref<64x16xf32, #tpu.memory_space<vmem>>, vector<64x16xf32>
    %c0_1 = arith.constant 0 : index
    %c0_2 = arith.constant 0 : index
    %1 = vector.load %arg4[%c0_1, %c0_2] : memref<16x64xf32, #tpu.memory_space<vmem>>, vector<16x64xf32>
    %c0_3 = arith.constant 0 : index
    %c0_4 = arith.constant 0 : index
    %c0_5 = arith.constant 0 : index
    %2 = vector.load %arg2[%c0_3, %c0_4, %c0_5] : memref<14x16x16xf32, #tpu.memory_space<vmem>>, vector<1x16x16xf32>
    %3 = vector.shape_cast %2 : vector<1x16x16xf32> to vector<16x16xf32>
    %cst = arith.constant dense<0.000000e+00> : vector<64x16xf32>
    %4 = tpu.matmul %0, %3, %cst {dimension_numbers = #tpu.dot_dimension_numbers<[1], [0], [0], [1], [0, 0, 1, 1], [], []>} : vector<64x16xf32>, vector<16x16xf32>, vector<64x16xf32> -> vector<64x16xf32>
    %c1 = arith.constant 1 : index
    %c0_6 = arith.constant 0 : index
    %c0_7 = arith.constant 0 : index
    %5 = vector.load %arg2[%c1, %c0_6, %c0_7] : memref<14x16x16xf32, #tpu.memory_space<vmem>>, vector<1x16x16xf32>
    %6 = vector.shape_cast %5 : vector<1x16x16xf32> to vector<16x16xf32>
    %cst_8 = arith.constant dense<0.000000e+00> : vector<64x16xf32>
    %7 = tpu.matmul %0, %6, %cst_8 {dimension_numbers = #tpu.dot_dimension_numbers<[1], [0], [0], [1], [0, 0, 1, 1], [], []>} : vector<64x16xf32>, vector<16x16xf32>, vector<64x16xf32> -> vector<64x16xf32>
    %c2 = arith.constant 2 : index
    %c0_9 = arith.constant 0 : index
    %c0_10 = arith.constant 0 : index
    %8 = vector.load %arg2[%c2, %c0_9, %c0_10] : memref<14x16x16xf32, #tpu.memory_space<vmem>>, vector<1x16x16xf32>
    %9 = vector.shape_cast %8 : vector<1x16x16xf32> to vector<16x16xf32>
    %cst_11 = arith.constant dense<0.000000e+00> : vector<64x16xf32>
    %10 = tpu.matmul %0, %9, %cst_11 {dimension_numbers = #tpu.dot_dimension_numbers<[1], [0], [0], [1], [0, 0, 1, 1], [], []>} : vector<64x16xf32>, vector<16x16xf32>, vector<64x16xf32> -> vector<64x16xf32>
    %c3 = arith.constant 3 : index
    %c0_12 = arith.constant 0 : index
    %c0_13 = arith.constant 0 : index
    %11 = vector.load %arg2[%c3, %c0_12, %c0_13] : memref<14x16x16xf32, #tpu.memory_space<vmem>>, vector<1x16x16xf32>
    %12 = vector.shape_cast %11 : vector<1x16x16xf32> to vector<16x16xf32>
    %cst_14 = arith.constant dense<0.000000e+00> : vector<64x16xf32>
    %13 = tpu.matmul %0, %12, %cst_14 {dimension_numbers = #tpu.dot_dimension_numbers<[1], [0], [0], [1], [0, 0, 1, 1], [], []>} : vector<64x16xf32>, vector<16x16xf32>, vector<64x16xf32> -> vector<64x16xf32>
    %c4 = arith.constant 4 : index
    %c0_15 = arith.constant 0 : index
    %c0_16 = arith.constant 0 : index
    %14 = vector.load %arg2[%c4, %c0_15, %c0_16] : memref<14x16x16xf32, #tpu.memory_space<vmem>>, vector<1x16x16xf32>
    %15 = vector.shape_cast %14 : vector<1x16x16xf32> to vector<16x16xf32>
    %cst_17 = arith.constant dense<0.000000e+00> : vector<64x16xf32>
    %16 = tpu.matmul %0, %15, %cst_17 {dimension_numbers = #tpu.dot_dimension_numbers<[1], [0], [0], [1], [0, 0, 1, 1], [], []>} : vector<64x16xf32>, vector<16x16xf32>, vector<64x16xf32> -> vector<64x16xf32>
    %c5 = arith.constant 5 : index
    %c0_18 = arith.constant 0 : index
    %c0_19 = arith.constant 0 : index
    %17 = vector.load %arg2[%c5, %c0_18, %c0_19] : memref<14x16x16xf32, #tpu.memory_space<vmem>>, vector<1x16x16xf32>
    %18 = vector.shape_cast %17 : vector<1x16x16xf32> to vector<16x16xf32>
    %cst_20 = arith.constant dense<0.000000e+00> : vector<64x16xf32>
    %19 = tpu.matmul %0, %18, %cst_20 {dimension_numbers = #tpu.dot_dimension_numbers<[1], [0], [0], [1], [0, 0, 1, 1], [], []>} : vector<64x16xf32>, vector<16x16xf32>, vector<64x16xf32> -> vector<64x16xf32>
    %c6 = arith.constant 6 : index
    %c0_21 = arith.constant 0 : index
    %c0_22 = arith.constant 0 : index
    %20 = vector.load %arg2[%c6, %c0_21, %c0_22] : memref<14x16x16xf32, #tpu.memory_space<vmem>>, vector<1x16x16xf32>
    %21 = vector.shape_cast %20 : vector<1x16x16xf32> to vector<16x16xf32>
    %cst_23 = arith.constant dense<0.000000e+00> : vector<64x16xf32>
    %22 = tpu.matmul %0, %21, %cst_23 {dimension_numbers = #tpu.dot_dimension_numbers<[1], [0], [0], [1], [0, 0, 1, 1], [], []>} : vector<64x16xf32>, vector<16x16xf32>, vector<64x16xf32> -> vector<64x16xf32>
    %c7 = arith.constant 7 : index
    %c0_24 = arith.constant 0 : index
    %c0_25 = arith.constant 0 : index
    %23 = vector.load %arg2[%c7, %c0_24, %c0_25] : memref<14x16x16xf32, #tpu.memory_space<vmem>>, vector<1x16x16xf32>
    %24 = vector.shape_cast %23 : vector<1x16x16xf32> to vector<16x16xf32>
    %cst_26 = arith.constant dense<0.000000e+00> : vector<64x16xf32>
    %25 = tpu.matmul %0, %24, %cst_26 {dimension_numbers = #tpu.dot_dimension_numbers<[1], [0], [0], [1], [0, 0, 1, 1], [], []>} : vector<64x16xf32>, vector<16x16xf32>, vector<64x16xf32> -> vector<64x16xf32>
    %c8 = arith.constant 8 : index
    %c0_27 = arith.constant 0 : index
    %c0_28 = arith.constant 0 : index
    %26 = vector.load %arg2[%c8, %c0_27, %c0_28] : memref<14x16x16xf32, #tpu.memory_space<vmem>>, vector<1x16x16xf32>
    %27 = vector.shape_cast %26 : vector<1x16x16xf32> to vector<16x16xf32>
    %cst_29 = arith.constant dense<0.000000e+00> : vector<64x16xf32>
    %28 = tpu.matmul %0, %27, %cst_29 {dimension_numbers = #tpu.dot_dimension_numbers<[1], [0], [0], [1], [0, 0, 1, 1], [], []>} : vector<64x16xf32>, vector<16x16xf32>, vector<64x16xf32> -> vector<64x16xf32>
    %c9 = arith.constant 9 : index
    %c0_30 = arith.constant 0 : index
    %c0_31 = arith.constant 0 : index
    %29 = vector.load %arg2[%c9, %c0_30, %c0_31] : memref<14x16x16xf32, #tpu.memory_space<vmem>>, vector<1x16x16xf32>
    %30 = vector.shape_cast %29 : vector<1x16x16xf32> to vector<16x16xf32>
    %cst_32 = arith.constant dense<0.000000e+00> : vector<64x16xf32>
    %31 = tpu.matmul %0, %30, %cst_32 {dimension_numbers = #tpu.dot_dimension_numbers<[1], [0], [0], [1], [0, 0, 1, 1], [], []>} : vector<64x16xf32>, vector<16x16xf32>, vector<64x16xf32> -> vector<64x16xf32>
    %c10 = arith.constant 10 : index
    %c0_33 = arith.constant 0 : index
    %c0_34 = arith.constant 0 : index
    %32 = vector.load %arg2[%c10, %c0_33, %c0_34] : memref<14x16x16xf32, #tpu.memory_space<vmem>>, vector<1x16x16xf32>
    %33 = vector.shape_cast %32 : vector<1x16x16xf32> to vector<16x16xf32>
    %cst_35 = arith.constant dense<0.000000e+00> : vector<64x16xf32>
    %34 = tpu.matmul %0, %33, %cst_35 {dimension_numbers = #tpu.dot_dimension_numbers<[1], [0], [0], [1], [0, 0, 1, 1], [], []>} : vector<64x16xf32>, vector<16x16xf32>, vector<64x16xf32> -> vector<64x16xf32>
    %c11 = arith.constant 11 : index
    %c0_36 = arith.constant 0 : index
    %c0_37 = arith.constant 0 : index
    %35 = vector.load %arg2[%c11, %c0_36, %c0_37] : memref<14x16x16xf32, #tpu.memory_space<vmem>>, vector<1x16x16xf32>
    %36 = vector.shape_cast %35 : vector<1x16x16xf32> to vector<16x16xf32>
    %cst_38 = arith.constant dense<0.000000e+00> : vector<64x16xf32>
    %37 = tpu.matmul %0, %36, %cst_38 {dimension_numbers = #tpu.dot_dimension_numbers<[1], [0], [0], [1], [0, 0, 1, 1], [], []>} : vector<64x16xf32>, vector<16x16xf32>, vector<64x16xf32> -> vector<64x16xf32>
    %c12 = arith.constant 12 : index
    %c0_39 = arith.constant 0 : index
    %c0_40 = arith.constant 0 : index
    %38 = vector.load %arg2[%c12, %c0_39, %c0_40] : memref<14x16x16xf32, #tpu.memory_space<vmem>>, vector<1x16x16xf32>
    %39 = vector.shape_cast %38 : vector<1x16x16xf32> to vector<16x16xf32>
    %cst_41 = arith.constant dense<0.000000e+00> : vector<64x16xf32>
    %40 = tpu.matmul %0, %39, %cst_41 {dimension_numbers = #tpu.dot_dimension_numbers<[1], [0], [0], [1], [0, 0, 1, 1], [], []>} : vector<64x16xf32>, vector<16x16xf32>, vector<64x16xf32> -> vector<64x16xf32>
    %c13 = arith.constant 13 : index
    %c0_42 = arith.constant 0 : index
    %c0_43 = arith.constant 0 : index
    %41 = vector.load %arg2[%c13, %c0_42, %c0_43] : memref<14x16x16xf32, #tpu.memory_space<vmem>>, vector<1x16x16xf32>
    %42 = vector.shape_cast %41 : vector<1x16x16xf32> to vector<16x16xf32>
    %cst_44 = arith.constant dense<0.000000e+00> : vector<64x16xf32>
    %43 = tpu.matmul %0, %42, %cst_44 {dimension_numbers = #tpu.dot_dimension_numbers<[1], [0], [0], [1], [0, 0, 1, 1], [], []>} : vector<64x16xf32>, vector<16x16xf32>, vector<64x16xf32> -> vector<64x16xf32>
    %44 = tpu.concatenate %4, %7, %10, %13, %16, %19, %22, %25, %28, %31, %34, %37, %40, %43 in 0 : vector<64x16xf32>, vector<64x16xf32>, vector<64x16xf32>, vector<64x16xf32>, vector<64x16xf32>, vector<64x16xf32>, vector<64x16xf32>, vector<64x16xf32>, vector<64x16xf32>, vector<64x16xf32>, vector<64x16xf32>, vector<64x16xf32>, vector<64x16xf32>, vector<64x16xf32> -> vector<896x16xf32>
    %cst_45 = arith.constant dense<0.000000e+00> : vector<896x64xf32>
    %45 = tpu.matmul %44, %1, %cst_45 {dimension_numbers = #tpu.dot_dimension_numbers<[1], [0], [0], [1], [0, 0, 1, 1], [], []>} : vector<896x16xf32>, vector<16x64xf32>, vector<896x64xf32> -> vector<896x64xf32>
    %46 = vector.shape_cast %45 : vector<896x64xf32> to vector<14x64x64xf32>
    %c0_46 = arith.constant 0 : index
    %c0_47 = arith.constant 0 : index
    %c0_48 = arith.constant 0 : index
    %47 = vector.load %arg5[%c0_46, %c0_47, %c0_48] : memref<14x64x64xf32, #tpu.memory_space<vmem>>, vector<14x64x64xf32>
    tpu.vector_store %arg5[%c0_46, %c0_47, %c0_48], %46 {strides = array<i32>} : memref<14x64x64xf32, #tpu.memory_space<vmem>>, vector<14x64x64xf32>,
    return
  }
  func.func @transform_0(%arg0: i32, %arg1: i32) -> (i32, i32, i32) {
    %c0_i32 = arith.constant 0 : i32
    %c0_i32_0 = arith.constant 0 : i32
    %c0_i32_1 = arith.constant 0 : i32
    return %arg0, %c0_i32, %c0_i32_0 : i32, i32, i32
  }
  func.func @transform_1(%arg0: i32, %arg1: i32) -> (i32, i32) {
    %c0_i32 = arith.constant 0 : i32
    %c0_i32_0 = arith.constant 0 : i32
    return %arg1, %c0_i32 : i32, i32
  }
  func.func @transform_2(%arg0: i32, %arg1: i32) -> (i32, i32) {
    %c0_i32 = arith.constant 0 : i32
    %c0_i32_0 = arith.constant 0 : i32
    %c0_i32_1 = arith.constant 0 : i32
    return %c0_i32, %c0_i32_0 : i32, i32
  }
  func.func @transform_3(%arg0: i32, %arg1: i32) -> (i32, i32, i32) {
    %c0_i32 = arith.constant 0 : i32
    %c0_i32_0 = arith.constant 0 : i32
    return %arg0, %arg1, %c0_i32 : i32, i32, i32
  }
}

module attributes {stable_mosaic.version = 11 : i64} {
  func.func @kernel(%arg0: i32, %arg1: i32, %arg2: memref<1x18x18x32xbf16, #tpu.memory_space<vmem>>, %arg3: memref<9x32x256xbf16, #tpu.memory_space<vmem>>, %arg4: memref<1x256xf32, #tpu.memory_space<vmem>>, %arg5: memref<1x256xf32, #tpu.memory_space<vmem>>, %arg6: memref<256x128xbf16, #tpu.memory_space<vmem>>, %arg7: memref<1x128xf32, #tpu.memory_space<vmem>>, %arg8: memref<1x16x16x128xf32, #tpu.memory_space<vmem>>, %arg9: memref<256x256xf32, #tpu.memory_space<vmem>>) attributes {dimension_semantics = [#tpu.dimension_semantics<parallel>, #tpu.dimension_semantics<parallel>], iteration_bounds = array<i64: 2, 1>, scalar_prefetch = 0 : i64, scratch_operands = 1 : i64, tpu.core_type = #tpu.core_type<tc>, window_params = [{transform_indices = @transform_0, window_bounds = array<i64: 1, 18, 18, 32>}, {pipeline_mode = #tpu.pipeline_mode<synchronous>, transform_indices = @transform_1, window_bounds = array<i64: 9, 32, 256>}, {pipeline_mode = #tpu.pipeline_mode<synchronous>, transform_indices = @transform_2, window_bounds = array<i64: 1, 256>}, {pipeline_mode = #tpu.pipeline_mode<synchronous>, transform_indices = @transform_3, window_bounds = array<i64: 1, 256>}, {pipeline_mode = #tpu.pipeline_mode<synchronous>, transform_indices = @transform_4, window_bounds = array<i64: 256, 128>}, {pipeline_mode = #tpu.pipeline_mode<synchronous>, transform_indices = @transform_5, window_bounds = array<i64: 1, 128>}, {transform_indices = @transform_6, window_bounds = array<i64: 1, 16, 16, 128>}]} {
    %c16_i32 = arith.constant 16 : i32
    %0 = arith.muli %arg1, %c16_i32 : i32
    %1 = tpu.assume_multiple %0, 16 : i32
    %c0_i32 = arith.constant 0 : i32
    %2 = arith.addi %1, %c0_i32 : i32
    %c0 = arith.constant 0 : index
    %3 = arith.index_cast %2 : i32 to index
    %c0_0 = arith.constant 0 : index
    %c0_1 = arith.constant 0 : index
    %4 = vector.load %arg2[%c0, %3, %c0_0, %c0_1] : memref<1x18x18x32xbf16, #tpu.memory_space<vmem>>, vector<1x16x16x32xbf16>
    %5 = vector.shape_cast %4 : vector<1x16x16x32xbf16> to vector<16x16x32xbf16>
    %6 = vector.shape_cast %5 : vector<16x16x32xbf16> to vector<256x32xbf16>
    %c0_2 = arith.constant 0 : index
    %c0_3 = arith.constant 0 : index
    %c0_4 = arith.constant 0 : index
    %7 = vector.load %arg3[%c0_2, %c0_3, %c0_4] : memref<9x32x256xbf16, #tpu.memory_space<vmem>>, vector<1x32x256xbf16>
    %8 = vector.shape_cast %7 : vector<1x32x256xbf16> to vector<32x256xbf16>
    %cst = arith.constant dense<0.000000e+00> : vector<256x256xf32>
    %9 = tpu.matmul %6, %8, %cst {dimension_numbers = #tpu.dot_dimension_numbers<[1], [0], [0], [1], [0, 0, 1, 1], [], []>} : vector<256x32xbf16>, vector<32x256xbf16>, vector<256x256xf32> -> vector<256x256xf32>
    %c0_5 = arith.constant 0 : index
    %c0_6 = arith.constant 0 : index
    %10 = vector.load %arg9[%c0_5, %c0_6] : memref<256x256xf32, #tpu.memory_space<vmem>>, vector<256x256xf32>
    tpu.vector_store %arg9[%c0_5, %c0_6], %9 {strides = array<i32>} : memref<256x256xf32, #tpu.memory_space<vmem>>, vector<256x256xf32>,
    %c0_i32_7 = arith.constant 0 : i32
    %11 = arith.addi %1, %c0_i32_7 : i32
    %c0_8 = arith.constant 0 : index
    %12 = arith.index_cast %11 : i32 to index
    %c1 = arith.constant 1 : index
    %c0_9 = arith.constant 0 : index
    %13 = vector.load %arg2[%c0_8, %12, %c1, %c0_9] : memref<1x18x18x32xbf16, #tpu.memory_space<vmem>>, vector<1x16x16x32xbf16>
    %14 = vector.shape_cast %13 : vector<1x16x16x32xbf16> to vector<16x16x32xbf16>
    %15 = vector.shape_cast %14 : vector<16x16x32xbf16> to vector<256x32xbf16>
    %c1_10 = arith.constant 1 : index
    %c0_11 = arith.constant 0 : index
    %c0_12 = arith.constant 0 : index
    %16 = vector.load %arg3[%c1_10, %c0_11, %c0_12] : memref<9x32x256xbf16, #tpu.memory_space<vmem>>, vector<1x32x256xbf16>
    %17 = vector.shape_cast %16 : vector<1x32x256xbf16> to vector<32x256xbf16>
    %cst_13 = arith.constant dense<0.000000e+00> : vector<256x256xf32>
    %18 = tpu.matmul %15, %17, %cst_13 {dimension_numbers = #tpu.dot_dimension_numbers<[1], [0], [0], [1], [0, 0, 1, 1], [], []>} : vector<256x32xbf16>, vector<32x256xbf16>, vector<256x256xf32> -> vector<256x256xf32>
    %c0_14 = arith.constant 0 : index
    %c0_15 = arith.constant 0 : index
    %19 = vector.load %arg9[%c0_14, %c0_15] : memref<256x256xf32, #tpu.memory_space<vmem>>, vector<256x256xf32>
    %20 = arith.addf %19, %18 : vector<256x256xf32>
    %c0_16 = arith.constant 0 : index
    %c0_17 = arith.constant 0 : index
    %21 = vector.load %arg9[%c0_16, %c0_17] : memref<256x256xf32, #tpu.memory_space<vmem>>, vector<256x256xf32>
    tpu.vector_store %arg9[%c0_16, %c0_17], %20 {strides = array<i32>} : memref<256x256xf32, #tpu.memory_space<vmem>>, vector<256x256xf32>,
    %c0_i32_18 = arith.constant 0 : i32
    %22 = arith.addi %1, %c0_i32_18 : i32
    %c0_19 = arith.constant 0 : index
    %23 = arith.index_cast %22 : i32 to index
    %c2 = arith.constant 2 : index
    %c0_20 = arith.constant 0 : index
    %24 = vector.load %arg2[%c0_19, %23, %c2, %c0_20] : memref<1x18x18x32xbf16, #tpu.memory_space<vmem>>, vector<1x16x16x32xbf16>
    %25 = vector.shape_cast %24 : vector<1x16x16x32xbf16> to vector<16x16x32xbf16>
    %26 = vector.shape_cast %25 : vector<16x16x32xbf16> to vector<256x32xbf16>
    %c2_21 = arith.constant 2 : index
    %c0_22 = arith.constant 0 : index
    %c0_23 = arith.constant 0 : index
    %27 = vector.load %arg3[%c2_21, %c0_22, %c0_23] : memref<9x32x256xbf16, #tpu.memory_space<vmem>>, vector<1x32x256xbf16>
    %28 = vector.shape_cast %27 : vector<1x32x256xbf16> to vector<32x256xbf16>
    %cst_24 = arith.constant dense<0.000000e+00> : vector<256x256xf32>
    %29 = tpu.matmul %26, %28, %cst_24 {dimension_numbers = #tpu.dot_dimension_numbers<[1], [0], [0], [1], [0, 0, 1, 1], [], []>} : vector<256x32xbf16>, vector<32x256xbf16>, vector<256x256xf32> -> vector<256x256xf32>
    %c0_25 = arith.constant 0 : index
    %c0_26 = arith.constant 0 : index
    %30 = vector.load %arg9[%c0_25, %c0_26] : memref<256x256xf32, #tpu.memory_space<vmem>>, vector<256x256xf32>
    %31 = arith.addf %30, %29 : vector<256x256xf32>
    %c0_27 = arith.constant 0 : index
    %c0_28 = arith.constant 0 : index
    %32 = vector.load %arg9[%c0_27, %c0_28] : memref<256x256xf32, #tpu.memory_space<vmem>>, vector<256x256xf32>
    tpu.vector_store %arg9[%c0_27, %c0_28], %31 {strides = array<i32>} : memref<256x256xf32, #tpu.memory_space<vmem>>, vector<256x256xf32>,
    %c1_i32 = arith.constant 1 : i32
    %33 = arith.addi %1, %c1_i32 : i32
    %c0_29 = arith.constant 0 : index
    %34 = arith.index_cast %33 : i32 to index
    %c0_30 = arith.constant 0 : index
    %c0_31 = arith.constant 0 : index
    %35 = vector.load %arg2[%c0_29, %34, %c0_30, %c0_31] : memref<1x18x18x32xbf16, #tpu.memory_space<vmem>>, vector<1x16x16x32xbf16>
    %36 = vector.shape_cast %35 : vector<1x16x16x32xbf16> to vector<16x16x32xbf16>
    %37 = vector.shape_cast %36 : vector<16x16x32xbf16> to vector<256x32xbf16>
    %c3 = arith.constant 3 : index
    %c0_32 = arith.constant 0 : index
    %c0_33 = arith.constant 0 : index
    %38 = vector.load %arg3[%c3, %c0_32, %c0_33] : memref<9x32x256xbf16, #tpu.memory_space<vmem>>, vector<1x32x256xbf16>
    %39 = vector.shape_cast %38 : vector<1x32x256xbf16> to vector<32x256xbf16>
    %cst_34 = arith.constant dense<0.000000e+00> : vector<256x256xf32>
    %40 = tpu.matmul %37, %39, %cst_34 {dimension_numbers = #tpu.dot_dimension_numbers<[1], [0], [0], [1], [0, 0, 1, 1], [], []>} : vector<256x32xbf16>, vector<32x256xbf16>, vector<256x256xf32> -> vector<256x256xf32>
    %c0_35 = arith.constant 0 : index
    %c0_36 = arith.constant 0 : index
    %41 = vector.load %arg9[%c0_35, %c0_36] : memref<256x256xf32, #tpu.memory_space<vmem>>, vector<256x256xf32>
    %42 = arith.addf %41, %40 : vector<256x256xf32>
    %c0_37 = arith.constant 0 : index
    %c0_38 = arith.constant 0 : index
    %43 = vector.load %arg9[%c0_37, %c0_38] : memref<256x256xf32, #tpu.memory_space<vmem>>, vector<256x256xf32>
    tpu.vector_store %arg9[%c0_37, %c0_38], %42 {strides = array<i32>} : memref<256x256xf32, #tpu.memory_space<vmem>>, vector<256x256xf32>,
    %c1_i32_39 = arith.constant 1 : i32
    %44 = arith.addi %1, %c1_i32_39 : i32
    %c0_40 = arith.constant 0 : index
    %45 = arith.index_cast %44 : i32 to index
    %c1_41 = arith.constant 1 : index
    %c0_42 = arith.constant 0 : index
    %46 = vector.load %arg2[%c0_40, %45, %c1_41, %c0_42] : memref<1x18x18x32xbf16, #tpu.memory_space<vmem>>, vector<1x16x16x32xbf16>
    %47 = vector.shape_cast %46 : vector<1x16x16x32xbf16> to vector<16x16x32xbf16>
    %48 = vector.shape_cast %47 : vector<16x16x32xbf16> to vector<256x32xbf16>
    %c4 = arith.constant 4 : index
    %c0_43 = arith.constant 0 : index
    %c0_44 = arith.constant 0 : index
    %49 = vector.load %arg3[%c4, %c0_43, %c0_44] : memref<9x32x256xbf16, #tpu.memory_space<vmem>>, vector<1x32x256xbf16>
    %50 = vector.shape_cast %49 : vector<1x32x256xbf16> to vector<32x256xbf16>
    %cst_45 = arith.constant dense<0.000000e+00> : vector<256x256xf32>
    %51 = tpu.matmul %48, %50, %cst_45 {dimension_numbers = #tpu.dot_dimension_numbers<[1], [0], [0], [1], [0, 0, 1, 1], [], []>} : vector<256x32xbf16>, vector<32x256xbf16>, vector<256x256xf32> -> vector<256x256xf32>
    %c0_46 = arith.constant 0 : index
    %c0_47 = arith.constant 0 : index
    %52 = vector.load %arg9[%c0_46, %c0_47] : memref<256x256xf32, #tpu.memory_space<vmem>>, vector<256x256xf32>
    %53 = arith.addf %52, %51 : vector<256x256xf32>
    %c0_48 = arith.constant 0 : index
    %c0_49 = arith.constant 0 : index
    %54 = vector.load %arg9[%c0_48, %c0_49] : memref<256x256xf32, #tpu.memory_space<vmem>>, vector<256x256xf32>
    tpu.vector_store %arg9[%c0_48, %c0_49], %53 {strides = array<i32>} : memref<256x256xf32, #tpu.memory_space<vmem>>, vector<256x256xf32>,
    %c1_i32_50 = arith.constant 1 : i32
    %55 = arith.addi %1, %c1_i32_50 : i32
    %c0_51 = arith.constant 0 : index
    %56 = arith.index_cast %55 : i32 to index
    %c2_52 = arith.constant 2 : index
    %c0_53 = arith.constant 0 : index
    %57 = vector.load %arg2[%c0_51, %56, %c2_52, %c0_53] : memref<1x18x18x32xbf16, #tpu.memory_space<vmem>>, vector<1x16x16x32xbf16>
    %58 = vector.shape_cast %57 : vector<1x16x16x32xbf16> to vector<16x16x32xbf16>
    %59 = vector.shape_cast %58 : vector<16x16x32xbf16> to vector<256x32xbf16>
    %c5 = arith.constant 5 : index
    %c0_54 = arith.constant 0 : index
    %c0_55 = arith.constant 0 : index
    %60 = vector.load %arg3[%c5, %c0_54, %c0_55] : memref<9x32x256xbf16, #tpu.memory_space<vmem>>, vector<1x32x256xbf16>
    %61 = vector.shape_cast %60 : vector<1x32x256xbf16> to vector<32x256xbf16>
    %cst_56 = arith.constant dense<0.000000e+00> : vector<256x256xf32>
    %62 = tpu.matmul %59, %61, %cst_56 {dimension_numbers = #tpu.dot_dimension_numbers<[1], [0], [0], [1], [0, 0, 1, 1], [], []>} : vector<256x32xbf16>, vector<32x256xbf16>, vector<256x256xf32> -> vector<256x256xf32>
    %c0_57 = arith.constant 0 : index
    %c0_58 = arith.constant 0 : index
    %63 = vector.load %arg9[%c0_57, %c0_58] : memref<256x256xf32, #tpu.memory_space<vmem>>, vector<256x256xf32>
    %64 = arith.addf %63, %62 : vector<256x256xf32>
    %c0_59 = arith.constant 0 : index
    %c0_60 = arith.constant 0 : index
    %65 = vector.load %arg9[%c0_59, %c0_60] : memref<256x256xf32, #tpu.memory_space<vmem>>, vector<256x256xf32>
    tpu.vector_store %arg9[%c0_59, %c0_60], %64 {strides = array<i32>} : memref<256x256xf32, #tpu.memory_space<vmem>>, vector<256x256xf32>,
    %c2_i32 = arith.constant 2 : i32
    %66 = arith.addi %1, %c2_i32 : i32
    %c0_61 = arith.constant 0 : index
    %67 = arith.index_cast %66 : i32 to index
    %c0_62 = arith.constant 0 : index
    %c0_63 = arith.constant 0 : index
    %68 = vector.load %arg2[%c0_61, %67, %c0_62, %c0_63] : memref<1x18x18x32xbf16, #tpu.memory_space<vmem>>, vector<1x16x16x32xbf16>
    %69 = vector.shape_cast %68 : vector<1x16x16x32xbf16> to vector<16x16x32xbf16>
    %70 = vector.shape_cast %69 : vector<16x16x32xbf16> to vector<256x32xbf16>
    %c6 = arith.constant 6 : index
    %c0_64 = arith.constant 0 : index
    %c0_65 = arith.constant 0 : index
    %71 = vector.load %arg3[%c6, %c0_64, %c0_65] : memref<9x32x256xbf16, #tpu.memory_space<vmem>>, vector<1x32x256xbf16>
    %72 = vector.shape_cast %71 : vector<1x32x256xbf16> to vector<32x256xbf16>
    %cst_66 = arith.constant dense<0.000000e+00> : vector<256x256xf32>
    %73 = tpu.matmul %70, %72, %cst_66 {dimension_numbers = #tpu.dot_dimension_numbers<[1], [0], [0], [1], [0, 0, 1, 1], [], []>} : vector<256x32xbf16>, vector<32x256xbf16>, vector<256x256xf32> -> vector<256x256xf32>
    %c0_67 = arith.constant 0 : index
    %c0_68 = arith.constant 0 : index
    %74 = vector.load %arg9[%c0_67, %c0_68] : memref<256x256xf32, #tpu.memory_space<vmem>>, vector<256x256xf32>
    %75 = arith.addf %74, %73 : vector<256x256xf32>
    %c0_69 = arith.constant 0 : index
    %c0_70 = arith.constant 0 : index
    %76 = vector.load %arg9[%c0_69, %c0_70] : memref<256x256xf32, #tpu.memory_space<vmem>>, vector<256x256xf32>
    tpu.vector_store %arg9[%c0_69, %c0_70], %75 {strides = array<i32>} : memref<256x256xf32, #tpu.memory_space<vmem>>, vector<256x256xf32>,
    %c2_i32_71 = arith.constant 2 : i32
    %77 = arith.addi %1, %c2_i32_71 : i32
    %c0_72 = arith.constant 0 : index
    %78 = arith.index_cast %77 : i32 to index
    %c1_73 = arith.constant 1 : index
    %c0_74 = arith.constant 0 : index
    %79 = vector.load %arg2[%c0_72, %78, %c1_73, %c0_74] : memref<1x18x18x32xbf16, #tpu.memory_space<vmem>>, vector<1x16x16x32xbf16>
    %80 = vector.shape_cast %79 : vector<1x16x16x32xbf16> to vector<16x16x32xbf16>
    %81 = vector.shape_cast %80 : vector<16x16x32xbf16> to vector<256x32xbf16>
    %c7 = arith.constant 7 : index
    %c0_75 = arith.constant 0 : index
    %c0_76 = arith.constant 0 : index
    %82 = vector.load %arg3[%c7, %c0_75, %c0_76] : memref<9x32x256xbf16, #tpu.memory_space<vmem>>, vector<1x32x256xbf16>
    %83 = vector.shape_cast %82 : vector<1x32x256xbf16> to vector<32x256xbf16>
    %cst_77 = arith.constant dense<0.000000e+00> : vector<256x256xf32>
    %84 = tpu.matmul %81, %83, %cst_77 {dimension_numbers = #tpu.dot_dimension_numbers<[1], [0], [0], [1], [0, 0, 1, 1], [], []>} : vector<256x32xbf16>, vector<32x256xbf16>, vector<256x256xf32> -> vector<256x256xf32>
    %c0_78 = arith.constant 0 : index
    %c0_79 = arith.constant 0 : index
    %85 = vector.load %arg9[%c0_78, %c0_79] : memref<256x256xf32, #tpu.memory_space<vmem>>, vector<256x256xf32>
    %86 = arith.addf %85, %84 : vector<256x256xf32>
    %c0_80 = arith.constant 0 : index
    %c0_81 = arith.constant 0 : index
    %87 = vector.load %arg9[%c0_80, %c0_81] : memref<256x256xf32, #tpu.memory_space<vmem>>, vector<256x256xf32>
    tpu.vector_store %arg9[%c0_80, %c0_81], %86 {strides = array<i32>} : memref<256x256xf32, #tpu.memory_space<vmem>>, vector<256x256xf32>,
    %c2_i32_82 = arith.constant 2 : i32
    %88 = arith.addi %1, %c2_i32_82 : i32
    %c0_83 = arith.constant 0 : index
    %89 = arith.index_cast %88 : i32 to index
    %c2_84 = arith.constant 2 : index
    %c0_85 = arith.constant 0 : index
    %90 = vector.load %arg2[%c0_83, %89, %c2_84, %c0_85] : memref<1x18x18x32xbf16, #tpu.memory_space<vmem>>, vector<1x16x16x32xbf16>
    %91 = vector.shape_cast %90 : vector<1x16x16x32xbf16> to vector<16x16x32xbf16>
    %92 = vector.shape_cast %91 : vector<16x16x32xbf16> to vector<256x32xbf16>
    %c8 = arith.constant 8 : index
    %c0_86 = arith.constant 0 : index
    %c0_87 = arith.constant 0 : index
    %93 = vector.load %arg3[%c8, %c0_86, %c0_87] : memref<9x32x256xbf16, #tpu.memory_space<vmem>>, vector<1x32x256xbf16>
    %94 = vector.shape_cast %93 : vector<1x32x256xbf16> to vector<32x256xbf16>
    %cst_88 = arith.constant dense<0.000000e+00> : vector<256x256xf32>
    %95 = tpu.matmul %92, %94, %cst_88 {dimension_numbers = #tpu.dot_dimension_numbers<[1], [0], [0], [1], [0, 0, 1, 1], [], []>} : vector<256x32xbf16>, vector<32x256xbf16>, vector<256x256xf32> -> vector<256x256xf32>
    %c0_89 = arith.constant 0 : index
    %c0_90 = arith.constant 0 : index
    %96 = vector.load %arg9[%c0_89, %c0_90] : memref<256x256xf32, #tpu.memory_space<vmem>>, vector<256x256xf32>
    %97 = arith.addf %96, %95 : vector<256x256xf32>
    %c0_91 = arith.constant 0 : index
    %c0_92 = arith.constant 0 : index
    %98 = vector.load %arg9[%c0_91, %c0_92] : memref<256x256xf32, #tpu.memory_space<vmem>>, vector<256x256xf32>
    tpu.vector_store %arg9[%c0_91, %c0_92], %97 {strides = array<i32>} : memref<256x256xf32, #tpu.memory_space<vmem>>, vector<256x256xf32>,
    %c0_93 = arith.constant 0 : index
    %c0_94 = arith.constant 0 : index
    %99 = vector.load %arg9[%c0_93, %c0_94] : memref<256x256xf32, #tpu.memory_space<vmem>>, vector<256x256xf32>
    %c0_95 = arith.constant 0 : index
    %c0_96 = arith.constant 0 : index
    %100 = vector.load %arg4[%c0_95, %c0_96] : memref<1x256xf32, #tpu.memory_space<vmem>>, vector<1x256xf32>
    %101 = vector.broadcast %100 : vector<1x256xf32> to vector<256x256xf32>
    %102 = arith.mulf %99, %101 : vector<256x256xf32>
    %c0_97 = arith.constant 0 : index
    %c0_98 = arith.constant 0 : index
    %103 = vector.load %arg5[%c0_97, %c0_98] : memref<1x256xf32, #tpu.memory_space<vmem>>, vector<1x256xf32>
    %104 = vector.broadcast %103 : vector<1x256xf32> to vector<256x256xf32>
    %105 = arith.addf %102, %104 : vector<256x256xf32>
    %cst_99 = arith.constant 0.000000e+00 : f32
    %106 = vector.broadcast %cst_99 : f32 to vector<256x256xf32>
    %107 = arith.maximumf %105, %106 : vector<256x256xf32>
    %108 = arith.truncf %107 : vector<256x256xf32> to vector<256x256xbf16>
    %c0_100 = arith.constant 0 : index
    %c0_101 = arith.constant 0 : index
    %109 = vector.load %arg6[%c0_100, %c0_101] : memref<256x128xbf16, #tpu.memory_space<vmem>>, vector<256x128xbf16>
    %cst_102 = arith.constant dense<0.000000e+00> : vector<256x128xf32>
    %110 = tpu.matmul %108, %109, %cst_102 {dimension_numbers = #tpu.dot_dimension_numbers<[1], [0], [0], [1], [0, 0, 1, 1], [], []>} : vector<256x256xbf16>, vector<256x128xbf16>, vector<256x128xf32> -> vector<256x128xf32>
    %c0_103 = arith.constant 0 : index
    %c0_104 = arith.constant 0 : index
    %111 = vector.load %arg7[%c0_103, %c0_104] : memref<1x128xf32, #tpu.memory_space<vmem>>, vector<1x128xf32>
    %112 = vector.broadcast %111 : vector<1x128xf32> to vector<256x128xf32>
    %113 = arith.addf %110, %112 : vector<256x128xf32>
    %114 = vector.shape_cast %113 : vector<256x128xf32> to vector<16x16x128xf32>
    %c0_105 = arith.constant 0 : index
    %c0_106 = arith.constant 0 : index
    %c0_107 = arith.constant 0 : index
    %c0_108 = arith.constant 0 : index
    %115 = vector.load %arg8[%c0_105, %c0_106, %c0_107, %c0_108] : memref<1x16x16x128xf32, #tpu.memory_space<vmem>>, vector<1x16x16x128xf32>
    %116 = vector.shape_cast %115 : vector<1x16x16x128xf32> to vector<16x16x128xf32>
    %117 = vector.shape_cast %114 : vector<16x16x128xf32> to vector<1x16x16x128xf32>
    tpu.vector_store %arg8[%c0_105, %c0_106, %c0_107, %c0_108], %117 {strides = array<i32>} : memref<1x16x16x128xf32, #tpu.memory_space<vmem>>, vector<1x16x16x128xf32>,
    return
  }
  func.func @transform_0(%arg0: i32, %arg1: i32) -> (i32, i32, i32, i32) {
    %c0_i32 = arith.constant 0 : i32
    %c0_i32_0 = arith.constant 0 : i32
    %c0_i32_1 = arith.constant 0 : i32
    %c0_i32_2 = arith.constant 0 : i32
    return %arg0, %c0_i32, %c0_i32_0, %c0_i32_1 : i32, i32, i32, i32
  }
  func.func @transform_1(%arg0: i32, %arg1: i32) -> (i32, i32, i32) {
    %c0_i32 = arith.constant 0 : i32
    %c0_i32_0 = arith.constant 0 : i32
    %c0_i32_1 = arith.constant 0 : i32
    %c0_i32_2 = arith.constant 0 : i32
    return %c0_i32, %c0_i32_0, %c0_i32_1 : i32, i32, i32
  }
  func.func @transform_2(%arg0: i32, %arg1: i32) -> (i32, i32) {
    %c0_i32 = arith.constant 0 : i32
    %c0_i32_0 = arith.constant 0 : i32
    %c0_i32_1 = arith.constant 0 : i32
    return %c0_i32, %c0_i32_0 : i32, i32
  }
  func.func @transform_3(%arg0: i32, %arg1: i32) -> (i32, i32) {
    %c0_i32 = arith.constant 0 : i32
    %c0_i32_0 = arith.constant 0 : i32
    %c0_i32_1 = arith.constant 0 : i32
    return %c0_i32, %c0_i32_0 : i32, i32
  }
  func.func @transform_4(%arg0: i32, %arg1: i32) -> (i32, i32) {
    %c0_i32 = arith.constant 0 : i32
    %c0_i32_0 = arith.constant 0 : i32
    %c0_i32_1 = arith.constant 0 : i32
    return %c0_i32, %c0_i32_0 : i32, i32
  }
  func.func @transform_5(%arg0: i32, %arg1: i32) -> (i32, i32) {
    %c0_i32 = arith.constant 0 : i32
    %c0_i32_0 = arith.constant 0 : i32
    %c0_i32_1 = arith.constant 0 : i32
    return %c0_i32, %c0_i32_0 : i32, i32
  }
  func.func @transform_6(%arg0: i32, %arg1: i32) -> (i32, i32, i32, i32) {
    %c0_i32 = arith.constant 0 : i32
    %c0_i32_0 = arith.constant 0 : i32
    %c0_i32_1 = arith.constant 0 : i32
    return %arg0, %arg1, %c0_i32, %c0_i32_0 : i32, i32, i32, i32
  }
}

</mosaic_0001>

<llo_original>
// kernel: auxiliary_psp_forward.3
$region0: #{auxiliary_psp_forward.3}
  #allocation0 [shape = 'u32[]', space=smem, size = 0x4, offset = 0x4, fixed_abs, tag = 'smem constant byte address 0x4 - core index']
  #allocation1 [shape = 'u32[72,128]{1,0:T(1,128)}', space=vmem, size = 0x9000, scoped, tag = 'internal scratch']
  %s0 = inlined_call_operand.vmem [shape: f32[42,16,16], index: 0, kind: input, shape index: {}]
  %s1 = inlined_call_operand.vmem [shape: f32[64,16], index: 1, kind: input, shape index: {}]
  %s2 = inlined_call_operand.vmem [shape: f32[16,64], index: 2, kind: input, shape index: {}]
  %s3 = inlined_call_operand.hbm [shape: f32[42,64,64], index: 3, kind: output, shape index: {}]
  %s4 = sld [smem:[#allocation0]]
  $region45: #{auxiliary_psp_forward.3} parent=0
    _
  %s6 = ssub.s32 1, %s4
  %s7 = scalar_select 0, %s6, %s4
  $region1: #{auxiliary_psp_forward.3} parent=0
    #allocation2 [shape = 'u8[917504]{0}', space=vmem, size = 0xe0000, scoped, tag = 'output window, operand 0']
    #allocation3 [shape = 's32[2]{0}', space=sflag, size = 0x8, scoped, tag = 'scoped memory for auxiliary_psp_forward.3']
    %8 = vsyncpa [#allocation3], 0
    %s9 = scalar_lea.sflag [#allocation3], 1
    %10 = vsyncpa %s9, 0
    loop: start=0, step=1, limit=5
    $region2: #{auxiliary_psp_forward.3} parent=1 // loop_pre_header
      _
    $region3: #{auxiliary_psp_forward.3} parent=1 // loop_header
      %s12 = sphi 0, %s16
      %p13 = scmp.ge.s32.totalorder %s12, 5
      %s19 = sphi 0, %s31
      %s20 = sphi 0, %s27
      %s21 = sphi 0, %s19
      %s22 = sphi 0, %s20
      %s23 = sphi 0, %s21
      %s24 = sphi 0, %s22
      %s34 = sphi 0, %s36
      %s37 = sphi 0, %s34
      %s38 = sphi 0, %s37
      %s54 = sphi 0, %s38
      %s60 = sphi 0, %s62
      %s63 = sphi 0, %s60
      %s64 = sphi 0, %s63
      %s80 = sphi 0, %s64
      %s84 = sphi 0, %s84
      %s86 = sphi 0, %s84
      %s87 = sphi 0, %s86
      %s101 = sphi 0, %s87
      %s109 = sphi 0, %s111
      %s112 = sphi 0, %s109
      %s113 = sphi 0, %s112
      %s129 = sphi 0, %s113
    $region4: #{auxiliary_psp_forward.3} parent=1 // loop_header_branch
      %15 = sbr.rel (%p13) target = $region8
    $region5: #{auxiliary_psp_forward.3} parent=1 // loop_body
      %s17 = ssub.s32 %s12, 1
      %s18 = ssub.s32 %s12, 2
      %s25 = sadd.s32 1, %s20
      %p26 = scmp.ge.s32.totalorder %s25, 1
      %s27 = scalar_select %p26, 0, %s25
      %s28 = sadd.s32 1, %s19
      %s29 = scalar_select %p26, %s28, %s19
      %p30 = scmp.ge.s32.totalorder %s29, 3
      %s31 = scalar_select %p30, 0, %s29
      %s32 = ssub.s32 %s19, %s31
      %p33 = scmp.eq.s32.totalorder %s32, 0
      %s35 = sadd.s32 %s34, 1
      %s36 = scalar_select %p33, %s34, %s35
      %p39 = pneg %p33
      %p40 = scmp.eq.s32.totalorder %s12, 2
      %p41 = por %p39, %p40
      %p42 = scmp.ne.s32.totalorder %s34, %s37
      %p43 = scmp.eq.s32.totalorder %s12, 0
      %p44 = por %p42, %p43
      %p45 = scmp.ne.s32.totalorder %s34, %s37
      %p46 = scmp.eq.s32.totalorder %s17, 2
      %p47 = por %p45, %p46
      %p48 = scmp.ne.s32.totalorder %s37, %s38
      %p49 = scmp.eq.s32.totalorder %s17, 0
      %p50 = por %p48, %p49
      %p51 = scmp.ne.s32.totalorder %s37, %s38
      %p52 = scmp.eq.s32.totalorder %s18, 2
      %p53 = por %p51, %p52
      %p55 = scmp.ne.s32.totalorder %s38, %s54
      %p56 = scmp.eq.s32.totalorder %s18, 0
      %p57 = por %p55, %p56
      %s58 = ssub.s32 %s20, %s27
      %p59 = scmp.eq.s32.totalorder %s58, 0
      %s61 = sadd.s32 %s60, 1
      %s62 = scalar_select %p59, %s60, %s61
      %p65 = pneg %p59
      %p66 = scmp.eq.s32.totalorder %s12, 2
      %p67 = por %p65, %p66
      %p68 = scmp.ne.s32.totalorder %s60, %s63
      %p69 = scmp.eq.s32.totalorder %s12, 0
      %p70 = por %p68, %p69
      %p71 = scmp.ne.s32.totalorder %s60, %s63
      %p72 = scmp.eq.s32.totalorder %s17, 2
      %p73 = por %p71, %p72
      %p74 = scmp.ne.s32.totalorder %s63, %s64
      %p75 = scmp.eq.s32.totalorder %s17, 0
      %p76 = por %p74, %p75
      %p77 = scmp.ne.s32.totalorder %s63, %s64
      %p78 = scmp.eq.s32.totalorder %s18, 2
      %p79 = por %p77, %p78
      %p81 = scmp.ne.s32.totalorder %s64, %s80
      %p82 = scmp.eq.s32.totalorder %s18, 0
      %p83 = por %p81, %p82
      %s85 = sadd.s32 %s84, 1
      %p88 = scmp.eq.s32.totalorder %s12, 2
      %p89 = scmp.ne.s32.totalorder %s84, %s86
      %p90 = scmp.eq.s32.totalorder %s12, 0
      %p91 = por %p89, %p90
      %p92 = scmp.ne.s32.totalorder %s84, %s86
      %p93 = scmp.eq.s32.totalorder %s17, 2
      %p94 = por %p92, %p93
      %p95 = scmp.ne.s32.totalorder %s86, %s87
      %p96 = scmp.eq.s32.totalorder %s17, 0
      %p97 = por %p95, %p96
      %p98 = scmp.ne.s32.totalorder %s86, %s87
      %p99 = scmp.eq.s32.totalorder %s18, 2
      %p100 = por %p98, %p99
      %p102 = scmp.ne.s32.totalorder %s87, %s101
      %p103 = scmp.eq.s32.totalorder %s18, 0
      %p104 = por %p102, %p103
      %s105 = ssub.s32 %s19, %s31
      %s106 = ssub.s32 %s20, %s27
      %s107 = sor.u32 %s105, %s106
      %p108 = scmp.eq.s32.totalorder %s107, 0
      %s110 = sadd.s32 %s109, 1
      %s111 = scalar_select %p108, %s109, %s110
      %p114 = pneg %p108
      %p115 = scmp.eq.s32.totalorder %s12, 2
      %p116 = por %p114, %p115
      %p117 = scmp.ne.s32.totalorder %s109, %s112
      %p118 = scmp.eq.s32.totalorder %s12, 0
      %p119 = por %p117, %p118
      %p120 = scmp.ne.s32.totalorder %s109, %s112
      %p121 = scmp.eq.s32.totalorder %s17, 2
      %p122 = por %p120, %p121
      %p123 = scmp.ne.s32.totalorder %s112, %s113
      %p124 = scmp.eq.s32.totalorder %s17, 0
      %p125 = por %p123, %p124
      %p126 = scmp.ne.s32.totalorder %s112, %s113
      %p127 = scmp.eq.s32.totalorder %s18, 2
      %p128 = por %p126, %p127
      %p130 = scmp.ne.s32.totalorder %s113, %s129
      %p131 = scmp.eq.s32.totalorder %s18, 0
      %p132 = por %p130, %p131
      %p133 = scmp.le.s32.totalorder 1, %s12
      %p134 = scmp.lt.s32.totalorder %s12, 4
      %p135 = pnand %p133, %p134
      %p136 = pneg %p135
      // Predicated region
      $region9: #{auxiliary_psp_forward.3} parent=5 // pred_check
        _
      $region10: #{auxiliary_psp_forward.3} parent=5 // pred_check_branch
        %138 = sbr.rel (%p135) target = $region12
      $region11: #{auxiliary_psp_forward.3} parent=5 // pred_region
        %s139 = ssub.s32 %s12, 1
        // Predicated region
        $region13: #{auxiliary_psp_forward.3} parent=11 // pred_check
          %p140 = pneg %p76
        $region14: #{auxiliary_psp_forward.3} parent=11 // pred_check_branch
          %142 = sbr.rel (%p140) target = $region16
        $region15: #{auxiliary_psp_forward.3} parent=11 // pred_region
          %s143 = smul.u32 8, %s22
          %p144 = scmp.lt.s32.totalorder %s143, 7
          %s145 = scalar_select %p144, %s143, 7
          %s146 = smul.addr %s145, 8
          %s147 = scalar_lea.vmem %s1, %s146
          %s148 = smul.u32 8, %s22
        $region16: #{auxiliary_psp_forward.3} parent=11 // pred_fallthru
          _
        // Predicated region
        $region17: #{auxiliary_psp_forward.3} parent=11 // pred_check
          %p149 = pneg %p97
        $region18: #{auxiliary_psp_forward.3} parent=11 // pred_check_branch
          %151 = sbr.rel (%p149) target = $region20
        $region19: #{auxiliary_psp_forward.3} parent=11 // pred_region
          _
        $region20: #{auxiliary_psp_forward.3} parent=11 // pred_fallthru
          _
      $region12: #{auxiliary_psp_forward.3} parent=5 // pred_fallthru
        _
      %p152 = scmp.lt.s32.totalorder %s12, 3
      // Predicated region
      $region21: #{auxiliary_psp_forward.3} parent=5 // pred_check
        %p153 = pneg %p152
      $region22: #{auxiliary_psp_forward.3} parent=5 // pred_check_branch
        %155 = sbr.rel (%p153) target = $region24
      $region23: #{auxiliary_psp_forward.3} parent=5 // pred_region
        // Predicated region
        $region25: #{auxiliary_psp_forward.3} parent=23 // pred_check
          %p156 = pneg %p44
        $region26: #{auxiliary_psp_forward.3} parent=23 // pred_check_branch
          %158 = sbr.rel (%p156) target = $region28
        $region27: #{auxiliary_psp_forward.3} parent=23 // pred_region
          %s159 = smul.u32 14, %s19
          %p160 = scmp.lt.s32.totalorder %s159, 41
          %s161 = scalar_select %p160, %s159, 41
          %s162 = smul.addr %s161, 2
          %s163 = smul.addr %s162, 8
          %s164 = scalar_lea.vmem %s0, %s163
          %s165 = smul.u32 14, %s19
        $region28: #{auxiliary_psp_forward.3} parent=23 // pred_fallthru
          _
      $region24: #{auxiliary_psp_forward.3} parent=5 // pred_fallthru
        _
      %p166 = scmp.le.s32.totalorder 1, %s12
      %p167 = scmp.lt.s32.totalorder %s12, 4
      %p168 = pnand %p166, %p167
      %p169 = pneg %p168
      // Predicated region
      $region29: #{auxiliary_psp_forward.3} parent=5 // pred_check
        _
      $region30: #{auxiliary_psp_forward.3} parent=5 // pred_check_branch
        %171 = sbr.rel (%p168) target = $region32
      $region31: #{auxiliary_psp_forward.3} parent=5 // pred_region
        %s172 = ssub.s32 %s12, 1
        %s173 = smul.u32 14, %s21
        %p174 = scmp.lt.s32.totalorder %s173, 41
        %s175 = scalar_select %p174, %s173, 41
        %s176 = smul.addr %s175, 2
        %s177 = smul.addr %s176, 8
        %s178 = scalar_lea.vmem %s0, %s177
        %p179 = pneg %p50
        %p180 = pneg %p47
        %s181 = smul.u32 8, %s22
        %p182 = scmp.lt.s32.totalorder %s181, 7
        %s183 = scalar_select %p182, %s181, 7
        %s184 = smul.addr %s183, 8
        %s185 = scalar_lea.vmem %s1, %s184
        %p186 = pneg %p76
        %p187 = pneg %p73
        %p188 = pneg %p97
        %p189 = pneg %p94
        %p190 = pneg %p125
        %p191 = pneg %p122
        %s192 = sand.u32 %s112, 1
        %s193 = scalar_lea.sflag [#allocation3], %s192
        %s194 = sand.u32 %s112, 1
        %s195 = smul.addr %s194, 896
        %s196 = scalar_lea.vmem [#allocation2], %s195
        %s197 = smul.u32 14, %s21
        %p198 = scmp.lt.s32.totalorder %s197, 41
        %s199 = scalar_select %p198, %s197, 41
        %s200 = smul.addr %s199, 2
        %s201 = smul.addr %s200, 8
        %s202 = scalar_lea.vmem %s0, %s201
        %s203 = smul.u32 14, %s21
        %s204 = smul.u32 8, %s22
        %p205 = scmp.lt.s32.totalorder %s204, 7
        %s206 = scalar_select %p205, %s204, 7
        %s207 = smul.addr %s206, 8
        %s208 = scalar_lea.vmem %s1, %s207
        %s209 = smul.u32 8, %s22
        %s210 = smul.u32 14, %s21
        %s211 = smul.u32 8, %s22
        %v212 = vld [vmem:[%s208] sm:$0xff]
        %v213 = vld [vmem:[%s208 + $0x8] sm:$0xff]
        %v214 = vld [vmem:[%s208 + $0x10] sm:$0xff]
        %v215 = vld [vmem:[%s208 + $0x18] sm:$0xff]
        %v216 = vld [vmem:[%s208 + $0x20] sm:$0xff]
        %v217 = vld [vmem:[%s208 + $0x28] sm:$0xff]
        %v218 = vld [vmem:[%s208 + $0x30] sm:$0xff]
        %v219 = vld [vmem:[%s208 + $0x38] sm:$0xff]
        %v220 = vld [vmem:[%s2] sm:$0xff]
        %v221 = vld [vmem:[%s2 + $0x8] sm:$0xff]
        %v222 = vld [vmem:[%s202] sm:$0xff]
        %v223 = vld [vmem:[%s202 + $0x8] sm:$0xff]
        %vm224 = vcmask 130048
        %v226 = vsel %vm224, %v212, 0
        %v229 = vsel %vm224, %v213, 0
        %v232 = vsel %vm224, %v214, 0
        %v235 = vsel %vm224, %v215, 0
        %v238 = vsel %vm224, %v216, 0
        %v241 = vsel %vm224, %v217, 0
        %v244 = vsel %vm224, %v218, 0
        %v247 = vsel %vm224, %v219, 0
        %249 = vmatpush.msra.mxu0 0.0
        %250 = vmatpush.msra.mxu0 0.0
        %251 = vmatpush.msra.mxu0 0.0
        %252 = vmatpush.msra.mxu0 0.0
        %253 = vmatpush.msra.mxu0 0.0
        %254 = vmatpush.msra.mxu0 0.0
        %255 = vmatpush.msra.mxu0 0.0
        %256 = vmatpush.msra.mxu0 0.0
        %257 = vmatpush.msra.mxu0 0.0
        %258 = vmatpush.msra.mxu0 0.0
        %259 = vmatpush.msra.mxu0 0.0
        %260 = vmatpush.msra.mxu0 0.0
        %261 = vmatpush.msra.mxu0 0.0
        %262 = vmatpush.msra.mxu0 0.0
        %263 = vmatpush.msra.mxu0 %v223
        %264 = vmatpush.msra.mxu0 %v222
        %265 = vmatmul.f32.gmra.mxu0 %v226
        %v266 = vpop.f32.mrf.mxu0
        %v267 = vadd.f32 0.0, %v266
        %268 = vmatmul.f32.gmra.mxu0 %v229
        %v269 = vpop.f32.mrf.mxu0
        %v270 = vadd.f32 0.0, %v269
        %271 = vmatmul.f32.gmra.mxu0 %v232
        %v272 = vpop.f32.mrf.mxu0
        %v273 = vadd.f32 0.0, %v272
        %274 = vmatmul.f32.gmra.mxu0 %v235
        %v275 = vpop.f32.mrf.mxu0
        %v276 = vadd.f32 0.0, %v275
        %277 = vmatmul.f32.gmra.mxu0 %v238
        %v278 = vpop.f32.mrf.mxu0
        %v279 = vadd.f32 0.0, %v278
        %280 = vmatmul.f32.gmra.mxu0 %v241
        %v281 = vpop.f32.mrf.mxu0
        %v282 = vadd.f32 0.0, %v281
        %283 = vmatmul.f32.gmra.mxu0 %v244
        %v284 = vpop.f32.mrf.mxu0
        %v285 = vadd.f32 0.0, %v284
        %286 = vmatmul.f32.gmra.mxu0 %v247
        %v287 = vpop.f32.mrf.mxu0
        %v288 = vadd.f32 0.0, %v287
        %289 = vdwg.mxu0
        %s290 = scalar_lea.vmem %s202, 16
        %v291 = vld [vmem:[%s290] sm:$0xff]
        %v292 = vld [vmem:[%s290 + $0x8] sm:$0xff]
        %293 = vmatpush.msra.mxu0 0.0
        %294 = vmatpush.msra.mxu0 0.0
        %295 = vmatpush.msra.mxu0 0.0
        %296 = vmatpush.msra.mxu0 0.0
        %297 = vmatpush.msra.mxu0 0.0
        %298 = vmatpush.msra.mxu0 0.0
        %299 = vmatpush.msra.mxu0 0.0
        %300 = vmatpush.msra.mxu0 0.0
        %301 = vmatpush.msra.mxu0 0.0
        %302 = vmatpush.msra.mxu0 0.0
        %303 = vmatpush.msra.mxu0 0.0
        %304 = vmatpush.msra.mxu0 0.0
        %305 = vmatpush.msra.mxu0 0.0
        %306 = vmatpush.msra.mxu0 0.0
        %307 = vmatpush.msra.mxu0 %v292
        %308 = vmatpush.msra.mxu0 %v291
        %309 = vmatmul.f32.gmra.mxu0 %v226
        %v310 = vpop.f32.mrf.mxu0
        %v311 = vadd.f32 0.0, %v310
        %312 = vmatmul.f32.gmra.mxu0 %v229
        %v313 = vpop.f32.mrf.mxu0
        %v314 = vadd.f32 0.0, %v313
        %315 = vmatmul.f32.gmra.mxu0 %v232
        %v316 = vpop.f32.mrf.mxu0
        %v317 = vadd.f32 0.0, %v316
        %318 = vmatmul.f32.gmra.mxu0 %v235
        %v319 = vpop.f32.mrf.mxu0
        %v320 = vadd.f32 0.0, %v319
        %321 = vmatmul.f32.gmra.mxu0 %v238
        %v322 = vpop.f32.mrf.mxu0
        %v323 = vadd.f32 0.0, %v322
        %324 = vmatmul.f32.gmra.mxu0 %v241
        %v325 = vpop.f32.mrf.mxu0
        %v326 = vadd.f32 0.0, %v325
        %327 = vmatmul.f32.gmra.mxu0 %v244
        %v328 = vpop.f32.mrf.mxu0
        %v329 = vadd.f32 0.0, %v328
        %330 = vmatmul.f32.gmra.mxu0 %v247
        %v331 = vpop.f32.mrf.mxu0
        %v332 = vadd.f32 0.0, %v331
        %333 = vdwg.mxu0
        %s334 = scalar_lea.vmem %s202, 32
        %v335 = vld [vmem:[%s334] sm:$0xff]
        %v336 = vld [vmem:[%s334 + $0x8] sm:$0xff]
        %337 = vmatpush.msra.mxu0 0.0
        %338 = vmatpush.msra.mxu0 0.0
        %339 = vmatpush.msra.mxu0 0.0
        %340 = vmatpush.msra.mxu0 0.0
        %341 = vmatpush.msra.mxu0 0.0
        %342 = vmatpush.msra.mxu0 0.0
        %343 = vmatpush.msra.mxu0 0.0
        %344 = vmatpush.msra.mxu0 0.0
        %345 = vmatpush.msra.mxu0 0.0
        %346 = vmatpush.msra.mxu0 0.0
        %347 = vmatpush.msra.mxu0 0.0
        %348 = vmatpush.msra.mxu0 0.0
        %349 = vmatpush.msra.mxu0 0.0
        %350 = vmatpush.msra.mxu0 0.0
        %351 = vmatpush.msra.mxu0 %v336
        %352 = vmatpush.msra.mxu0 %v335
        %353 = vmatmul.f32.gmra.mxu0 %v226
        %v354 = vpop.f32.mrf.mxu0
        %v355 = vadd.f32 0.0, %v354
        %356 = vmatmul.f32.gmra.mxu0 %v229
        %v357 = vpop.f32.mrf.mxu0
        %v358 = vadd.f32 0.0, %v357
        %359 = vmatmul.f32.gmra.mxu0 %v232
        %v360 = vpop.f32.mrf.mxu0
        %v361 = vadd.f32 0.0, %v360
        %362 = vmatmul.f32.gmra.mxu0 %v235
        %v363 = vpop.f32.mrf.mxu0
        %v364 = vadd.f32 0.0, %v363
        %365 = vmatmul.f32.gmra.mxu0 %v238
        %v366 = vpop.f32.mrf.mxu0
        %v367 = vadd.f32 0.0, %v366
        %368 = vmatmul.f32.gmra.mxu0 %v241
        %v369 = vpop.f32.mrf.mxu0
        %v370 = vadd.f32 0.0, %v369
        %371 = vmatmul.f32.gmra.mxu0 %v244
        %v372 = vpop.f32.mrf.mxu0
        %v373 = vadd.f32 0.0, %v372
        %374 = vmatmul.f32.gmra.mxu0 %v247
        %v375 = vpop.f32.mrf.mxu0
        %v376 = vadd.f32 0.0, %v375
        %377 = vdwg.mxu0
        %s378 = scalar_lea.vmem %s202, 48
        %v379 = vld [vmem:[%s378] sm:$0xff]
        %v380 = vld [vmem:[%s378 + $0x8] sm:$0xff]
        %381 = vmatpush.msra.mxu0 0.0
        %382 = vmatpush.msra.mxu0 0.0
        %383 = vmatpush.msra.mxu0 0.0
        %384 = vmatpush.msra.mxu0 0.0
        %385 = vmatpush.msra.mxu0 0.0
        %386 = vmatpush.msra.mxu0 0.0
        %387 = vmatpush.msra.mxu0 0.0
        %388 = vmatpush.msra.mxu0 0.0
        %389 = vmatpush.msra.mxu0 0.0
        %390 = vmatpush.msra.mxu0 0.0
        %391 = vmatpush.msra.mxu0 0.0
        %392 = vmatpush.msra.mxu0 0.0
        %393 = vmatpush.msra.mxu0 0.0
        %394 = vmatpush.msra.mxu0 0.0
        %395 = vmatpush.msra.mxu0 %v380
        %396 = vmatpush.msra.mxu0 %v379
        %397 = vmatmul.f32.gmra.mxu0 %v226
        %v398 = vpop.f32.mrf.mxu0
        %v399 = vadd.f32 0.0, %v398
        %400 = vmatmul.f32.gmra.mxu0 %v229
        %v401 = vpop.f32.mrf.mxu0
        %v402 = vadd.f32 0.0, %v401
        %403 = vmatmul.f32.gmra.mxu0 %v232
        %v404 = vpop.f32.mrf.mxu0
        %v405 = vadd.f32 0.0, %v404
        %406 = vmatmul.f32.gmra.mxu0 %v235
        %v407 = vpop.f32.mrf.mxu0
        %v408 = vadd.f32 0.0, %v407
        %409 = vmatmul.f32.gmra.mxu0 %v238
        %v410 = vpop.f32.mrf.mxu0
        %v411 = vadd.f32 0.0, %v410
        %412 = vmatmul.f32.gmra.mxu0 %v241
        %v413 = vpop.f32.mrf.mxu0
        %v414 = vadd.f32 0.0, %v413
        %415 = vmatmul.f32.gmra.mxu0 %v244
        %v416 = vpop.f32.mrf.mxu0
        %v417 = vadd.f32 0.0, %v416
        %418 = vmatmul.f32.gmra.mxu0 %v247
        %v419 = vpop.f32.mrf.mxu0
        %v420 = vadd.f32 0.0, %v419
        %421 = vdwg.mxu0
        %s422 = scalar_lea.vmem %s202, 64
        %v423 = vld [vmem:[%s422] sm:$0xff]
        %v424 = vld [vmem:[%s422 + $0x8] sm:$0xff]
        %425 = vmatpush.msra.mxu0 0.0
        %426 = vmatpush.msra.mxu0 0.0
        %427 = vmatpush.msra.mxu0 0.0
        %428 = vmatpush.msra.mxu0 0.0
        %429 = vmatpush.msra.mxu0 0.0
        %430 = vmatpush.msra.mxu0 0.0
        %431 = vmatpush.msra.mxu0 0.0
        %432 = vmatpush.msra.mxu0 0.0
        %433 = vmatpush.msra.mxu0 0.0
        %434 = vmatpush.msra.mxu0 0.0
        %435 = vmatpush.msra.mxu0 0.0
        %436 = vmatpush.msra.mxu0 0.0
        %437 = vmatpush.msra.mxu0 0.0
        %438 = vmatpush.msra.mxu0 0.0
        %439 = vmatpush.msra.mxu0 %v424
        %440 = vmatpush.msra.mxu0 %v423
        %441 = vmatmul.f32.gmra.mxu0 %v226
        %v442 = vpop.f32.mrf.mxu0
        %v443 = vadd.f32 0.0, %v442
        %444 = vmatmul.f32.gmra.mxu0 %v229
        %v445 = vpop.f32.mrf.mxu0
        %v446 = vadd.f32 0.0, %v445
        %447 = vmatmul.f32.gmra.mxu0 %v232
        %v448 = vpop.f32.mrf.mxu0
        %v449 = vadd.f32 0.0, %v448
        %450 = vmatmul.f32.gmra.mxu0 %v235
        %v451 = vpop.f32.mrf.mxu0
        %v452 = vadd.f32 0.0, %v451
        %453 = vmatmul.f32.gmra.mxu0 %v238
        %v454 = vpop.f32.mrf.mxu0
        %v455 = vadd.f32 0.0, %v454
        %456 = vmatmul.f32.gmra.mxu0 %v241
        %v457 = vpop.f32.mrf.mxu0
        %v458 = vadd.f32 0.0, %v457
        %459 = vmatmul.f32.gmra.mxu0 %v244
        %v460 = vpop.f32.mrf.mxu0
        %v461 = vadd.f32 0.0, %v460
        %462 = vmatmul.f32.gmra.mxu0 %v247
        %v463 = vpop.f32.mrf.mxu0
        %v464 = vadd.f32 0.0, %v463
        %465 = vdwg.mxu0
        %s466 = scalar_lea.vmem %s202, 80
        %v467 = vld [vmem:[%s466] sm:$0xff]
        %v468 = vld [vmem:[%s466 + $0x8] sm:$0xff]
        %469 = vmatpush.msra.mxu0 0.0
        %470 = vmatpush.msra.mxu0 0.0
        %471 = vmatpush.msra.mxu0 0.0
        %472 = vmatpush.msra.mxu0 0.0
        %473 = vmatpush.msra.mxu0 0.0
        %474 = vmatpush.msra.mxu0 0.0
        %475 = vmatpush.msra.mxu0 0.0
        %476 = vmatpush.msra.mxu0 0.0
        %477 = vmatpush.msra.mxu0 0.0
        %478 = vmatpush.msra.mxu0 0.0
        %479 = vmatpush.msra.mxu0 0.0
        %480 = vmatpush.msra.mxu0 0.0
        %481 = vmatpush.msra.mxu0 0.0
        %482 = vmatpush.msra.mxu0 0.0
        %483 = vmatpush.msra.mxu0 %v468
        %484 = vmatpush.msra.mxu0 %v467
        %485 = vmatmul.f32.gmra.mxu0 %v226
        %v486 = vpop.f32.mrf.mxu0
        %v487 = vadd.f32 0.0, %v486
        %488 = vmatmul.f32.gmra.mxu0 %v229
        %v489 = vpop.f32.mrf.mxu0
        %v490 = vadd.f32 0.0, %v489
        %491 = vmatmul.f32.gmra.mxu0 %v232
        %v492 = vpop.f32.mrf.mxu0
        %v493 = vadd.f32 0.0, %v492
        %494 = vmatmul.f32.gmra.mxu0 %v235
        %v495 = vpop.f32.mrf.mxu0
        %v496 = vadd.f32 0.0, %v495
        %497 = vmatmul.f32.gmra.mxu0 %v238
        %v498 = vpop.f32.mrf.mxu0
        %v499 = vadd.f32 0.0, %v498
        %500 = vmatmul.f32.gmra.mxu0 %v241
        %v501 = vpop.f32.mrf.mxu0
        %v502 = vadd.f32 0.0, %v501
        %503 = vmatmul.f32.gmra.mxu0 %v244
        %v504 = vpop.f32.mrf.mxu0
        %v505 = vadd.f32 0.0, %v504
        %506 = vmatmul.f32.gmra.mxu0 %v247
        %v507 = vpop.f32.mrf.mxu0
        %v508 = vadd.f32 0.0, %v507
        %509 = vdwg.mxu0
        %s510 = scalar_lea.vmem %s202, 96
        %v511 = vld [vmem:[%s510] sm:$0xff]
        %v512 = vld [vmem:[%s510 + $0x8] sm:$0xff]
        %513 = vmatpush.msra.mxu0 0.0
        %514 = vmatpush.msra.mxu0 0.0
        %515 = vmatpush.msra.mxu0 0.0
        %516 = vmatpush.msra.mxu0 0.0
        %517 = vmatpush.msra.mxu0 0.0
        %518 = vmatpush.msra.mxu0 0.0
        %519 = vmatpush.msra.mxu0 0.0
        %520 = vmatpush.msra.mxu0 0.0
        %521 = vmatpush.msra.mxu0 0.0
        %522 = vmatpush.msra.mxu0 0.0
        %523 = vmatpush.msra.mxu0 0.0
        %524 = vmatpush.msra.mxu0 0.0
        %525 = vmatpush.msra.mxu0 0.0
        %526 = vmatpush.msra.mxu0 0.0
        %527 = vmatpush.msra.mxu0 %v512
        %528 = vmatpush.msra.mxu0 %v511
        %529 = vmatmul.f32.gmra.mxu0 %v226
        %v530 = vpop.f32.mrf.mxu0
        %v531 = vadd.f32 0.0, %v530
        %532 = vmatmul.f32.gmra.mxu0 %v229
        %v533 = vpop.f32.mrf.mxu0
        %v534 = vadd.f32 0.0, %v533
        %535 = vmatmul.f32.gmra.mxu0 %v232
        %v536 = vpop.f32.mrf.mxu0
        %v537 = vadd.f32 0.0, %v536
        %538 = vmatmul.f32.gmra.mxu0 %v235
        %v539 = vpop.f32.mrf.mxu0
        %v540 = vadd.f32 0.0, %v539
        %541 = vmatmul.f32.gmra.mxu0 %v238
        %v542 = vpop.f32.mrf.mxu0
        %v543 = vadd.f32 0.0, %v542
        %544 = vmatmul.f32.gmra.mxu0 %v241
        %v545 = vpop.f32.mrf.mxu0
        %v546 = vadd.f32 0.0, %v545
        %547 = vmatmul.f32.gmra.mxu0 %v244
        %v548 = vpop.f32.mrf.mxu0
        %v549 = vadd.f32 0.0, %v548
        %550 = vmatmul.f32.gmra.mxu0 %v247
        %v551 = vpop.f32.mrf.mxu0
        %v552 = vadd.f32 0.0, %v551
        %553 = vdwg.mxu0
        %s554 = scalar_lea.vmem %s202, 112
        %v555 = vld [vmem:[%s554] sm:$0xff]
        %v556 = vld [vmem:[%s554 + $0x8] sm:$0xff]
        %557 = vmatpush.msra.mxu0 0.0
        %558 = vmatpush.msra.mxu0 0.0
        %559 = vmatpush.msra.mxu0 0.0
        %560 = vmatpush.msra.mxu0 0.0
        %561 = vmatpush.msra.mxu0 0.0
        %562 = vmatpush.msra.mxu0 0.0
        %563 = vmatpush.msra.mxu0 0.0
        %564 = vmatpush.msra.mxu0 0.0
        %565 = vmatpush.msra.mxu0 0.0
        %566 = vmatpush.msra.mxu0 0.0
        %567 = vmatpush.msra.mxu0 0.0
        %568 = vmatpush.msra.mxu0 0.0
        %569 = vmatpush.msra.mxu0 0.0
        %570 = vmatpush.msra.mxu0 0.0
        %571 = vmatpush.msra.mxu0 %v556
        %572 = vmatpush.msra.mxu0 %v555
        %573 = vmatmul.f32.gmra.mxu0 %v226
        %v574 = vpop.f32.mrf.mxu0
        %v575 = vadd.f32 0.0, %v574
        %576 = vmatmul.f32.gmra.mxu0 %v229
        %v577 = vpop.f32.mrf.mxu0
        %v578 = vadd.f32 0.0, %v577
        %579 = vmatmul.f32.gmra.mxu0 %v232
        %v580 = vpop.f32.mrf.mxu0
        %v581 = vadd.f32 0.0, %v580
        %582 = vmatmul.f32.gmra.mxu0 %v235
        %v583 = vpop.f32.mrf.mxu0
        %v584 = vadd.f32 0.0, %v583
        %585 = vmatmul.f32.gmra.mxu0 %v238
        %v586 = vpop.f32.mrf.mxu0
        %v587 = vadd.f32 0.0, %v586
        %588 = vmatmul.f32.gmra.mxu0 %v241
        %v589 = vpop.f32.mrf.mxu0
        %v590 = vadd.f32 0.0, %v589
        %591 = vmatmul.f32.gmra.mxu0 %v244
        %v592 = vpop.f32.mrf.mxu0
        %v593 = vadd.f32 0.0, %v592
        %594 = vmatmul.f32.gmra.mxu0 %v247
        %v595 = vpop.f32.mrf.mxu0
        %v596 = vadd.f32 0.0, %v595
        %597 = vdwg.mxu0
        %s598 = scalar_lea.vmem %s202, 128
        %v599 = vld [vmem:[%s598] sm:$0xff]
        %v600 = vld [vmem:[%s598 + $0x8] sm:$0xff]
        %601 = vmatpush.msra.mxu0 0.0
        %602 = vmatpush.msra.mxu0 0.0
        %603 = vmatpush.msra.mxu0 0.0
        %604 = vmatpush.msra.mxu0 0.0
        %605 = vmatpush.msra.mxu0 0.0
        %606 = vmatpush.msra.mxu0 0.0
        %607 = vmatpush.msra.mxu0 0.0
        %608 = vmatpush.msra.mxu0 0.0
        %609 = vmatpush.msra.mxu0 0.0
        %610 = vmatpush.msra.mxu0 0.0
        %611 = vmatpush.msra.mxu0 0.0
        %612 = vmatpush.msra.mxu0 0.0
        %613 = vmatpush.msra.mxu0 0.0
        %614 = vmatpush.msra.mxu0 0.0
        %615 = vmatpush.msra.mxu0 %v600
        %616 = vmatpush.msra.mxu0 %v599
        %617 = vmatmul.f32.gmra.mxu0 %v226
        %v618 = vpop.f32.mrf.mxu0
        %v619 = vadd.f32 0.0, %v618
        %620 = vmatmul.f32.gmra.mxu0 %v229
        %v621 = vpop.f32.mrf.mxu0
        %v622 = vadd.f32 0.0, %v621
        %623 = vmatmul.f32.gmra.mxu0 %v232
        %v624 = vpop.f32.mrf.mxu0
        %v625 = vadd.f32 0.0, %v624
        %626 = vmatmul.f32.gmra.mxu0 %v235
        %v627 = vpop.f32.mrf.mxu0
        %v628 = vadd.f32 0.0, %v627
        %629 = vmatmul.f32.gmra.mxu0 %v238
        %v630 = vpop.f32.mrf.mxu0
        %v631 = vadd.f32 0.0, %v630
        %632 = vmatmul.f32.gmra.mxu0 %v241
        %v633 = vpop.f32.mrf.mxu0
        %v634 = vadd.f32 0.0, %v633
        %635 = vmatmul.f32.gmra.mxu0 %v244
        %v636 = vpop.f32.mrf.mxu0
        %v637 = vadd.f32 0.0, %v636
        %638 = vmatmul.f32.gmra.mxu0 %v247
        %v639 = vpop.f32.mrf.mxu0
        %v640 = vadd.f32 0.0, %v639
        %641 = vdwg.mxu0
        %s642 = scalar_lea.vmem %s202, 144
        %v643 = vld [vmem:[%s642] sm:$0xff]
        %v644 = vld [vmem:[%s642 + $0x8] sm:$0xff]
        %645 = vmatpush.msra.mxu0 0.0
        %646 = vmatpush.msra.mxu0 0.0
        %647 = vmatpush.msra.mxu0 0.0
        %648 = vmatpush.msra.mxu0 0.0
        %649 = vmatpush.msra.mxu0 0.0
        %650 = vmatpush.msra.mxu0 0.0
        %651 = vmatpush.msra.mxu0 0.0
        %652 = vmatpush.msra.mxu0 0.0
        %653 = vmatpush.msra.mxu0 0.0
        %654 = vmatpush.msra.mxu0 0.0
        %655 = vmatpush.msra.mxu0 0.0
        %656 = vmatpush.msra.mxu0 0.0
        %657 = vmatpush.msra.mxu0 0.0
        %658 = vmatpush.msra.mxu0 0.0
        %659 = vmatpush.msra.mxu0 %v644
        %660 = vmatpush.msra.mxu0 %v643
        %661 = vmatmul.f32.gmra.mxu0 %v226
        %v662 = vpop.f32.mrf.mxu0
        %v663 = vadd.f32 0.0, %v662
        %664 = vmatmul.f32.gmra.mxu0 %v229
        %v665 = vpop.f32.mrf.mxu0
        %v666 = vadd.f32 0.0, %v665
        %667 = vmatmul.f32.gmra.mxu0 %v232
        %v668 = vpop.f32.mrf.mxu0
        %v669 = vadd.f32 0.0, %v668
        %670 = vmatmul.f32.gmra.mxu0 %v235
        %v671 = vpop.f32.mrf.mxu0
        %v672 = vadd.f32 0.0, %v671
        %673 = vmatmul.f32.gmra.mxu0 %v238
        %v674 = vpop.f32.mrf.mxu0
        %v675 = vadd.f32 0.0, %v674
        %676 = vmatmul.f32.gmra.mxu0 %v241
        %v677 = vpop.f32.mrf.mxu0
        %v678 = vadd.f32 0.0, %v677
        %679 = vmatmul.f32.gmra.mxu0 %v244
        %v680 = vpop.f32.mrf.mxu0
        %v681 = vadd.f32 0.0, %v680
        %682 = vmatmul.f32.gmra.mxu0 %v247
        %v683 = vpop.f32.mrf.mxu0
        %v684 = vadd.f32 0.0, %v683
        %685 = vdwg.mxu0
        %s686 = scalar_lea.vmem %s202, 160
        %v687 = vld [vmem:[%s686] sm:$0xff]
        %v688 = vld [vmem:[%s686 + $0x8] sm:$0xff]
        %689 = vmatpush.msra.mxu0 0.0
        %690 = vmatpush.msra.mxu0 0.0
        %691 = vmatpush.msra.mxu0 0.0
        %692 = vmatpush.msra.mxu0 0.0
        %693 = vmatpush.msra.mxu0 0.0
        %694 = vmatpush.msra.mxu0 0.0
        %695 = vmatpush.msra.mxu0 0.0
        %696 = vmatpush.msra.mxu0 0.0
        %697 = vmatpush.msra.mxu0 0.0
        %698 = vmatpush.msra.mxu0 0.0
        %699 = vmatpush.msra.mxu0 0.0
        %700 = vmatpush.msra.mxu0 0.0
        %701 = vmatpush.msra.mxu0 0.0
        %702 = vmatpush.msra.mxu0 0.0
        %703 = vmatpush.msra.mxu0 %v688
        %704 = vmatpush.msra.mxu0 %v687
        %705 = vmatmul.f32.gmra.mxu0 %v226
        %v706 = vpop.f32.mrf.mxu0
        %v707 = vadd.f32 0.0, %v706
        %708 = vmatmul.f32.gmra.mxu0 %v229
        %v709 = vpop.f32.mrf.mxu0
        %v710 = vadd.f32 0.0, %v709
        %711 = vmatmul.f32.gmra.mxu0 %v232
        %v712 = vpop.f32.mrf.mxu0
        %v713 = vadd.f32 0.0, %v712
        %714 = vmatmul.f32.gmra.mxu0 %v235
        %v715 = vpop.f32.mrf.mxu0
        %v716 = vadd.f32 0.0, %v715
        %717 = vmatmul.f32.gmra.mxu0 %v238
        %v718 = vpop.f32.mrf.mxu0
        %v719 = vadd.f32 0.0, %v718
        %720 = vmatmul.f32.gmra.mxu0 %v241
        %v721 = vpop.f32.mrf.mxu0
        %v722 = vadd.f32 0.0, %v721
        %723 = vmatmul.f32.gmra.mxu0 %v244
        %v724 = vpop.f32.mrf.mxu0
        %v725 = vadd.f32 0.0, %v724
        %726 = vmatmul.f32.gmra.mxu0 %v247
        %v727 = vpop.f32.mrf.mxu0
        %v728 = vadd.f32 0.0, %v727
        %729 = vdwg.mxu0
        %s730 = scalar_lea.vmem %s202, 176
        %v731 = vld [vmem:[%s730] sm:$0xff]
        %v732 = vld [vmem:[%s730 + $0x8] sm:$0xff]
        %733 = vmatpush.msra.mxu0 0.0
        %734 = vmatpush.msra.mxu0 0.0
        %735 = vmatpush.msra.mxu0 0.0
        %736 = vmatpush.msra.mxu0 0.0
        %737 = vmatpush.msra.mxu0 0.0
        %738 = vmatpush.msra.mxu0 0.0
        %739 = vmatpush.msra.mxu0 0.0
        %740 = vmatpush.msra.mxu0 0.0
        %741 = vmatpush.msra.mxu0 0.0
        %742 = vmatpush.msra.mxu0 0.0
        %743 = vmatpush.msra.mxu0 0.0
        %744 = vmatpush.msra.mxu0 0.0
        %745 = vmatpush.msra.mxu0 0.0
        %746 = vmatpush.msra.mxu0 0.0
        %747 = vmatpush.msra.mxu0 %v732
        %748 = vmatpush.msra.mxu0 %v731
        %749 = vmatmul.f32.gmra.mxu0 %v226
        %v750 = vpop.f32.mrf.mxu0
        %v751 = vadd.f32 0.0, %v750
        %752 = vmatmul.f32.gmra.mxu0 %v229
        %v753 = vpop.f32.mrf.mxu0
        %v754 = vadd.f32 0.0, %v753
        %755 = vmatmul.f32.gmra.mxu0 %v232
        %v756 = vpop.f32.mrf.mxu0
        %v757 = vadd.f32 0.0, %v756
        %758 = vmatmul.f32.gmra.mxu0 %v235
        %v759 = vpop.f32.mrf.mxu0
        %v760 = vadd.f32 0.0, %v759
        %761 = vmatmul.f32.gmra.mxu0 %v238
        %v762 = vpop.f32.mrf.mxu0
        %v763 = vadd.f32 0.0, %v762
        %764 = vmatmul.f32.gmra.mxu0 %v241
        %v765 = vpop.f32.mrf.mxu0
        %v766 = vadd.f32 0.0, %v765
        %767 = vmatmul.f32.gmra.mxu0 %v244
        %v768 = vpop.f32.mrf.mxu0
        %v769 = vadd.f32 0.0, %v768
        %770 = vmatmul.f32.gmra.mxu0 %v247
        %v771 = vpop.f32.mrf.mxu0
        %v772 = vadd.f32 0.0, %v771
        %773 = vdwg.mxu0
        %s774 = scalar_lea.vmem %s202, 192
        %v775 = vld [vmem:[%s774] sm:$0xff]
        %v776 = vld [vmem:[%s774 + $0x8] sm:$0xff]
        %777 = vmatpush.msra.mxu0 0.0
        %778 = vmatpush.msra.mxu0 0.0
        %779 = vmatpush.msra.mxu0 0.0
        %780 = vmatpush.msra.mxu0 0.0
        %781 = vmatpush.msra.mxu0 0.0
        %782 = vmatpush.msra.mxu0 0.0
        %783 = vmatpush.msra.mxu0 0.0
        %784 = vmatpush.msra.mxu0 0.0
        %785 = vmatpush.msra.mxu0 0.0
        %786 = vmatpush.msra.mxu0 0.0
        %787 = vmatpush.msra.mxu0 0.0
        %788 = vmatpush.msra.mxu0 0.0
        %789 = vmatpush.msra.mxu0 0.0
        %790 = vmatpush.msra.mxu0 0.0
        %791 = vmatpush.msra.mxu0 %v776
        %792 = vmatpush.msra.mxu0 %v775
        %793 = vmatmul.f32.gmra.mxu0 %v226
        %v794 = vpop.f32.mrf.mxu0
        %v795 = vadd.f32 0.0, %v794
        %796 = vmatmul.f32.gmra.mxu0 %v229
        %v797 = vpop.f32.mrf.mxu0
        %v798 = vadd.f32 0.0, %v797
        %799 = vmatmul.f32.gmra.mxu0 %v232
        %v800 = vpop.f32.mrf.mxu0
        %v801 = vadd.f32 0.0, %v800
        %802 = vmatmul.f32.gmra.mxu0 %v235
        %v803 = vpop.f32.mrf.mxu0
        %v804 = vadd.f32 0.0, %v803
        %805 = vmatmul.f32.gmra.mxu0 %v238
        %v806 = vpop.f32.mrf.mxu0
        %v807 = vadd.f32 0.0, %v806
        %808 = vmatmul.f32.gmra.mxu0 %v241
        %v809 = vpop.f32.mrf.mxu0
        %v810 = vadd.f32 0.0, %v809
        %811 = vmatmul.f32.gmra.mxu0 %v244
        %v812 = vpop.f32.mrf.mxu0
        %v813 = vadd.f32 0.0, %v812
        %814 = vmatmul.f32.gmra.mxu0 %v247
        %v815 = vpop.f32.mrf.mxu0
        %v816 = vadd.f32 0.0, %v815
        %817 = vdwg.mxu0
        %s818 = scalar_lea.vmem %s202, 208
        %v819 = vld [vmem:[%s818] sm:$0xff]
        %v820 = vld [vmem:[%s818 + $0x8] sm:$0xff]
        %821 = vmatpush.msra.mxu0 0.0
        %822 = vmatpush.msra.mxu0 0.0
        %823 = vmatpush.msra.mxu0 0.0
        %824 = vmatpush.msra.mxu0 0.0
        %825 = vmatpush.msra.mxu0 0.0
        %826 = vmatpush.msra.mxu0 0.0
        %827 = vmatpush.msra.mxu0 0.0
        %828 = vmatpush.msra.mxu0 0.0
        %829 = vmatpush.msra.mxu0 0.0
        %830 = vmatpush.msra.mxu0 0.0
        %831 = vmatpush.msra.mxu0 0.0
        %832 = vmatpush.msra.mxu0 0.0
        %833 = vmatpush.msra.mxu0 0.0
        %834 = vmatpush.msra.mxu0 0.0
        %835 = vmatpush.msra.mxu0 %v820
        %836 = vmatpush.msra.mxu0 %v819
        %837 = vmatmul.f32.gmra.mxu0 %v226
        %v838 = vpop.f32.mrf.mxu0
        %v839 = vadd.f32 0.0, %v838
        %840 = vmatmul.f32.gmra.mxu0 %v229
        %v841 = vpop.f32.mrf.mxu0
        %v842 = vadd.f32 0.0, %v841
        %843 = vmatmul.f32.gmra.mxu0 %v232
        %v844 = vpop.f32.mrf.mxu0
        %v845 = vadd.f32 0.0, %v844
        %846 = vmatmul.f32.gmra.mxu0 %v235
        %v847 = vpop.f32.mrf.mxu0
        %v848 = vadd.f32 0.0, %v847
        %849 = vmatmul.f32.gmra.mxu0 %v238
        %v850 = vpop.f32.mrf.mxu0
        %v851 = vadd.f32 0.0, %v850
        %852 = vmatmul.f32.gmra.mxu0 %v241
        %v853 = vpop.f32.mrf.mxu0
        %v854 = vadd.f32 0.0, %v853
        %855 = vmatmul.f32.gmra.mxu0 %v244
        %v856 = vpop.f32.mrf.mxu0
        %v857 = vadd.f32 0.0, %v856
        %858 = vmatmul.f32.gmra.mxu0 %v247
        %v859 = vpop.f32.mrf.mxu0
        %v860 = vadd.f32 0.0, %v859
        %861 = vdwg.mxu0
        %v863 = vsel %vm224, %v267, 0
        %v866 = vsel %vm224, %v270, 0
        %v869 = vsel %vm224, %v273, 0
        %v872 = vsel %vm224, %v276, 0
        %v875 = vsel %vm224, %v279, 0
        %v878 = vsel %vm224, %v282, 0
        %v881 = vsel %vm224, %v285, 0
        %v884 = vsel %vm224, %v288, 0
        %v887 = vsel %vm224, %v311, 0
        %v890 = vsel %vm224, %v314, 0
        %v893 = vsel %vm224, %v317, 0
        %v896 = vsel %vm224, %v320, 0
        %v899 = vsel %vm224, %v323, 0
        %v902 = vsel %vm224, %v326, 0
        %v905 = vsel %vm224, %v329, 0
        %v908 = vsel %vm224, %v332, 0
        %v911 = vsel %vm224, %v355, 0
        %v914 = vsel %vm224, %v358, 0
        %v917 = vsel %vm224, %v361, 0
        %v920 = vsel %vm224, %v364, 0
        %v923 = vsel %vm224, %v367, 0
        %v926 = vsel %vm224, %v370, 0
        %v929 = vsel %vm224, %v373, 0
        %v932 = vsel %vm224, %v376, 0
        %v935 = vsel %vm224, %v399, 0
        %v938 = vsel %vm224, %v402, 0
        %v941 = vsel %vm224, %v405, 0
        %v944 = vsel %vm224, %v408, 0
        %v947 = vsel %vm224, %v411, 0
        %v950 = vsel %vm224, %v414, 0
        %v953 = vsel %vm224, %v417, 0
        %v956 = vsel %vm224, %v420, 0
        %v959 = vsel %vm224, %v443, 0
        %v962 = vsel %vm224, %v446, 0
        %v965 = vsel %vm224, %v449, 0
        %v968 = vsel %vm224, %v452, 0
        %v971 = vsel %vm224, %v455, 0
        %v974 = vsel %vm224, %v458, 0
        %v977 = vsel %vm224, %v461, 0
        %v980 = vsel %vm224, %v464, 0
        %v983 = vsel %vm224, %v487, 0
        %v986 = vsel %vm224, %v490, 0
        %v989 = vsel %vm224, %v493, 0
        %v992 = vsel %vm224, %v496, 0
        %v995 = vsel %vm224, %v499, 0
        %v998 = vsel %vm224, %v502, 0
        %v1001 = vsel %vm224, %v505, 0
        %v1004 = vsel %vm224, %v508, 0
        %v1007 = vsel %vm224, %v531, 0
        %v1010 = vsel %vm224, %v534, 0
        %v1013 = vsel %vm224, %v537, 0
        %v1016 = vsel %vm224, %v540, 0
        %v1019 = vsel %vm224, %v543, 0
        %v1022 = vsel %vm224, %v546, 0
        %v1025 = vsel %vm224, %v549, 0
        %v1028 = vsel %vm224, %v552, 0
        %v1031 = vsel %vm224, %v575, 0
        %v1034 = vsel %vm224, %v578, 0
        %v1037 = vsel %vm224, %v581, 0
        %v1040 = vsel %vm224, %v584, 0
        %v1043 = vsel %vm224, %v587, 0
        %v1046 = vsel %vm224, %v590, 0
        %v1049 = vsel %vm224, %v593, 0
        %v1052 = vsel %vm224, %v596, 0
        %v1055 = vsel %vm224, %v619, 0
        %v1058 = vsel %vm224, %v622, 0
        %v1061 = vsel %vm224, %v625, 0
        %v1064 = vsel %vm224, %v628, 0
        %v1067 = vsel %vm224, %v631, 0
        %v1070 = vsel %vm224, %v634, 0
        %v1073 = vsel %vm224, %v637, 0
        %v1076 = vsel %vm224, %v640, 0
        %v1079 = vsel %vm224, %v663, 0
        %v1082 = vsel %vm224, %v666, 0
        %v1085 = vsel %vm224, %v669, 0
        %v1088 = vsel %vm224, %v672, 0
        %v1091 = vsel %vm224, %v675, 0
        %v1094 = vsel %vm224, %v678, 0
        %v1097 = vsel %vm224, %v681, 0
        %v1100 = vsel %vm224, %v684, 0
        %v1103 = vsel %vm224, %v707, 0
        %v1106 = vsel %vm224, %v710, 0
        %v1109 = vsel %vm224, %v713, 0
        %v1112 = vsel %vm224, %v716, 0
        %v1115 = vsel %vm224, %v719, 0
        %v1118 = vsel %vm224, %v722, 0
        %v1121 = vsel %vm224, %v725, 0
        %v1124 = vsel %vm224, %v728, 0
        %v1127 = vsel %vm224, %v751, 0
        %v1130 = vsel %vm224, %v754, 0
        %v1133 = vsel %vm224, %v757, 0
        %v1136 = vsel %vm224, %v760, 0
        %v1139 = vsel %vm224, %v763, 0
        %v1142 = vsel %vm224, %v766, 0
        %v1145 = vsel %vm224, %v769, 0
        %v1148 = vsel %vm224, %v772, 0
        %v1151 = vsel %vm224, %v795, 0
        %v1154 = vsel %vm224, %v798, 0
        %v1157 = vsel %vm224, %v801, 0
        %v1160 = vsel %vm224, %v804, 0
        %v1163 = vsel %vm224, %v807, 0
        %v1166 = vsel %vm224, %v810, 0
        %v1169 = vsel %vm224, %v813, 0
        %v1172 = vsel %vm224, %v816, 0
        %v1175 = vsel %vm224, %v839, 0
        %v1178 = vsel %vm224, %v842, 0
        %v1181 = vsel %vm224, %v845, 0
        %v1184 = vsel %vm224, %v848, 0
        %v1187 = vsel %vm224, %v851, 0
        %v1190 = vsel %vm224, %v854, 0
        %v1193 = vsel %vm224, %v857, 0
        %v1196 = vsel %vm224, %v860, 0
        %1198 = vmatpush.msra.mxu0 0.0
        %1199 = vmatpush.msra.mxu0 0.0
        %1200 = vmatpush.msra.mxu0 0.0
        %1201 = vmatpush.msra.mxu0 0.0
        %1202 = vmatpush.msra.mxu0 0.0
        %1203 = vmatpush.msra.mxu0 0.0
        %1204 = vmatpush.msra.mxu0 0.0
        %1205 = vmatpush.msra.mxu0 0.0
        %1206 = vmatpush.msra.mxu0 0.0
        %1207 = vmatpush.msra.mxu0 0.0
        %1208 = vmatpush.msra.mxu0 0.0
        %1209 = vmatpush.msra.mxu0 0.0
        %1210 = vmatpush.msra.mxu0 0.0
        %1211 = vmatpush.msra.mxu0 0.0
        %1212 = vmatpush.msra.mxu0 %v221
        %1213 = vmatpush.msra.mxu0 %v220
        %1214 = vmatmul.f32.gmra.mxu0 %v863
        %v1215 = vpop.f32.mrf.mxu0
        %v1216 = vadd.f32 0.0, %v1215
        %1217 = vmatmul.f32.gmra.mxu0 %v866
        %v1218 = vpop.f32.mrf.mxu0
        %v1219 = vadd.f32 0.0, %v1218
        %1220 = vmatmul.f32.gmra.mxu0 %v869
        %v1221 = vpop.f32.mrf.mxu0
        %v1222 = vadd.f32 0.0, %v1221
        %1223 = vmatmul.f32.gmra.mxu0 %v872
        %v1224 = vpop.f32.mrf.mxu0
        %v1225 = vadd.f32 0.0, %v1224
        %1226 = vmatmul.f32.gmra.mxu0 %v875
        %v1227 = vpop.f32.mrf.mxu0
        %v1228 = vadd.f32 0.0, %v1227
        %1229 = vmatmul.f32.gmra.mxu0 %v878
        %v1230 = vpop.f32.mrf.mxu0
        %v1231 = vadd.f32 0.0, %v1230
        %1232 = vmatmul.f32.gmra.mxu0 %v881
        %v1233 = vpop.f32.mrf.mxu0
        %v1234 = vadd.f32 0.0, %v1233
        %1235 = vmatmul.f32.gmra.mxu0 %v884
        %v1236 = vpop.f32.mrf.mxu0
        %v1237 = vadd.f32 0.0, %v1236
        %1238 = vmatmul.f32.gmra.mxu0 %v887
        %v1239 = vpop.f32.mrf.mxu0
        %v1240 = vadd.f32 0.0, %v1239
        %1241 = vmatmul.f32.gmra.mxu0 %v890
        %v1242 = vpop.f32.mrf.mxu0
        %v1243 = vadd.f32 0.0, %v1242
        %1244 = vmatmul.f32.gmra.mxu0 %v893
        %v1245 = vpop.f32.mrf.mxu0
        %v1246 = vadd.f32 0.0, %v1245
        %1247 = vmatmul.f32.gmra.mxu0 %v896
        %v1248 = vpop.f32.mrf.mxu0
        %v1249 = vadd.f32 0.0, %v1248
        %1250 = vmatmul.f32.gmra.mxu0 %v899
        %v1251 = vpop.f32.mrf.mxu0
        %v1252 = vadd.f32 0.0, %v1251
        %1253 = vmatmul.f32.gmra.mxu0 %v902
        %v1254 = vpop.f32.mrf.mxu0
        %v1255 = vadd.f32 0.0, %v1254
        %1256 = vmatmul.f32.gmra.mxu0 %v905
        %v1257 = vpop.f32.mrf.mxu0
        %v1258 = vadd.f32 0.0, %v1257
        %1259 = vmatmul.f32.gmra.mxu0 %v908
        %v1260 = vpop.f32.mrf.mxu0
        %v1261 = vadd.f32 0.0, %v1260
        %1262 = vmatmul.f32.gmra.mxu0 %v911
        %v1263 = vpop.f32.mrf.mxu0
        %v1264 = vadd.f32 0.0, %v1263
        %1265 = vmatmul.f32.gmra.mxu0 %v914
        %v1266 = vpop.f32.mrf.mxu0
        %v1267 = vadd.f32 0.0, %v1266
        %1268 = vmatmul.f32.gmra.mxu0 %v917
        %v1269 = vpop.f32.mrf.mxu0
        %v1270 = vadd.f32 0.0, %v1269
        %1271 = vmatmul.f32.gmra.mxu0 %v920
        %v1272 = vpop.f32.mrf.mxu0
        %v1273 = vadd.f32 0.0, %v1272
        %1274 = vmatmul.f32.gmra.mxu0 %v923
        %v1275 = vpop.f32.mrf.mxu0
        %v1276 = vadd.f32 0.0, %v1275
        %1277 = vmatmul.f32.gmra.mxu0 %v926
        %v1278 = vpop.f32.mrf.mxu0
        %v1279 = vadd.f32 0.0, %v1278
        %1280 = vmatmul.f32.gmra.mxu0 %v929
        %v1281 = vpop.f32.mrf.mxu0
        %v1282 = vadd.f32 0.0, %v1281
        %1283 = vmatmul.f32.gmra.mxu0 %v932
        %v1284 = vpop.f32.mrf.mxu0
        %v1285 = vadd.f32 0.0, %v1284
        %1286 = vmatmul.f32.gmra.mxu0 %v935
        %v1287 = vpop.f32.mrf.mxu0
        %v1288 = vadd.f32 0.0, %v1287
        %1289 = vmatmul.f32.gmra.mxu0 %v938
        %v1290 = vpop.f32.mrf.mxu0
        %v1291 = vadd.f32 0.0, %v1290
        %1292 = vmatmul.f32.gmra.mxu0 %v941
        %v1293 = vpop.f32.mrf.mxu0
        %v1294 = vadd.f32 0.0, %v1293
        %1295 = vmatmul.f32.gmra.mxu0 %v944
        %v1296 = vpop.f32.mrf.mxu0
        %v1297 = vadd.f32 0.0, %v1296
        %1298 = vmatmul.f32.gmra.mxu0 %v947
        %v1299 = vpop.f32.mrf.mxu0
        %v1300 = vadd.f32 0.0, %v1299
        %1301 = vmatmul.f32.gmra.mxu0 %v950
        %v1302 = vpop.f32.mrf.mxu0
        %v1303 = vadd.f32 0.0, %v1302
        %1304 = vmatmul.f32.gmra.mxu0 %v953
        %v1305 = vpop.f32.mrf.mxu0
        %v1306 = vadd.f32 0.0, %v1305
        %1307 = vmatmul.f32.gmra.mxu0 %v956
        %v1308 = vpop.f32.mrf.mxu0
        %v1309 = vadd.f32 0.0, %v1308
        %1310 = vmatmul.f32.gmra.mxu0 %v959
        %v1311 = vpop.f32.mrf.mxu0
        %v1312 = vadd.f32 0.0, %v1311
        %1313 = vmatmul.f32.gmra.mxu0 %v962
        %v1314 = vpop.f32.mrf.mxu0
        %v1315 = vadd.f32 0.0, %v1314
        %1316 = vmatmul.f32.gmra.mxu0 %v965
        %v1317 = vpop.f32.mrf.mxu0
        %v1318 = vadd.f32 0.0, %v1317
        %1319 = vmatmul.f32.gmra.mxu0 %v968
        %v1320 = vpop.f32.mrf.mxu0
        %v1321 = vadd.f32 0.0, %v1320
        %1322 = vmatmul.f32.gmra.mxu0 %v971
        %v1323 = vpop.f32.mrf.mxu0
        %v1324 = vadd.f32 0.0, %v1323
        %1325 = vmatmul.f32.gmra.mxu0 %v974
        %v1326 = vpop.f32.mrf.mxu0
        %v1327 = vadd.f32 0.0, %v1326
        %1328 = vmatmul.f32.gmra.mxu0 %v977
        %v1329 = vpop.f32.mrf.mxu0
        %v1330 = vadd.f32 0.0, %v1329
        %1331 = vmatmul.f32.gmra.mxu0 %v980
        %v1332 = vpop.f32.mrf.mxu0
        %v1333 = vadd.f32 0.0, %v1332
        %1334 = vmatmul.f32.gmra.mxu0 %v983
        %v1335 = vpop.f32.mrf.mxu0
        %v1336 = vadd.f32 0.0, %v1335
        %1337 = vmatmul.f32.gmra.mxu0 %v986
        %v1338 = vpop.f32.mrf.mxu0
        %v1339 = vadd.f32 0.0, %v1338
        %1340 = vmatmul.f32.gmra.mxu0 %v989
        %v1341 = vpop.f32.mrf.mxu0
        %v1342 = vadd.f32 0.0, %v1341
        %1343 = vmatmul.f32.gmra.mxu0 %v992
        %v1344 = vpop.f32.mrf.mxu0
        %v1345 = vadd.f32 0.0, %v1344
        %1346 = vmatmul.f32.gmra.mxu0 %v995
        %v1347 = vpop.f32.mrf.mxu0
        %v1348 = vadd.f32 0.0, %v1347
        %1349 = vmatmul.f32.gmra.mxu0 %v998
        %v1350 = vpop.f32.mrf.mxu0
        %v1351 = vadd.f32 0.0, %v1350
        %1352 = vmatmul.f32.gmra.mxu0 %v1001
        %v1353 = vpop.f32.mrf.mxu0
        %v1354 = vadd.f32 0.0, %v1353
        %1355 = vmatmul.f32.gmra.mxu0 %v1004
        %v1356 = vpop.f32.mrf.mxu0
        %v1357 = vadd.f32 0.0, %v1356
        %1358 = vmatmul.f32.gmra.mxu0 %v1007
        %v1359 = vpop.f32.mrf.mxu0
        %v1360 = vadd.f32 0.0, %v1359
        %1361 = vmatmul.f32.gmra.mxu0 %v1010
        %v1362 = vpop.f32.mrf.mxu0
        %v1363 = vadd.f32 0.0, %v1362
        %1364 = vmatmul.f32.gmra.mxu0 %v1013
        %v1365 = vpop.f32.mrf.mxu0
        %v1366 = vadd.f32 0.0, %v1365
        %1367 = vmatmul.f32.gmra.mxu0 %v1016
        %v1368 = vpop.f32.mrf.mxu0
        %v1369 = vadd.f32 0.0, %v1368
        %1370 = vmatmul.f32.gmra.mxu0 %v1019
        %v1371 = vpop.f32.mrf.mxu0
        %v1372 = vadd.f32 0.0, %v1371
        %1373 = vmatmul.f32.gmra.mxu0 %v1022
        %v1374 = vpop.f32.mrf.mxu0
        %v1375 = vadd.f32 0.0, %v1374
        %1376 = vmatmul.f32.gmra.mxu0 %v1025
        %v1377 = vpop.f32.mrf.mxu0
        %v1378 = vadd.f32 0.0, %v1377
        %1379 = vmatmul.f32.gmra.mxu0 %v1028
        %v1380 = vpop.f32.mrf.mxu0
        %v1381 = vadd.f32 0.0, %v1380
        %1382 = vmatmul.f32.gmra.mxu0 %v1031
        %v1383 = vpop.f32.mrf.mxu0
        %v1384 = vadd.f32 0.0, %v1383
        %1385 = vmatmul.f32.gmra.mxu0 %v1034
        %v1386 = vpop.f32.mrf.mxu0
        %v1387 = vadd.f32 0.0, %v1386
        %1388 = vmatmul.f32.gmra.mxu0 %v1037
        %v1389 = vpop.f32.mrf.mxu0
        %v1390 = vadd.f32 0.0, %v1389
        %1391 = vmatmul.f32.gmra.mxu0 %v1040
        %v1392 = vpop.f32.mrf.mxu0
        %v1393 = vadd.f32 0.0, %v1392
        %1394 = vmatmul.f32.gmra.mxu0 %v1043
        %v1395 = vpop.f32.mrf.mxu0
        %v1396 = vadd.f32 0.0, %v1395
        %1397 = vmatmul.f32.gmra.mxu0 %v1046
        %v1398 = vpop.f32.mrf.mxu0
        %v1399 = vadd.f32 0.0, %v1398
        %1400 = vmatmul.f32.gmra.mxu0 %v1049
        %v1401 = vpop.f32.mrf.mxu0
        %v1402 = vadd.f32 0.0, %v1401
        %1403 = vmatmul.f32.gmra.mxu0 %v1052
        %v1404 = vpop.f32.mrf.mxu0
        %v1405 = vadd.f32 0.0, %v1404
        %1406 = vmatmul.f32.gmra.mxu0 %v1055
        %v1407 = vpop.f32.mrf.mxu0
        %v1408 = vadd.f32 0.0, %v1407
        %1409 = vmatmul.f32.gmra.mxu0 %v1058
        %v1410 = vpop.f32.mrf.mxu0
        %v1411 = vadd.f32 0.0, %v1410
        %1412 = vmatmul.f32.gmra.mxu0 %v1061
        %v1413 = vpop.f32.mrf.mxu0
        %v1414 = vadd.f32 0.0, %v1413
        %1415 = vmatmul.f32.gmra.mxu0 %v1064
        %v1416 = vpop.f32.mrf.mxu0
        %v1417 = vadd.f32 0.0, %v1416
        %1418 = vmatmul.f32.gmra.mxu0 %v1067
        %v1419 = vpop.f32.mrf.mxu0
        %v1420 = vadd.f32 0.0, %v1419
        %1421 = vmatmul.f32.gmra.mxu0 %v1070
        %v1422 = vpop.f32.mrf.mxu0
        %v1423 = vadd.f32 0.0, %v1422
        %1424 = vmatmul.f32.gmra.mxu0 %v1073
        %v1425 = vpop.f32.mrf.mxu0
        %v1426 = vadd.f32 0.0, %v1425
        %1427 = vmatmul.f32.gmra.mxu0 %v1076
        %v1428 = vpop.f32.mrf.mxu0
        %v1429 = vadd.f32 0.0, %v1428
        %1430 = vmatmul.f32.gmra.mxu0 %v1079
        %v1431 = vpop.f32.mrf.mxu0
        %v1432 = vadd.f32 0.0, %v1431
        %1433 = vmatmul.f32.gmra.mxu0 %v1082
        %v1434 = vpop.f32.mrf.mxu0
        %v1435 = vadd.f32 0.0, %v1434
        %1436 = vmatmul.f32.gmra.mxu0 %v1085
        %v1437 = vpop.f32.mrf.mxu0
        %v1438 = vadd.f32 0.0, %v1437
        %1439 = vmatmul.f32.gmra.mxu0 %v1088
        %v1440 = vpop.f32.mrf.mxu0
        %v1441 = vadd.f32 0.0, %v1440
        %1442 = vmatmul.f32.gmra.mxu0 %v1091
        %v1443 = vpop.f32.mrf.mxu0
        %v1444 = vadd.f32 0.0, %v1443
        %1445 = vmatmul.f32.gmra.mxu0 %v1094
        %v1446 = vpop.f32.mrf.mxu0
        %v1447 = vadd.f32 0.0, %v1446
        %1448 = vmatmul.f32.gmra.mxu0 %v1097
        %v1449 = vpop.f32.mrf.mxu0
        %v1450 = vadd.f32 0.0, %v1449
        %1451 = vmatmul.f32.gmra.mxu0 %v1100
        %v1452 = vpop.f32.mrf.mxu0
        %v1453 = vadd.f32 0.0, %v1452
        %1454 = vmatmul.f32.gmra.mxu0 %v1103
        %v1455 = vpop.f32.mrf.mxu0
        %v1456 = vadd.f32 0.0, %v1455
        %1457 = vmatmul.f32.gmra.mxu0 %v1106
        %v1458 = vpop.f32.mrf.mxu0
        %v1459 = vadd.f32 0.0, %v1458
        %1460 = vmatmul.f32.gmra.mxu0 %v1109
        %v1461 = vpop.f32.mrf.mxu0
        %v1462 = vadd.f32 0.0, %v1461
        %1463 = vmatmul.f32.gmra.mxu0 %v1112
        %v1464 = vpop.f32.mrf.mxu0
        %v1465 = vadd.f32 0.0, %v1464
        %1466 = vmatmul.f32.gmra.mxu0 %v1115
        %v1467 = vpop.f32.mrf.mxu0
        %v1468 = vadd.f32 0.0, %v1467
        %1469 = vmatmul.f32.gmra.mxu0 %v1118
        %v1470 = vpop.f32.mrf.mxu0
        %v1471 = vadd.f32 0.0, %v1470
        %1472 = vmatmul.f32.gmra.mxu0 %v1121
        %v1473 = vpop.f32.mrf.mxu0
        %v1474 = vadd.f32 0.0, %v1473
        %1475 = vmatmul.f32.gmra.mxu0 %v1124
        %v1476 = vpop.f32.mrf.mxu0
        %v1477 = vadd.f32 0.0, %v1476
        %1478 = vmatmul.f32.gmra.mxu0 %v1127
        %v1479 = vpop.f32.mrf.mxu0
        %v1480 = vadd.f32 0.0, %v1479
        %1481 = vmatmul.f32.gmra.mxu0 %v1130
        %v1482 = vpop.f32.mrf.mxu0
        %v1483 = vadd.f32 0.0, %v1482
        %1484 = vmatmul.f32.gmra.mxu0 %v1133
        %v1485 = vpop.f32.mrf.mxu0
        %v1486 = vadd.f32 0.0, %v1485
        %1487 = vmatmul.f32.gmra.mxu0 %v1136
        %v1488 = vpop.f32.mrf.mxu0
        %v1489 = vadd.f32 0.0, %v1488
        %1490 = vmatmul.f32.gmra.mxu0 %v1139
        %v1491 = vpop.f32.mrf.mxu0
        %v1492 = vadd.f32 0.0, %v1491
        %1493 = vmatmul.f32.gmra.mxu0 %v1142
        %v1494 = vpop.f32.mrf.mxu0
        %v1495 = vadd.f32 0.0, %v1494
        %1496 = vmatmul.f32.gmra.mxu0 %v1145
        %v1497 = vpop.f32.mrf.mxu0
        %v1498 = vadd.f32 0.0, %v1497
        %1499 = vmatmul.f32.gmra.mxu0 %v1148
        %v1500 = vpop.f32.mrf.mxu0
        %v1501 = vadd.f32 0.0, %v1500
        %1502 = vmatmul.f32.gmra.mxu0 %v1151
        %v1503 = vpop.f32.mrf.mxu0
        %v1504 = vadd.f32 0.0, %v1503
        %1505 = vmatmul.f32.gmra.mxu0 %v1154
        %v1506 = vpop.f32.mrf.mxu0
        %v1507 = vadd.f32 0.0, %v1506
        %1508 = vmatmul.f32.gmra.mxu0 %v1157
        %v1509 = vpop.f32.mrf.mxu0
        %v1510 = vadd.f32 0.0, %v1509
        %1511 = vmatmul.f32.gmra.mxu0 %v1160
        %v1512 = vpop.f32.mrf.mxu0
        %v1513 = vadd.f32 0.0, %v1512
        %1514 = vmatmul.f32.gmra.mxu0 %v1163
        %v1515 = vpop.f32.mrf.mxu0
        %v1516 = vadd.f32 0.0, %v1515
        %1517 = vmatmul.f32.gmra.mxu0 %v1166
        %v1518 = vpop.f32.mrf.mxu0
        %v1519 = vadd.f32 0.0, %v1518
        %1520 = vmatmul.f32.gmra.mxu0 %v1169
        %v1521 = vpop.f32.mrf.mxu0
        %v1522 = vadd.f32 0.0, %v1521
        %1523 = vmatmul.f32.gmra.mxu0 %v1172
        %v1524 = vpop.f32.mrf.mxu0
        %v1525 = vadd.f32 0.0, %v1524
        %1526 = vmatmul.f32.gmra.mxu0 %v1175
        %v1527 = vpop.f32.mrf.mxu0
        %v1528 = vadd.f32 0.0, %v1527
        %1529 = vmatmul.f32.gmra.mxu0 %v1178
        %v1530 = vpop.f32.mrf.mxu0
        %v1531 = vadd.f32 0.0, %v1530
        %1532 = vmatmul.f32.gmra.mxu0 %v1181
        %v1533 = vpop.f32.mrf.mxu0
        %v1534 = vadd.f32 0.0, %v1533
        %1535 = vmatmul.f32.gmra.mxu0 %v1184
        %v1536 = vpop.f32.mrf.mxu0
        %v1537 = vadd.f32 0.0, %v1536
        %1538 = vmatmul.f32.gmra.mxu0 %v1187
        %v1539 = vpop.f32.mrf.mxu0
        %v1540 = vadd.f32 0.0, %v1539
        %1541 = vmatmul.f32.gmra.mxu0 %v1190
        %v1542 = vpop.f32.mrf.mxu0
        %v1543 = vadd.f32 0.0, %v1542
        %1544 = vmatmul.f32.gmra.mxu0 %v1193
        %v1545 = vpop.f32.mrf.mxu0
        %v1546 = vadd.f32 0.0, %v1545
        %1547 = vmatmul.f32.gmra.mxu0 %v1196
        %v1548 = vpop.f32.mrf.mxu0
        %v1549 = vadd.f32 0.0, %v1548
        %1550 = vdwg.mxu0
        %vm1551 = vcmask 523264
        %1552 = vst.msk [vmem:[%s196] sm:$0xff] %vm1551, %v1216
        %1553 = vst.msk [vmem:[%s196 + $0x8] sm:$0xff] %vm1551, %v1219
        %1554 = vst.msk [vmem:[%s196 + $0x10] sm:$0xff] %vm1551, %v1222
        %1555 = vst.msk [vmem:[%s196 + $0x18] sm:$0xff] %vm1551, %v1225
        %1556 = vst.msk [vmem:[%s196 + $0x20] sm:$0xff] %vm1551, %v1228
        %1557 = vst.msk [vmem:[%s196 + $0x28] sm:$0xff] %vm1551, %v1231
        %1558 = vst.msk [vmem:[%s196 + $0x30] sm:$0xff] %vm1551, %v1234
        %1559 = vst.msk [vmem:[%s196 + $0x38] sm:$0xff] %vm1551, %v1237
        %1560 = vst.msk [vmem:[%s196 + $0x40] sm:$0xff] %vm1551, %v1240
        %1561 = vst.msk [vmem:[%s196 + $0x48] sm:$0xff] %vm1551, %v1243
        %1562 = vst.msk [vmem:[%s196 + $0x50] sm:$0xff] %vm1551, %v1246
        %1563 = vst.msk [vmem:[%s196 + $0x58] sm:$0xff] %vm1551, %v1249
        %1564 = vst.msk [vmem:[%s196 + $0x60] sm:$0xff] %vm1551, %v1252
        %1565 = vst.msk [vmem:[%s196 + $0x68] sm:$0xff] %vm1551, %v1255
        %1566 = vst.msk [vmem:[%s196 + $0x70] sm:$0xff] %vm1551, %v1258
        %1567 = vst.msk [vmem:[%s196 + $0x78] sm:$0xff] %vm1551, %v1261
        %1568 = vst.msk [vmem:[%s196 + $0x80] sm:$0xff] %vm1551, %v1264
        %1569 = vst.msk [vmem:[%s196 + $0x88] sm:$0xff] %vm1551, %v1267
        %1570 = vst.msk [vmem:[%s196 + $0x90] sm:$0xff] %vm1551, %v1270
        %1571 = vst.msk [vmem:[%s196 + $0x98] sm:$0xff] %vm1551, %v1273
        %1572 = vst.msk [vmem:[%s196 + $0xa0] sm:$0xff] %vm1551, %v1276
        %1573 = vst.msk [vmem:[%s196 + $0xa8] sm:$0xff] %vm1551, %v1279
        %1574 = vst.msk [vmem:[%s196 + $0xb0] sm:$0xff] %vm1551, %v1282
        %1575 = vst.msk [vmem:[%s196 + $0xb8] sm:$0xff] %vm1551, %v1285
        %1576 = vst.msk [vmem:[%s196 + $0xc0] sm:$0xff] %vm1551, %v1288
        %1577 = vst.msk [vmem:[%s196 + $0xc8] sm:$0xff] %vm1551, %v1291
        %1578 = vst.msk [vmem:[%s196 + $0xd0] sm:$0xff] %vm1551, %v1294
        %1579 = vst.msk [vmem:[%s196 + $0xd8] sm:$0xff] %vm1551, %v1297
        %1580 = vst.msk [vmem:[%s196 + $0xe0] sm:$0xff] %vm1551, %v1300
        %1581 = vst.msk [vmem:[%s196 + $0xe8] sm:$0xff] %vm1551, %v1303
        %1582 = vst.msk [vmem:[%s196 + $0xf0] sm:$0xff] %vm1551, %v1306
        %1583 = vst.msk [vmem:[%s196 + $0xf8] sm:$0xff] %vm1551, %v1309
        %1584 = vst.msk [vmem:[%s196 + $0x100] sm:$0xff] %vm1551, %v1312
        %1585 = vst.msk [vmem:[%s196 + $0x108] sm:$0xff] %vm1551, %v1315
        %1586 = vst.msk [vmem:[%s196 + $0x110] sm:$0xff] %vm1551, %v1318
        %1587 = vst.msk [vmem:[%s196 + $0x118] sm:$0xff] %vm1551, %v1321
        %1588 = vst.msk [vmem:[%s196 + $0x120] sm:$0xff] %vm1551, %v1324
        %1589 = vst.msk [vmem:[%s196 + $0x128] sm:$0xff] %vm1551, %v1327
        %1590 = vst.msk [vmem:[%s196 + $0x130] sm:$0xff] %vm1551, %v1330
        %1591 = vst.msk [vmem:[%s196 + $0x138] sm:$0xff] %vm1551, %v1333
        %1592 = vst.msk [vmem:[%s196 + $0x140] sm:$0xff] %vm1551, %v1336
        %1593 = vst.msk [vmem:[%s196 + $0x148] sm:$0xff] %vm1551, %v1339
        %1594 = vst.msk [vmem:[%s196 + $0x150] sm:$0xff] %vm1551, %v1342
        %1595 = vst.msk [vmem:[%s196 + $0x158] sm:$0xff] %vm1551, %v1345
        %1596 = vst.msk [vmem:[%s196 + $0x160] sm:$0xff] %vm1551, %v1348
        %1597 = vst.msk [vmem:[%s196 + $0x168] sm:$0xff] %vm1551, %v1351
        %1598 = vst.msk [vmem:[%s196 + $0x170] sm:$0xff] %vm1551, %v1354
        %1599 = vst.msk [vmem:[%s196 + $0x178] sm:$0xff] %vm1551, %v1357
        %1600 = vst.msk [vmem:[%s196 + $0x180] sm:$0xff] %vm1551, %v1360
        %1601 = vst.msk [vmem:[%s196 + $0x188] sm:$0xff] %vm1551, %v1363
        %1602 = vst.msk [vmem:[%s196 + $0x190] sm:$0xff] %vm1551, %v1366
        %1603 = vst.msk [vmem:[%s196 + $0x198] sm:$0xff] %vm1551, %v1369
        %1604 = vst.msk [vmem:[%s196 + $0x1a0] sm:$0xff] %vm1551, %v1372
        %1605 = vst.msk [vmem:[%s196 + $0x1a8] sm:$0xff] %vm1551, %v1375
        %1606 = vst.msk [vmem:[%s196 + $0x1b0] sm:$0xff] %vm1551, %v1378
        %1607 = vst.msk [vmem:[%s196 + $0x1b8] sm:$0xff] %vm1551, %v1381
        %1608 = vst.msk [vmem:[%s196 + $0x1c0] sm:$0xff] %vm1551, %v1384
        %1609 = vst.msk [vmem:[%s196 + $0x1c8] sm:$0xff] %vm1551, %v1387
        %1610 = vst.msk [vmem:[%s196 + $0x1d0] sm:$0xff] %vm1551, %v1390
        %1611 = vst.msk [vmem:[%s196 + $0x1d8] sm:$0xff] %vm1551, %v1393
        %1612 = vst.msk [vmem:[%s196 + $0x1e0] sm:$0xff] %vm1551, %v1396
        %1613 = vst.msk [vmem:[%s196 + $0x1e8] sm:$0xff] %vm1551, %v1399
        %1614 = vst.msk [vmem:[%s196 + $0x1f0] sm:$0xff] %vm1551, %v1402
        %1615 = vst.msk [vmem:[%s196 + $0x1f8] sm:$0xff] %vm1551, %v1405
        %1616 = vst.msk [vmem:[%s196 + $0x200] sm:$0xff] %vm1551, %v1408
        %1617 = vst.msk [vmem:[%s196 + $0x208] sm:$0xff] %vm1551, %v1411
        %1618 = vst.msk [vmem:[%s196 + $0x210] sm:$0xff] %vm1551, %v1414
        %1619 = vst.msk [vmem:[%s196 + $0x218] sm:$0xff] %vm1551, %v1417
        %1620 = vst.msk [vmem:[%s196 + $0x220] sm:$0xff] %vm1551, %v1420
        %1621 = vst.msk [vmem:[%s196 + $0x228] sm:$0xff] %vm1551, %v1423
        %1622 = vst.msk [vmem:[%s196 + $0x230] sm:$0xff] %vm1551, %v1426
        %1623 = vst.msk [vmem:[%s196 + $0x238] sm:$0xff] %vm1551, %v1429
        %1624 = vst.msk [vmem:[%s196 + $0x240] sm:$0xff] %vm1551, %v1432
        %1625 = vst.msk [vmem:[%s196 + $0x248] sm:$0xff] %vm1551, %v1435
        %1626 = vst.msk [vmem:[%s196 + $0x250] sm:$0xff] %vm1551, %v1438
        %1627 = vst.msk [vmem:[%s196 + $0x258] sm:$0xff] %vm1551, %v1441
        %1628 = vst.msk [vmem:[%s196 + $0x260] sm:$0xff] %vm1551, %v1444
        %1629 = vst.msk [vmem:[%s196 + $0x268] sm:$0xff] %vm1551, %v1447
        %1630 = vst.msk [vmem:[%s196 + $0x270] sm:$0xff] %vm1551, %v1450
        %1631 = vst.msk [vmem:[%s196 + $0x278] sm:$0xff] %vm1551, %v1453
        %1632 = vst.msk [vmem:[%s196 + $0x280] sm:$0xff] %vm1551, %v1456
        %1633 = vst.msk [vmem:[%s196 + $0x288] sm:$0xff] %vm1551, %v1459
        %1634 = vst.msk [vmem:[%s196 + $0x290] sm:$0xff] %vm1551, %v1462
        %1635 = vst.msk [vmem:[%s196 + $0x298] sm:$0xff] %vm1551, %v1465
        %1636 = vst.msk [vmem:[%s196 + $0x2a0] sm:$0xff] %vm1551, %v1468
        %1637 = vst.msk [vmem:[%s196 + $0x2a8] sm:$0xff] %vm1551, %v1471
        %1638 = vst.msk [vmem:[%s196 + $0x2b0] sm:$0xff] %vm1551, %v1474
        %1639 = vst.msk [vmem:[%s196 + $0x2b8] sm:$0xff] %vm1551, %v1477
        %1640 = vst.msk [vmem:[%s196 + $0x2c0] sm:$0xff] %vm1551, %v1480
        %1641 = vst.msk [vmem:[%s196 + $0x2c8] sm:$0xff] %vm1551, %v1483
        %1642 = vst.msk [vmem:[%s196 + $0x2d0] sm:$0xff] %vm1551, %v1486
        %1643 = vst.msk [vmem:[%s196 + $0x2d8] sm:$0xff] %vm1551, %v1489
        %1644 = vst.msk [vmem:[%s196 + $0x2e0] sm:$0xff] %vm1551, %v1492
        %1645 = vst.msk [vmem:[%s196 + $0x2e8] sm:$0xff] %vm1551, %v1495
        %1646 = vst.msk [vmem:[%s196 + $0x2f0] sm:$0xff] %vm1551, %v1498
        %1647 = vst.msk [vmem:[%s196 + $0x2f8] sm:$0xff] %vm1551, %v1501
        %1648 = vst.msk [vmem:[%s196 + $0x300] sm:$0xff] %vm1551, %v1504
        %1649 = vst.msk [vmem:[%s196 + $0x308] sm:$0xff] %vm1551, %v1507
        %1650 = vst.msk [vmem:[%s196 + $0x310] sm:$0xff] %vm1551, %v1510
        %1651 = vst.msk [vmem:[%s196 + $0x318] sm:$0xff] %vm1551, %v1513
        %1652 = vst.msk [vmem:[%s196 + $0x320] sm:$0xff] %vm1551, %v1516
        %1653 = vst.msk [vmem:[%s196 + $0x328] sm:$0xff] %vm1551, %v1519
        %1654 = vst.msk [vmem:[%s196 + $0x330] sm:$0xff] %vm1551, %v1522
        %1655 = vst.msk [vmem:[%s196 + $0x338] sm:$0xff] %vm1551, %v1525
        %1656 = vst.msk [vmem:[%s196 + $0x340] sm:$0xff] %vm1551, %v1528
        %1657 = vst.msk [vmem:[%s196 + $0x348] sm:$0xff] %vm1551, %v1531
        %1658 = vst.msk [vmem:[%s196 + $0x350] sm:$0xff] %vm1551, %v1534
        %1659 = vst.msk [vmem:[%s196 + $0x358] sm:$0xff] %vm1551, %v1537
        %1660 = vst.msk [vmem:[%s196 + $0x360] sm:$0xff] %vm1551, %v1540
        %1661 = vst.msk [vmem:[%s196 + $0x368] sm:$0xff] %vm1551, %v1543
        %1662 = vst.msk [vmem:[%s196 + $0x370] sm:$0xff] %vm1551, %v1546
        %1663 = vst.msk [vmem:[%s196 + $0x378] sm:$0xff] %vm1551, %v1549
        %s1664 = sand.u32 %s112, 1
        %s1665 = scalar_lea.sflag [#allocation3], %s1664
        %s1666 = sand.u32 %s112, 1
        %s1667 = smul.addr %s1666, 896
        %s1668 = scalar_lea.vmem [#allocation2], %s1667
        // Predicated region
        $region33: #{auxiliary_psp_forward.3} parent=31 // pred_check
          %p1669 = pneg %p122
        $region34: #{auxiliary_psp_forward.3} parent=31 // pred_check_branch
          %1671 = sbr.rel (%p1669) target = $region36
        $region35: #{auxiliary_psp_forward.3} parent=31 // pred_region
          %s1672 = smul.u32 14, %s21
          %s1673 = smul.u32 8, %s22
          %1675 = vsyncadd %s1665, 0
          %s1676 = smul.addr %s1672, 8
          %s1677 = sadd.s32 %s1673, %s1676
          %s1678 = smul.addr %s1677, 8
          %s1679 = scalar_lea.hbm %s3, %s1678
          %s1680 = sshll.u32 %s1668, 4
          %s1681 = int_to_ptr.vmem [resolvable:$true] %s1680
          %s1682 = sshll.u32 %s1679, 4
          %s1683 = int_to_ptr.hbm [resolvable:$true] %s1682
          %1688 = dma.vmem_to_hbm [thread:$0]  %s1681, 14336, %s1683, %s1665, 128, 128, 8
        $region36: #{auxiliary_psp_forward.3} parent=31 // pred_fallthru
          _
      $region32: #{auxiliary_psp_forward.3} parent=5 // pred_fallthru
        _
      %p1689 = scmp.le.s32.totalorder 2, %s12
      // Predicated region
      $region37: #{auxiliary_psp_forward.3} parent=5 // pred_check
        %p1690 = pneg %p1689
      $region38: #{auxiliary_psp_forward.3} parent=5 // pred_check_branch
        %1692 = sbr.rel (%p1690) target = $region40
      $region39: #{auxiliary_psp_forward.3} parent=5 // pred_region
        %s1693 = ssub.s32 %s12, 2
        // Predicated region
        $region41: #{auxiliary_psp_forward.3} parent=39 // pred_check
          %p1694 = pneg %p128
        $region42: #{auxiliary_psp_forward.3} parent=39 // pred_check_branch
          %1696 = sbr.rel (%p1694) target = $region44
        $region43: #{auxiliary_psp_forward.3} parent=39 // pred_region
          %s1697 = sand.u32 %s113, 1
          %s1698 = scalar_lea.sflag [#allocation3], %s1697
          %s1699 = sand.u32 %s113, 1
          %s1700 = smul.addr %s1699, 896
          %s1701 = scalar_lea.vmem [#allocation2], %s1700
          %1703 = dma.done %s1698, 14336
        $region44: #{auxiliary_psp_forward.3} parent=39 // pred_fallthru
          _
      $region40: #{auxiliary_psp_forward.3} parent=5 // pred_fallthru
        _
    $region6: #{auxiliary_psp_forward.3} parent=1 // loop_footer
      %s16 = sadd.s32 1, %s12
    $region7: #{auxiliary_psp_forward.3} parent=1 // loop_footer_branch
      %11 = sbr.rel target = $region3
    $region8: #{auxiliary_psp_forward.3} parent=1 // loop_exit
      _
    %1704 = vsyncpa [#allocation3], 1
    %s1705 = scalar_lea.sflag [#allocation3], 1
    %1706 = vsyncpa %s1705, 1

// kernel: auxiliary_psp_forward.2
$region0: #{auxiliary_psp_forward.2}
  #allocation0 [shape = 'u32[]', space=smem, size = 0x4, offset = 0x4, fixed_abs, tag = 'smem constant byte address 0x4 - core index']
  #allocation1 [shape = 'u32[72,128]{1,0:T(1,128)}', space=vmem, size = 0x9000, scoped, tag = 'internal scratch']
  #allocation2 [shape = 'f32[256,256]{1,0:T(8,128)}', space=vmem, size = 0x40000, scoped, tag = 'scratch operand']
  %s0 = inlined_call_operand.vmem [shape: bf16[2,18,18,32], index: 0, kind: input, shape index: {}]
  %s1 = inlined_call_operand.vmem [shape: bf16[9,32,256], index: 1, kind: input, shape index: {}]
  %s2 = inlined_call_operand.vmem [shape: f32[1,256], index: 2, kind: input, shape index: {}]
  %s3 = inlined_call_operand.vmem [shape: f32[1,256], index: 3, kind: input, shape index: {}]
  %s4 = inlined_call_operand.vmem [shape: bf16[256,128], index: 4, kind: input, shape index: {}]
  %s5 = inlined_call_operand.vmem [shape: f32[1,128], index: 5, kind: input, shape index: {}]
  %s6 = inlined_call_operand.vmem [shape: f32[2,16,16,128], index: 6, kind: output, shape index: {}]
  %s7 = sld [smem:[#allocation0]]
  $region57: #{auxiliary_psp_forward.2} parent=0
    _
  %s9 = ssub.s32 1, %s7
  %s10 = scalar_select 0, %s9, %s7
  loop: start=0, step=1, limit=4
  $region2: #{auxiliary_psp_forward.2} parent=0 // loop_pre_header
    _
  $region3: #{auxiliary_psp_forward.2} parent=0 // loop_header
    %s12 = sphi 0, %s16
    %p13 = scmp.ge.s32.totalorder %s12, 4
    %s19 = sphi 0, %s31
    %s20 = sphi 0, %s27
    %s21 = sphi 0, %s19
    %s22 = sphi 0, %s20
    %s23 = sphi 0, %s21
    %s24 = sphi 0, %s22
    %s34 = sphi 0, %s36
    %s37 = sphi 0, %s34
    %s38 = sphi 0, %s37
    %s54 = sphi 0, %s38
    %s58 = sphi 0, %s58
    %s60 = sphi 0, %s58
    %s61 = sphi 0, %s60
    %s75 = sphi 0, %s61
    %s79 = sphi 0, %s79
    %s81 = sphi 0, %s79
    %s82 = sphi 0, %s81
    %s96 = sphi 0, %s82
    %s100 = sphi 0, %s100
    %s102 = sphi 0, %s100
    %s103 = sphi 0, %s102
    %s117 = sphi 0, %s103
    %s121 = sphi 0, %s121
    %s123 = sphi 0, %s121
    %s124 = sphi 0, %s123
    %s138 = sphi 0, %s124
    %s142 = sphi 0, %s142
    %s144 = sphi 0, %s142
    %s145 = sphi 0, %s144
    %s159 = sphi 0, %s145
    %s167 = sphi 0, %s169
    %s170 = sphi 0, %s167
    %s171 = sphi 0, %s170
    %s187 = sphi 0, %s171
  $region4: #{auxiliary_psp_forward.2} parent=0 // loop_header_branch
    %15 = sbr.rel (%p13) target = $region8
  $region5: #{auxiliary_psp_forward.2} parent=0 // loop_body
    %s17 = ssub.s32 %s12, 1
    %s18 = ssub.s32 %s12, 2
    %s25 = sadd.s32 1, %s20
    %p26 = scmp.ge.s32.totalorder %s25, 1
    %s27 = scalar_select %p26, 0, %s25
    %s28 = sadd.s32 1, %s19
    %s29 = scalar_select %p26, %s28, %s19
    %p30 = scmp.ge.s32.totalorder %s29, 2
    %s31 = scalar_select %p30, 0, %s29
    %s32 = ssub.s32 %s19, %s31
    %p33 = scmp.eq.s32.totalorder %s32, 0
    %s35 = sadd.s32 %s34, 1
    %s36 = scalar_select %p33, %s34, %s35
    %p39 = pneg %p33
    %p40 = scmp.eq.s32.totalorder %s12, 1
    %p41 = por %p39, %p40
    %p42 = scmp.ne.s32.totalorder %s34, %s37
    %p43 = scmp.eq.s32.totalorder %s12, 0
    %p44 = por %p42, %p43
    %p45 = scmp.ne.s32.totalorder %s34, %s37
    %p46 = scmp.eq.s32.totalorder %s17, 1
    %p47 = por %p45, %p46
    %p48 = scmp.ne.s32.totalorder %s37, %s38
    %p49 = scmp.eq.s32.totalorder %s17, 0
    %p50 = por %p48, %p49
    %p51 = scmp.ne.s32.totalorder %s37, %s38
    %p52 = scmp.eq.s32.totalorder %s18, 1
    %p53 = por %p51, %p52
    %p55 = scmp.ne.s32.totalorder %s38, %s54
    %p56 = scmp.eq.s32.totalorder %s18, 0
    %p57 = por %p55, %p56
    %s59 = sadd.s32 %s58, 1
    %p62 = scmp.eq.s32.totalorder %s12, 1
    %p63 = scmp.ne.s32.totalorder %s58, %s60
    %p64 = scmp.eq.s32.totalorder %s12, 0
    %p65 = por %p63, %p64
    %p66 = scmp.ne.s32.totalorder %s58, %s60
    %p67 = scmp.eq.s32.totalorder %s17, 1
    %p68 = por %p66, %p67
    %p69 = scmp.ne.s32.totalorder %s60, %s61
    %p70 = scmp.eq.s32.totalorder %s17, 0
    %p71 = por %p69, %p70
    %p72 = scmp.ne.s32.totalorder %s60, %s61
    %p73 = scmp.eq.s32.totalorder %s18, 1
    %p74 = por %p72, %p73
    %p76 = scmp.ne.s32.totalorder %s61, %s75
    %p77 = scmp.eq.s32.totalorder %s18, 0
    %p78 = por %p76, %p77
    %s80 = sadd.s32 %s79, 1
    %p83 = scmp.eq.s32.totalorder %s12, 1
    %p84 = scmp.ne.s32.totalorder %s79, %s81
    %p85 = scmp.eq.s32.totalorder %s12, 0
    %p86 = por %p84, %p85
    %p87 = scmp.ne.s32.totalorder %s79, %s81
    %p88 = scmp.eq.s32.totalorder %s17, 1
    %p89 = por %p87, %p88
    %p90 = scmp.ne.s32.totalorder %s81, %s82
    %p91 = scmp.eq.s32.totalorder %s17, 0
    %p92 = por %p90, %p91
    %p93 = scmp.ne.s32.totalorder %s81, %s82
    %p94 = scmp.eq.s32.totalorder %s18, 1
    %p95 = por %p93, %p94
    %p97 = scmp.ne.s32.totalorder %s82, %s96
    %p98 = scmp.eq.s32.totalorder %s18, 0
    %p99 = por %p97, %p98
    %s101 = sadd.s32 %s100, 1
    %p104 = scmp.eq.s32.totalorder %s12, 1
    %p105 = scmp.ne.s32.totalorder %s100, %s102
    %p106 = scmp.eq.s32.totalorder %s12, 0
    %p107 = por %p105, %p106
    %p108 = scmp.ne.s32.totalorder %s100, %s102
    %p109 = scmp.eq.s32.totalorder %s17, 1
    %p110 = por %p108, %p109
    %p111 = scmp.ne.s32.totalorder %s102, %s103
    %p112 = scmp.eq.s32.totalorder %s17, 0
    %p113 = por %p111, %p112
    %p114 = scmp.ne.s32.totalorder %s102, %s103
    %p115 = scmp.eq.s32.totalorder %s18, 1
    %p116 = por %p114, %p115
    %p118 = scmp.ne.s32.totalorder %s103, %s117
    %p119 = scmp.eq.s32.totalorder %s18, 0
    %p120 = por %p118, %p119
    %s122 = sadd.s32 %s121, 1
    %p125 = scmp.eq.s32.totalorder %s12, 1
    %p126 = scmp.ne.s32.totalorder %s121, %s123
    %p127 = scmp.eq.s32.totalorder %s12, 0
    %p128 = por %p126, %p127
    %p129 = scmp.ne.s32.totalorder %s121, %s123
    %p130 = scmp.eq.s32.totalorder %s17, 1
    %p131 = por %p129, %p130
    %p132 = scmp.ne.s32.totalorder %s123, %s124
    %p133 = scmp.eq.s32.totalorder %s17, 0
    %p134 = por %p132, %p133
    %p135 = scmp.ne.s32.totalorder %s123, %s124
    %p136 = scmp.eq.s32.totalorder %s18, 1
    %p137 = por %p135, %p136
    %p139 = scmp.ne.s32.totalorder %s124, %s138
    %p140 = scmp.eq.s32.totalorder %s18, 0
    %p141 = por %p139, %p140
    %s143 = sadd.s32 %s142, 1
    %p146 = scmp.eq.s32.totalorder %s12, 1
    %p147 = scmp.ne.s32.totalorder %s142, %s144
    %p148 = scmp.eq.s32.totalorder %s12, 0
    %p149 = por %p147, %p148
    %p150 = scmp.ne.s32.totalorder %s142, %s144
    %p151 = scmp.eq.s32.totalorder %s17, 1
    %p152 = por %p150, %p151
    %p153 = scmp.ne.s32.totalorder %s144, %s145
    %p154 = scmp.eq.s32.totalorder %s17, 0
    %p155 = por %p153, %p154
    %p156 = scmp.ne.s32.totalorder %s144, %s145
    %p157 = scmp.eq.s32.totalorder %s18, 1
    %p158 = por %p156, %p157
    %p160 = scmp.ne.s32.totalorder %s145, %s159
    %p161 = scmp.eq.s32.totalorder %s18, 0
    %p162 = por %p160, %p161
    %s163 = ssub.s32 %s19, %s31
    %s164 = ssub.s32 %s20, %s27
    %s165 = sor.u32 %s163, %s164
    %p166 = scmp.eq.s32.totalorder %s165, 0
    %s168 = sadd.s32 %s167, 1
    %s169 = scalar_select %p166, %s167, %s168
    %p172 = pneg %p166
    %p173 = scmp.eq.s32.totalorder %s12, 1
    %p174 = por %p172, %p173
    %p175 = scmp.ne.s32.totalorder %s167, %s170
    %p176 = scmp.eq.s32.totalorder %s12, 0
    %p177 = por %p175, %p176
    %p178 = scmp.ne.s32.totalorder %s167, %s170
    %p179 = scmp.eq.s32.totalorder %s17, 1
    %p180 = por %p178, %p179
    %p181 = scmp.ne.s32.totalorder %s170, %s171
    %p182 = scmp.eq.s32.totalorder %s17, 0
    %p183 = por %p181, %p182
    %p184 = scmp.ne.s32.totalorder %s170, %s171
    %p185 = scmp.eq.s32.totalorder %s18, 1
    %p186 = por %p184, %p185
    %p188 = scmp.ne.s32.totalorder %s171, %s187
    %p189 = scmp.eq.s32.totalorder %s18, 0
    %p190 = por %p188, %p189
    %p191 = scmp.le.s32.totalorder 1, %s12
    %p192 = scmp.lt.s32.totalorder %s12, 3
    %p193 = pnand %p191, %p192
    %p194 = pneg %p193
    // Predicated region
    $region9: #{auxiliary_psp_forward.2} parent=5 // pred_check
      _
    $region10: #{auxiliary_psp_forward.2} parent=5 // pred_check_branch
      %196 = sbr.rel (%p193) target = $region12
    $region11: #{auxiliary_psp_forward.2} parent=5 // pred_region
      %s197 = ssub.s32 %s12, 1
      // Predicated region
      $region13: #{auxiliary_psp_forward.2} parent=11 // pred_check
        %p198 = pneg %p71
      $region14: #{auxiliary_psp_forward.2} parent=11 // pred_check_branch
        %200 = sbr.rel (%p198) target = $region16
      $region15: #{auxiliary_psp_forward.2} parent=11 // pred_region
        _
      $region16: #{auxiliary_psp_forward.2} parent=11 // pred_fallthru
        _
      // Predicated region
      $region17: #{auxiliary_psp_forward.2} parent=11 // pred_check
        %p201 = pneg %p92
      $region18: #{auxiliary_psp_forward.2} parent=11 // pred_check_branch
        %203 = sbr.rel (%p201) target = $region20
      $region19: #{auxiliary_psp_forward.2} parent=11 // pred_region
        _
      $region20: #{auxiliary_psp_forward.2} parent=11 // pred_fallthru
        _
      // Predicated region
      $region21: #{auxiliary_psp_forward.2} parent=11 // pred_check
        %p204 = pneg %p113
      $region22: #{auxiliary_psp_forward.2} parent=11 // pred_check_branch
        %206 = sbr.rel (%p204) target = $region24
      $region23: #{auxiliary_psp_forward.2} parent=11 // pred_region
        _
      $region24: #{auxiliary_psp_forward.2} parent=11 // pred_fallthru
        _
      // Predicated region
      $region25: #{auxiliary_psp_forward.2} parent=11 // pred_check
        %p207 = pneg %p134
      $region26: #{auxiliary_psp_forward.2} parent=11 // pred_check_branch
        %209 = sbr.rel (%p207) target = $region28
      $region27: #{auxiliary_psp_forward.2} parent=11 // pred_region
        _
      $region28: #{auxiliary_psp_forward.2} parent=11 // pred_fallthru
        _
      // Predicated region
      $region29: #{auxiliary_psp_forward.2} parent=11 // pred_check
        %p210 = pneg %p155
      $region30: #{auxiliary_psp_forward.2} parent=11 // pred_check_branch
        %212 = sbr.rel (%p210) target = $region32
      $region31: #{auxiliary_psp_forward.2} parent=11 // pred_region
        _
      $region32: #{auxiliary_psp_forward.2} parent=11 // pred_fallthru
        _
    $region12: #{auxiliary_psp_forward.2} parent=5 // pred_fallthru
      _
    %p213 = scmp.lt.s32.totalorder %s12, 2
    // Predicated region
    $region33: #{auxiliary_psp_forward.2} parent=5 // pred_check
      %p214 = pneg %p213
    $region34: #{auxiliary_psp_forward.2} parent=5 // pred_check_branch
      %216 = sbr.rel (%p214) target = $region36
    $region35: #{auxiliary_psp_forward.2} parent=5 // pred_region
      // Predicated region
      $region37: #{auxiliary_psp_forward.2} parent=35 // pred_check
        %p217 = pneg %p44
      $region38: #{auxiliary_psp_forward.2} parent=35 // pred_check_branch
        %219 = sbr.rel (%p217) target = $region40
      $region39: #{auxiliary_psp_forward.2} parent=35 // pred_region
        %p220 = scmp.lt.s32.totalorder %s19, 1
        %s221 = scalar_select %p220, %s19, 1
        %s222 = smul.addr %s221, 54
        %s223 = smul.addr %s222, 4
        %s224 = scalar_lea.vmem %s0, %s223
      $region40: #{auxiliary_psp_forward.2} parent=35 // pred_fallthru
        _
    $region36: #{auxiliary_psp_forward.2} parent=5 // pred_fallthru
      _
    %p225 = scmp.le.s32.totalorder 1, %s12
    %p226 = scmp.lt.s32.totalorder %s12, 3
    %p227 = pnand %p225, %p226
    %p228 = pneg %p227
    // Predicated region
    $region41: #{auxiliary_psp_forward.2} parent=5 // pred_check
      _
    $region42: #{auxiliary_psp_forward.2} parent=5 // pred_check_branch
      %230 = sbr.rel (%p227) target = $region44
    $region43: #{auxiliary_psp_forward.2} parent=5 // pred_region
      %s231 = ssub.s32 %s12, 1
      %p232 = scmp.lt.s32.totalorder %s21, 1
      %s233 = scalar_select %p232, %s21, 1
      %s234 = smul.addr %s233, 54
      %s235 = smul.addr %s234, 4
      %s236 = scalar_lea.vmem %s0, %s235
      %p237 = pneg %p50
      %p238 = pneg %p47
      %p239 = pneg %p71
      %p240 = pneg %p68
      %p241 = pneg %p92
      %p242 = pneg %p89
      %p243 = pneg %p113
      %p244 = pneg %p110
      %p245 = pneg %p134
      %p246 = pneg %p131
      %p247 = pneg %p155
      %p248 = pneg %p152
      %p249 = pneg %p183
      %p250 = pneg %p180
      %s251 = smul.u32 16, %s22
      %p252 = scmp.lt.s32.totalorder %s21, 1
      %s253 = scalar_select %p252, %s21, 1
      %p254 = scmp.lt.s32.totalorder %s251, 15
      %s255 = scalar_select %p254, %s251, 15
      %s256 = smul.addr %s255, 2
      %s257 = smul.addr %s253, 32
      %s258 = sadd.s32 %s256, %s257
      %s259 = smul.addr %s258, 8
      %s260 = scalar_lea.vmem %s6, %s259
      %p261 = scmp.lt.s32.totalorder %s21, 1
      %s262 = scalar_select %p261, %s21, 1
      %s263 = smul.addr %s262, 54
      %s264 = smul.addr %s263, 4
      %s265 = scalar_lea.vmem %s0, %s264
      %s266 = smul.u32 16, %s22
      %p267 = scmp.lt.s32.totalorder %s21, 1
      %s268 = scalar_select %p267, %s21, 1
      %p269 = scmp.lt.s32.totalorder %s266, 15
      %s270 = scalar_select %p269, %s266, 15
      %s271 = smul.addr %s270, 2
      %s272 = smul.addr %s268, 32
      %s273 = sadd.s32 %s271, %s272
      %s274 = smul.addr %s273, 8
      %s275 = scalar_lea.vmem %s6, %s274
      %s276 = smul.u32 16, %s22
      %s278 = smul.u32 %s22, 16
      %s279 = smul.u32 %s278, 3
      %s280 = smul.addr %s279, 4
      %s281 = scalar_lea.vmem %s265, %s280
      %v282 = vld [vmem:[%s281] sm:$0xf]
      %v283 = vld [vmem:[%s281 + $0x4] sm:$0xf]
      %v284 = vld [vmem:[%s281 + $0xc] sm:$0xf]
      %v285 = vld [vmem:[%s281 + $0x10] sm:$0xf]
      %v286 = vld [vmem:[%s281 + $0x18] sm:$0xf]
      %v287 = vld [vmem:[%s281 + $0x1c] sm:$0xf]
      %v288 = vld [vmem:[%s281 + $0x24] sm:$0xf]
      %v289 = vld [vmem:[%s281 + $0x28] sm:$0xf]
      %v290 = vld [vmem:[%s281 + $0x30] sm:$0xf]
      %v291 = vld [vmem:[%s281 + $0x34] sm:$0xf]
      %v292 = vld [vmem:[%s281 + $0x3c] sm:$0xf]
      %v293 = vld [vmem:[%s281 + $0x40] sm:$0xf]
      %v294 = vld [vmem:[%s281 + $0x48] sm:$0xf]
      %v295 = vld [vmem:[%s281 + $0x4c] sm:$0xf]
      %v296 = vld [vmem:[%s281 + $0x54] sm:$0xf]
      %v297 = vld [vmem:[%s281 + $0x58] sm:$0xf]
      %v298 = vld [vmem:[%s281 + $0x60] sm:$0xf]
      %v299 = vld [vmem:[%s281 + $0x64] sm:$0xf]
      %v300 = vld [vmem:[%s281 + $0x6c] sm:$0xf]
      %v301 = vld [vmem:[%s281 + $0x70] sm:$0xf]
      %v302 = vld [vmem:[%s281 + $0x78] sm:$0xf]
      %v303 = vld [vmem:[%s281 + $0x7c] sm:$0xf]
      %v304 = vld [vmem:[%s281 + $0x84] sm:$0xf]
      %v305 = vld [vmem:[%s281 + $0x88] sm:$0xf]
      %v306 = vld [vmem:[%s281 + $0x90] sm:$0xf]
      %v307 = vld [vmem:[%s281 + $0x94] sm:$0xf]
      %v308 = vld [vmem:[%s281 + $0x9c] sm:$0xf]
      %v309 = vld [vmem:[%s281 + $0xa0] sm:$0xf]
      %v310 = vld [vmem:[%s281 + $0xa8] sm:$0xf]
      %v311 = vld [vmem:[%s281 + $0xac] sm:$0xf]
      %v312 = vld [vmem:[%s281 + $0xb4] sm:$0xf]
      %v313 = vld [vmem:[%s281 + $0xb8] sm:$0xf]
      %v314 = vld [vmem:[%s1] sm:$0xff]
      %v315 = vld [vmem:[%s1 + $0x8] sm:$0xff]
      %v316 = vld [vmem:[%s1 + $0x10] sm:$0xff]
      %v317 = vld [vmem:[%s1 + $0x18] sm:$0xff]
      %v350 = vunpack.c.l.b16 %v282
      %v351 = vunpack.c.l.b16 %v283
      %v352 = vunpack.c.l.b16 %v284
      %v353 = vunpack.c.l.b16 %v285
      %v354 = vunpack.c.l.b16 %v286
      %v355 = vunpack.c.l.b16 %v287
      %v356 = vunpack.c.l.b16 %v288
      %v357 = vunpack.c.l.b16 %v289
      %v358 = vunpack.c.l.b16 %v290
      %v359 = vunpack.c.l.b16 %v291
      %v360 = vunpack.c.l.b16 %v292
      %v361 = vunpack.c.l.b16 %v293
      %v362 = vunpack.c.l.b16 %v294
      %v363 = vunpack.c.l.b16 %v295
      %v364 = vunpack.c.l.b16 %v296
      %v365 = vunpack.c.l.b16 %v297
      %v366 = vunpack.c.l.b16 %v298
      %v367 = vunpack.c.l.b16 %v299
      %v368 = vunpack.c.l.b16 %v300
      %v369 = vunpack.c.l.b16 %v301
      %v370 = vunpack.c.l.b16 %v302
      %v371 = vunpack.c.l.b16 %v303
      %v372 = vunpack.c.l.b16 %v304
      %v373 = vunpack.c.l.b16 %v305
      %v374 = vunpack.c.l.b16 %v306
      %v375 = vunpack.c.l.b16 %v307
      %v376 = vunpack.c.l.b16 %v308
      %v377 = vunpack.c.l.b16 %v309
      %v378 = vunpack.c.l.b16 %v310
      %v379 = vunpack.c.l.b16 %v311
      %v380 = vunpack.c.l.b16 %v312
      %v381 = vunpack.c.l.b16 %v313
      %v382 = vpack.c.b16 %v351, %v350
      %v383 = vpack.c.b16 %v353, %v352
      %v384 = vpack.c.b16 %v355, %v354
      %v385 = vpack.c.b16 %v357, %v356
      %v386 = vpack.c.b16 %v359, %v358
      %v387 = vpack.c.b16 %v361, %v360
      %v388 = vpack.c.b16 %v363, %v362
      %v389 = vpack.c.b16 %v365, %v364
      %v390 = vpack.c.b16 %v367, %v366
      %v391 = vpack.c.b16 %v369, %v368
      %v392 = vpack.c.b16 %v371, %v370
      %v393 = vpack.c.b16 %v373, %v372
      %v394 = vpack.c.b16 %v375, %v374
      %v395 = vpack.c.b16 %v377, %v376
      %v396 = vpack.c.b16 %v379, %v378
      %v397 = vpack.c.b16 %v381, %v380
      %v402 = vunpack.c.l.b16 %v314
      %v403 = vunpack.c.h.b16 %v314
      %v404 = vunpack.c.l.b16 %v315
      %v405 = vunpack.c.h.b16 %v315
      %v406 = vunpack.c.l.b16 %v316
      %v407 = vunpack.c.h.b16 %v316
      %v408 = vunpack.c.l.b16 %v317
      %v409 = vunpack.c.h.b16 %v317
      %v410 = vpack.c.b16 %v404, %v402
      %v411 = vpack.c.b16 %v405, %v403
      %v412 = vpack.c.b16 %v408, %v406
      %v413 = vpack.c.b16 %v409, %v407
      %vm418 = vcmask 261120
      %v420 = vsel %vm418, %v382, 0
      %v423 = vsel %vm418, %v383, 0
      %v426 = vsel %vm418, %v384, 0
      %v429 = vsel %vm418, %v385, 0
      %v432 = vsel %vm418, %v386, 0
      %v435 = vsel %vm418, %v387, 0
      %v438 = vsel %vm418, %v388, 0
      %v441 = vsel %vm418, %v389, 0
      %v444 = vsel %vm418, %v390, 0
      %v447 = vsel %vm418, %v391, 0
      %v450 = vsel %vm418, %v392, 0
      %v453 = vsel %vm418, %v393, 0
      %v456 = vsel %vm418, %v394, 0
      %v459 = vsel %vm418, %v395, 0
      %v462 = vsel %vm418, %v396, 0
      %v465 = vsel %vm418, %v397, 0
      %467 = vmatpush.bf16.msra.mxu0 0
      %468 = vmatpush.bf16.msra.mxu0 0
      %469 = vmatpush.bf16.msra.mxu0 0
      %470 = vmatpush.bf16.msra.mxu0 0
      %471 = vmatpush.bf16.msra.mxu0 0
      %472 = vmatpush.bf16.msra.mxu0 0
      %473 = vmatpush.bf16.msra.mxu0 %v412
      %474 = vmatpush.bf16.msra.mxu0 %v410
      %475 = vmatmul.bf16.gmra.mxu0 %v420
      %v476 = vpop.f32.mrf.mxu0
      %v477 = vadd.f32 0.0, %v476
      %v478 = vpop.f32.mrf.mxu0
      %v479 = vadd.f32 0.0, %v478
      %480 = vmatmul.bf16.gmra.mxu0 %v423
      %v481 = vpop.f32.mrf.mxu0
      %v482 = vadd.f32 0.0, %v481
      %v483 = vpop.f32.mrf.mxu0
      %v484 = vadd.f32 0.0, %v483
      %485 = vmatmul.bf16.gmra.mxu0 %v426
      %v486 = vpop.f32.mrf.mxu0
      %v487 = vadd.f32 0.0, %v486
      %v488 = vpop.f32.mrf.mxu0
      %v489 = vadd.f32 0.0, %v488
      %490 = vmatmul.bf16.gmra.mxu0 %v429
      %v491 = vpop.f32.mrf.mxu0
      %v492 = vadd.f32 0.0, %v491
      %v493 = vpop.f32.mrf.mxu0
      %v494 = vadd.f32 0.0, %v493
      %495 = vmatmul.bf16.gmra.mxu0 %v432
      %v496 = vpop.f32.mrf.mxu0
      %v497 = vadd.f32 0.0, %v496
      %v498 = vpop.f32.mrf.mxu0
      %v499 = vadd.f32 0.0, %v498
      %500 = vmatmul.bf16.gmra.mxu0 %v435
      %v501 = vpop.f32.mrf.mxu0
      %v502 = vadd.f32 0.0, %v501
      %v503 = vpop.f32.mrf.mxu0
      %v504 = vadd.f32 0.0, %v503
      %505 = vmatmul.bf16.gmra.mxu0 %v438
      %v506 = vpop.f32.mrf.mxu0
      %v507 = vadd.f32 0.0, %v506
      %v508 = vpop.f32.mrf.mxu0
      %v509 = vadd.f32 0.0, %v508
      %510 = vmatmul.bf16.gmra.mxu0 %v441
      %v511 = vpop.f32.mrf.mxu0
      %v512 = vadd.f32 0.0, %v511
      %v513 = vpop.f32.mrf.mxu0
      %v514 = vadd.f32 0.0, %v513
      %515 = vmatmul.bf16.gmra.mxu0 %v444
      %v516 = vpop.f32.mrf.mxu0
      %v517 = vadd.f32 0.0, %v516
      %v518 = vpop.f32.mrf.mxu0
      %v519 = vadd.f32 0.0, %v518
      %520 = vmatmul.bf16.gmra.mxu0 %v447
      %v521 = vpop.f32.mrf.mxu0
      %v522 = vadd.f32 0.0, %v521
      %v523 = vpop.f32.mrf.mxu0
      %v524 = vadd.f32 0.0, %v523
      %525 = vmatmul.bf16.gmra.mxu0 %v450
      %v526 = vpop.f32.mrf.mxu0
      %v527 = vadd.f32 0.0, %v526
      %v528 = vpop.f32.mrf.mxu0
      %v529 = vadd.f32 0.0, %v528
      %530 = vmatmul.bf16.gmra.mxu0 %v453
      %v531 = vpop.f32.mrf.mxu0
      %v532 = vadd.f32 0.0, %v531
      %v533 = vpop.f32.mrf.mxu0
      %v534 = vadd.f32 0.0, %v533
      %535 = vmatmul.bf16.gmra.mxu0 %v456
      %v536 = vpop.f32.mrf.mxu0
      %v537 = vadd.f32 0.0, %v536
      %v538 = vpop.f32.mrf.mxu0
      %v539 = vadd.f32 0.0, %v538
      %540 = vmatmul.bf16.gmra.mxu0 %v459
      %v541 = vpop.f32.mrf.mxu0
      %v542 = vadd.f32 0.0, %v541
      %v543 = vpop.f32.mrf.mxu0
      %v544 = vadd.f32 0.0, %v543
      %545 = vmatmul.bf16.gmra.mxu0 %v462
      %v546 = vpop.f32.mrf.mxu0
      %v547 = vadd.f32 0.0, %v546
      %v548 = vpop.f32.mrf.mxu0
      %v549 = vadd.f32 0.0, %v548
      %550 = vmatmul.bf16.gmra.mxu0 %v465
      %v551 = vpop.f32.mrf.mxu0
      %v552 = vadd.f32 0.0, %v551
      %v553 = vpop.f32.mrf.mxu0
      %v554 = vadd.f32 0.0, %v553
      %555 = vdwg.mxu0
      %556 = vmatpush.bf16.msra.mxu0 0
      %557 = vmatpush.bf16.msra.mxu0 0
      %558 = vmatpush.bf16.msra.mxu0 0
      %559 = vmatpush.bf16.msra.mxu0 0
      %560 = vmatpush.bf16.msra.mxu0 0
      %561 = vmatpush.bf16.msra.mxu0 0
      %562 = vmatpush.bf16.msra.mxu0 %v413
      %563 = vmatpush.bf16.msra.mxu0 %v411
      %564 = vmatmul.bf16.gmra.mxu0 %v420
      %v565 = vpop.f32.mrf.mxu0
      %v566 = vadd.f32 0.0, %v565
      %v567 = vpop.f32.mrf.mxu0
      %v568 = vadd.f32 0.0, %v567
      %569 = vmatmul.bf16.gmra.mxu0 %v423
      %v570 = vpop.f32.mrf.mxu0
      %v571 = vadd.f32 0.0, %v570
      %v572 = vpop.f32.mrf.mxu0
      %v573 = vadd.f32 0.0, %v572
      %574 = vmatmul.bf16.gmra.mxu0 %v426
      %v575 = vpop.f32.mrf.mxu0
      %v576 = vadd.f32 0.0, %v575
      %v577 = vpop.f32.mrf.mxu0
      %v578 = vadd.f32 0.0, %v577
      %579 = vmatmul.bf16.gmra.mxu0 %v429
      %v580 = vpop.f32.mrf.mxu0
      %v581 = vadd.f32 0.0, %v580
      %v582 = vpop.f32.mrf.mxu0
      %v583 = vadd.f32 0.0, %v582
      %584 = vmatmul.bf16.gmra.mxu0 %v432
      %v585 = vpop.f32.mrf.mxu0
      %v586 = vadd.f32 0.0, %v585
      %v587 = vpop.f32.mrf.mxu0
      %v588 = vadd.f32 0.0, %v587
      %589 = vmatmul.bf16.gmra.mxu0 %v435
      %v590 = vpop.f32.mrf.mxu0
      %v591 = vadd.f32 0.0, %v590
      %v592 = vpop.f32.mrf.mxu0
      %v593 = vadd.f32 0.0, %v592
      %594 = vmatmul.bf16.gmra.mxu0 %v438
      %v595 = vpop.f32.mrf.mxu0
      %v596 = vadd.f32 0.0, %v595
      %v597 = vpop.f32.mrf.mxu0
      %v598 = vadd.f32 0.0, %v597
      %599 = vmatmul.bf16.gmra.mxu0 %v441
      %v600 = vpop.f32.mrf.mxu0
      %v601 = vadd.f32 0.0, %v600
      %v602 = vpop.f32.mrf.mxu0
      %v603 = vadd.f32 0.0, %v602
      %604 = vmatmul.bf16.gmra.mxu0 %v444
      %v605 = vpop.f32.mrf.mxu0
      %v606 = vadd.f32 0.0, %v605
      %v607 = vpop.f32.mrf.mxu0
      %v608 = vadd.f32 0.0, %v607
      %609 = vmatmul.bf16.gmra.mxu0 %v447
      %v610 = vpop.f32.mrf.mxu0
      %v611 = vadd.f32 0.0, %v610
      %v612 = vpop.f32.mrf.mxu0
      %v613 = vadd.f32 0.0, %v612
      %614 = vmatmul.bf16.gmra.mxu0 %v450
      %v615 = vpop.f32.mrf.mxu0
      %v616 = vadd.f32 0.0, %v615
      %v617 = vpop.f32.mrf.mxu0
      %v618 = vadd.f32 0.0, %v617
      %619 = vmatmul.bf16.gmra.mxu0 %v453
      %v620 = vpop.f32.mrf.mxu0
      %v621 = vadd.f32 0.0, %v620
      %v622 = vpop.f32.mrf.mxu0
      %v623 = vadd.f32 0.0, %v622
      %624 = vmatmul.bf16.gmra.mxu0 %v456
      %v625 = vpop.f32.mrf.mxu0
      %v626 = vadd.f32 0.0, %v625
      %v627 = vpop.f32.mrf.mxu0
      %v628 = vadd.f32 0.0, %v627
      %629 = vmatmul.bf16.gmra.mxu0 %v459
      %v630 = vpop.f32.mrf.mxu0
      %v631 = vadd.f32 0.0, %v630
      %v632 = vpop.f32.mrf.mxu0
      %v633 = vadd.f32 0.0, %v632
      %634 = vmatmul.bf16.gmra.mxu0 %v462
      %v635 = vpop.f32.mrf.mxu0
      %v636 = vadd.f32 0.0, %v635
      %v637 = vpop.f32.mrf.mxu0
      %v638 = vadd.f32 0.0, %v637
      %639 = vmatmul.bf16.gmra.mxu0 %v465
      %v640 = vpop.f32.mrf.mxu0
      %v641 = vadd.f32 0.0, %v640
      %v642 = vpop.f32.mrf.mxu0
      %v643 = vadd.f32 0.0, %v642
      %644 = vdwg.mxu0
      %645 = vst [vmem:[#allocation2] sm:$0xff] %v477
      %646 = vst [vmem:[#allocation2 + $0x8] sm:$0xff] %v566
      %647 = vst [vmem:[#allocation2 + $0x10] sm:$0xff] %v479
      %648 = vst [vmem:[#allocation2 + $0x18] sm:$0xff] %v568
      %649 = vst [vmem:[#allocation2 + $0x20] sm:$0xff] %v482
      %650 = vst [vmem:[#allocation2 + $0x28] sm:$0xff] %v571
      %651 = vst [vmem:[#allocation2 + $0x30] sm:$0xff] %v484
      %652 = vst [vmem:[#allocation2 + $0x38] sm:$0xff] %v573
      %653 = vst [vmem:[#allocation2 + $0x40] sm:$0xff] %v487
      %654 = vst [vmem:[#allocation2 + $0x48] sm:$0xff] %v576
      %655 = vst [vmem:[#allocation2 + $0x50] sm:$0xff] %v489
      %656 = vst [vmem:[#allocation2 + $0x58] sm:$0xff] %v578
      %657 = vst [vmem:[#allocation2 + $0x60] sm:$0xff] %v492
      %658 = vst [vmem:[#allocation2 + $0x68] sm:$0xff] %v581
      %659 = vst [vmem:[#allocation2 + $0x70] sm:$0xff] %v494
      %660 = vst [vmem:[#allocation2 + $0x78] sm:$0xff] %v583
      %661 = vst [vmem:[#allocation2 + $0x80] sm:$0xff] %v497
      %662 = vst [vmem:[#allocation2 + $0x88] sm:$0xff] %v586
      %663 = vst [vmem:[#allocation2 + $0x90] sm:$0xff] %v499
      %664 = vst [vmem:[#allocation2 + $0x98] sm:$0xff] %v588
      %665 = vst [vmem:[#allocation2 + $0xa0] sm:$0xff] %v502
      %666 = vst [vmem:[#allocation2 + $0xa8] sm:$0xff] %v591
      %667 = vst [vmem:[#allocation2 + $0xb0] sm:$0xff] %v504
      %668 = vst [vmem:[#allocation2 + $0xb8] sm:$0xff] %v593
      %669 = vst [vmem:[#allocation2 + $0xc0] sm:$0xff] %v507
      %670 = vst [vmem:[#allocation2 + $0xc8] sm:$0xff] %v596
      %671 = vst [vmem:[#allocation2 + $0xd0] sm:$0xff] %v509
      %672 = vst [vmem:[#allocation2 + $0xd8] sm:$0xff] %v598
      %673 = vst [vmem:[#allocation2 + $0xe0] sm:$0xff] %v512
      %674 = vst [vmem:[#allocation2 + $0xe8] sm:$0xff] %v601
      %675 = vst [vmem:[#allocation2 + $0xf0] sm:$0xff] %v514
      %676 = vst [vmem:[#allocation2 + $0xf8] sm:$0xff] %v603
      %677 = vst [vmem:[#allocation2 + $0x100] sm:$0xff] %v517
      %678 = vst [vmem:[#allocation2 + $0x108] sm:$0xff] %v606
      %679 = vst [vmem:[#allocation2 + $0x110] sm:$0xff] %v519
      %680 = vst [vmem:[#allocation2 + $0x118] sm:$0xff] %v608
      %681 = vst [vmem:[#allocation2 + $0x120] sm:$0xff] %v522
      %682 = vst [vmem:[#allocation2 + $0x128] sm:$0xff] %v611
      %683 = vst [vmem:[#allocation2 + $0x130] sm:$0xff] %v524
      %684 = vst [vmem:[#allocation2 + $0x138] sm:$0xff] %v613
      %685 = vst [vmem:[#allocation2 + $0x140] sm:$0xff] %v527
      %686 = vst [vmem:[#allocation2 + $0x148] sm:$0xff] %v616
      %687 = vst [vmem:[#allocation2 + $0x150] sm:$0xff] %v529
      %688 = vst [vmem:[#allocation2 + $0x158] sm:$0xff] %v618
      %689 = vst [vmem:[#allocation2 + $0x160] sm:$0xff] %v532
      %690 = vst [vmem:[#allocation2 + $0x168] sm:$0xff] %v621
      %691 = vst [vmem:[#allocation2 + $0x170] sm:$0xff] %v534
      %692 = vst [vmem:[#allocation2 + $0x178] sm:$0xff] %v623
      %693 = vst [vmem:[#allocation2 + $0x180] sm:$0xff] %v537
      %694 = vst [vmem:[#allocation2 + $0x188] sm:$0xff] %v626
      %695 = vst [vmem:[#allocation2 + $0x190] sm:$0xff] %v539
      %696 = vst [vmem:[#allocation2 + $0x198] sm:$0xff] %v628
      %697 = vst [vmem:[#allocation2 + $0x1a0] sm:$0xff] %v542
      %698 = vst [vmem:[#allocation2 + $0x1a8] sm:$0xff] %v631
      %699 = vst [vmem:[#allocation2 + $0x1b0] sm:$0xff] %v544
      %700 = vst [vmem:[#allocation2 + $0x1b8] sm:$0xff] %v633
      %701 = vst [vmem:[#allocation2 + $0x1c0] sm:$0xff] %v547
      %702 = vst [vmem:[#allocation2 + $0x1c8] sm:$0xff] %v636
      %703 = vst [vmem:[#allocation2 + $0x1d0] sm:$0xff] %v549
      %704 = vst [vmem:[#allocation2 + $0x1d8] sm:$0xff] %v638
      %705 = vst [vmem:[#allocation2 + $0x1e0] sm:$0xff] %v552
      %706 = vst [vmem:[#allocation2 + $0x1e8] sm:$0xff] %v641
      %707 = vst [vmem:[#allocation2 + $0x1f0] sm:$0xff] %v554
      %708 = vst [vmem:[#allocation2 + $0x1f8] sm:$0xff] %v643
      %v709 = vld [vmem:[%s281] sm:$0xf]
      %v710 = vld [vmem:[%s281 + $0x4] sm:$0xf]
      %v711 = vld [vmem:[%s281 + $0x8] sm:$0x1]
      %v712 = vld [vmem:[%s281 + $0xc] sm:$0xf]
      %v713 = vld [vmem:[%s281 + $0x10] sm:$0xf]
      %v714 = vld [vmem:[%s281 + $0x14] sm:$0x1]
      %v715 = vld [vmem:[%s281 + $0x18] sm:$0xf]
      %v716 = vld [vmem:[%s281 + $0x1c] sm:$0xf]
      %v717 = vld [vmem:[%s281 + $0x20] sm:$0x1]
      %v718 = vld [vmem:[%s281 + $0x24] sm:$0xf]
      %v719 = vld [vmem:[%s281 + $0x28] sm:$0xf]
      %v720 = vld [vmem:[%s281 + $0x2c] sm:$0x1]
      %v721 = vld [vmem:[%s281 + $0x30] sm:$0xf]
      %v722 = vld [vmem:[%s281 + $0x34] sm:$0xf]
      %v723 = vld [vmem:[%s281 + $0x38] sm:$0x1]
      %v724 = vld [vmem:[%s281 + $0x3c] sm:$0xf]
      %v725 = vld [vmem:[%s281 + $0x40] sm:$0xf]
      %v726 = vld [vmem:[%s281 + $0x44] sm:$0x1]
      %v727 = vld [vmem:[%s281 + $0x48] sm:$0xf]
      %v728 = vld [vmem:[%s281 + $0x4c] sm:$0xf]
      %v729 = vld [vmem:[%s281 + $0x50] sm:$0x1]
      %v730 = vld [vmem:[%s281 + $0x54] sm:$0xf]
      %v731 = vld [vmem:[%s281 + $0x58] sm:$0xf]
      %v732 = vld [vmem:[%s281 + $0x5c] sm:$0x1]
      %v733 = vld [vmem:[%s281 + $0x60] sm:$0xf]
      %v734 = vld [vmem:[%s281 + $0x64] sm:$0xf]
      %v735 = vld [vmem:[%s281 + $0x68] sm:$0x1]
      %v736 = vld [vmem:[%s281 + $0x6c] sm:$0xf]
      %v737 = vld [vmem:[%s281 + $0x70] sm:$0xf]
      %v738 = vld [vmem:[%s281 + $0x74] sm:$0x1]
      %v739 = vld [vmem:[%s281 + $0x78] sm:$0xf]
      %v740 = vld [vmem:[%s281 + $0x7c] sm:$0xf]
      %v741 = vld [vmem:[%s281 + $0x80] sm:$0x1]
      %v742 = vld [vmem:[%s281 + $0x84] sm:$0xf]
      %v743 = vld [vmem:[%s281 + $0x88] sm:$0xf]
      %v744 = vld [vmem:[%s281 + $0x8c] sm:$0x1]
      %v745 = vld [vmem:[%s281 + $0x90] sm:$0xf]
      %v746 = vld [vmem:[%s281 + $0x94] sm:$0xf]
      %v747 = vld [vmem:[%s281 + $0x98] sm:$0x1]
      %v748 = vld [vmem:[%s281 + $0x9c] sm:$0xf]
      %v749 = vld [vmem:[%s281 + $0xa0] sm:$0xf]
      %v750 = vld [vmem:[%s281 + $0xa4] sm:$0x1]
      %v751 = vld [vmem:[%s281 + $0xa8] sm:$0xf]
      %v752 = vld [vmem:[%s281 + $0xac] sm:$0xf]
      %v753 = vld [vmem:[%s281 + $0xb0] sm:$0x1]
      %v754 = vld [vmem:[%s281 + $0xb4] sm:$0xf]
      %v755 = vld [vmem:[%s281 + $0xb8] sm:$0xf]
      %v756 = vld [vmem:[%s281 + $0xbc] sm:$0x1]
      %vm757 = vsmask.f32 3328
      %vm758 = vsmask.f32 7440
      %vm759 = vmor %vm757, %vm758
      %v761 = vshrl.u32 %v709, 16
      %v763 = vrot.slane %v761, 4
      %v764 = vshll.u32 %v709, 16
      %v766 = vrot.slane %v764, 5
      %v767 = vor.u32 %v763, %v766
      %v768 = vrot.slane %v767, 4
      %v770 = vshll.u32 %v710, 16
      %v772 = vrot.slane %v770, 5
      %v773 = vsel %vm759, %v768, %v772
      %v774 = vshrl.u32 %v710, 16
      %v776 = vrot.slane %v774, 4
      %v777 = vor.u32 %v776, %v772
      %v778 = vrot.slane %v777, 4
      %v780 = vshll.u32 %v711, 16
      %v782 = vrot.slane %v780, 5
      %v783 = vsel %vm759, %v778, %v782
      %v785 = vshrl.u32 %v712, 16
      %v787 = vrot.slane %v785, 4
      %v788 = vshll.u32 %v712, 16
      %v790 = vrot.slane %v788, 5
      %v791 = vor.u32 %v787, %v790
      %v792 = vrot.slane %v791, 4
      %v794 = vshll.u32 %v713, 16
      %v796 = vrot.slane %v794, 5
      %v797 = vsel %vm759, %v792, %v796
      %v798 = vshrl.u32 %v713, 16
      %v800 = vrot.slane %v798, 4
      %v801 = vor.u32 %v800, %v796
      %v802 = vrot.slane %v801, 4
      %v804 = vshll.u32 %v714, 16
      %v806 = vrot.slane %v804, 5
      %v807 = vsel %vm759, %v802, %v806
      %v809 = vshrl.u32 %v715, 16
      %v811 = vrot.slane %v809, 4
      %v812 = vshll.u32 %v715, 16
      %v814 = vrot.slane %v812, 5
      %v815 = vor.u32 %v811, %v814
      %v816 = vrot.slane %v815, 4
      %v818 = vshll.u32 %v716, 16
      %v820 = vrot.slane %v818, 5
      %v821 = vsel %vm759, %v816, %v820
      %v822 = vshrl.u32 %v716, 16
      %v824 = vrot.slane %v822, 4
      %v825 = vor.u32 %v824, %v820
      %v826 = vrot.slane %v825, 4
      %v828 = vshll.u32 %v717, 16
      %v830 = vrot.slane %v828, 5
      %v831 = vsel %vm759, %v826, %v830
      %v833 = vshrl.u32 %v718, 16
      %v835 = vrot.slane %v833, 4
      %v836 = vshll.u32 %v718, 16
      %v838 = vrot.slane %v836, 5
      %v839 = vor.u32 %v835, %v838
      %v840 = vrot.slane %v839, 4
      %v842 = vshll.u32 %v719, 16
      %v844 = vrot.slane %v842, 5
      %v845 = vsel %vm759, %v840, %v844
      %v846 = vshrl.u32 %v719, 16
      %v848 = vrot.slane %v846, 4
      %v849 = vor.u32 %v848, %v844
      %v850 = vrot.slane %v849, 4
      %v852 = vshll.u32 %v720, 16
      %v854 = vrot.slane %v852, 5
      %v855 = vsel %vm759, %v850, %v854
      %v857 = vshrl.u32 %v721, 16
      %v859 = vrot.slane %v857, 4
      %v860 = vshll.u32 %v721, 16
      %v862 = vrot.slane %v860, 5
      %v863 = vor.u32 %v859, %v862
      %v864 = vrot.slane %v863, 4
      %v866 = vshll.u32 %v722, 16
      %v868 = vrot.slane %v866, 5
      %v869 = vsel %vm759, %v864, %v868
      %v870 = vshrl.u32 %v722, 16
      %v872 = vrot.slane %v870, 4
      %v873 = vor.u32 %v872, %v868
      %v874 = vrot.slane %v873, 4
      %v876 = vshll.u32 %v723, 16
      %v878 = vrot.slane %v876, 5
      %v879 = vsel %vm759, %v874, %v878
      %v881 = vshrl.u32 %v724, 16
      %v883 = vrot.slane %v881, 4
      %v884 = vshll.u32 %v724, 16
      %v886 = vrot.slane %v884, 5
      %v887 = vor.u32 %v883, %v886
      %v888 = vrot.slane %v887, 4
      %v890 = vshll.u32 %v725, 16
      %v892 = vrot.slane %v890, 5
      %v893 = vsel %vm759, %v888, %v892
      %v894 = vshrl.u32 %v725, 16
      %v896 = vrot.slane %v894, 4
      %v897 = vor.u32 %v896, %v892
      %v898 = vrot.slane %v897, 4
      %v900 = vshll.u32 %v726, 16
      %v902 = vrot.slane %v900, 5
      %v903 = vsel %vm759, %v898, %v902
      %v905 = vshrl.u32 %v727, 16
      %v907 = vrot.slane %v905, 4
      %v908 = vshll.u32 %v727, 16
      %v910 = vrot.slane %v908, 5
      %v911 = vor.u32 %v907, %v910
      %v912 = vrot.slane %v911, 4
      %v914 = vshll.u32 %v728, 16
      %v916 = vrot.slane %v914, 5
      %v917 = vsel %vm759, %v912, %v916
      %v918 = vshrl.u32 %v728, 16
      %v920 = vrot.slane %v918, 4
      %v921 = vor.u32 %v920, %v916
      %v922 = vrot.slane %v921, 4
      %v924 = vshll.u32 %v729, 16
      %v926 = vrot.slane %v924, 5
      %v927 = vsel %vm759, %v922, %v926
      %v929 = vshrl.u32 %v730, 16
      %v931 = vrot.slane %v929, 4
      %v932 = vshll.u32 %v730, 16
      %v934 = vrot.slane %v932, 5
      %v935 = vor.u32 %v931, %v934
      %v936 = vrot.slane %v935, 4
      %v938 = vshll.u32 %v731, 16
      %v940 = vrot.slane %v938, 5
      %v941 = vsel %vm759, %v936, %v940
      %v942 = vshrl.u32 %v731, 16
      %v944 = vrot.slane %v942, 4
      %v945 = vor.u32 %v944, %v940
      %v946 = vrot.slane %v945, 4
      %v948 = vshll.u32 %v732, 16
      %v950 = vrot.slane %v948, 5
      %v951 = vsel %vm759, %v946, %v950
      %v953 = vshrl.u32 %v733, 16
      %v955 = vrot.slane %v953, 4
      %v956 = vshll.u32 %v733, 16
      %v958 = vrot.slane %v956, 5
      %v959 = vor.u32 %v955, %v958
      %v960 = vrot.slane %v959, 4
      %v962 = vshll.u32 %v734, 16
      %v964 = vrot.slane %v962, 5
      %v965 = vsel %vm759, %v960, %v964
      %v966 = vshrl.u32 %v734, 16
      %v968 = vrot.slane %v966, 4
      %v969 = vor.u32 %v968, %v964
      %v970 = vrot.slane %v969, 4
      %v972 = vshll.u32 %v735, 16
      %v974 = vrot.slane %v972, 5
      %v975 = vsel %vm759, %v970, %v974
      %v977 = vshrl.u32 %v736, 16
      %v979 = vrot.slane %v977, 4
      %v980 = vshll.u32 %v736, 16
      %v982 = vrot.slane %v980, 5
      %v983 = vor.u32 %v979, %v982
      %v984 = vrot.slane %v983, 4
      %v986 = vshll.u32 %v737, 16
      %v988 = vrot.slane %v986, 5
      %v989 = vsel %vm759, %v984, %v988
      %v990 = vshrl.u32 %v737, 16
      %v992 = vrot.slane %v990, 4
      %v993 = vor.u32 %v992, %v988
      %v994 = vrot.slane %v993, 4
      %v996 = vshll.u32 %v738, 16
      %v998 = vrot.slane %v996, 5
      %v999 = vsel %vm759, %v994, %v998
      %v1001 = vshrl.u32 %v739, 16
      %v1003 = vrot.slane %v1001, 4
      %v1004 = vshll.u32 %v739, 16
      %v1006 = vrot.slane %v1004, 5
      %v1007 = vor.u32 %v1003, %v1006
      %v1008 = vrot.slane %v1007, 4
      %v1010 = vshll.u32 %v740, 16
      %v1012 = vrot.slane %v1010, 5
      %v1013 = vsel %vm759, %v1008, %v1012
      %v1014 = vshrl.u32 %v740, 16
      %v1016 = vrot.slane %v1014, 4
      %v1017 = vor.u32 %v1016, %v1012
      %v1018 = vrot.slane %v1017, 4
      %v1020 = vshll.u32 %v741, 16
      %v1022 = vrot.slane %v1020, 5
      %v1023 = vsel %vm759, %v1018, %v1022
      %v1025 = vshrl.u32 %v742, 16
      %v1027 = vrot.slane %v1025, 4
      %v1028 = vshll.u32 %v742, 16
      %v1030 = vrot.slane %v1028, 5
      %v1031 = vor.u32 %v1027, %v1030
      %v1032 = vrot.slane %v1031, 4
      %v1034 = vshll.u32 %v743, 16
      %v1036 = vrot.slane %v1034, 5
      %v1037 = vsel %vm759, %v1032, %v1036
      %v1038 = vshrl.u32 %v743, 16
      %v1040 = vrot.slane %v1038, 4
      %v1041 = vor.u32 %v1040, %v1036
      %v1042 = vrot.slane %v1041, 4
      %v1044 = vshll.u32 %v744, 16
      %v1046 = vrot.slane %v1044, 5
      %v1047 = vsel %vm759, %v1042, %v1046
      %v1049 = vshrl.u32 %v745, 16
      %v1051 = vrot.slane %v1049, 4
      %v1052 = vshll.u32 %v745, 16
      %v1054 = vrot.slane %v1052, 5
      %v1055 = vor.u32 %v1051, %v1054
      %v1056 = vrot.slane %v1055, 4
      %v1058 = vshll.u32 %v746, 16
      %v1060 = vrot.slane %v1058, 5
      %v1061 = vsel %vm759, %v1056, %v1060
      %v1062 = vshrl.u32 %v746, 16
      %v1064 = vrot.slane %v1062, 4
      %v1065 = vor.u32 %v1064, %v1060
      %v1066 = vrot.slane %v1065, 4
      %v1068 = vshll.u32 %v747, 16
      %v1070 = vrot.slane %v1068, 5
      %v1071 = vsel %vm759, %v1066, %v1070
      %v1073 = vshrl.u32 %v748, 16
      %v1075 = vrot.slane %v1073, 4
      %v1076 = vshll.u32 %v748, 16
      %v1078 = vrot.slane %v1076, 5
      %v1079 = vor.u32 %v1075, %v1078
      %v1080 = vrot.slane %v1079, 4
      %v1082 = vshll.u32 %v749, 16
      %v1084 = vrot.slane %v1082, 5
      %v1085 = vsel %vm759, %v1080, %v1084
      %v1086 = vshrl.u32 %v749, 16
      %v1088 = vrot.slane %v1086, 4
      %v1089 = vor.u32 %v1088, %v1084
      %v1090 = vrot.slane %v1089, 4
      %v1092 = vshll.u32 %v750, 16
      %v1094 = vrot.slane %v1092, 5
      %v1095 = vsel %vm759, %v1090, %v1094
      %v1097 = vshrl.u32 %v751, 16
      %v1099 = vrot.slane %v1097, 4
      %v1100 = vshll.u32 %v751, 16
      %v1102 = vrot.slane %v1100, 5
      %v1103 = vor.u32 %v1099, %v1102
      %v1104 = vrot.slane %v1103, 4
      %v1106 = vshll.u32 %v752, 16
      %v1108 = vrot.slane %v1106, 5
      %v1109 = vsel %vm759, %v1104, %v1108
      %v1110 = vshrl.u32 %v752, 16
      %v1112 = vrot.slane %v1110, 4
      %v1113 = vor.u32 %v1112, %v1108
      %v1114 = vrot.slane %v1113, 4
      %v1116 = vshll.u32 %v753, 16
      %v1118 = vrot.slane %v1116, 5
      %v1119 = vsel %vm759, %v1114, %v1118
      %v1121 = vshrl.u32 %v754, 16
      %v1123 = vrot.slane %v1121, 4
      %v1124 = vshll.u32 %v754, 16
      %v1126 = vrot.slane %v1124, 5
      %v1127 = vor.u32 %v1123, %v1126
      %v1128 = vrot.slane %v1127, 4
      %v1130 = vshll.u32 %v755, 16
      %v1132 = vrot.slane %v1130, 5
      %v1133 = vsel %vm759, %v1128, %v1132
      %v1134 = vshrl.u32 %v755, 16
      %v1136 = vrot.slane %v1134, 4
      %v1137 = vor.u32 %v1136, %v1132
      %v1138 = vrot.slane %v1137, 4
      %v1140 = vshll.u32 %v756, 16
      %v1142 = vrot.slane %v1140, 5
      %v1143 = vsel %vm759, %v1138, %v1142
      %s1144 = scalar_lea.vmem %s1, 32
      %v1145 = vld [vmem:[%s1144] sm:$0xff]
      %v1146 = vld [vmem:[%s1144 + $0x8] sm:$0xff]
      %v1147 = vld [vmem:[%s1144 + $0x10] sm:$0xff]
      %v1148 = vld [vmem:[%s1144 + $0x18] sm:$0xff]
      %v1149 = vunpack.c.l.b16 %v773
      %v1150 = vunpack.c.l.b16 %v783
      %v1151 = vunpack.c.l.b16 %v797
      %v1152 = vunpack.c.l.b16 %v807
      %v1153 = vunpack.c.l.b16 %v821
      %v1154 = vunpack.c.l.b16 %v831
      %v1155 = vunpack.c.l.b16 %v845
      %v1156 = vunpack.c.l.b16 %v855
      %v1157 = vunpack.c.l.b16 %v869
      %v1158 = vunpack.c.l.b16 %v879
      %v1159 = vunpack.c.l.b16 %v893
      %v1160 = vunpack.c.l.b16 %v903
      %v1161 = vunpack.c.l.b16 %v917
      %v1162 = vunpack.c.l.b16 %v927
      %v1163 = vunpack.c.l.b16 %v941
      %v1164 = vunpack.c.l.b16 %v951
      %v1165 = vunpack.c.l.b16 %v965
      %v1166 = vunpack.c.l.b16 %v975
      %v1167 = vunpack.c.l.b16 %v989
      %v1168 = vunpack.c.l.b16 %v999
      %v1169 = vunpack.c.l.b16 %v1013
      %v1170 = vunpack.c.l.b16 %v1023
      %v1171 = vunpack.c.l.b16 %v1037
      %v1172 = vunpack.c.l.b16 %v1047
      %v1173 = vunpack.c.l.b16 %v1061
      %v1174 = vunpack.c.l.b16 %v1071
      %v1175 = vunpack.c.l.b16 %v1085
      %v1176 = vunpack.c.l.b16 %v1095
      %v1177 = vunpack.c.l.b16 %v1109
      %v1178 = vunpack.c.l.b16 %v1119
      %v1179 = vunpack.c.l.b16 %v1133
      %v1180 = vunpack.c.l.b16 %v1143
      %v1181 = vpack.c.b16 %v1150, %v1149
      %v1182 = vpack.c.b16 %v1152, %v1151
      %v1183 = vpack.c.b16 %v1154, %v1153
      %v1184 = vpack.c.b16 %v1156, %v1155
      %v1185 = vpack.c.b16 %v1158, %v1157
      %v1186 = vpack.c.b16 %v1160, %v1159
      %v1187 = vpack.c.b16 %v1162, %v1161
      %v1188 = vpack.c.b16 %v1164, %v1163
      %v1189 = vpack.c.b16 %v1166, %v1165
      %v1190 = vpack.c.b16 %v1168, %v1167
      %v1191 = vpack.c.b16 %v1170, %v1169
      %v1192 = vpack.c.b16 %v1172, %v1171
      %v1193 = vpack.c.b16 %v1174, %v1173
      %v1194 = vpack.c.b16 %v1176, %v1175
      %v1195 = vpack.c.b16 %v1178, %v1177
      %v1196 = vpack.c.b16 %v1180, %v1179
      %v1201 = vunpack.c.l.b16 %v1145
      %v1202 = vunpack.c.h.b16 %v1145
      %v1203 = vunpack.c.l.b16 %v1146
      %v1204 = vunpack.c.h.b16 %v1146
      %v1205 = vunpack.c.l.b16 %v1147
      %v1206 = vunpack.c.h.b16 %v1147
      %v1207 = vunpack.c.l.b16 %v1148
      %v1208 = vunpack.c.h.b16 %v1148
      %v1209 = vpack.c.b16 %v1203, %v1201
      %v1210 = vpack.c.b16 %v1204, %v1202
      %v1211 = vpack.c.b16 %v1207, %v1205
      %v1212 = vpack.c.b16 %v1208, %v1206
      %v1218 = vsel %vm418, %v1181, 0
      %v1221 = vsel %vm418, %v1182, 0
      %v1224 = vsel %vm418, %v1183, 0
      %v1227 = vsel %vm418, %v1184, 0
      %v1230 = vsel %vm418, %v1185, 0
      %v1233 = vsel %vm418, %v1186, 0
      %v1236 = vsel %vm418, %v1187, 0
      %v1239 = vsel %vm418, %v1188, 0
      %v1242 = vsel %vm418, %v1189, 0
      %v1245 = vsel %vm418, %v1190, 0
      %v1248 = vsel %vm418, %v1191, 0
      %v1251 = vsel %vm418, %v1192, 0
      %v1254 = vsel %vm418, %v1193, 0
      %v1257 = vsel %vm418, %v1194, 0
      %v1260 = vsel %vm418, %v1195, 0
      %v1263 = vsel %vm418, %v1196, 0
      %1265 = vmatpush.bf16.msra.mxu0 0
      %1266 = vmatpush.bf16.msra.mxu0 0
      %1267 = vmatpush.bf16.msra.mxu0 0
      %1268 = vmatpush.bf16.msra.mxu0 0
      %1269 = vmatpush.bf16.msra.mxu0 0
      %1270 = vmatpush.bf16.msra.mxu0 0
      %1271 = vmatpush.bf16.msra.mxu0 %v1211
      %1272 = vmatpush.bf16.msra.mxu0 %v1209
      %1273 = vmatmul.bf16.gmra.mxu0 %v1218
      %v1274 = vpop.f32.mrf.mxu0
      %v1275 = vadd.f32 0.0, %v1274
      %v1276 = vpop.f32.mrf.mxu0
      %v1277 = vadd.f32 0.0, %v1276
      %1278 = vmatmul.bf16.gmra.mxu0 %v1221
      %v1279 = vpop.f32.mrf.mxu0
      %v1280 = vadd.f32 0.0, %v1279
      %v1281 = vpop.f32.mrf.mxu0
      %v1282 = vadd.f32 0.0, %v1281
      %1283 = vmatmul.bf16.gmra.mxu0 %v1224
      %v1284 = vpop.f32.mrf.mxu0
      %v1285 = vadd.f32 0.0, %v1284
      %v1286 = vpop.f32.mrf.mxu0
      %v1287 = vadd.f32 0.0, %v1286
      %1288 = vmatmul.bf16.gmra.mxu0 %v1227
      %v1289 = vpop.f32.mrf.mxu0
      %v1290 = vadd.f32 0.0, %v1289
      %v1291 = vpop.f32.mrf.mxu0
      %v1292 = vadd.f32 0.0, %v1291
      %1293 = vmatmul.bf16.gmra.mxu0 %v1230
      %v1294 = vpop.f32.mrf.mxu0
      %v1295 = vadd.f32 0.0, %v1294
      %v1296 = vpop.f32.mrf.mxu0
      %v1297 = vadd.f32 0.0, %v1296
      %1298 = vmatmul.bf16.gmra.mxu0 %v1233
      %v1299 = vpop.f32.mrf.mxu0
      %v1300 = vadd.f32 0.0, %v1299
      %v1301 = vpop.f32.mrf.mxu0
      %v1302 = vadd.f32 0.0, %v1301
      %1303 = vmatmul.bf16.gmra.mxu0 %v1236
      %v1304 = vpop.f32.mrf.mxu0
      %v1305 = vadd.f32 0.0, %v1304
      %v1306 = vpop.f32.mrf.mxu0
      %v1307 = vadd.f32 0.0, %v1306
      %1308 = vmatmul.bf16.gmra.mxu0 %v1239
      %v1309 = vpop.f32.mrf.mxu0
      %v1310 = vadd.f32 0.0, %v1309
      %v1311 = vpop.f32.mrf.mxu0
      %v1312 = vadd.f32 0.0, %v1311
      %1313 = vmatmul.bf16.gmra.mxu0 %v1242
      %v1314 = vpop.f32.mrf.mxu0
      %v1315 = vadd.f32 0.0, %v1314
      %v1316 = vpop.f32.mrf.mxu0
      %v1317 = vadd.f32 0.0, %v1316
      %1318 = vmatmul.bf16.gmra.mxu0 %v1245
      %v1319 = vpop.f32.mrf.mxu0
      %v1320 = vadd.f32 0.0, %v1319
      %v1321 = vpop.f32.mrf.mxu0
      %v1322 = vadd.f32 0.0, %v1321
      %1323 = vmatmul.bf16.gmra.mxu0 %v1248
      %v1324 = vpop.f32.mrf.mxu0
      %v1325 = vadd.f32 0.0, %v1324
      %v1326 = vpop.f32.mrf.mxu0
      %v1327 = vadd.f32 0.0, %v1326
      %1328 = vmatmul.bf16.gmra.mxu0 %v1251
      %v1329 = vpop.f32.mrf.mxu0
      %v1330 = vadd.f32 0.0, %v1329
      %v1331 = vpop.f32.mrf.mxu0
      %v1332 = vadd.f32 0.0, %v1331
      %1333 = vmatmul.bf16.gmra.mxu0 %v1254
      %v1334 = vpop.f32.mrf.mxu0
      %v1335 = vadd.f32 0.0, %v1334
      %v1336 = vpop.f32.mrf.mxu0
      %v1337 = vadd.f32 0.0, %v1336
      %1338 = vmatmul.bf16.gmra.mxu0 %v1257
      %v1339 = vpop.f32.mrf.mxu0
      %v1340 = vadd.f32 0.0, %v1339
      %v1341 = vpop.f32.mrf.mxu0
      %v1342 = vadd.f32 0.0, %v1341
      %1343 = vmatmul.bf16.gmra.mxu0 %v1260
      %v1344 = vpop.f32.mrf.mxu0
      %v1345 = vadd.f32 0.0, %v1344
      %v1346 = vpop.f32.mrf.mxu0
      %v1347 = vadd.f32 0.0, %v1346
      %1348 = vmatmul.bf16.gmra.mxu0 %v1263
      %v1349 = vpop.f32.mrf.mxu0
      %v1350 = vadd.f32 0.0, %v1349
      %v1351 = vpop.f32.mrf.mxu0
      %v1352 = vadd.f32 0.0, %v1351
      %1353 = vdwg.mxu0
      %1354 = vmatpush.bf16.msra.mxu0 0
      %1355 = vmatpush.bf16.msra.mxu0 0
      %1356 = vmatpush.bf16.msra.mxu0 0
      %1357 = vmatpush.bf16.msra.mxu0 0
      %1358 = vmatpush.bf16.msra.mxu0 0
      %1359 = vmatpush.bf16.msra.mxu0 0
      %1360 = vmatpush.bf16.msra.mxu0 %v1212
      %1361 = vmatpush.bf16.msra.mxu0 %v1210
      %1362 = vmatmul.bf16.gmra.mxu0 %v1218
      %v1363 = vpop.f32.mrf.mxu0
      %v1364 = vadd.f32 0.0, %v1363
      %v1365 = vpop.f32.mrf.mxu0
      %v1366 = vadd.f32 0.0, %v1365
      %1367 = vmatmul.bf16.gmra.mxu0 %v1221
      %v1368 = vpop.f32.mrf.mxu0
      %v1369 = vadd.f32 0.0, %v1368
      %v1370 = vpop.f32.mrf.mxu0
      %v1371 = vadd.f32 0.0, %v1370
      %1372 = vmatmul.bf16.gmra.mxu0 %v1224
      %v1373 = vpop.f32.mrf.mxu0
      %v1374 = vadd.f32 0.0, %v1373
      %v1375 = vpop.f32.mrf.mxu0
      %v1376 = vadd.f32 0.0, %v1375
      %1377 = vmatmul.bf16.gmra.mxu0 %v1227
      %v1378 = vpop.f32.mrf.mxu0
      %v1379 = vadd.f32 0.0, %v1378
      %v1380 = vpop.f32.mrf.mxu0
      %v1381 = vadd.f32 0.0, %v1380
      %1382 = vmatmul.bf16.gmra.mxu0 %v1230
      %v1383 = vpop.f32.mrf.mxu0
      %v1384 = vadd.f32 0.0, %v1383
      %v1385 = vpop.f32.mrf.mxu0
      %v1386 = vadd.f32 0.0, %v1385
      %1387 = vmatmul.bf16.gmra.mxu0 %v1233
      %v1388 = vpop.f32.mrf.mxu0
      %v1389 = vadd.f32 0.0, %v1388
      %v1390 = vpop.f32.mrf.mxu0
      %v1391 = vadd.f32 0.0, %v1390
      %1392 = vmatmul.bf16.gmra.mxu0 %v1236
      %v1393 = vpop.f32.mrf.mxu0
      %v1394 = vadd.f32 0.0, %v1393
      %v1395 = vpop.f32.mrf.mxu0
      %v1396 = vadd.f32 0.0, %v1395
      %1397 = vmatmul.bf16.gmra.mxu0 %v1239
      %v1398 = vpop.f32.mrf.mxu0
      %v1399 = vadd.f32 0.0, %v1398
      %v1400 = vpop.f32.mrf.mxu0
      %v1401 = vadd.f32 0.0, %v1400
      %1402 = vmatmul.bf16.gmra.mxu0 %v1242
      %v1403 = vpop.f32.mrf.mxu0
      %v1404 = vadd.f32 0.0, %v1403
      %v1405 = vpop.f32.mrf.mxu0
      %v1406 = vadd.f32 0.0, %v1405
      %1407 = vmatmul.bf16.gmra.mxu0 %v1245
      %v1408 = vpop.f32.mrf.mxu0
      %v1409 = vadd.f32 0.0, %v1408
      %v1410 = vpop.f32.mrf.mxu0
      %v1411 = vadd.f32 0.0, %v1410
      %1412 = vmatmul.bf16.gmra.mxu0 %v1248
      %v1413 = vpop.f32.mrf.mxu0
      %v1414 = vadd.f32 0.0, %v1413
      %v1415 = vpop.f32.mrf.mxu0
      %v1416 = vadd.f32 0.0, %v1415
      %1417 = vmatmul.bf16.gmra.mxu0 %v1251
      %v1418 = vpop.f32.mrf.mxu0
      %v1419 = vadd.f32 0.0, %v1418
      %v1420 = vpop.f32.mrf.mxu0
      %v1421 = vadd.f32 0.0, %v1420
      %1422 = vmatmul.bf16.gmra.mxu0 %v1254
      %v1423 = vpop.f32.mrf.mxu0
      %v1424 = vadd.f32 0.0, %v1423
      %v1425 = vpop.f32.mrf.mxu0
      %v1426 = vadd.f32 0.0, %v1425
      %1427 = vmatmul.bf16.gmra.mxu0 %v1257
      %v1428 = vpop.f32.mrf.mxu0
      %v1429 = vadd.f32 0.0, %v1428
      %v1430 = vpop.f32.mrf.mxu0
      %v1431 = vadd.f32 0.0, %v1430
      %1432 = vmatmul.bf16.gmra.mxu0 %v1260
      %v1433 = vpop.f32.mrf.mxu0
      %v1434 = vadd.f32 0.0, %v1433
      %v1435 = vpop.f32.mrf.mxu0
      %v1436 = vadd.f32 0.0, %v1435
      %1437 = vmatmul.bf16.gmra.mxu0 %v1263
      %v1438 = vpop.f32.mrf.mxu0
      %v1439 = vadd.f32 0.0, %v1438
      %v1440 = vpop.f32.mrf.mxu0
      %v1441 = vadd.f32 0.0, %v1440
      %1442 = vdwg.mxu0
      %v1443 = vld [vmem:[#allocation2] sm:$0xff]
      %v1444 = vld [vmem:[#allocation2 + $0x8] sm:$0xff]
      %v1445 = vld [vmem:[#allocation2 + $0x10] sm:$0xff]
      %v1446 = vld [vmem:[#allocation2 + $0x18] sm:$0xff]
      %v1447 = vld [vmem:[#allocation2 + $0x20] sm:$0xff]
      %v1448 = vld [vmem:[#allocation2 + $0x28] sm:$0xff]
      %v1449 = vld [vmem:[#allocation2 + $0x30] sm:$0xff]
      %v1450 = vld [vmem:[#allocation2 + $0x38] sm:$0xff]
      %v1451 = vld [vmem:[#allocation2 + $0x40] sm:$0xff]
      %v1452 = vld [vmem:[#allocation2 + $0x48] sm:$0xff]
      %v1453 = vld [vmem:[#allocation2 + $0x50] sm:$0xff]
      %v1454 = vld [vmem:[#allocation2 + $0x58] sm:$0xff]
      %v1455 = vld [vmem:[#allocation2 + $0x60] sm:$0xff]
      %v1456 = vld [vmem:[#allocation2 + $0x68] sm:$0xff]
      %v1457 = vld [vmem:[#allocation2 + $0x70] sm:$0xff]
      %v1458 = vld [vmem:[#allocation2 + $0x78] sm:$0xff]
      %v1459 = vld [vmem:[#allocation2 + $0x80] sm:$0xff]
      %v1460 = vld [vmem:[#allocation2 + $0x88] sm:$0xff]
      %v1461 = vld [vmem:[#allocation2 + $0x90] sm:$0xff]
      %v1462 = vld [vmem:[#allocation2 + $0x98] sm:$0xff]
      %v1463 = vld [vmem:[#allocation2 + $0xa0] sm:$0xff]
      %v1464 = vld [vmem:[#allocation2 + $0xa8] sm:$0xff]
      %v1465 = vld [vmem:[#allocation2 + $0xb0] sm:$0xff]
      %v1466 = vld [vmem:[#allocation2 + $0xb8] sm:$0xff]
      %v1467 = vld [vmem:[#allocation2 + $0xc0] sm:$0xff]
      %v1468 = vld [vmem:[#allocation2 + $0xc8] sm:$0xff]
      %v1469 = vld [vmem:[#allocation2 + $0xd0] sm:$0xff]
      %v1470 = vld [vmem:[#allocation2 + $0xd8] sm:$0xff]
      %v1471 = vld [vmem:[#allocation2 + $0xe0] sm:$0xff]
      %v1472 = vld [vmem:[#allocation2 + $0xe8] sm:$0xff]
      %v1473 = vld [vmem:[#allocation2 + $0xf0] sm:$0xff]
      %v1474 = vld [vmem:[#allocation2 + $0xf8] sm:$0xff]
      %v1475 = vld [vmem:[#allocation2 + $0x100] sm:$0xff]
      %v1476 = vld [vmem:[#allocation2 + $0x108] sm:$0xff]
      %v1477 = vld [vmem:[#allocation2 + $0x110] sm:$0xff]
      %v1478 = vld [vmem:[#allocation2 + $0x118] sm:$0xff]
      %v1479 = vld [vmem:[#allocation2 + $0x120] sm:$0xff]
      %v1480 = vld [vmem:[#allocation2 + $0x128] sm:$0xff]
      %v1481 = vld [vmem:[#allocation2 + $0x130] sm:$0xff]
      %v1482 = vld [vmem:[#allocation2 + $0x138] sm:$0xff]
      %v1483 = vld [vmem:[#allocation2 + $0x140] sm:$0xff]
      %v1484 = vld [vmem:[#allocation2 + $0x148] sm:$0xff]
      %v1485 = vld [vmem:[#allocation2 + $0x150] sm:$0xff]
      %v1486 = vld [vmem:[#allocation2 + $0x158] sm:$0xff]
      %v1487 = vld [vmem:[#allocation2 + $0x160] sm:$0xff]
      %v1488 = vld [vmem:[#allocation2 + $0x168] sm:$0xff]
      %v1489 = vld [vmem:[#allocation2 + $0x170] sm:$0xff]
      %v1490 = vld [vmem:[#allocation2 + $0x178] sm:$0xff]
      %v1491 = vld [vmem:[#allocation2 + $0x180] sm:$0xff]
      %v1492 = vld [vmem:[#allocation2 + $0x188] sm:$0xff]
      %v1493 = vld [vmem:[#allocation2 + $0x190] sm:$0xff]
      %v1494 = vld [vmem:[#allocation2 + $0x198] sm:$0xff]
      %v1495 = vld [vmem:[#allocation2 + $0x1a0] sm:$0xff]
      %v1496 = vld [vmem:[#allocation2 + $0x1a8] sm:$0xff]
      %v1497 = vld [vmem:[#allocation2 + $0x1b0] sm:$0xff]
      %v1498 = vld [vmem:[#allocation2 + $0x1b8] sm:$0xff]
      %v1499 = vld [vmem:[#allocation2 + $0x1c0] sm:$0xff]
      %v1500 = vld [vmem:[#allocation2 + $0x1c8] sm:$0xff]
      %v1501 = vld [vmem:[#allocation2 + $0x1d0] sm:$0xff]
      %v1502 = vld [vmem:[#allocation2 + $0x1d8] sm:$0xff]
      %v1503 = vld [vmem:[#allocation2 + $0x1e0] sm:$0xff]
      %v1504 = vld [vmem:[#allocation2 + $0x1e8] sm:$0xff]
      %v1505 = vld [vmem:[#allocation2 + $0x1f0] sm:$0xff]
      %v1506 = vld [vmem:[#allocation2 + $0x1f8] sm:$0xff]
      %v1507 = vadd.f32 %v1443, %v1275
      %v1508 = vadd.f32 %v1444, %v1364
      %v1509 = vadd.f32 %v1445, %v1277
      %v1510 = vadd.f32 %v1446, %v1366
      %v1511 = vadd.f32 %v1447, %v1280
      %v1512 = vadd.f32 %v1448, %v1369
      %v1513 = vadd.f32 %v1449, %v1282
      %v1514 = vadd.f32 %v1450, %v1371
      %v1515 = vadd.f32 %v1451, %v1285
      %v1516 = vadd.f32 %v1452, %v1374
      %v1517 = vadd.f32 %v1453, %v1287
      %v1518 = vadd.f32 %v1454, %v1376
      %v1519 = vadd.f32 %v1455, %v1290
      %v1520 = vadd.f32 %v1456, %v1379
      %v1521 = vadd.f32 %v1457, %v1292
      %v1522 = vadd.f32 %v1458, %v1381
      %v1523 = vadd.f32 %v1459, %v1295
      %v1524 = vadd.f32 %v1460, %v1384
      %v1525 = vadd.f32 %v1461, %v1297
      %v1526 = vadd.f32 %v1462, %v1386
      %v1527 = vadd.f32 %v1463, %v1300
      %v1528 = vadd.f32 %v1464, %v1389
      %v1529 = vadd.f32 %v1465, %v1302
      %v1530 = vadd.f32 %v1466, %v1391
      %v1531 = vadd.f32 %v1467, %v1305
      %v1532 = vadd.f32 %v1468, %v1394
      %v1533 = vadd.f32 %v1469, %v1307
      %v1534 = vadd.f32 %v1470, %v1396
      %v1535 = vadd.f32 %v1471, %v1310
      %v1536 = vadd.f32 %v1472, %v1399
      %v1537 = vadd.f32 %v1473, %v1312
      %v1538 = vadd.f32 %v1474, %v1401
      %v1539 = vadd.f32 %v1475, %v1315
      %v1540 = vadd.f32 %v1476, %v1404
      %v1541 = vadd.f32 %v1477, %v1317
      %v1542 = vadd.f32 %v1478, %v1406
      %v1543 = vadd.f32 %v1479, %v1320
      %v1544 = vadd.f32 %v1480, %v1409
      %v1545 = vadd.f32 %v1481, %v1322
      %v1546 = vadd.f32 %v1482, %v1411
      %v1547 = vadd.f32 %v1483, %v1325
      %v1548 = vadd.f32 %v1484, %v1414
      %v1549 = vadd.f32 %v1485, %v1327
      %v1550 = vadd.f32 %v1486, %v1416
      %v1551 = vadd.f32 %v1487, %v1330
      %v1552 = vadd.f32 %v1488, %v1419
      %v1553 = vadd.f32 %v1489, %v1332
      %v1554 = vadd.f32 %v1490, %v1421
      %v1555 = vadd.f32 %v1491, %v1335
      %v1556 = vadd.f32 %v1492, %v1424
      %v1557 = vadd.f32 %v1493, %v1337
      %v1558 = vadd.f32 %v1494, %v1426
      %v1559 = vadd.f32 %v1495, %v1340
      %v1560 = vadd.f32 %v1496, %v1429
      %v1561 = vadd.f32 %v1497, %v1342
      %v1562 = vadd.f32 %v1498, %v1431
      %v1563 = vadd.f32 %v1499, %v1345
      %v1564 = vadd.f32 %v1500, %v1434
      %v1565 = vadd.f32 %v1501, %v1347
      %v1566 = vadd.f32 %v1502, %v1436
      %v1567 = vadd.f32 %v1503, %v1350
      %v1568 = vadd.f32 %v1504, %v1439
      %v1569 = vadd.f32 %v1505, %v1352
      %v1570 = vadd.f32 %v1506, %v1441
      %1571 = vst [vmem:[#allocation2] sm:$0xff] %v1507
      %1572 = vst [vmem:[#allocation2 + $0x8] sm:$0xff] %v1508
      %1573 = vst [vmem:[#allocation2 + $0x10] sm:$0xff] %v1509
      %1574 = vst [vmem:[#allocation2 + $0x18] sm:$0xff] %v1510
      %1575 = vst [vmem:[#allocation2 + $0x20] sm:$0xff] %v1511
      %1576 = vst [vmem:[#allocation2 + $0x28] sm:$0xff] %v1512
      %1577 = vst [vmem:[#allocation2 + $0x30] sm:$0xff] %v1513
      %1578 = vst [vmem:[#allocation2 + $0x38] sm:$0xff] %v1514
      %1579 = vst [vmem:[#allocation2 + $0x40] sm:$0xff] %v1515
      %1580 = vst [vmem:[#allocation2 + $0x48] sm:$0xff] %v1516
      %1581 = vst [vmem:[#allocation2 + $0x50] sm:$0xff] %v1517
      %1582 = vst [vmem:[#allocation2 + $0x58] sm:$0xff] %v1518
      %1583 = vst [vmem:[#allocation2 + $0x60] sm:$0xff] %v1519
      %1584 = vst [vmem:[#allocation2 + $0x68] sm:$0xff] %v1520
      %1585 = vst [vmem:[#allocation2 + $0x70] sm:$0xff] %v1521
      %1586 = vst [vmem:[#allocation2 + $0x78] sm:$0xff] %v1522
      %1587 = vst [vmem:[#allocation2 + $0x80] sm:$0xff] %v1523
      %1588 = vst [vmem:[#allocation2 + $0x88] sm:$0xff] %v1524
      %1589 = vst [vmem:[#allocation2 + $0x90] sm:$0xff] %v1525
      %1590 = vst [vmem:[#allocation2 + $0x98] sm:$0xff] %v1526
      %1591 = vst [vmem:[#allocation2 + $0xa0] sm:$0xff] %v1527
      %1592 = vst [vmem:[#allocation2 + $0xa8] sm:$0xff] %v1528
      %1593 = vst [vmem:[#allocation2 + $0xb0] sm:$0xff] %v1529
      %1594 = vst [vmem:[#allocation2 + $0xb8] sm:$0xff] %v1530
      %1595 = vst [vmem:[#allocation2 + $0xc0] sm:$0xff] %v1531
      %1596 = vst [vmem:[#allocation2 + $0xc8] sm:$0xff] %v1532
      %1597 = vst [vmem:[#allocation2 + $0xd0] sm:$0xff] %v1533
      %1598 = vst [vmem:[#allocation2 + $0xd8] sm:$0xff] %v1534
      %1599 = vst [vmem:[#allocation2 + $0xe0] sm:$0xff] %v1535
      %1600 = vst [vmem:[#allocation2 + $0xe8] sm:$0xff] %v1536
      %1601 = vst [vmem:[#allocation2 + $0xf0] sm:$0xff] %v1537
      %1602 = vst [vmem:[#allocation2 + $0xf8] sm:$0xff] %v1538
      %1603 = vst [vmem:[#allocation2 + $0x100] sm:$0xff] %v1539
      %1604 = vst [vmem:[#allocation2 + $0x108] sm:$0xff] %v1540
      %1605 = vst [vmem:[#allocation2 + $0x110] sm:$0xff] %v1541
      %1606 = vst [vmem:[#allocation2 + $0x118] sm:$0xff] %v1542
      %1607 = vst [vmem:[#allocation2 + $0x120] sm:$0xff] %v1543
      %1608 = vst [vmem:[#allocation2 + $0x128] sm:$0xff] %v1544
      %1609 = vst [vmem:[#allocation2 + $0x130] sm:$0xff] %v1545
      %1610 = vst [vmem:[#allocation2 + $0x138] sm:$0xff] %v1546
      %1611 = vst [vmem:[#allocation2 + $0x140] sm:$0xff] %v1547
      %1612 = vst [vmem:[#allocation2 + $0x148] sm:$0xff] %v1548
      %1613 = vst [vmem:[#allocation2 + $0x150] sm:$0xff] %v1549
      %1614 = vst [vmem:[#allocation2 + $0x158] sm:$0xff] %v1550
      %1615 = vst [vmem:[#allocation2 + $0x160] sm:$0xff] %v1551
      %1616 = vst [vmem:[#allocation2 + $0x168] sm:$0xff] %v1552
      %1617 = vst [vmem:[#allocation2 + $0x170] sm:$0xff] %v1553
      %1618 = vst [vmem:[#allocation2 + $0x178] sm:$0xff] %v1554
      %1619 = vst [vmem:[#allocation2 + $0x180] sm:$0xff] %v1555
      %1620 = vst [vmem:[#allocation2 + $0x188] sm:$0xff] %v1556
      %1621 = vst [vmem:[#allocation2 + $0x190] sm:$0xff] %v1557
      %1622 = vst [vmem:[#allocation2 + $0x198] sm:$0xff] %v1558
      %1623 = vst [vmem:[#allocation2 + $0x1a0] sm:$0xff] %v1559
      %1624 = vst [vmem:[#allocation2 + $0x1a8] sm:$0xff] %v1560
      %1625 = vst [vmem:[#allocation2 + $0x1b0] sm:$0xff] %v1561
      %1626 = vst [vmem:[#allocation2 + $0x1b8] sm:$0xff] %v1562
      %1627 = vst [vmem:[#allocation2 + $0x1c0] sm:$0xff] %v1563
      %1628 = vst [vmem:[#allocation2 + $0x1c8] sm:$0xff] %v1564
      %1629 = vst [vmem:[#allocation2 + $0x1d0] sm:$0xff] %v1565
      %1630 = vst [vmem:[#allocation2 + $0x1d8] sm:$0xff] %v1566
      %1631 = vst [vmem:[#allocation2 + $0x1e0] sm:$0xff] %v1567
      %1632 = vst [vmem:[#allocation2 + $0x1e8] sm:$0xff] %v1568
      %1633 = vst [vmem:[#allocation2 + $0x1f0] sm:$0xff] %v1569
      %1634 = vst [vmem:[#allocation2 + $0x1f8] sm:$0xff] %v1570
      %v1635 = vld [vmem:[%s281] sm:$0xe]
      %v1636 = vld [vmem:[%s281 + $0x4] sm:$0xf]
      %v1637 = vld [vmem:[%s281 + $0x8] sm:$0x1]
      %v1638 = vld [vmem:[%s281 + $0xc] sm:$0xe]
      %v1639 = vld [vmem:[%s281 + $0x10] sm:$0xf]
      %v1640 = vld [vmem:[%s281 + $0x14] sm:$0x1]
      %v1641 = vld [vmem:[%s281 + $0x18] sm:$0xe]
      %v1642 = vld [vmem:[%s281 + $0x1c] sm:$0xf]
      %v1643 = vld [vmem:[%s281 + $0x20] sm:$0x1]
      %v1644 = vld [vmem:[%s281 + $0x24] sm:$0xe]
      %v1645 = vld [vmem:[%s281 + $0x28] sm:$0xf]
      %v1646 = vld [vmem:[%s281 + $0x2c] sm:$0x1]
      %v1647 = vld [vmem:[%s281 + $0x30] sm:$0xe]
      %v1648 = vld [vmem:[%s281 + $0x34] sm:$0xf]
      %v1649 = vld [vmem:[%s281 + $0x38] sm:$0x1]
      %v1650 = vld [vmem:[%s281 + $0x3c] sm:$0xe]
      %v1651 = vld [vmem:[%s281 + $0x40] sm:$0xf]
      %v1652 = vld [vmem:[%s281 + $0x44] sm:$0x1]
      %v1653 = vld [vmem:[%s281 + $0x48] sm:$0xe]
      %v1654 = vld [vmem:[%s281 + $0x4c] sm:$0xf]
      %v1655 = vld [vmem:[%s281 + $0x50] sm:$0x1]
      %v1656 = vld [vmem:[%s281 + $0x54] sm:$0xe]
      %v1657 = vld [vmem:[%s281 + $0x58] sm:$0xf]
      %v1658 = vld [vmem:[%s281 + $0x5c] sm:$0x1]
      %v1659 = vld [vmem:[%s281 + $0x60] sm:$0xe]
      %v1660 = vld [vmem:[%s281 + $0x64] sm:$0xf]
      %v1661 = vld [vmem:[%s281 + $0x68] sm:$0x1]
      %v1662 = vld [vmem:[%s281 + $0x6c] sm:$0xe]
      %v1663 = vld [vmem:[%s281 + $0x70] sm:$0xf]
      %v1664 = vld [vmem:[%s281 + $0x74] sm:$0x1]
      %v1665 = vld [vmem:[%s281 + $0x78] sm:$0xe]
      %v1666 = vld [vmem:[%s281 + $0x7c] sm:$0xf]
      %v1667 = vld [vmem:[%s281 + $0x80] sm:$0x1]
      %v1668 = vld [vmem:[%s281 + $0x84] sm:$0xe]
      %v1669 = vld [vmem:[%s281 + $0x88] sm:$0xf]
      %v1670 = vld [vmem:[%s281 + $0x8c] sm:$0x1]
      %v1671 = vld [vmem:[%s281 + $0x90] sm:$0xe]
      %v1672 = vld [vmem:[%s281 + $0x94] sm:$0xf]
      %v1673 = vld [vmem:[%s281 + $0x98] sm:$0x1]
      %v1674 = vld [vmem:[%s281 + $0x9c] sm:$0xe]
      %v1675 = vld [vmem:[%s281 + $0xa0] sm:$0xf]
      %v1676 = vld [vmem:[%s281 + $0xa4] sm:$0x1]
      %v1677 = vld [vmem:[%s281 + $0xa8] sm:$0xe]
      %v1678 = vld [vmem:[%s281 + $0xac] sm:$0xf]
      %v1679 = vld [vmem:[%s281 + $0xb0] sm:$0x1]
      %v1680 = vld [vmem:[%s281 + $0xb4] sm:$0xe]
      %v1681 = vld [vmem:[%s281 + $0xb8] sm:$0xf]
      %v1682 = vld [vmem:[%s281 + $0xbc] sm:$0x1]
      %vm1731 = vcmask 1042432
      %vm1732 = vcmask 1046532
      %vm1733 = vmor %vm1731, %vm1732
      %v1734 = vrot.slane %v1635, 5
      %v1735 = vrot.slane %v1734, 4
      %v1736 = vrot.slane %v1636, 5
      %v1737 = vsel %vm1733, %v1735, %v1736
      %v1738 = vrot.slane %v1736, 4
      %v1739 = vrot.slane %v1637, 5
      %v1740 = vsel %vm1733, %v1738, %v1739
      %v1741 = vrot.slane %v1638, 5
      %v1742 = vrot.slane %v1741, 4
      %v1743 = vrot.slane %v1639, 5
      %v1744 = vsel %vm1733, %v1742, %v1743
      %v1745 = vrot.slane %v1743, 4
      %v1746 = vrot.slane %v1640, 5
      %v1747 = vsel %vm1733, %v1745, %v1746
      %v1748 = vrot.slane %v1641, 5
      %v1749 = vrot.slane %v1748, 4
      %v1750 = vrot.slane %v1642, 5
      %v1751 = vsel %vm1733, %v1749, %v1750
      %v1752 = vrot.slane %v1750, 4
      %v1753 = vrot.slane %v1643, 5
      %v1754 = vsel %vm1733, %v1752, %v1753
      %v1755 = vrot.slane %v1644, 5
      %v1756 = vrot.slane %v1755, 4
      %v1757 = vrot.slane %v1645, 5
      %v1758 = vsel %vm1733, %v1756, %v1757
      %v1759 = vrot.slane %v1757, 4
      %v1760 = vrot.slane %v1646, 5
      %v1761 = vsel %vm1733, %v1759, %v1760
      %v1762 = vrot.slane %v1647, 5
      %v1763 = vrot.slane %v1762, 4
      %v1764 = vrot.slane %v1648, 5
      %v1765 = vsel %vm1733, %v1763, %v1764
      %v1766 = vrot.slane %v1764, 4
      %v1767 = vrot.slane %v1649, 5
      %v1768 = vsel %vm1733, %v1766, %v1767
      %v1769 = vrot.slane %v1650, 5
      %v1770 = vrot.slane %v1769, 4
      %v1771 = vrot.slane %v1651, 5
      %v1772 = vsel %vm1733, %v1770, %v1771
      %v1773 = vrot.slane %v1771, 4
      %v1774 = vrot.slane %v1652, 5
      %v1775 = vsel %vm1733, %v1773, %v1774
      %v1776 = vrot.slane %v1653, 5
      %v1777 = vrot.slane %v1776, 4
      %v1778 = vrot.slane %v1654, 5
      %v1779 = vsel %vm1733, %v1777, %v1778
      %v1780 = vrot.slane %v1778, 4
      %v1781 = vrot.slane %v1655, 5
      %v1782 = vsel %vm1733, %v1780, %v1781
      %v1783 = vrot.slane %v1656, 5
      %v1784 = vrot.slane %v1783, 4
      %v1785 = vrot.slane %v1657, 5
      %v1786 = vsel %vm1733, %v1784, %v1785
      %v1787 = vrot.slane %v1785, 4
      %v1788 = vrot.slane %v1658, 5
      %v1789 = vsel %vm1733, %v1787, %v1788
      %v1790 = vrot.slane %v1659, 5
      %v1791 = vrot.slane %v1790, 4
      %v1792 = vrot.slane %v1660, 5
      %v1793 = vsel %vm1733, %v1791, %v1792
      %v1794 = vrot.slane %v1792, 4
      %v1795 = vrot.slane %v1661, 5
      %v1796 = vsel %vm1733, %v1794, %v1795
      %v1797 = vrot.slane %v1662, 5
      %v1798 = vrot.slane %v1797, 4
      %v1799 = vrot.slane %v1663, 5
      %v1800 = vsel %vm1733, %v1798, %v1799
      %v1801 = vrot.slane %v1799, 4
      %v1802 = vrot.slane %v1664, 5
      %v1803 = vsel %vm1733, %v1801, %v1802
      %v1804 = vrot.slane %v1665, 5
      %v1805 = vrot.slane %v1804, 4
      %v1806 = vrot.slane %v1666, 5
      %v1807 = vsel %vm1733, %v1805, %v1806
      %v1808 = vrot.slane %v1806, 4
      %v1809 = vrot.slane %v1667, 5
      %v1810 = vsel %vm1733, %v1808, %v1809
      %v1811 = vrot.slane %v1668, 5
      %v1812 = vrot.slane %v1811, 4
      %v1813 = vrot.slane %v1669, 5
      %v1814 = vsel %vm1733, %v1812, %v1813
      %v1815 = vrot.slane %v1813, 4
      %v1816 = vrot.slane %v1670, 5
      %v1817 = vsel %vm1733, %v1815, %v1816
      %v1818 = vrot.slane %v1671, 5
      %v1819 = vrot.slane %v1818, 4
      %v1820 = vrot.slane %v1672, 5
      %v1821 = vsel %vm1733, %v1819, %v1820
      %v1822 = vrot.slane %v1820, 4
      %v1823 = vrot.slane %v1673, 5
      %v1824 = vsel %vm1733, %v1822, %v1823
      %v1825 = vrot.slane %v1674, 5
      %v1826 = vrot.slane %v1825, 4
      %v1827 = vrot.slane %v1675, 5
      %v1828 = vsel %vm1733, %v1826, %v1827
      %v1829 = vrot.slane %v1827, 4
      %v1830 = vrot.slane %v1676, 5
      %v1831 = vsel %vm1733, %v1829, %v1830
      %v1832 = vrot.slane %v1677, 5
      %v1833 = vrot.slane %v1832, 4
      %v1834 = vrot.slane %v1678, 5
      %v1835 = vsel %vm1733, %v1833, %v1834
      %v1836 = vrot.slane %v1834, 4
      %v1837 = vrot.slane %v1679, 5
      %v1838 = vsel %vm1733, %v1836, %v1837
      %v1839 = vrot.slane %v1680, 5
      %v1840 = vrot.slane %v1839, 4
      %v1841 = vrot.slane %v1681, 5
      %v1842 = vsel %vm1733, %v1840, %v1841
      %v1843 = vrot.slane %v1841, 4
      %v1844 = vrot.slane %v1682, 5
      %v1845 = vsel %vm1733, %v1843, %v1844
      %s1846 = scalar_lea.vmem %s1, 64
      %v1847 = vld [vmem:[%s1846] sm:$0xff]
      %v1848 = vld [vmem:[%s1846 + $0x8] sm:$0xff]
      %v1849 = vld [vmem:[%s1846 + $0x10] sm:$0xff]
      %v1850 = vld [vmem:[%s1846 + $0x18] sm:$0xff]
      %v1851 = vunpack.c.l.b16 %v1737
      %v1852 = vunpack.c.l.b16 %v1740
      %v1853 = vunpack.c.l.b16 %v1744
      %v1854 = vunpack.c.l.b16 %v1747
      %v1855 = vunpack.c.l.b16 %v1751
      %v1856 = vunpack.c.l.b16 %v1754
      %v1857 = vunpack.c.l.b16 %v1758
      %v1858 = vunpack.c.l.b16 %v1761
      %v1859 = vunpack.c.l.b16 %v1765
      %v1860 = vunpack.c.l.b16 %v1768
      %v1861 = vunpack.c.l.b16 %v1772
      %v1862 = vunpack.c.l.b16 %v1775
      %v1863 = vunpack.c.l.b16 %v1779
      %v1864 = vunpack.c.l.b16 %v1782
      %v1865 = vunpack.c.l.b16 %v1786
      %v1866 = vunpack.c.l.b16 %v1789
      %v1867 = vunpack.c.l.b16 %v1793
      %v1868 = vunpack.c.l.b16 %v1796
      %v1869 = vunpack.c.l.b16 %v1800
      %v1870 = vunpack.c.l.b16 %v1803
      %v1871 = vunpack.c.l.b16 %v1807
      %v1872 = vunpack.c.l.b16 %v1810
      %v1873 = vunpack.c.l.b16 %v1814
      %v1874 = vunpack.c.l.b16 %v1817
      %v1875 = vunpack.c.l.b16 %v1821
      %v1876 = vunpack.c.l.b16 %v1824
      %v1877 = vunpack.c.l.b16 %v1828
      %v1878 = vunpack.c.l.b16 %v1831
      %v1879 = vunpack.c.l.b16 %v1835
      %v1880 = vunpack.c.l.b16 %v1838
      %v1881 = vunpack.c.l.b16 %v1842
      %v1882 = vunpack.c.l.b16 %v1845
      %v1883 = vpack.c.b16 %v1852, %v1851
      %v1884 = vpack.c.b16 %v1854, %v1853
      %v1885 = vpack.c.b16 %v1856, %v1855
      %v1886 = vpack.c.b16 %v1858, %v1857
      %v1887 = vpack.c.b16 %v1860, %v1859
      %v1888 = vpack.c.b16 %v1862, %v1861
      %v1889 = vpack.c.b16 %v1864, %v1863
      %v1890 = vpack.c.b16 %v1866, %v1865
      %v1891 = vpack.c.b16 %v1868, %v1867
      %v1892 = vpack.c.b16 %v1870, %v1869
      %v1893 = vpack.c.b16 %v1872, %v1871
      %v1894 = vpack.c.b16 %v1874, %v1873
      %v1895 = vpack.c.b16 %v1876, %v1875
      %v1896 = vpack.c.b16 %v1878, %v1877
      %v1897 = vpack.c.b16 %v1880, %v1879
      %v1898 = vpack.c.b16 %v1882, %v1881
      %v1903 = vunpack.c.l.b16 %v1847
      %v1904 = vunpack.c.h.b16 %v1847
      %v1905 = vunpack.c.l.b16 %v1848
      %v1906 = vunpack.c.h.b16 %v1848
      %v1907 = vunpack.c.l.b16 %v1849
      %v1908 = vunpack.c.h.b16 %v1849
      %v1909 = vunpack.c.l.b16 %v1850
      %v1910 = vunpack.c.h.b16 %v1850
      %v1911 = vpack.c.b16 %v1905, %v1903
      %v1912 = vpack.c.b16 %v1906, %v1904
      %v1913 = vpack.c.b16 %v1909, %v1907
      %v1914 = vpack.c.b16 %v1910, %v1908
      %v1920 = vsel %vm418, %v1883, 0
      %v1923 = vsel %vm418, %v1884, 0
      %v1926 = vsel %vm418, %v1885, 0
      %v1929 = vsel %vm418, %v1886, 0
      %v1932 = vsel %vm418, %v1887, 0
      %v1935 = vsel %vm418, %v1888, 0
      %v1938 = vsel %vm418, %v1889, 0
      %v1941 = vsel %vm418, %v1890, 0
      %v1944 = vsel %vm418, %v1891, 0
      %v1947 = vsel %vm418, %v1892, 0
      %v1950 = vsel %vm418, %v1893, 0
      %v1953 = vsel %vm418, %v1894, 0
      %v1956 = vsel %vm418, %v1895, 0
      %v1959 = vsel %vm418, %v1896, 0
      %v1962 = vsel %vm418, %v1897, 0
      %v1965 = vsel %vm418, %v1898, 0
      %1967 = vmatpush.bf16.msra.mxu0 0
      %1968 = vmatpush.bf16.msra.mxu0 0
      %1969 = vmatpush.bf16.msra.mxu0 0
      %1970 = vmatpush.bf16.msra.mxu0 0
      %1971 = vmatpush.bf16.msra.mxu0 0
      %1972 = vmatpush.bf16.msra.mxu0 0
      %1973 = vmatpush.bf16.msra.mxu0 %v1913
      %1974 = vmatpush.bf16.msra.mxu0 %v1911
      %1975 = vmatmul.bf16.gmra.mxu0 %v1920
      %v1976 = vpop.f32.mrf.mxu0
      %v1977 = vadd.f32 0.0, %v1976
      %v1978 = vpop.f32.mrf.mxu0
      %v1979 = vadd.f32 0.0, %v1978
      %1980 = vmatmul.bf16.gmra.mxu0 %v1923
      %v1981 = vpop.f32.mrf.mxu0
      %v1982 = vadd.f32 0.0, %v1981
      %v1983 = vpop.f32.mrf.mxu0
      %v1984 = vadd.f32 0.0, %v1983
      %1985 = vmatmul.bf16.gmra.mxu0 %v1926
      %v1986 = vpop.f32.mrf.mxu0
      %v1987 = vadd.f32 0.0, %v1986
      %v1988 = vpop.f32.mrf.mxu0
      %v1989 = vadd.f32 0.0, %v1988
      %1990 = vmatmul.bf16.gmra.mxu0 %v1929
      %v1991 = vpop.f32.mrf.mxu0
      %v1992 = vadd.f32 0.0, %v1991
      %v1993 = vpop.f32.mrf.mxu0
      %v1994 = vadd.f32 0.0, %v1993
      %1995 = vmatmul.bf16.gmra.mxu0 %v1932
      %v1996 = vpop.f32.mrf.mxu0
      %v1997 = vadd.f32 0.0, %v1996
      %v1998 = vpop.f32.mrf.mxu0
      %v1999 = vadd.f32 0.0, %v1998
      %2000 = vmatmul.bf16.gmra.mxu0 %v1935
      %v2001 = vpop.f32.mrf.mxu0
      %v2002 = vadd.f32 0.0, %v2001
      %v2003 = vpop.f32.mrf.mxu0
      %v2004 = vadd.f32 0.0, %v2003
      %2005 = vmatmul.bf16.gmra.mxu0 %v1938
      %v2006 = vpop.f32.mrf.mxu0
      %v2007 = vadd.f32 0.0, %v2006
      %v2008 = vpop.f32.mrf.mxu0
      %v2009 = vadd.f32 0.0, %v2008
      %2010 = vmatmul.bf16.gmra.mxu0 %v1941
      %v2011 = vpop.f32.mrf.mxu0
      %v2012 = vadd.f32 0.0, %v2011
      %v2013 = vpop.f32.mrf.mxu0
      %v2014 = vadd.f32 0.0, %v2013
      %2015 = vmatmul.bf16.gmra.mxu0 %v1944
      %v2016 = vpop.f32.mrf.mxu0
      %v2017 = vadd.f32 0.0, %v2016
      %v2018 = vpop.f32.mrf.mxu0
      %v2019 = vadd.f32 0.0, %v2018
      %2020 = vmatmul.bf16.gmra.mxu0 %v1947
      %v2021 = vpop.f32.mrf.mxu0
      %v2022 = vadd.f32 0.0, %v2021
      %v2023 = vpop.f32.mrf.mxu0
      %v2024 = vadd.f32 0.0, %v2023
      %2025 = vmatmul.bf16.gmra.mxu0 %v1950
      %v2026 = vpop.f32.mrf.mxu0
      %v2027 = vadd.f32 0.0, %v2026
      %v2028 = vpop.f32.mrf.mxu0
      %v2029 = vadd.f32 0.0, %v2028
      %2030 = vmatmul.bf16.gmra.mxu0 %v1953
      %v2031 = vpop.f32.mrf.mxu0
      %v2032 = vadd.f32 0.0, %v2031
      %v2033 = vpop.f32.mrf.mxu0
      %v2034 = vadd.f32 0.0, %v2033
      %2035 = vmatmul.bf16.gmra.mxu0 %v1956
      %v2036 = vpop.f32.mrf.mxu0
      %v2037 = vadd.f32 0.0, %v2036
      %v2038 = vpop.f32.mrf.mxu0
      %v2039 = vadd.f32 0.0, %v2038
      %2040 = vmatmul.bf16.gmra.mxu0 %v1959
      %v2041 = vpop.f32.mrf.mxu0
      %v2042 = vadd.f32 0.0, %v2041
      %v2043 = vpop.f32.mrf.mxu0
      %v2044 = vadd.f32 0.0, %v2043
      %2045 = vmatmul.bf16.gmra.mxu0 %v1962
      %v2046 = vpop.f32.mrf.mxu0
      %v2047 = vadd.f32 0.0, %v2046
      %v2048 = vpop.f32.mrf.mxu0
      %v2049 = vadd.f32 0.0, %v2048
      %2050 = vmatmul.bf16.gmra.mxu0 %v1965
      %v2051 = vpop.f32.mrf.mxu0
      %v2052 = vadd.f32 0.0, %v2051
      %v2053 = vpop.f32.mrf.mxu0
      %v2054 = vadd.f32 0.0, %v2053
      %2055 = vdwg.mxu0
      %2056 = vmatpush.bf16.msra.mxu0 0
      %2057 = vmatpush.bf16.msra.mxu0 0
      %2058 = vmatpush.bf16.msra.mxu0 0
      %2059 = vmatpush.bf16.msra.mxu0 0
      %2060 = vmatpush.bf16.msra.mxu0 0
      %2061 = vmatpush.bf16.msra.mxu0 0
      %2062 = vmatpush.bf16.msra.mxu0 %v1914
      %2063 = vmatpush.bf16.msra.mxu0 %v1912
      %2064 = vmatmul.bf16.gmra.mxu0 %v1920
      %v2065 = vpop.f32.mrf.mxu0
      %v2066 = vadd.f32 0.0, %v2065
      %v2067 = vpop.f32.mrf.mxu0
      %v2068 = vadd.f32 0.0, %v2067
      %2069 = vmatmul.bf16.gmra.mxu0 %v1923
      %v2070 = vpop.f32.mrf.mxu0
      %v2071 = vadd.f32 0.0, %v2070
      %v2072 = vpop.f32.mrf.mxu0
      %v2073 = vadd.f32 0.0, %v2072
      %2074 = vmatmul.bf16.gmra.mxu0 %v1926
      %v2075 = vpop.f32.mrf.mxu0
      %v2076 = vadd.f32 0.0, %v2075
      %v2077 = vpop.f32.mrf.mxu0
      %v2078 = vadd.f32 0.0, %v2077
      %2079 = vmatmul.bf16.gmra.mxu0 %v1929
      %v2080 = vpop.f32.mrf.mxu0
      %v2081 = vadd.f32 0.0, %v2080
      %v2082 = vpop.f32.mrf.mxu0
      %v2083 = vadd.f32 0.0, %v2082
      %2084 = vmatmul.bf16.gmra.mxu0 %v1932
      %v2085 = vpop.f32.mrf.mxu0
      %v2086 = vadd.f32 0.0, %v2085
      %v2087 = vpop.f32.mrf.mxu0
      %v2088 = vadd.f32 0.0, %v2087
      %2089 = vmatmul.bf16.gmra.mxu0 %v1935
      %v2090 = vpop.f32.mrf.mxu0
      %v2091 = vadd.f32 0.0, %v2090
      %v2092 = vpop.f32.mrf.mxu0
      %v2093 = vadd.f32 0.0, %v2092
      %2094 = vmatmul.bf16.gmra.mxu0 %v1938
      %v2095 = vpop.f32.mrf.mxu0
      %v2096 = vadd.f32 0.0, %v2095
      %v2097 = vpop.f32.mrf.mxu0
      %v2098 = vadd.f32 0.0, %v2097
      %2099 = vmatmul.bf16.gmra.mxu0 %v1941
      %v2100 = vpop.f32.mrf.mxu0
      %v2101 = vadd.f32 0.0, %v2100
      %v2102 = vpop.f32.mrf.mxu0
      %v2103 = vadd.f32 0.0, %v2102
      %2104 = vmatmul.bf16.gmra.mxu0 %v1944
      %v2105 = vpop.f32.mrf.mxu0
      %v2106 = vadd.f32 0.0, %v2105
      %v2107 = vpop.f32.mrf.mxu0
      %v2108 = vadd.f32 0.0, %v2107
      %2109 = vmatmul.bf16.gmra.mxu0 %v1947
      %v2110 = vpop.f32.mrf.mxu0
      %v2111 = vadd.f32 0.0, %v2110
      %v2112 = vpop.f32.mrf.mxu0
      %v2113 = vadd.f32 0.0, %v2112
      %2114 = vmatmul.bf16.gmra.mxu0 %v1950
      %v2115 = vpop.f32.mrf.mxu0
      %v2116 = vadd.f32 0.0, %v2115
      %v2117 = vpop.f32.mrf.mxu0
      %v2118 = vadd.f32 0.0, %v2117
      %2119 = vmatmul.bf16.gmra.mxu0 %v1953
      %v2120 = vpop.f32.mrf.mxu0
      %v2121 = vadd.f32 0.0, %v2120
      %v2122 = vpop.f32.mrf.mxu0
      %v2123 = vadd.f32 0.0, %v2122
      %2124 = vmatmul.bf16.gmra.mxu0 %v1956
      %v2125 = vpop.f32.mrf.mxu0
      %v2126 = vadd.f32 0.0, %v2125
      %v2127 = vpop.f32.mrf.mxu0
      %v2128 = vadd.f32 0.0, %v2127
      %2129 = vmatmul.bf16.gmra.mxu0 %v1959
      %v2130 = vpop.f32.mrf.mxu0
      %v2131 = vadd.f32 0.0, %v2130
      %v2132 = vpop.f32.mrf.mxu0
      %v2133 = vadd.f32 0.0, %v2132
      %2134 = vmatmul.bf16.gmra.mxu0 %v1962
      %v2135 = vpop.f32.mrf.mxu0
      %v2136 = vadd.f32 0.0, %v2135
      %v2137 = vpop.f32.mrf.mxu0
      %v2138 = vadd.f32 0.0, %v2137
      %2139 = vmatmul.bf16.gmra.mxu0 %v1965
      %v2140 = vpop.f32.mrf.mxu0
      %v2141 = vadd.f32 0.0, %v2140
      %v2142 = vpop.f32.mrf.mxu0
      %v2143 = vadd.f32 0.0, %v2142
      %2144 = vdwg.mxu0
      %v2145 = vld [vmem:[#allocation2] sm:$0xff]
      %v2146 = vld [vmem:[#allocation2 + $0x8] sm:$0xff]
      %v2147 = vld [vmem:[#allocation2 + $0x10] sm:$0xff]
      %v2148 = vld [vmem:[#allocation2 + $0x18] sm:$0xff]
      %v2149 = vld [vmem:[#allocation2 + $0x20] sm:$0xff]
      %v2150 = vld [vmem:[#allocation2 + $0x28] sm:$0xff]
      %v2151 = vld [vmem:[#allocation2 + $0x30] sm:$0xff]
      %v2152 = vld [vmem:[#allocation2 + $0x38] sm:$0xff]
      %v2153 = vld [vmem:[#allocation2 + $0x40] sm:$0xff]
      %v2154 = vld [vmem:[#allocation2 + $0x48] sm:$0xff]
      %v2155 = vld [vmem:[#allocation2 + $0x50] sm:$0xff]
      %v2156 = vld [vmem:[#allocation2 + $0x58] sm:$0xff]
      %v2157 = vld [vmem:[#allocation2 + $0x60] sm:$0xff]
      %v2158 = vld [vmem:[#allocation2 + $0x68] sm:$0xff]
      %v2159 = vld [vmem:[#allocation2 + $0x70] sm:$0xff]
      %v2160 = vld [vmem:[#allocation2 + $0x78] sm:$0xff]
      %v2161 = vld [vmem:[#allocation2 + $0x80] sm:$0xff]
      %v2162 = vld [vmem:[#allocation2 + $0x88] sm:$0xff]
      %v2163 = vld [vmem:[#allocation2 + $0x90] sm:$0xff]
      %v2164 = vld [vmem:[#allocation2 + $0x98] sm:$0xff]
      %v2165 = vld [vmem:[#allocation2 + $0xa0] sm:$0xff]
      %v2166 = vld [vmem:[#allocation2 + $0xa8] sm:$0xff]
      %v2167 = vld [vmem:[#allocation2 + $0xb0] sm:$0xff]
      %v2168 = vld [vmem:[#allocation2 + $0xb8] sm:$0xff]
      %v2169 = vld [vmem:[#allocation2 + $0xc0] sm:$0xff]
      %v2170 = vld [vmem:[#allocation2 + $0xc8] sm:$0xff]
      %v2171 = vld [vmem:[#allocation2 + $0xd0] sm:$0xff]
      %v2172 = vld [vmem:[#allocation2 + $0xd8] sm:$0xff]
      %v2173 = vld [vmem:[#allocation2 + $0xe0] sm:$0xff]
      %v2174 = vld [vmem:[#allocation2 + $0xe8] sm:$0xff]
      %v2175 = vld [vmem:[#allocation2 + $0xf0] sm:$0xff]
      %v2176 = vld [vmem:[#allocation2 + $0xf8] sm:$0xff]
      %v2177 = vld [vmem:[#allocation2 + $0x100] sm:$0xff]
      %v2178 = vld [vmem:[#allocation2 + $0x108] sm:$0xff]
      %v2179 = vld [vmem:[#allocation2 + $0x110] sm:$0xff]
      %v2180 = vld [vmem:[#allocation2 + $0x118] sm:$0xff]
      %v2181 = vld [vmem:[#allocation2 + $0x120] sm:$0xff]
      %v2182 = vld [vmem:[#allocation2 + $0x128] sm:$0xff]
      %v2183 = vld [vmem:[#allocation2 + $0x130] sm:$0xff]
      %v2184 = vld [vmem:[#allocation2 + $0x138] sm:$0xff]
      %v2185 = vld [vmem:[#allocation2 + $0x140] sm:$0xff]
      %v2186 = vld [vmem:[#allocation2 + $0x148] sm:$0xff]
      %v2187 = vld [vmem:[#allocation2 + $0x150] sm:$0xff]
      %v2188 = vld [vmem:[#allocation2 + $0x158] sm:$0xff]
      %v2189 = vld [vmem:[#allocation2 + $0x160] sm:$0xff]
      %v2190 = vld [vmem:[#allocation2 + $0x168] sm:$0xff]
      %v2191 = vld [vmem:[#allocation2 + $0x170] sm:$0xff]
      %v2192 = vld [vmem:[#allocation2 + $0x178] sm:$0xff]
      %v2193 = vld [vmem:[#allocation2 + $0x180] sm:$0xff]
      %v2194 = vld [vmem:[#allocation2 + $0x188] sm:$0xff]
      %v2195 = vld [vmem:[#allocation2 + $0x190] sm:$0xff]
      %v2196 = vld [vmem:[#allocation2 + $0x198] sm:$0xff]
      %v2197 = vld [vmem:[#allocation2 + $0x1a0] sm:$0xff]
      %v2198 = vld [vmem:[#allocation2 + $0x1a8] sm:$0xff]
      %v2199 = vld [vmem:[#allocation2 + $0x1b0] sm:$0xff]
      %v2200 = vld [vmem:[#allocation2 + $0x1b8] sm:$0xff]
      %v2201 = vld [vmem:[#allocation2 + $0x1c0] sm:$0xff]
      %v2202 = vld [vmem:[#allocation2 + $0x1c8] sm:$0xff]
      %v2203 = vld [vmem:[#allocation2 + $0x1d0] sm:$0xff]
      %v2204 = vld [vmem:[#allocation2 + $0x1d8] sm:$0xff]
      %v2205 = vld [vmem:[#allocation2 + $0x1e0] sm:$0xff]
      %v2206 = vld [vmem:[#allocation2 + $0x1e8] sm:$0xff]
      %v2207 = vld [vmem:[#allocation2 + $0x1f0] sm:$0xff]
      %v2208 = vld [vmem:[#allocation2 + $0x1f8] sm:$0xff]
      %v2209 = vadd.f32 %v2145, %v1977
      %v2210 = vadd.f32 %v2146, %v2066
      %v2211 = vadd.f32 %v2147, %v1979
      %v2212 = vadd.f32 %v2148, %v2068
      %v2213 = vadd.f32 %v2149, %v1982
      %v2214 = vadd.f32 %v2150, %v2071
      %v2215 = vadd.f32 %v2151, %v1984
      %v2216 = vadd.f32 %v2152, %v2073
      %v2217 = vadd.f32 %v2153, %v1987
      %v2218 = vadd.f32 %v2154, %v2076
      %v2219 = vadd.f32 %v2155, %v1989
      %v2220 = vadd.f32 %v2156, %v2078
      %v2221 = vadd.f32 %v2157, %v1992
      %v2222 = vadd.f32 %v2158, %v2081
      %v2223 = vadd.f32 %v2159, %v1994
      %v2224 = vadd.f32 %v2160, %v2083
      %v2225 = vadd.f32 %v2161, %v1997
      %v2226 = vadd.f32 %v2162, %v2086
      %v2227 = vadd.f32 %v2163, %v1999
      %v2228 = vadd.f32 %v2164, %v2088
      %v2229 = vadd.f32 %v2165, %v2002
      %v2230 = vadd.f32 %v2166, %v2091
      %v2231 = vadd.f32 %v2167, %v2004
      %v2232 = vadd.f32 %v2168, %v2093
      %v2233 = vadd.f32 %v2169, %v2007
      %v2234 = vadd.f32 %v2170, %v2096
      %v2235 = vadd.f32 %v2171, %v2009
      %v2236 = vadd.f32 %v2172, %v2098
      %v2237 = vadd.f32 %v2173, %v2012
      %v2238 = vadd.f32 %v2174, %v2101
      %v2239 = vadd.f32 %v2175, %v2014
      %v2240 = vadd.f32 %v2176, %v2103
      %v2241 = vadd.f32 %v2177, %v2017
      %v2242 = vadd.f32 %v2178, %v2106
      %v2243 = vadd.f32 %v2179, %v2019
      %v2244 = vadd.f32 %v2180, %v2108
      %v2245 = vadd.f32 %v2181, %v2022
      %v2246 = vadd.f32 %v2182, %v2111
      %v2247 = vadd.f32 %v2183, %v2024
      %v2248 = vadd.f32 %v2184, %v2113
      %v2249 = vadd.f32 %v2185, %v2027
      %v2250 = vadd.f32 %v2186, %v2116
      %v2251 = vadd.f32 %v2187, %v2029
      %v2252 = vadd.f32 %v2188, %v2118
      %v2253 = vadd.f32 %v2189, %v2032
      %v2254 = vadd.f32 %v2190, %v2121
      %v2255 = vadd.f32 %v2191, %v2034
      %v2256 = vadd.f32 %v2192, %v2123
      %v2257 = vadd.f32 %v2193, %v2037
      %v2258 = vadd.f32 %v2194, %v2126
      %v2259 = vadd.f32 %v2195, %v2039
      %v2260 = vadd.f32 %v2196, %v2128
      %v2261 = vadd.f32 %v2197, %v2042
      %v2262 = vadd.f32 %v2198, %v2131
      %v2263 = vadd.f32 %v2199, %v2044
      %v2264 = vadd.f32 %v2200, %v2133
      %v2265 = vadd.f32 %v2201, %v2047
      %v2266 = vadd.f32 %v2202, %v2136
      %v2267 = vadd.f32 %v2203, %v2049
      %v2268 = vadd.f32 %v2204, %v2138
      %v2269 = vadd.f32 %v2205, %v2052
      %v2270 = vadd.f32 %v2206, %v2141
      %v2271 = vadd.f32 %v2207, %v2054
      %v2272 = vadd.f32 %v2208, %v2143
      %2273 = vst [vmem:[#allocation2] sm:$0xff] %v2209
      %2274 = vst [vmem:[#allocation2 + $0x8] sm:$0xff] %v2210
      %2275 = vst [vmem:[#allocation2 + $0x10] sm:$0xff] %v2211
      %2276 = vst [vmem:[#allocation2 + $0x18] sm:$0xff] %v2212
      %2277 = vst [vmem:[#allocation2 + $0x20] sm:$0xff] %v2213
      %2278 = vst [vmem:[#allocation2 + $0x28] sm:$0xff] %v2214
      %2279 = vst [vmem:[#allocation2 + $0x30] sm:$0xff] %v2215
      %2280 = vst [vmem:[#allocation2 + $0x38] sm:$0xff] %v2216
      %2281 = vst [vmem:[#allocation2 + $0x40] sm:$0xff] %v2217
      %2282 = vst [vmem:[#allocation2 + $0x48] sm:$0xff] %v2218
      %2283 = vst [vmem:[#allocation2 + $0x50] sm:$0xff] %v2219
      %2284 = vst [vmem:[#allocation2 + $0x58] sm:$0xff] %v2220
      %2285 = vst [vmem:[#allocation2 + $0x60] sm:$0xff] %v2221
      %2286 = vst [vmem:[#allocation2 + $0x68] sm:$0xff] %v2222
      %2287 = vst [vmem:[#allocation2 + $0x70] sm:$0xff] %v2223
      %2288 = vst [vmem:[#allocation2 + $0x78] sm:$0xff] %v2224
      %2289 = vst [vmem:[#allocation2 + $0x80] sm:$0xff] %v2225
      %2290 = vst [vmem:[#allocation2 + $0x88] sm:$0xff] %v2226
      %2291 = vst [vmem:[#allocation2 + $0x90] sm:$0xff] %v2227
      %2292 = vst [vmem:[#allocation2 + $0x98] sm:$0xff] %v2228
      %2293 = vst [vmem:[#allocation2 + $0xa0] sm:$0xff] %v2229
      %2294 = vst [vmem:[#allocation2 + $0xa8] sm:$0xff] %v2230
      %2295 = vst [vmem:[#allocation2 + $0xb0] sm:$0xff] %v2231
      %2296 = vst [vmem:[#allocation2 + $0xb8] sm:$0xff] %v2232
      %2297 = vst [vmem:[#allocation2 + $0xc0] sm:$0xff] %v2233
      %2298 = vst [vmem:[#allocation2 + $0xc8] sm:$0xff] %v2234
      %2299 = vst [vmem:[#allocation2 + $0xd0] sm:$0xff] %v2235
      %2300 = vst [vmem:[#allocation2 + $0xd8] sm:$0xff] %v2236
      %2301 = vst [vmem:[#allocation2 + $0xe0] sm:$0xff] %v2237
      %2302 = vst [vmem:[#allocation2 + $0xe8] sm:$0xff] %v2238
      %2303 = vst [vmem:[#allocation2 + $0xf0] sm:$0xff] %v2239
      %2304 = vst [vmem:[#allocation2 + $0xf8] sm:$0xff] %v2240
      %2305 = vst [vmem:[#allocation2 + $0x100] sm:$0xff] %v2241
      %2306 = vst [vmem:[#allocation2 + $0x108] sm:$0xff] %v2242
      %2307 = vst [vmem:[#allocation2 + $0x110] sm:$0xff] %v2243
      %2308 = vst [vmem:[#allocation2 + $0x118] sm:$0xff] %v2244
      %2309 = vst [vmem:[#allocation2 + $0x120] sm:$0xff] %v2245
      %2310 = vst [vmem:[#allocation2 + $0x128] sm:$0xff] %v2246
      %2311 = vst [vmem:[#allocation2 + $0x130] sm:$0xff] %v2247
      %2312 = vst [vmem:[#allocation2 + $0x138] sm:$0xff] %v2248
      %2313 = vst [vmem:[#allocation2 + $0x140] sm:$0xff] %v2249
      %2314 = vst [vmem:[#allocation2 + $0x148] sm:$0xff] %v2250
      %2315 = vst [vmem:[#allocation2 + $0x150] sm:$0xff] %v2251
      %2316 = vst [vmem:[#allocation2 + $0x158] sm:$0xff] %v2252
      %2317 = vst [vmem:[#allocation2 + $0x160] sm:$0xff] %v2253
      %2318 = vst [vmem:[#allocation2 + $0x168] sm:$0xff] %v2254
      %2319 = vst [vmem:[#allocation2 + $0x170] sm:$0xff] %v2255
      %2320 = vst [vmem:[#allocation2 + $0x178] sm:$0xff] %v2256
      %2321 = vst [vmem:[#allocation2 + $0x180] sm:$0xff] %v2257
      %2322 = vst [vmem:[#allocation2 + $0x188] sm:$0xff] %v2258
      %2323 = vst [vmem:[#allocation2 + $0x190] sm:$0xff] %v2259
      %2324 = vst [vmem:[#allocation2 + $0x198] sm:$0xff] %v2260
      %2325 = vst [vmem:[#allocation2 + $0x1a0] sm:$0xff] %v2261
      %2326 = vst [vmem:[#allocation2 + $0x1a8] sm:$0xff] %v2262
      %2327 = vst [vmem:[#allocation2 + $0x1b0] sm:$0xff] %v2263
      %2328 = vst [vmem:[#allocation2 + $0x1b8] sm:$0xff] %v2264
      %2329 = vst [vmem:[#allocation2 + $0x1c0] sm:$0xff] %v2265
      %2330 = vst [vmem:[#allocation2 + $0x1c8] sm:$0xff] %v2266
      %2331 = vst [vmem:[#allocation2 + $0x1d0] sm:$0xff] %v2267
      %2332 = vst [vmem:[#allocation2 + $0x1d8] sm:$0xff] %v2268
      %2333 = vst [vmem:[#allocation2 + $0x1e0] sm:$0xff] %v2269
      %2334 = vst [vmem:[#allocation2 + $0x1e8] sm:$0xff] %v2270
      %2335 = vst [vmem:[#allocation2 + $0x1f0] sm:$0xff] %v2271
      %2336 = vst [vmem:[#allocation2 + $0x1f8] sm:$0xff] %v2272
      %s2337 = sadd.s32 %s278, 1
      %s2338 = smul.u32 %s2337, 3
      %s2339 = smul.addr %s2338, 4
      %s2340 = scalar_lea.vmem %s265, %s2339
      %v2341 = vld [vmem:[%s2340] sm:$0xf]
      %v2342 = vld [vmem:[%s2340 + $0x4] sm:$0xf]
      %v2343 = vld [vmem:[%s2340 + $0xc] sm:$0xf]
      %v2344 = vld [vmem:[%s2340 + $0x10] sm:$0xf]
      %v2345 = vld [vmem:[%s2340 + $0x18] sm:$0xf]
      %v2346 = vld [vmem:[%s2340 + $0x1c] sm:$0xf]
      %v2347 = vld [vmem:[%s2340 + $0x24] sm:$0xf]
      %v2348 = vld [vmem:[%s2340 + $0x28] sm:$0xf]
      %v2349 = vld [vmem:[%s2340 + $0x30] sm:$0xf]
      %v2350 = vld [vmem:[%s2340 + $0x34] sm:$0xf]
      %v2351 = vld [vmem:[%s2340 + $0x3c] sm:$0xf]
      %v2352 = vld [vmem:[%s2340 + $0x40] sm:$0xf]
      %v2353 = vld [vmem:[%s2340 + $0x48] sm:$0xf]
      %v2354 = vld [vmem:[%s2340 + $0x4c] sm:$0xf]
      %v2355 = vld [vmem:[%s2340 + $0x54] sm:$0xf]
      %v2356 = vld [vmem:[%s2340 + $0x58] sm:$0xf]
      %v2357 = vld [vmem:[%s2340 + $0x60] sm:$0xf]
      %v2358 = vld [vmem:[%s2340 + $0x64] sm:$0xf]
      %v2359 = vld [vmem:[%s2340 + $0x6c] sm:$0xf]
      %v2360 = vld [vmem:[%s2340 + $0x70] sm:$0xf]
      %v2361 = vld [vmem:[%s2340 + $0x78] sm:$0xf]
      %v2362 = vld [vmem:[%s2340 + $0x7c] sm:$0xf]
      %v2363 = vld [vmem:[%s2340 + $0x84] sm:$0xf]
      %v2364 = vld [vmem:[%s2340 + $0x88] sm:$0xf]
      %v2365 = vld [vmem:[%s2340 + $0x90] sm:$0xf]
      %v2366 = vld [vmem:[%s2340 + $0x94] sm:$0xf]
      %v2367 = vld [vmem:[%s2340 + $0x9c] sm:$0xf]
      %v2368 = vld [vmem:[%s2340 + $0xa0] sm:$0xf]
      %v2369 = vld [vmem:[%s2340 + $0xa8] sm:$0xf]
      %v2370 = vld [vmem:[%s2340 + $0xac] sm:$0xf]
      %v2371 = vld [vmem:[%s2340 + $0xb4] sm:$0xf]
      %v2372 = vld [vmem:[%s2340 + $0xb8] sm:$0xf]
      %s2373 = scalar_lea.vmem %s1, 96
      %v2374 = vld [vmem:[%s2373] sm:$0xff]
      %v2375 = vld [vmem:[%s2373 + $0x8] sm:$0xff]
      %v2376 = vld [vmem:[%s2373 + $0x10] sm:$0xff]
      %v2377 = vld [vmem:[%s2373 + $0x18] sm:$0xff]
      %v2410 = vunpack.c.l.b16 %v2341
      %v2411 = vunpack.c.l.b16 %v2342
      %v2412 = vunpack.c.l.b16 %v2343
      %v2413 = vunpack.c.l.b16 %v2344
      %v2414 = vunpack.c.l.b16 %v2345
      %v2415 = vunpack.c.l.b16 %v2346
      %v2416 = vunpack.c.l.b16 %v2347
      %v2417 = vunpack.c.l.b16 %v2348
      %v2418 = vunpack.c.l.b16 %v2349
      %v2419 = vunpack.c.l.b16 %v2350
      %v2420 = vunpack.c.l.b16 %v2351
      %v2421 = vunpack.c.l.b16 %v2352
      %v2422 = vunpack.c.l.b16 %v2353
      %v2423 = vunpack.c.l.b16 %v2354
      %v2424 = vunpack.c.l.b16 %v2355
      %v2425 = vunpack.c.l.b16 %v2356
      %v2426 = vunpack.c.l.b16 %v2357
      %v2427 = vunpack.c.l.b16 %v2358
      %v2428 = vunpack.c.l.b16 %v2359
      %v2429 = vunpack.c.l.b16 %v2360
      %v2430 = vunpack.c.l.b16 %v2361
      %v2431 = vunpack.c.l.b16 %v2362
      %v2432 = vunpack.c.l.b16 %v2363
      %v2433 = vunpack.c.l.b16 %v2364
      %v2434 = vunpack.c.l.b16 %v2365
      %v2435 = vunpack.c.l.b16 %v2366
      %v2436 = vunpack.c.l.b16 %v2367
      %v2437 = vunpack.c.l.b16 %v2368
      %v2438 = vunpack.c.l.b16 %v2369
      %v2439 = vunpack.c.l.b16 %v2370
      %v2440 = vunpack.c.l.b16 %v2371
      %v2441 = vunpack.c.l.b16 %v2372
      %v2442 = vpack.c.b16 %v2411, %v2410
      %v2443 = vpack.c.b16 %v2413, %v2412
      %v2444 = vpack.c.b16 %v2415, %v2414
      %v2445 = vpack.c.b16 %v2417, %v2416
      %v2446 = vpack.c.b16 %v2419, %v2418
      %v2447 = vpack.c.b16 %v2421, %v2420
      %v2448 = vpack.c.b16 %v2423, %v2422
      %v2449 = vpack.c.b16 %v2425, %v2424
      %v2450 = vpack.c.b16 %v2427, %v2426
      %v2451 = vpack.c.b16 %v2429, %v2428
      %v2452 = vpack.c.b16 %v2431, %v2430
      %v2453 = vpack.c.b16 %v2433, %v2432
      %v2454 = vpack.c.b16 %v2435, %v2434
      %v2455 = vpack.c.b16 %v2437, %v2436
      %v2456 = vpack.c.b16 %v2439, %v2438
      %v2457 = vpack.c.b16 %v2441, %v2440
      %v2462 = vunpack.c.l.b16 %v2374
      %v2463 = vunpack.c.h.b16 %v2374
      %v2464 = vunpack.c.l.b16 %v2375
      %v2465 = vunpack.c.h.b16 %v2375
      %v2466 = vunpack.c.l.b16 %v2376
      %v2467 = vunpack.c.h.b16 %v2376
      %v2468 = vunpack.c.l.b16 %v2377
      %v2469 = vunpack.c.h.b16 %v2377
      %v2470 = vpack.c.b16 %v2464, %v2462
      %v2471 = vpack.c.b16 %v2465, %v2463
      %v2472 = vpack.c.b16 %v2468, %v2466
      %v2473 = vpack.c.b16 %v2469, %v2467
      %v2479 = vsel %vm418, %v2442, 0
      %v2482 = vsel %vm418, %v2443, 0
      %v2485 = vsel %vm418, %v2444, 0
      %v2488 = vsel %vm418, %v2445, 0
      %v2491 = vsel %vm418, %v2446, 0
      %v2494 = vsel %vm418, %v2447, 0
      %v2497 = vsel %vm418, %v2448, 0
      %v2500 = vsel %vm418, %v2449, 0
      %v2503 = vsel %vm418, %v2450, 0
      %v2506 = vsel %vm418, %v2451, 0
      %v2509 = vsel %vm418, %v2452, 0
      %v2512 = vsel %vm418, %v2453, 0
      %v2515 = vsel %vm418, %v2454, 0
      %v2518 = vsel %vm418, %v2455, 0
      %v2521 = vsel %vm418, %v2456, 0
      %v2524 = vsel %vm418, %v2457, 0
      %2526 = vmatpush.bf16.msra.mxu0 0
      %2527 = vmatpush.bf16.msra.mxu0 0
      %2528 = vmatpush.bf16.msra.mxu0 0
      %2529 = vmatpush.bf16.msra.mxu0 0
      %2530 = vmatpush.bf16.msra.mxu0 0
      %2531 = vmatpush.bf16.msra.mxu0 0
      %2532 = vmatpush.bf16.msra.mxu0 %v2472
      %2533 = vmatpush.bf16.msra.mxu0 %v2470
      %2534 = vmatmul.bf16.gmra.mxu0 %v2479
      %v2535 = vpop.f32.mrf.mxu0
      %v2536 = vadd.f32 0.0, %v2535
      %v2537 = vpop.f32.mrf.mxu0
      %v2538 = vadd.f32 0.0, %v2537
      %2539 = vmatmul.bf16.gmra.mxu0 %v2482
      %v2540 = vpop.f32.mrf.mxu0
      %v2541 = vadd.f32 0.0, %v2540
      %v2542 = vpop.f32.mrf.mxu0
      %v2543 = vadd.f32 0.0, %v2542
      %2544 = vmatmul.bf16.gmra.mxu0 %v2485
      %v2545 = vpop.f32.mrf.mxu0
      %v2546 = vadd.f32 0.0, %v2545
      %v2547 = vpop.f32.mrf.mxu0
      %v2548 = vadd.f32 0.0, %v2547
      %2549 = vmatmul.bf16.gmra.mxu0 %v2488
      %v2550 = vpop.f32.mrf.mxu0
      %v2551 = vadd.f32 0.0, %v2550
      %v2552 = vpop.f32.mrf.mxu0
      %v2553 = vadd.f32 0.0, %v2552
      %2554 = vmatmul.bf16.gmra.mxu0 %v2491
      %v2555 = vpop.f32.mrf.mxu0
      %v2556 = vadd.f32 0.0, %v2555
      %v2557 = vpop.f32.mrf.mxu0
      %v2558 = vadd.f32 0.0, %v2557
      %2559 = vmatmul.bf16.gmra.mxu0 %v2494
      %v2560 = vpop.f32.mrf.mxu0
      %v2561 = vadd.f32 0.0, %v2560
      %v2562 = vpop.f32.mrf.mxu0
      %v2563 = vadd.f32 0.0, %v2562
      %2564 = vmatmul.bf16.gmra.mxu0 %v2497
      %v2565 = vpop.f32.mrf.mxu0
      %v2566 = vadd.f32 0.0, %v2565
      %v2567 = vpop.f32.mrf.mxu0
      %v2568 = vadd.f32 0.0, %v2567
      %2569 = vmatmul.bf16.gmra.mxu0 %v2500
      %v2570 = vpop.f32.mrf.mxu0
      %v2571 = vadd.f32 0.0, %v2570
      %v2572 = vpop.f32.mrf.mxu0
      %v2573 = vadd.f32 0.0, %v2572
      %2574 = vmatmul.bf16.gmra.mxu0 %v2503
      %v2575 = vpop.f32.mrf.mxu0
      %v2576 = vadd.f32 0.0, %v2575
      %v2577 = vpop.f32.mrf.mxu0
      %v2578 = vadd.f32 0.0, %v2577
      %2579 = vmatmul.bf16.gmra.mxu0 %v2506
      %v2580 = vpop.f32.mrf.mxu0
      %v2581 = vadd.f32 0.0, %v2580
      %v2582 = vpop.f32.mrf.mxu0
      %v2583 = vadd.f32 0.0, %v2582
      %2584 = vmatmul.bf16.gmra.mxu0 %v2509
      %v2585 = vpop.f32.mrf.mxu0
      %v2586 = vadd.f32 0.0, %v2585
      %v2587 = vpop.f32.mrf.mxu0
      %v2588 = vadd.f32 0.0, %v2587
      %2589 = vmatmul.bf16.gmra.mxu0 %v2512
      %v2590 = vpop.f32.mrf.mxu0
      %v2591 = vadd.f32 0.0, %v2590
      %v2592 = vpop.f32.mrf.mxu0
      %v2593 = vadd.f32 0.0, %v2592
      %2594 = vmatmul.bf16.gmra.mxu0 %v2515
      %v2595 = vpop.f32.mrf.mxu0
      %v2596 = vadd.f32 0.0, %v2595
      %v2597 = vpop.f32.mrf.mxu0
      %v2598 = vadd.f32 0.0, %v2597
      %2599 = vmatmul.bf16.gmra.mxu0 %v2518
      %v2600 = vpop.f32.mrf.mxu0
      %v2601 = vadd.f32 0.0, %v2600
      %v2602 = vpop.f32.mrf.mxu0
      %v2603 = vadd.f32 0.0, %v2602
      %2604 = vmatmul.bf16.gmra.mxu0 %v2521
      %v2605 = vpop.f32.mrf.mxu0
      %v2606 = vadd.f32 0.0, %v2605
      %v2607 = vpop.f32.mrf.mxu0
      %v2608 = vadd.f32 0.0, %v2607
      %2609 = vmatmul.bf16.gmra.mxu0 %v2524
      %v2610 = vpop.f32.mrf.mxu0
      %v2611 = vadd.f32 0.0, %v2610
      %v2612 = vpop.f32.mrf.mxu0
      %v2613 = vadd.f32 0.0, %v2612
      %2614 = vdwg.mxu0
      %2615 = vmatpush.bf16.msra.mxu0 0
      %2616 = vmatpush.bf16.msra.mxu0 0
      %2617 = vmatpush.bf16.msra.mxu0 0
      %2618 = vmatpush.bf16.msra.mxu0 0
      %2619 = vmatpush.bf16.msra.mxu0 0
      %2620 = vmatpush.bf16.msra.mxu0 0
      %2621 = vmatpush.bf16.msra.mxu0 %v2473
      %2622 = vmatpush.bf16.msra.mxu0 %v2471
      %2623 = vmatmul.bf16.gmra.mxu0 %v2479
      %v2624 = vpop.f32.mrf.mxu0
      %v2625 = vadd.f32 0.0, %v2624
      %v2626 = vpop.f32.mrf.mxu0
      %v2627 = vadd.f32 0.0, %v2626
      %2628 = vmatmul.bf16.gmra.mxu0 %v2482
      %v2629 = vpop.f32.mrf.mxu0
      %v2630 = vadd.f32 0.0, %v2629
      %v2631 = vpop.f32.mrf.mxu0
      %v2632 = vadd.f32 0.0, %v2631
      %2633 = vmatmul.bf16.gmra.mxu0 %v2485
      %v2634 = vpop.f32.mrf.mxu0
      %v2635 = vadd.f32 0.0, %v2634
      %v2636 = vpop.f32.mrf.mxu0
      %v2637 = vadd.f32 0.0, %v2636
      %2638 = vmatmul.bf16.gmra.mxu0 %v2488
      %v2639 = vpop.f32.mrf.mxu0
      %v2640 = vadd.f32 0.0, %v2639
      %v2641 = vpop.f32.mrf.mxu0
      %v2642 = vadd.f32 0.0, %v2641
      %2643 = vmatmul.bf16.gmra.mxu0 %v2491
      %v2644 = vpop.f32.mrf.mxu0
      %v2645 = vadd.f32 0.0, %v2644
      %v2646 = vpop.f32.mrf.mxu0
      %v2647 = vadd.f32 0.0, %v2646
      %2648 = vmatmul.bf16.gmra.mxu0 %v2494
      %v2649 = vpop.f32.mrf.mxu0
      %v2650 = vadd.f32 0.0, %v2649
      %v2651 = vpop.f32.mrf.mxu0
      %v2652 = vadd.f32 0.0, %v2651
      %2653 = vmatmul.bf16.gmra.mxu0 %v2497
      %v2654 = vpop.f32.mrf.mxu0
      %v2655 = vadd.f32 0.0, %v2654
      %v2656 = vpop.f32.mrf.mxu0
      %v2657 = vadd.f32 0.0, %v2656
      %2658 = vmatmul.bf16.gmra.mxu0 %v2500
      %v2659 = vpop.f32.mrf.mxu0
      %v2660 = vadd.f32 0.0, %v2659
      %v2661 = vpop.f32.mrf.mxu0
      %v2662 = vadd.f32 0.0, %v2661
      %2663 = vmatmul.bf16.gmra.mxu0 %v2503
      %v2664 = vpop.f32.mrf.mxu0
      %v2665 = vadd.f32 0.0, %v2664
      %v2666 = vpop.f32.mrf.mxu0
      %v2667 = vadd.f32 0.0, %v2666
      %2668 = vmatmul.bf16.gmra.mxu0 %v2506
      %v2669 = vpop.f32.mrf.mxu0
      %v2670 = vadd.f32 0.0, %v2669
      %v2671 = vpop.f32.mrf.mxu0
      %v2672 = vadd.f32 0.0, %v2671
      %2673 = vmatmul.bf16.gmra.mxu0 %v2509
      %v2674 = vpop.f32.mrf.mxu0
      %v2675 = vadd.f32 0.0, %v2674
      %v2676 = vpop.f32.mrf.mxu0
      %v2677 = vadd.f32 0.0, %v2676
      %2678 = vmatmul.bf16.gmra.mxu0 %v2512
      %v2679 = vpop.f32.mrf.mxu0
      %v2680 = vadd.f32 0.0, %v2679
      %v2681 = vpop.f32.mrf.mxu0
      %v2682 = vadd.f32 0.0, %v2681
      %2683 = vmatmul.bf16.gmra.mxu0 %v2515
      %v2684 = vpop.f32.mrf.mxu0
      %v2685 = vadd.f32 0.0, %v2684
      %v2686 = vpop.f32.mrf.mxu0
      %v2687 = vadd.f32 0.0, %v2686
      %2688 = vmatmul.bf16.gmra.mxu0 %v2518
      %v2689 = vpop.f32.mrf.mxu0
      %v2690 = vadd.f32 0.0, %v2689
      %v2691 = vpop.f32.mrf.mxu0
      %v2692 = vadd.f32 0.0, %v2691
      %2693 = vmatmul.bf16.gmra.mxu0 %v2521
      %v2694 = vpop.f32.mrf.mxu0
      %v2695 = vadd.f32 0.0, %v2694
      %v2696 = vpop.f32.mrf.mxu0
      %v2697 = vadd.f32 0.0, %v2696
      %2698 = vmatmul.bf16.gmra.mxu0 %v2524
      %v2699 = vpop.f32.mrf.mxu0
      %v2700 = vadd.f32 0.0, %v2699
      %v2701 = vpop.f32.mrf.mxu0
      %v2702 = vadd.f32 0.0, %v2701
      %2703 = vdwg.mxu0
      %v2704 = vld [vmem:[#allocation2] sm:$0xff]
      %v2705 = vld [vmem:[#allocation2 + $0x8] sm:$0xff]
      %v2706 = vld [vmem:[#allocation2 + $0x10] sm:$0xff]
      %v2707 = vld [vmem:[#allocation2 + $0x18] sm:$0xff]
      %v2708 = vld [vmem:[#allocation2 + $0x20] sm:$0xff]
      %v2709 = vld [vmem:[#allocation2 + $0x28] sm:$0xff]
      %v2710 = vld [vmem:[#allocation2 + $0x30] sm:$0xff]
      %v2711 = vld [vmem:[#allocation2 + $0x38] sm:$0xff]
      %v2712 = vld [vmem:[#allocation2 + $0x40] sm:$0xff]
      %v2713 = vld [vmem:[#allocation2 + $0x48] sm:$0xff]
      %v2714 = vld [vmem:[#allocation2 + $0x50] sm:$0xff]
      %v2715 = vld [vmem:[#allocation2 + $0x58] sm:$0xff]
      %v2716 = vld [vmem:[#allocation2 + $0x60] sm:$0xff]
      %v2717 = vld [vmem:[#allocation2 + $0x68] sm:$0xff]
      %v2718 = vld [vmem:[#allocation2 + $0x70] sm:$0xff]
      %v2719 = vld [vmem:[#allocation2 + $0x78] sm:$0xff]
      %v2720 = vld [vmem:[#allocation2 + $0x80] sm:$0xff]
      %v2721 = vld [vmem:[#allocation2 + $0x88] sm:$0xff]
      %v2722 = vld [vmem:[#allocation2 + $0x90] sm:$0xff]
      %v2723 = vld [vmem:[#allocation2 + $0x98] sm:$0xff]
      %v2724 = vld [vmem:[#allocation2 + $0xa0] sm:$0xff]
      %v2725 = vld [vmem:[#allocation2 + $0xa8] sm:$0xff]
      %v2726 = vld [vmem:[#allocation2 + $0xb0] sm:$0xff]
      %v2727 = vld [vmem:[#allocation2 + $0xb8] sm:$0xff]
      %v2728 = vld [vmem:[#allocation2 + $0xc0] sm:$0xff]
      %v2729 = vld [vmem:[#allocation2 + $0xc8] sm:$0xff]
      %v2730 = vld [vmem:[#allocation2 + $0xd0] sm:$0xff]
      %v2731 = vld [vmem:[#allocation2 + $0xd8] sm:$0xff]
      %v2732 = vld [vmem:[#allocation2 + $0xe0] sm:$0xff]
      %v2733 = vld [vmem:[#allocation2 + $0xe8] sm:$0xff]
      %v2734 = vld [vmem:[#allocation2 + $0xf0] sm:$0xff]
      %v2735 = vld [vmem:[#allocation2 + $0xf8] sm:$0xff]
      %v2736 = vld [vmem:[#allocation2 + $0x100] sm:$0xff]
      %v2737 = vld [vmem:[#allocation2 + $0x108] sm:$0xff]
      %v2738 = vld [vmem:[#allocation2 + $0x110] sm:$0xff]
      %v2739 = vld [vmem:[#allocation2 + $0x118] sm:$0xff]
      %v2740 = vld [vmem:[#allocation2 + $0x120] sm:$0xff]
      %v2741 = vld [vmem:[#allocation2 + $0x128] sm:$0xff]
      %v2742 = vld [vmem:[#allocation2 + $0x130] sm:$0xff]
      %v2743 = vld [vmem:[#allocation2 + $0x138] sm:$0xff]
      %v2744 = vld [vmem:[#allocation2 + $0x140] sm:$0xff]
      %v2745 = vld [vmem:[#allocation2 + $0x148] sm:$0xff]
      %v2746 = vld [vmem:[#allocation2 + $0x150] sm:$0xff]
      %v2747 = vld [vmem:[#allocation2 + $0x158] sm:$0xff]
      %v2748 = vld [vmem:[#allocation2 + $0x160] sm:$0xff]
      %v2749 = vld [vmem:[#allocation2 + $0x168] sm:$0xff]
      %v2750 = vld [vmem:[#allocation2 + $0x170] sm:$0xff]
      %v2751 = vld [vmem:[#allocation2 + $0x178] sm:$0xff]
      %v2752 = vld [vmem:[#allocation2 + $0x180] sm:$0xff]
      %v2753 = vld [vmem:[#allocation2 + $0x188] sm:$0xff]
      %v2754 = vld [vmem:[#allocation2 + $0x190] sm:$0xff]
      %v2755 = vld [vmem:[#allocation2 + $0x198] sm:$0xff]
      %v2756 = vld [vmem:[#allocation2 + $0x1a0] sm:$0xff]
      %v2757 = vld [vmem:[#allocation2 + $0x1a8] sm:$0xff]
      %v2758 = vld [vmem:[#allocation2 + $0x1b0] sm:$0xff]
      %v2759 = vld [vmem:[#allocation2 + $0x1b8] sm:$0xff]
      %v2760 = vld [vmem:[#allocation2 + $0x1c0] sm:$0xff]
      %v2761 = vld [vmem:[#allocation2 + $0x1c8] sm:$0xff]
      %v2762 = vld [vmem:[#allocation2 + $0x1d0] sm:$0xff]
      %v2763 = vld [vmem:[#allocation2 + $0x1d8] sm:$0xff]
      %v2764 = vld [vmem:[#allocation2 + $0x1e0] sm:$0xff]
      %v2765 = vld [vmem:[#allocation2 + $0x1e8] sm:$0xff]
      %v2766 = vld [vmem:[#allocation2 + $0x1f0] sm:$0xff]
      %v2767 = vld [vmem:[#allocation2 + $0x1f8] sm:$0xff]
      %v2768 = vadd.f32 %v2704, %v2536
      %v2769 = vadd.f32 %v2705, %v2625
      %v2770 = vadd.f32 %v2706, %v2538
      %v2771 = vadd.f32 %v2707, %v2627
      %v2772 = vadd.f32 %v2708, %v2541
      %v2773 = vadd.f32 %v2709, %v2630
      %v2774 = vadd.f32 %v2710, %v2543
      %v2775 = vadd.f32 %v2711, %v2632
      %v2776 = vadd.f32 %v2712, %v2546
      %v2777 = vadd.f32 %v2713, %v2635
      %v2778 = vadd.f32 %v2714, %v2548
      %v2779 = vadd.f32 %v2715, %v2637
      %v2780 = vadd.f32 %v2716, %v2551
      %v2781 = vadd.f32 %v2717, %v2640
      %v2782 = vadd.f32 %v2718, %v2553
      %v2783 = vadd.f32 %v2719, %v2642
      %v2784 = vadd.f32 %v2720, %v2556
      %v2785 = vadd.f32 %v2721, %v2645
      %v2786 = vadd.f32 %v2722, %v2558
      %v2787 = vadd.f32 %v2723, %v2647
      %v2788 = vadd.f32 %v2724, %v2561
      %v2789 = vadd.f32 %v2725, %v2650
      %v2790 = vadd.f32 %v2726, %v2563
      %v2791 = vadd.f32 %v2727, %v2652
      %v2792 = vadd.f32 %v2728, %v2566
      %v2793 = vadd.f32 %v2729, %v2655
      %v2794 = vadd.f32 %v2730, %v2568
      %v2795 = vadd.f32 %v2731, %v2657
      %v2796 = vadd.f32 %v2732, %v2571
      %v2797 = vadd.f32 %v2733, %v2660
      %v2798 = vadd.f32 %v2734, %v2573
      %v2799 = vadd.f32 %v2735, %v2662
      %v2800 = vadd.f32 %v2736, %v2576
      %v2801 = vadd.f32 %v2737, %v2665
      %v2802 = vadd.f32 %v2738, %v2578
      %v2803 = vadd.f32 %v2739, %v2667
      %v2804 = vadd.f32 %v2740, %v2581
      %v2805 = vadd.f32 %v2741, %v2670
      %v2806 = vadd.f32 %v2742, %v2583
      %v2807 = vadd.f32 %v2743, %v2672
      %v2808 = vadd.f32 %v2744, %v2586
      %v2809 = vadd.f32 %v2745, %v2675
      %v2810 = vadd.f32 %v2746, %v2588
      %v2811 = vadd.f32 %v2747, %v2677
      %v2812 = vadd.f32 %v2748, %v2591
      %v2813 = vadd.f32 %v2749, %v2680
      %v2814 = vadd.f32 %v2750, %v2593
      %v2815 = vadd.f32 %v2751, %v2682
      %v2816 = vadd.f32 %v2752, %v2596
      %v2817 = vadd.f32 %v2753, %v2685
      %v2818 = vadd.f32 %v2754, %v2598
      %v2819 = vadd.f32 %v2755, %v2687
      %v2820 = vadd.f32 %v2756, %v2601
      %v2821 = vadd.f32 %v2757, %v2690
      %v2822 = vadd.f32 %v2758, %v2603
      %v2823 = vadd.f32 %v2759, %v2692
      %v2824 = vadd.f32 %v2760, %v2606
      %v2825 = vadd.f32 %v2761, %v2695
      %v2826 = vadd.f32 %v2762, %v2608
      %v2827 = vadd.f32 %v2763, %v2697
      %v2828 = vadd.f32 %v2764, %v2611
      %v2829 = vadd.f32 %v2765, %v2700
      %v2830 = vadd.f32 %v2766, %v2613
      %v2831 = vadd.f32 %v2767, %v2702
      %2832 = vst [vmem:[#allocation2] sm:$0xff] %v2768
      %2833 = vst [vmem:[#allocation2 + $0x8] sm:$0xff] %v2769
      %2834 = vst [vmem:[#allocation2 + $0x10] sm:$0xff] %v2770
      %2835 = vst [vmem:[#allocation2 + $0x18] sm:$0xff] %v2771
      %2836 = vst [vmem:[#allocation2 + $0x20] sm:$0xff] %v2772
      %2837 = vst [vmem:[#allocation2 + $0x28] sm:$0xff] %v2773
      %2838 = vst [vmem:[#allocation2 + $0x30] sm:$0xff] %v2774
      %2839 = vst [vmem:[#allocation2 + $0x38] sm:$0xff] %v2775
      %2840 = vst [vmem:[#allocation2 + $0x40] sm:$0xff] %v2776
      %2841 = vst [vmem:[#allocation2 + $0x48] sm:$0xff] %v2777
      %2842 = vst [vmem:[#allocation2 + $0x50] sm:$0xff] %v2778
      %2843 = vst [vmem:[#allocation2 + $0x58] sm:$0xff] %v2779
      %2844 = vst [vmem:[#allocation2 + $0x60] sm:$0xff] %v2780
      %2845 = vst [vmem:[#allocation2 + $0x68] sm:$0xff] %v2781
      %2846 = vst [vmem:[#allocation2 + $0x70] sm:$0xff] %v2782
      %2847 = vst [vmem:[#allocation2 + $0x78] sm:$0xff] %v2783
      %2848 = vst [vmem:[#allocation2 + $0x80] sm:$0xff] %v2784
      %2849 = vst [vmem:[#allocation2 + $0x88] sm:$0xff] %v2785
      %2850 = vst [vmem:[#allocation2 + $0x90] sm:$0xff] %v2786
      %2851 = vst [vmem:[#allocation2 + $0x98] sm:$0xff] %v2787
      %2852 = vst [vmem:[#allocation2 + $0xa0] sm:$0xff] %v2788
      %2853 = vst [vmem:[#allocation2 + $0xa8] sm:$0xff] %v2789
      %2854 = vst [vmem:[#allocation2 + $0xb0] sm:$0xff] %v2790
      %2855 = vst [vmem:[#allocation2 + $0xb8] sm:$0xff] %v2791
      %2856 = vst [vmem:[#allocation2 + $0xc0] sm:$0xff] %v2792
      %2857 = vst [vmem:[#allocation2 + $0xc8] sm:$0xff] %v2793
      %2858 = vst [vmem:[#allocation2 + $0xd0] sm:$0xff] %v2794
      %2859 = vst [vmem:[#allocation2 + $0xd8] sm:$0xff] %v2795
      %2860 = vst [vmem:[#allocation2 + $0xe0] sm:$0xff] %v2796
      %2861 = vst [vmem:[#allocation2 + $0xe8] sm:$0xff] %v2797
      %2862 = vst [vmem:[#allocation2 + $0xf0] sm:$0xff] %v2798
      %2863 = vst [vmem:[#allocation2 + $0xf8] sm:$0xff] %v2799
      %2864 = vst [vmem:[#allocation2 + $0x100] sm:$0xff] %v2800
      %2865 = vst [vmem:[#allocation2 + $0x108] sm:$0xff] %v2801
      %2866 = vst [vmem:[#allocation2 + $0x110] sm:$0xff] %v2802
      %2867 = vst [vmem:[#allocation2 + $0x118] sm:$0xff] %v2803
      %2868 = vst [vmem:[#allocation2 + $0x120] sm:$0xff] %v2804
      %2869 = vst [vmem:[#allocation2 + $0x128] sm:$0xff] %v2805
      %2870 = vst [vmem:[#allocation2 + $0x130] sm:$0xff] %v2806
      %2871 = vst [vmem:[#allocation2 + $0x138] sm:$0xff] %v2807
      %2872 = vst [vmem:[#allocation2 + $0x140] sm:$0xff] %v2808
      %2873 = vst [vmem:[#allocation2 + $0x148] sm:$0xff] %v2809
      %2874 = vst [vmem:[#allocation2 + $0x150] sm:$0xff] %v2810
      %2875 = vst [vmem:[#allocation2 + $0x158] sm:$0xff] %v2811
      %2876 = vst [vmem:[#allocation2 + $0x160] sm:$0xff] %v2812
      %2877 = vst [vmem:[#allocation2 + $0x168] sm:$0xff] %v2813
      %2878 = vst [vmem:[#allocation2 + $0x170] sm:$0xff] %v2814
      %2879 = vst [vmem:[#allocation2 + $0x178] sm:$0xff] %v2815
      %2880 = vst [vmem:[#allocation2 + $0x180] sm:$0xff] %v2816
      %2881 = vst [vmem:[#allocation2 + $0x188] sm:$0xff] %v2817
      %2882 = vst [vmem:[#allocation2 + $0x190] sm:$0xff] %v2818
      %2883 = vst [vmem:[#allocation2 + $0x198] sm:$0xff] %v2819
      %2884 = vst [vmem:[#allocation2 + $0x1a0] sm:$0xff] %v2820
      %2885 = vst [vmem:[#allocation2 + $0x1a8] sm:$0xff] %v2821
      %2886 = vst [vmem:[#allocation2 + $0x1b0] sm:$0xff] %v2822
      %2887 = vst [vmem:[#allocation2 + $0x1b8] sm:$0xff] %v2823
      %2888 = vst [vmem:[#allocation2 + $0x1c0] sm:$0xff] %v2824
      %2889 = vst [vmem:[#allocation2 + $0x1c8] sm:$0xff] %v2825
      %2890 = vst [vmem:[#allocation2 + $0x1d0] sm:$0xff] %v2826
      %2891 = vst [vmem:[#allocation2 + $0x1d8] sm:$0xff] %v2827
      %2892 = vst [vmem:[#allocation2 + $0x1e0] sm:$0xff] %v2828
      %2893 = vst [vmem:[#allocation2 + $0x1e8] sm:$0xff] %v2829
      %2894 = vst [vmem:[#allocation2 + $0x1f0] sm:$0xff] %v2830
      %2895 = vst [vmem:[#allocation2 + $0x1f8] sm:$0xff] %v2831
      %v2896 = vld [vmem:[%s2340] sm:$0xf]
      %v2897 = vld [vmem:[%s2340 + $0x4] sm:$0xf]
      %v2898 = vld [vmem:[%s2340 + $0x8] sm:$0x1]
      %v2899 = vld [vmem:[%s2340 + $0xc] sm:$0xf]
      %v2900 = vld [vmem:[%s2340 + $0x10] sm:$0xf]
      %v2901 = vld [vmem:[%s2340 + $0x14] sm:$0x1]
      %v2902 = vld [vmem:[%s2340 + $0x18] sm:$0xf]
      %v2903 = vld [vmem:[%s2340 + $0x1c] sm:$0xf]
      %v2904 = vld [vmem:[%s2340 + $0x20] sm:$0x1]
      %v2905 = vld [vmem:[%s2340 + $0x24] sm:$0xf]
      %v2906 = vld [vmem:[%s2340 + $0x28] sm:$0xf]
      %v2907 = vld [vmem:[%s2340 + $0x2c] sm:$0x1]
      %v2908 = vld [vmem:[%s2340 + $0x30] sm:$0xf]
      %v2909 = vld [vmem:[%s2340 + $0x34] sm:$0xf]
      %v2910 = vld [vmem:[%s2340 + $0x38] sm:$0x1]
      %v2911 = vld [vmem:[%s2340 + $0x3c] sm:$0xf]
      %v2912 = vld [vmem:[%s2340 + $0x40] sm:$0xf]
      %v2913 = vld [vmem:[%s2340 + $0x44] sm:$0x1]
      %v2914 = vld [vmem:[%s2340 + $0x48] sm:$0xf]
      %v2915 = vld [vmem:[%s2340 + $0x4c] sm:$0xf]
      %v2916 = vld [vmem:[%s2340 + $0x50] sm:$0x1]
      %v2917 = vld [vmem:[%s2340 + $0x54] sm:$0xf]
      %v2918 = vld [vmem:[%s2340 + $0x58] sm:$0xf]
      %v2919 = vld [vmem:[%s2340 + $0x5c] sm:$0x1]
      %v2920 = vld [vmem:[%s2340 + $0x60] sm:$0xf]
      %v2921 = vld [vmem:[%s2340 + $0x64] sm:$0xf]
      %v2922 = vld [vmem:[%s2340 + $0x68] sm:$0x1]
      %v2923 = vld [vmem:[%s2340 + $0x6c] sm:$0xf]
      %v2924 = vld [vmem:[%s2340 + $0x70] sm:$0xf]
      %v2925 = vld [vmem:[%s2340 + $0x74] sm:$0x1]
      %v2926 = vld [vmem:[%s2340 + $0x78] sm:$0xf]
      %v2927 = vld [vmem:[%s2340 + $0x7c] sm:$0xf]
      %v2928 = vld [vmem:[%s2340 + $0x80] sm:$0x1]
      %v2929 = vld [vmem:[%s2340 + $0x84] sm:$0xf]
      %v2930 = vld [vmem:[%s2340 + $0x88] sm:$0xf]
      %v2931 = vld [vmem:[%s2340 + $0x8c] sm:$0x1]
      %v2932 = vld [vmem:[%s2340 + $0x90] sm:$0xf]
      %v2933 = vld [vmem:[%s2340 + $0x94] sm:$0xf]
      %v2934 = vld [vmem:[%s2340 + $0x98] sm:$0x1]
      %v2935 = vld [vmem:[%s2340 + $0x9c] sm:$0xf]
      %v2936 = vld [vmem:[%s2340 + $0xa0] sm:$0xf]
      %v2937 = vld [vmem:[%s2340 + $0xa4] sm:$0x1]
      %v2938 = vld [vmem:[%s2340 + $0xa8] sm:$0xf]
      %v2939 = vld [vmem:[%s2340 + $0xac] sm:$0xf]
      %v2940 = vld [vmem:[%s2340 + $0xb0] sm:$0x1]
      %v2941 = vld [vmem:[%s2340 + $0xb4] sm:$0xf]
      %v2942 = vld [vmem:[%s2340 + $0xb8] sm:$0xf]
      %v2943 = vld [vmem:[%s2340 + $0xbc] sm:$0x1]
      %v2945 = vshrl.u32 %v2896, 16
      %v2947 = vrot.slane %v2945, 4
      %v2948 = vshll.u32 %v2896, 16
      %v2950 = vrot.slane %v2948, 5
      %v2951 = vor.u32 %v2947, %v2950
      %v2952 = vrot.slane %v2951, 4
      %v2954 = vshll.u32 %v2897, 16
      %v2956 = vrot.slane %v2954, 5
      %v2957 = vsel %vm759, %v2952, %v2956
      %v2958 = vshrl.u32 %v2897, 16
      %v2960 = vrot.slane %v2958, 4
      %v2961 = vor.u32 %v2960, %v2956
      %v2962 = vrot.slane %v2961, 4
      %v2964 = vshll.u32 %v2898, 16
      %v2966 = vrot.slane %v2964, 5
      %v2967 = vsel %vm759, %v2962, %v2966
      %v2969 = vshrl.u32 %v2899, 16
      %v2971 = vrot.slane %v2969, 4
      %v2972 = vshll.u32 %v2899, 16
      %v2974 = vrot.slane %v2972, 5
      %v2975 = vor.u32 %v2971, %v2974
      %v2976 = vrot.slane %v2975, 4
      %v2978 = vshll.u32 %v2900, 16
      %v2980 = vrot.slane %v2978, 5
      %v2981 = vsel %vm759, %v2976, %v2980
      %v2982 = vshrl.u32 %v2900, 16
      %v2984 = vrot.slane %v2982, 4
      %v2985 = vor.u32 %v2984, %v2980
      %v2986 = vrot.slane %v2985, 4
      %v2988 = vshll.u32 %v2901, 16
      %v2990 = vrot.slane %v2988, 5
      %v2991 = vsel %vm759, %v2986, %v2990
      %v2993 = vshrl.u32 %v2902, 16
      %v2995 = vrot.slane %v2993, 4
      %v2996 = vshll.u32 %v2902, 16
      %v2998 = vrot.slane %v2996, 5
      %v2999 = vor.u32 %v2995, %v2998
      %v3000 = vrot.slane %v2999, 4
      %v3002 = vshll.u32 %v2903, 16
      %v3004 = vrot.slane %v3002, 5
      %v3005 = vsel %vm759, %v3000, %v3004
      %v3006 = vshrl.u32 %v2903, 16
      %v3008 = vrot.slane %v3006, 4
      %v3009 = vor.u32 %v3008, %v3004
      %v3010 = vrot.slane %v3009, 4
      %v3012 = vshll.u32 %v2904, 16
      %v3014 = vrot.slane %v3012, 5
      %v3015 = vsel %vm759, %v3010, %v3014
      %v3017 = vshrl.u32 %v2905, 16
      %v3019 = vrot.slane %v3017, 4
      %v3020 = vshll.u32 %v2905, 16
      %v3022 = vrot.slane %v3020, 5
      %v3023 = vor.u32 %v3019, %v3022
      %v3024 = vrot.slane %v3023, 4
      %v3026 = vshll.u32 %v2906, 16
      %v3028 = vrot.slane %v3026, 5
      %v3029 = vsel %vm759, %v3024, %v3028
      %v3030 = vshrl.u32 %v2906, 16
      %v3032 = vrot.slane %v3030, 4
      %v3033 = vor.u32 %v3032, %v3028
      %v3034 = vrot.slane %v3033, 4
      %v3036 = vshll.u32 %v2907, 16
      %v3038 = vrot.slane %v3036, 5
      %v3039 = vsel %vm759, %v3034, %v3038
      %v3041 = vshrl.u32 %v2908, 16
      %v3043 = vrot.slane %v3041, 4
      %v3044 = vshll.u32 %v2908, 16
      %v3046 = vrot.slane %v3044, 5
      %v3047 = vor.u32 %v3043, %v3046
      %v3048 = vrot.slane %v3047, 4
      %v3050 = vshll.u32 %v2909, 16
      %v3052 = vrot.slane %v3050, 5
      %v3053 = vsel %vm759, %v3048, %v3052
      %v3054 = vshrl.u32 %v2909, 16
      %v3056 = vrot.slane %v3054, 4
      %v3057 = vor.u32 %v3056, %v3052
      %v3058 = vrot.slane %v3057, 4
      %v3060 = vshll.u32 %v2910, 16
      %v3062 = vrot.slane %v3060, 5
      %v3063 = vsel %vm759, %v3058, %v3062
      %v3065 = vshrl.u32 %v2911, 16
      %v3067 = vrot.slane %v3065, 4
      %v3068 = vshll.u32 %v2911, 16
      %v3070 = vrot.slane %v3068, 5
      %v3071 = vor.u32 %v3067, %v3070
      %v3072 = vrot.slane %v3071, 4
      %v3074 = vshll.u32 %v2912, 16
      %v3076 = vrot.slane %v3074, 5
      %v3077 = vsel %vm759, %v3072, %v3076
      %v3078 = vshrl.u32 %v2912, 16
      %v3080 = vrot.slane %v3078, 4
      %v3081 = vor.u32 %v3080, %v3076
      %v3082 = vrot.slane %v3081, 4
      %v3084 = vshll.u32 %v2913, 16
      %v3086 = vrot.slane %v3084, 5
      %v3087 = vsel %vm759, %v3082, %v3086
      %v3089 = vshrl.u32 %v2914, 16
      %v3091 = vrot.slane %v3089, 4
      %v3092 = vshll.u32 %v2914, 16
      %v3094 = vrot.slane %v3092, 5
      %v3095 = vor.u32 %v3091, %v3094
      %v3096 = vrot.slane %v3095, 4
      %v3098 = vshll.u32 %v2915, 16
      %v3100 = vrot.slane %v3098, 5
      %v3101 = vsel %vm759, %v3096, %v3100
      %v3102 = vshrl.u32 %v2915, 16
      %v3104 = vrot.slane %v3102, 4
      %v3105 = vor.u32 %v3104, %v3100
      %v3106 = vrot.slane %v3105, 4
      %v3108 = vshll.u32 %v2916, 16
      %v3110 = vrot.slane %v3108, 5
      %v3111 = vsel %vm759, %v3106, %v3110
      %v3113 = vshrl.u32 %v2917, 16
      %v3115 = vrot.slane %v3113, 4
      %v3116 = vshll.u32 %v2917, 16
      %v3118 = vrot.slane %v3116, 5
      %v3119 = vor.u32 %v3115, %v3118
      %v3120 = vrot.slane %v3119, 4
      %v3122 = vshll.u32 %v2918, 16
      %v3124 = vrot.slane %v3122, 5
      %v3125 = vsel %vm759, %v3120, %v3124
      %v3126 = vshrl.u32 %v2918, 16
      %v3128 = vrot.slane %v3126, 4
      %v3129 = vor.u32 %v3128, %v3124
      %v3130 = vrot.slane %v3129, 4
      %v3132 = vshll.u32 %v2919, 16
      %v3134 = vrot.slane %v3132, 5
      %v3135 = vsel %vm759, %v3130, %v3134
      %v3137 = vshrl.u32 %v2920, 16
      %v3139 = vrot.slane %v3137, 4
      %v3140 = vshll.u32 %v2920, 16
      %v3142 = vrot.slane %v3140, 5
      %v3143 = vor.u32 %v3139, %v3142
      %v3144 = vrot.slane %v3143, 4
      %v3146 = vshll.u32 %v2921, 16
      %v3148 = vrot.slane %v3146, 5
      %v3149 = vsel %vm759, %v3144, %v3148
      %v3150 = vshrl.u32 %v2921, 16
      %v3152 = vrot.slane %v3150, 4
      %v3153 = vor.u32 %v3152, %v3148
      %v3154 = vrot.slane %v3153, 4
      %v3156 = vshll.u32 %v2922, 16
      %v3158 = vrot.slane %v3156, 5
      %v3159 = vsel %vm759, %v3154, %v3158
      %v3161 = vshrl.u32 %v2923, 16
      %v3163 = vrot.slane %v3161, 4
      %v3164 = vshll.u32 %v2923, 16
      %v3166 = vrot.slane %v3164, 5
      %v3167 = vor.u32 %v3163, %v3166
      %v3168 = vrot.slane %v3167, 4
      %v3170 = vshll.u32 %v2924, 16
      %v3172 = vrot.slane %v3170, 5
      %v3173 = vsel %vm759, %v3168, %v3172
      %v3174 = vshrl.u32 %v2924, 16
      %v3176 = vrot.slane %v3174, 4
      %v3177 = vor.u32 %v3176, %v3172
      %v3178 = vrot.slane %v3177, 4
      %v3180 = vshll.u32 %v2925, 16
      %v3182 = vrot.slane %v3180, 5
      %v3183 = vsel %vm759, %v3178, %v3182
      %v3185 = vshrl.u32 %v2926, 16
      %v3187 = vrot.slane %v3185, 4
      %v3188 = vshll.u32 %v2926, 16
      %v3190 = vrot.slane %v3188, 5
      %v3191 = vor.u32 %v3187, %v3190
      %v3192 = vrot.slane %v3191, 4
      %v3194 = vshll.u32 %v2927, 16
      %v3196 = vrot.slane %v3194, 5
      %v3197 = vsel %vm759, %v3192, %v3196
      %v3198 = vshrl.u32 %v2927, 16
      %v3200 = vrot.slane %v3198, 4
      %v3201 = vor.u32 %v3200, %v3196
      %v3202 = vrot.slane %v3201, 4
      %v3204 = vshll.u32 %v2928, 16
      %v3206 = vrot.slane %v3204, 5
      %v3207 = vsel %vm759, %v3202, %v3206
      %v3209 = vshrl.u32 %v2929, 16
      %v3211 = vrot.slane %v3209, 4
      %v3212 = vshll.u32 %v2929, 16
      %v3214 = vrot.slane %v3212, 5
      %v3215 = vor.u32 %v3211, %v3214
      %v3216 = vrot.slane %v3215, 4
      %v3218 = vshll.u32 %v2930, 16
      %v3220 = vrot.slane %v3218, 5
      %v3221 = vsel %vm759, %v3216, %v3220
      %v3222 = vshrl.u32 %v2930, 16
      %v3224 = vrot.slane %v3222, 4
      %v3225 = vor.u32 %v3224, %v3220
      %v3226 = vrot.slane %v3225, 4
      %v3228 = vshll.u32 %v2931, 16
      %v3230 = vrot.slane %v3228, 5
      %v3231 = vsel %vm759, %v3226, %v3230
      %v3233 = vshrl.u32 %v2932, 16
      %v3235 = vrot.slane %v3233, 4
      %v3236 = vshll.u32 %v2932, 16
      %v3238 = vrot.slane %v3236, 5
      %v3239 = vor.u32 %v3235, %v3238
      %v3240 = vrot.slane %v3239, 4
      %v3242 = vshll.u32 %v2933, 16
      %v3244 = vrot.slane %v3242, 5
      %v3245 = vsel %vm759, %v3240, %v3244
      %v3246 = vshrl.u32 %v2933, 16
      %v3248 = vrot.slane %v3246, 4
      %v3249 = vor.u32 %v3248, %v3244
      %v3250 = vrot.slane %v3249, 4
      %v3252 = vshll.u32 %v2934, 16
      %v3254 = vrot.slane %v3252, 5
      %v3255 = vsel %vm759, %v3250, %v3254
      %v3257 = vshrl.u32 %v2935, 16
      %v3259 = vrot.slane %v3257, 4
      %v3260 = vshll.u32 %v2935, 16
      %v3262 = vrot.slane %v3260, 5
      %v3263 = vor.u32 %v3259, %v3262
      %v3264 = vrot.slane %v3263, 4
      %v3266 = vshll.u32 %v2936, 16
      %v3268 = vrot.slane %v3266, 5
      %v3269 = vsel %vm759, %v3264, %v3268
      %v3270 = vshrl.u32 %v2936, 16
      %v3272 = vrot.slane %v3270, 4
      %v3273 = vor.u32 %v3272, %v3268
      %v3274 = vrot.slane %v3273, 4
      %v3276 = vshll.u32 %v2937, 16
      %v3278 = vrot.slane %v3276, 5
      %v3279 = vsel %vm759, %v3274, %v3278
      %v3281 = vshrl.u32 %v2938, 16
      %v3283 = vrot.slane %v3281, 4
      %v3284 = vshll.u32 %v2938, 16
      %v3286 = vrot.slane %v3284, 5
      %v3287 = vor.u32 %v3283, %v3286
      %v3288 = vrot.slane %v3287, 4
      %v3290 = vshll.u32 %v2939, 16
      %v3292 = vrot.slane %v3290, 5
      %v3293 = vsel %vm759, %v3288, %v3292
      %v3294 = vshrl.u32 %v2939, 16
      %v3296 = vrot.slane %v3294, 4
      %v3297 = vor.u32 %v3296, %v3292
      %v3298 = vrot.slane %v3297, 4
      %v3300 = vshll.u32 %v2940, 16
      %v3302 = vrot.slane %v3300, 5
      %v3303 = vsel %vm759, %v3298, %v3302
      %v3305 = vshrl.u32 %v2941, 16
      %v3307 = vrot.slane %v3305, 4
      %v3308 = vshll.u32 %v2941, 16
      %v3310 = vrot.slane %v3308, 5
      %v3311 = vor.u32 %v3307, %v3310
      %v3312 = vrot.slane %v3311, 4
      %v3314 = vshll.u32 %v2942, 16
      %v3316 = vrot.slane %v3314, 5
      %v3317 = vsel %vm759, %v3312, %v3316
      %v3318 = vshrl.u32 %v2942, 16
      %v3320 = vrot.slane %v3318, 4
      %v3321 = vor.u32 %v3320, %v3316
      %v3322 = vrot.slane %v3321, 4
      %v3324 = vshll.u32 %v2943, 16
      %v3326 = vrot.slane %v3324, 5
      %v3327 = vsel %vm759, %v3322, %v3326
      %s3328 = scalar_lea.vmem %s1, 128
      %v3329 = vld [vmem:[%s3328] sm:$0xff]
      %v3330 = vld [vmem:[%s3328 + $0x8] sm:$0xff]
      %v3331 = vld [vmem:[%s3328 + $0x10] sm:$0xff]
      %v3332 = vld [vmem:[%s3328 + $0x18] sm:$0xff]
      %v3333 = vunpack.c.l.b16 %v2957
      %v3334 = vunpack.c.l.b16 %v2967
      %v3335 = vunpack.c.l.b16 %v2981
      %v3336 = vunpack.c.l.b16 %v2991
      %v3337 = vunpack.c.l.b16 %v3005
      %v3338 = vunpack.c.l.b16 %v3015
      %v3339 = vunpack.c.l.b16 %v3029
      %v3340 = vunpack.c.l.b16 %v3039
      %v3341 = vunpack.c.l.b16 %v3053
      %v3342 = vunpack.c.l.b16 %v3063
      %v3343 = vunpack.c.l.b16 %v3077
      %v3344 = vunpack.c.l.b16 %v3087
      %v3345 = vunpack.c.l.b16 %v3101
      %v3346 = vunpack.c.l.b16 %v3111
      %v3347 = vunpack.c.l.b16 %v3125
      %v3348 = vunpack.c.l.b16 %v3135
      %v3349 = vunpack.c.l.b16 %v3149
      %v3350 = vunpack.c.l.b16 %v3159
      %v3351 = vunpack.c.l.b16 %v3173
      %v3352 = vunpack.c.l.b16 %v3183
      %v3353 = vunpack.c.l.b16 %v3197
      %v3354 = vunpack.c.l.b16 %v3207
      %v3355 = vunpack.c.l.b16 %v3221
      %v3356 = vunpack.c.l.b16 %v3231
      %v3357 = vunpack.c.l.b16 %v3245
      %v3358 = vunpack.c.l.b16 %v3255
      %v3359 = vunpack.c.l.b16 %v3269
      %v3360 = vunpack.c.l.b16 %v3279
      %v3361 = vunpack.c.l.b16 %v3293
      %v3362 = vunpack.c.l.b16 %v3303
      %v3363 = vunpack.c.l.b16 %v3317
      %v3364 = vunpack.c.l.b16 %v3327
      %v3365 = vpack.c.b16 %v3334, %v3333
      %v3366 = vpack.c.b16 %v3336, %v3335
      %v3367 = vpack.c.b16 %v3338, %v3337
      %v3368 = vpack.c.b16 %v3340, %v3339
      %v3369 = vpack.c.b16 %v3342, %v3341
      %v3370 = vpack.c.b16 %v3344, %v3343
      %v3371 = vpack.c.b16 %v3346, %v3345
      %v3372 = vpack.c.b16 %v3348, %v3347
      %v3373 = vpack.c.b16 %v3350, %v3349
      %v3374 = vpack.c.b16 %v3352, %v3351
      %v3375 = vpack.c.b16 %v3354, %v3353
      %v3376 = vpack.c.b16 %v3356, %v3355
      %v3377 = vpack.c.b16 %v3358, %v3357
      %v3378 = vpack.c.b16 %v3360, %v3359
      %v3379 = vpack.c.b16 %v3362, %v3361
      %v3380 = vpack.c.b16 %v3364, %v3363
      %v3385 = vunpack.c.l.b16 %v3329
      %v3386 = vunpack.c.h.b16 %v3329
      %v3387 = vunpack.c.l.b16 %v3330
      %v3388 = vunpack.c.h.b16 %v3330
      %v3389 = vunpack.c.l.b16 %v3331
      %v3390 = vunpack.c.h.b16 %v3331
      %v3391 = vunpack.c.l.b16 %v3332
      %v3392 = vunpack.c.h.b16 %v3332
      %v3393 = vpack.c.b16 %v3387, %v3385
      %v3394 = vpack.c.b16 %v3388, %v3386
      %v3395 = vpack.c.b16 %v3391, %v3389
      %v3396 = vpack.c.b16 %v3392, %v3390
      %v3402 = vsel %vm418, %v3365, 0
      %v3405 = vsel %vm418, %v3366, 0
      %v3408 = vsel %vm418, %v3367, 0
      %v3411 = vsel %vm418, %v3368, 0
      %v3414 = vsel %vm418, %v3369, 0
      %v3417 = vsel %vm418, %v3370, 0
      %v3420 = vsel %vm418, %v3371, 0
      %v3423 = vsel %vm418, %v3372, 0
      %v3426 = vsel %vm418, %v3373, 0
      %v3429 = vsel %vm418, %v3374, 0
      %v3432 = vsel %vm418, %v3375, 0
      %v3435 = vsel %vm418, %v3376, 0
      %v3438 = vsel %vm418, %v3377, 0
      %v3441 = vsel %vm418, %v3378, 0
      %v3444 = vsel %vm418, %v3379, 0
      %v3447 = vsel %vm418, %v3380, 0
      %3449 = vmatpush.bf16.msra.mxu0 0
      %3450 = vmatpush.bf16.msra.mxu0 0
      %3451 = vmatpush.bf16.msra.mxu0 0
      %3452 = vmatpush.bf16.msra.mxu0 0
      %3453 = vmatpush.bf16.msra.mxu0 0
      %3454 = vmatpush.bf16.msra.mxu0 0
      %3455 = vmatpush.bf16.msra.mxu0 %v3395
      %3456 = vmatpush.bf16.msra.mxu0 %v3393
      %3457 = vmatmul.bf16.gmra.mxu0 %v3402
      %v3458 = vpop.f32.mrf.mxu0
      %v3459 = vadd.f32 0.0, %v3458
      %v3460 = vpop.f32.mrf.mxu0
      %v3461 = vadd.f32 0.0, %v3460
      %3462 = vmatmul.bf16.gmra.mxu0 %v3405
      %v3463 = vpop.f32.mrf.mxu0
      %v3464 = vadd.f32 0.0, %v3463
      %v3465 = vpop.f32.mrf.mxu0
      %v3466 = vadd.f32 0.0, %v3465
      %3467 = vmatmul.bf16.gmra.mxu0 %v3408
      %v3468 = vpop.f32.mrf.mxu0
      %v3469 = vadd.f32 0.0, %v3468
      %v3470 = vpop.f32.mrf.mxu0
      %v3471 = vadd.f32 0.0, %v3470
      %3472 = vmatmul.bf16.gmra.mxu0 %v3411
      %v3473 = vpop.f32.mrf.mxu0
      %v3474 = vadd.f32 0.0, %v3473
      %v3475 = vpop.f32.mrf.mxu0
      %v3476 = vadd.f32 0.0, %v3475
      %3477 = vmatmul.bf16.gmra.mxu0 %v3414
      %v3478 = vpop.f32.mrf.mxu0
      %v3479 = vadd.f32 0.0, %v3478
      %v3480 = vpop.f32.mrf.mxu0
      %v3481 = vadd.f32 0.0, %v3480
      %3482 = vmatmul.bf16.gmra.mxu0 %v3417
      %v3483 = vpop.f32.mrf.mxu0
      %v3484 = vadd.f32 0.0, %v3483
      %v3485 = vpop.f32.mrf.mxu0
      %v3486 = vadd.f32 0.0, %v3485
      %3487 = vmatmul.bf16.gmra.mxu0 %v3420
      %v3488 = vpop.f32.mrf.mxu0
      %v3489 = vadd.f32 0.0, %v3488
      %v3490 = vpop.f32.mrf.mxu0
      %v3491 = vadd.f32 0.0, %v3490
      %3492 = vmatmul.bf16.gmra.mxu0 %v3423
      %v3493 = vpop.f32.mrf.mxu0
      %v3494 = vadd.f32 0.0, %v3493
      %v3495 = vpop.f32.mrf.mxu0
      %v3496 = vadd.f32 0.0, %v3495
      %3497 = vmatmul.bf16.gmra.mxu0 %v3426
      %v3498 = vpop.f32.mrf.mxu0
      %v3499 = vadd.f32 0.0, %v3498
      %v3500 = vpop.f32.mrf.mxu0
      %v3501 = vadd.f32 0.0, %v3500
      %3502 = vmatmul.bf16.gmra.mxu0 %v3429
      %v3503 = vpop.f32.mrf.mxu0
      %v3504 = vadd.f32 0.0, %v3503
      %v3505 = vpop.f32.mrf.mxu0
      %v3506 = vadd.f32 0.0, %v3505
      %3507 = vmatmul.bf16.gmra.mxu0 %v3432
      %v3508 = vpop.f32.mrf.mxu0
      %v3509 = vadd.f32 0.0, %v3508
      %v3510 = vpop.f32.mrf.mxu0
      %v3511 = vadd.f32 0.0, %v3510
      %3512 = vmatmul.bf16.gmra.mxu0 %v3435
      %v3513 = vpop.f32.mrf.mxu0
      %v3514 = vadd.f32 0.0, %v3513
      %v3515 = vpop.f32.mrf.mxu0
      %v3516 = vadd.f32 0.0, %v3515
      %3517 = vmatmul.bf16.gmra.mxu0 %v3438
      %v3518 = vpop.f32.mrf.mxu0
      %v3519 = vadd.f32 0.0, %v3518
      %v3520 = vpop.f32.mrf.mxu0
      %v3521 = vadd.f32 0.0, %v3520
      %3522 = vmatmul.bf16.gmra.mxu0 %v3441
      %v3523 = vpop.f32.mrf.mxu0
      %v3524 = vadd.f32 0.0, %v3523
      %v3525 = vpop.f32.mrf.mxu0
      %v3526 = vadd.f32 0.0, %v3525
      %3527 = vmatmul.bf16.gmra.mxu0 %v3444
      %v3528 = vpop.f32.mrf.mxu0
      %v3529 = vadd.f32 0.0, %v3528
      %v3530 = vpop.f32.mrf.mxu0
      %v3531 = vadd.f32 0.0, %v3530
      %3532 = vmatmul.bf16.gmra.mxu0 %v3447
      %v3533 = vpop.f32.mrf.mxu0
      %v3534 = vadd.f32 0.0, %v3533
      %v3535 = vpop.f32.mrf.mxu0
      %v3536 = vadd.f32 0.0, %v3535
      %3537 = vdwg.mxu0
      %3538 = vmatpush.bf16.msra.mxu0 0
      %3539 = vmatpush.bf16.msra.mxu0 0
      %3540 = vmatpush.bf16.msra.mxu0 0
      %3541 = vmatpush.bf16.msra.mxu0 0
      %3542 = vmatpush.bf16.msra.mxu0 0
      %3543 = vmatpush.bf16.msra.mxu0 0
      %3544 = vmatpush.bf16.msra.mxu0 %v3396
      %3545 = vmatpush.bf16.msra.mxu0 %v3394
      %3546 = vmatmul.bf16.gmra.mxu0 %v3402
      %v3547 = vpop.f32.mrf.mxu0
      %v3548 = vadd.f32 0.0, %v3547
      %v3549 = vpop.f32.mrf.mxu0
      %v3550 = vadd.f32 0.0, %v3549
      %3551 = vmatmul.bf16.gmra.mxu0 %v3405
      %v3552 = vpop.f32.mrf.mxu0
      %v3553 = vadd.f32 0.0, %v3552
      %v3554 = vpop.f32.mrf.mxu0
      %v3555 = vadd.f32 0.0, %v3554
      %3556 = vmatmul.bf16.gmra.mxu0 %v3408
      %v3557 = vpop.f32.mrf.mxu0
      %v3558 = vadd.f32 0.0, %v3557
      %v3559 = vpop.f32.mrf.mxu0
      %v3560 = vadd.f32 0.0, %v3559
      %3561 = vmatmul.bf16.gmra.mxu0 %v3411
      %v3562 = vpop.f32.mrf.mxu0
      %v3563 = vadd.f32 0.0, %v3562
      %v3564 = vpop.f32.mrf.mxu0
      %v3565 = vadd.f32 0.0, %v3564
      %3566 = vmatmul.bf16.gmra.mxu0 %v3414
      %v3567 = vpop.f32.mrf.mxu0
      %v3568 = vadd.f32 0.0, %v3567
      %v3569 = vpop.f32.mrf.mxu0
      %v3570 = vadd.f32 0.0, %v3569
      %3571 = vmatmul.bf16.gmra.mxu0 %v3417
      %v3572 = vpop.f32.mrf.mxu0
      %v3573 = vadd.f32 0.0, %v3572
      %v3574 = vpop.f32.mrf.mxu0
      %v3575 = vadd.f32 0.0, %v3574
      %3576 = vmatmul.bf16.gmra.mxu0 %v3420
      %v3577 = vpop.f32.mrf.mxu0
      %v3578 = vadd.f32 0.0, %v3577
      %v3579 = vpop.f32.mrf.mxu0
      %v3580 = vadd.f32 0.0, %v3579
      %3581 = vmatmul.bf16.gmra.mxu0 %v3423
      %v3582 = vpop.f32.mrf.mxu0
      %v3583 = vadd.f32 0.0, %v3582
      %v3584 = vpop.f32.mrf.mxu0
      %v3585 = vadd.f32 0.0, %v3584
      %3586 = vmatmul.bf16.gmra.mxu0 %v3426
      %v3587 = vpop.f32.mrf.mxu0
      %v3588 = vadd.f32 0.0, %v3587
      %v3589 = vpop.f32.mrf.mxu0
      %v3590 = vadd.f32 0.0, %v3589
      %3591 = vmatmul.bf16.gmra.mxu0 %v3429
      %v3592 = vpop.f32.mrf.mxu0
      %v3593 = vadd.f32 0.0, %v3592
      %v3594 = vpop.f32.mrf.mxu0
      %v3595 = vadd.f32 0.0, %v3594
      %3596 = vmatmul.bf16.gmra.mxu0 %v3432
      %v3597 = vpop.f32.mrf.mxu0
      %v3598 = vadd.f32 0.0, %v3597
      %v3599 = vpop.f32.mrf.mxu0
      %v3600 = vadd.f32 0.0, %v3599
      %3601 = vmatmul.bf16.gmra.mxu0 %v3435
      %v3602 = vpop.f32.mrf.mxu0
      %v3603 = vadd.f32 0.0, %v3602
      %v3604 = vpop.f32.mrf.mxu0
      %v3605 = vadd.f32 0.0, %v3604
      %3606 = vmatmul.bf16.gmra.mxu0 %v3438
      %v3607 = vpop.f32.mrf.mxu0
      %v3608 = vadd.f32 0.0, %v3607
      %v3609 = vpop.f32.mrf.mxu0
      %v3610 = vadd.f32 0.0, %v3609
      %3611 = vmatmul.bf16.gmra.mxu0 %v3441
      %v3612 = vpop.f32.mrf.mxu0
      %v3613 = vadd.f32 0.0, %v3612
      %v3614 = vpop.f32.mrf.mxu0
      %v3615 = vadd.f32 0.0, %v3614
      %3616 = vmatmul.bf16.gmra.mxu0 %v3444
      %v3617 = vpop.f32.mrf.mxu0
      %v3618 = vadd.f32 0.0, %v3617
      %v3619 = vpop.f32.mrf.mxu0
      %v3620 = vadd.f32 0.0, %v3619
      %3621 = vmatmul.bf16.gmra.mxu0 %v3447
      %v3622 = vpop.f32.mrf.mxu0
      %v3623 = vadd.f32 0.0, %v3622
      %v3624 = vpop.f32.mrf.mxu0
      %v3625 = vadd.f32 0.0, %v3624
      %3626 = vdwg.mxu0
      %v3627 = vld [vmem:[#allocation2] sm:$0xff]
      %v3628 = vld [vmem:[#allocation2 + $0x8] sm:$0xff]
      %v3629 = vld [vmem:[#allocation2 + $0x10] sm:$0xff]
      %v3630 = vld [vmem:[#allocation2 + $0x18] sm:$0xff]
      %v3631 = vld [vmem:[#allocation2 + $0x20] sm:$0xff]
      %v3632 = vld [vmem:[#allocation2 + $0x28] sm:$0xff]
      %v3633 = vld [vmem:[#allocation2 + $0x30] sm:$0xff]
      %v3634 = vld [vmem:[#allocation2 + $0x38] sm:$0xff]
      %v3635 = vld [vmem:[#allocation2 + $0x40] sm:$0xff]
      %v3636 = vld [vmem:[#allocation2 + $0x48] sm:$0xff]
      %v3637 = vld [vmem:[#allocation2 + $0x50] sm:$0xff]
      %v3638 = vld [vmem:[#allocation2 + $0x58] sm:$0xff]
      %v3639 = vld [vmem:[#allocation2 + $0x60] sm:$0xff]
      %v3640 = vld [vmem:[#allocation2 + $0x68] sm:$0xff]
      %v3641 = vld [vmem:[#allocation2 + $0x70] sm:$0xff]
      %v3642 = vld [vmem:[#allocation2 + $0x78] sm:$0xff]
      %v3643 = vld [vmem:[#allocation2 + $0x80] sm:$0xff]
      %v3644 = vld [vmem:[#allocation2 + $0x88] sm:$0xff]
      %v3645 = vld [vmem:[#allocation2 + $0x90] sm:$0xff]
      %v3646 = vld [vmem:[#allocation2 + $0x98] sm:$0xff]
      %v3647 = vld [vmem:[#allocation2 + $0xa0] sm:$0xff]
      %v3648 = vld [vmem:[#allocation2 + $0xa8] sm:$0xff]
      %v3649 = vld [vmem:[#allocation2 + $0xb0] sm:$0xff]
      %v3650 = vld [vmem:[#allocation2 + $0xb8] sm:$0xff]
      %v3651 = vld [vmem:[#allocation2 + $0xc0] sm:$0xff]
      %v3652 = vld [vmem:[#allocation2 + $0xc8] sm:$0xff]
      %v3653 = vld [vmem:[#allocation2 + $0xd0] sm:$0xff]
      %v3654 = vld [vmem:[#allocation2 + $0xd8] sm:$0xff]
      %v3655 = vld [vmem:[#allocation2 + $0xe0] sm:$0xff]
      %v3656 = vld [vmem:[#allocation2 + $0xe8] sm:$0xff]
      %v3657 = vld [vmem:[#allocation2 + $0xf0] sm:$0xff]
      %v3658 = vld [vmem:[#allocation2 + $0xf8] sm:$0xff]
      %v3659 = vld [vmem:[#allocation2 + $0x100] sm:$0xff]
      %v3660 = vld [vmem:[#allocation2 + $0x108] sm:$0xff]
      %v3661 = vld [vmem:[#allocation2 + $0x110] sm:$0xff]
      %v3662 = vld [vmem:[#allocation2 + $0x118] sm:$0xff]
      %v3663 = vld [vmem:[#allocation2 + $0x120] sm:$0xff]
      %v3664 = vld [vmem:[#allocation2 + $0x128] sm:$0xff]
      %v3665 = vld [vmem:[#allocation2 + $0x130] sm:$0xff]
      %v3666 = vld [vmem:[#allocation2 + $0x138] sm:$0xff]
      %v3667 = vld [vmem:[#allocation2 + $0x140] sm:$0xff]
      %v3668 = vld [vmem:[#allocation2 + $0x148] sm:$0xff]
      %v3669 = vld [vmem:[#allocation2 + $0x150] sm:$0xff]
      %v3670 = vld [vmem:[#allocation2 + $0x158] sm:$0xff]
      %v3671 = vld [vmem:[#allocation2 + $0x160] sm:$0xff]
      %v3672 = vld [vmem:[#allocation2 + $0x168] sm:$0xff]
      %v3673 = vld [vmem:[#allocation2 + $0x170] sm:$0xff]
      %v3674 = vld [vmem:[#allocation2 + $0x178] sm:$0xff]
      %v3675 = vld [vmem:[#allocation2 + $0x180] sm:$0xff]
      %v3676 = vld [vmem:[#allocation2 + $0x188] sm:$0xff]
      %v3677 = vld [vmem:[#allocation2 + $0x190] sm:$0xff]
      %v3678 = vld [vmem:[#allocation2 + $0x198] sm:$0xff]
      %v3679 = vld [vmem:[#allocation2 + $0x1a0] sm:$0xff]
      %v3680 = vld [vmem:[#allocation2 + $0x1a8] sm:$0xff]
      %v3681 = vld [vmem:[#allocation2 + $0x1b0] sm:$0xff]
      %v3682 = vld [vmem:[#allocation2 + $0x1b8] sm:$0xff]
      %v3683 = vld [vmem:[#allocation2 + $0x1c0] sm:$0xff]
      %v3684 = vld [vmem:[#allocation2 + $0x1c8] sm:$0xff]
      %v3685 = vld [vmem:[#allocation2 + $0x1d0] sm:$0xff]
      %v3686 = vld [vmem:[#allocation2 + $0x1d8] sm:$0xff]
      %v3687 = vld [vmem:[#allocation2 + $0x1e0] sm:$0xff]
      %v3688 = vld [vmem:[#allocation2 + $0x1e8] sm:$0xff]
      %v3689 = vld [vmem:[#allocation2 + $0x1f0] sm:$0xff]
      %v3690 = vld [vmem:[#allocation2 + $0x1f8] sm:$0xff]
      %v3691 = vadd.f32 %v3627, %v3459
      %v3692 = vadd.f32 %v3628, %v3548
      %v3693 = vadd.f32 %v3629, %v3461
      %v3694 = vadd.f32 %v3630, %v3550
      %v3695 = vadd.f32 %v3631, %v3464
      %v3696 = vadd.f32 %v3632, %v3553
      %v3697 = vadd.f32 %v3633, %v3466
      %v3698 = vadd.f32 %v3634, %v3555
      %v3699 = vadd.f32 %v3635, %v3469
      %v3700 = vadd.f32 %v3636, %v3558
      %v3701 = vadd.f32 %v3637, %v3471
      %v3702 = vadd.f32 %v3638, %v3560
      %v3703 = vadd.f32 %v3639, %v3474
      %v3704 = vadd.f32 %v3640, %v3563
      %v3705 = vadd.f32 %v3641, %v3476
      %v3706 = vadd.f32 %v3642, %v3565
      %v3707 = vadd.f32 %v3643, %v3479
      %v3708 = vadd.f32 %v3644, %v3568
      %v3709 = vadd.f32 %v3645, %v3481
      %v3710 = vadd.f32 %v3646, %v3570
      %v3711 = vadd.f32 %v3647, %v3484
      %v3712 = vadd.f32 %v3648, %v3573
      %v3713 = vadd.f32 %v3649, %v3486
      %v3714 = vadd.f32 %v3650, %v3575
      %v3715 = vadd.f32 %v3651, %v3489
      %v3716 = vadd.f32 %v3652, %v3578
      %v3717 = vadd.f32 %v3653, %v3491
      %v3718 = vadd.f32 %v3654, %v3580
      %v3719 = vadd.f32 %v3655, %v3494
      %v3720 = vadd.f32 %v3656, %v3583
      %v3721 = vadd.f32 %v3657, %v3496
      %v3722 = vadd.f32 %v3658, %v3585
      %v3723 = vadd.f32 %v3659, %v3499
      %v3724 = vadd.f32 %v3660, %v3588
      %v3725 = vadd.f32 %v3661, %v3501
      %v3726 = vadd.f32 %v3662, %v3590
      %v3727 = vadd.f32 %v3663, %v3504
      %v3728 = vadd.f32 %v3664, %v3593
      %v3729 = vadd.f32 %v3665, %v3506
      %v3730 = vadd.f32 %v3666, %v3595
      %v3731 = vadd.f32 %v3667, %v3509
      %v3732 = vadd.f32 %v3668, %v3598
      %v3733 = vadd.f32 %v3669, %v3511
      %v3734 = vadd.f32 %v3670, %v3600
      %v3735 = vadd.f32 %v3671, %v3514
      %v3736 = vadd.f32 %v3672, %v3603
      %v3737 = vadd.f32 %v3673, %v3516
      %v3738 = vadd.f32 %v3674, %v3605
      %v3739 = vadd.f32 %v3675, %v3519
      %v3740 = vadd.f32 %v3676, %v3608
      %v3741 = vadd.f32 %v3677, %v3521
      %v3742 = vadd.f32 %v3678, %v3610
      %v3743 = vadd.f32 %v3679, %v3524
      %v3744 = vadd.f32 %v3680, %v3613
      %v3745 = vadd.f32 %v3681, %v3526
      %v3746 = vadd.f32 %v3682, %v3615
      %v3747 = vadd.f32 %v3683, %v3529
      %v3748 = vadd.f32 %v3684, %v3618
      %v3749 = vadd.f32 %v3685, %v3531
      %v3750 = vadd.f32 %v3686, %v3620
      %v3751 = vadd.f32 %v3687, %v3534
      %v3752 = vadd.f32 %v3688, %v3623
      %v3753 = vadd.f32 %v3689, %v3536
      %v3754 = vadd.f32 %v3690, %v3625
      %3755 = vst [vmem:[#allocation2] sm:$0xff] %v3691
      %3756 = vst [vmem:[#allocation2 + $0x8] sm:$0xff] %v3692
      %3757 = vst [vmem:[#allocation2 + $0x10] sm:$0xff] %v3693
      %3758 = vst [vmem:[#allocation2 + $0x18] sm:$0xff] %v3694
      %3759 = vst [vmem:[#allocation2 + $0x20] sm:$0xff] %v3695
      %3760 = vst [vmem:[#allocation2 + $0x28] sm:$0xff] %v3696
      %3761 = vst [vmem:[#allocation2 + $0x30] sm:$0xff] %v3697
      %3762 = vst [vmem:[#allocation2 + $0x38] sm:$0xff] %v3698
      %3763 = vst [vmem:[#allocation2 + $0x40] sm:$0xff] %v3699
      %3764 = vst [vmem:[#allocation2 + $0x48] sm:$0xff] %v3700
      %3765 = vst [vmem:[#allocation2 + $0x50] sm:$0xff] %v3701
      %3766 = vst [vmem:[#allocation2 + $0x58] sm:$0xff] %v3702
      %3767 = vst [vmem:[#allocation2 + $0x60] sm:$0xff] %v3703
      %3768 = vst [vmem:[#allocation2 + $0x68] sm:$0xff] %v3704
      %3769 = vst [vmem:[#allocation2 + $0x70] sm:$0xff] %v3705
      %3770 = vst [vmem:[#allocation2 + $0x78] sm:$0xff] %v3706
      %3771 = vst [vmem:[#allocation2 + $0x80] sm:$0xff] %v3707
      %3772 = vst [vmem:[#allocation2 + $0x88] sm:$0xff] %v3708
      %3773 = vst [vmem:[#allocation2 + $0x90] sm:$0xff] %v3709
      %3774 = vst [vmem:[#allocation2 + $0x98] sm:$0xff] %v3710
      %3775 = vst [vmem:[#allocation2 + $0xa0] sm:$0xff] %v3711
      %3776 = vst [vmem:[#allocation2 + $0xa8] sm:$0xff] %v3712
      %3777 = vst [vmem:[#allocation2 + $0xb0] sm:$0xff] %v3713
      %3778 = vst [vmem:[#allocation2 + $0xb8] sm:$0xff] %v3714
      %3779 = vst [vmem:[#allocation2 + $0xc0] sm:$0xff] %v3715
      %3780 = vst [vmem:[#allocation2 + $0xc8] sm:$0xff] %v3716
      %3781 = vst [vmem:[#allocation2 + $0xd0] sm:$0xff] %v3717
      %3782 = vst [vmem:[#allocation2 + $0xd8] sm:$0xff] %v3718
      %3783 = vst [vmem:[#allocation2 + $0xe0] sm:$0xff] %v3719
      %3784 = vst [vmem:[#allocation2 + $0xe8] sm:$0xff] %v3720
      %3785 = vst [vmem:[#allocation2 + $0xf0] sm:$0xff] %v3721
      %3786 = vst [vmem:[#allocation2 + $0xf8] sm:$0xff] %v3722
      %3787 = vst [vmem:[#allocation2 + $0x100] sm:$0xff] %v3723
      %3788 = vst [vmem:[#allocation2 + $0x108] sm:$0xff] %v3724
      %3789 = vst [vmem:[#allocation2 + $0x110] sm:$0xff] %v3725
      %3790 = vst [vmem:[#allocation2 + $0x118] sm:$0xff] %v3726
      %3791 = vst [vmem:[#allocation2 + $0x120] sm:$0xff] %v3727
      %3792 = vst [vmem:[#allocation2 + $0x128] sm:$0xff] %v3728
      %3793 = vst [vmem:[#allocation2 + $0x130] sm:$0xff] %v3729
      %3794 = vst [vmem:[#allocation2 + $0x138] sm:$0xff] %v3730
      %3795 = vst [vmem:[#allocation2 + $0x140] sm:$0xff] %v3731
      %3796 = vst [vmem:[#allocation2 + $0x148] sm:$0xff] %v3732
      %3797 = vst [vmem:[#allocation2 + $0x150] sm:$0xff] %v3733
      %3798 = vst [vmem:[#allocation2 + $0x158] sm:$0xff] %v3734
      %3799 = vst [vmem:[#allocation2 + $0x160] sm:$0xff] %v3735
      %3800 = vst [vmem:[#allocation2 + $0x168] sm:$0xff] %v3736
      %3801 = vst [vmem:[#allocation2 + $0x170] sm:$0xff] %v3737
      %3802 = vst [vmem:[#allocation2 + $0x178] sm:$0xff] %v3738
      %3803 = vst [vmem:[#allocation2 + $0x180] sm:$0xff] %v3739
      %3804 = vst [vmem:[#allocation2 + $0x188] sm:$0xff] %v3740
      %3805 = vst [vmem:[#allocation2 + $0x190] sm:$0xff] %v3741
      %3806 = vst [vmem:[#allocation2 + $0x198] sm:$0xff] %v3742
      %3807 = vst [vmem:[#allocation2 + $0x1a0] sm:$0xff] %v3743
      %3808 = vst [vmem:[#allocation2 + $0x1a8] sm:$0xff] %v3744
      %3809 = vst [vmem:[#allocation2 + $0x1b0] sm:$0xff] %v3745
      %3810 = vst [vmem:[#allocation2 + $0x1b8] sm:$0xff] %v3746
      %3811 = vst [vmem:[#allocation2 + $0x1c0] sm:$0xff] %v3747
      %3812 = vst [vmem:[#allocation2 + $0x1c8] sm:$0xff] %v3748
      %3813 = vst [vmem:[#allocation2 + $0x1d0] sm:$0xff] %v3749
      %3814 = vst [vmem:[#allocation2 + $0x1d8] sm:$0xff] %v3750
      %3815 = vst [vmem:[#allocation2 + $0x1e0] sm:$0xff] %v3751
      %3816 = vst [vmem:[#allocation2 + $0x1e8] sm:$0xff] %v3752
      %3817 = vst [vmem:[#allocation2 + $0x1f0] sm:$0xff] %v3753
      %3818 = vst [vmem:[#allocation2 + $0x1f8] sm:$0xff] %v3754
      %v3819 = vld [vmem:[%s2340] sm:$0xe]
      %v3820 = vld [vmem:[%s2340 + $0x4] sm:$0xf]
      %v3821 = vld [vmem:[%s2340 + $0x8] sm:$0x1]
      %v3822 = vld [vmem:[%s2340 + $0xc] sm:$0xe]
      %v3823 = vld [vmem:[%s2340 + $0x10] sm:$0xf]
      %v3824 = vld [vmem:[%s2340 + $0x14] sm:$0x1]
      %v3825 = vld [vmem:[%s2340 + $0x18] sm:$0xe]
      %v3826 = vld [vmem:[%s2340 + $0x1c] sm:$0xf]
      %v3827 = vld [vmem:[%s2340 + $0x20] sm:$0x1]
      %v3828 = vld [vmem:[%s2340 + $0x24] sm:$0xe]
      %v3829 = vld [vmem:[%s2340 + $0x28] sm:$0xf]
      %v3830 = vld [vmem:[%s2340 + $0x2c] sm:$0x1]
      %v3831 = vld [vmem:[%s2340 + $0x30] sm:$0xe]
      %v3832 = vld [vmem:[%s2340 + $0x34] sm:$0xf]
      %v3833 = vld [vmem:[%s2340 + $0x38] sm:$0x1]
      %v3834 = vld [vmem:[%s2340 + $0x3c] sm:$0xe]
      %v3835 = vld [vmem:[%s2340 + $0x40] sm:$0xf]
      %v3836 = vld [vmem:[%s2340 + $0x44] sm:$0x1]
      %v3837 = vld [vmem:[%s2340 + $0x48] sm:$0xe]
      %v3838 = vld [vmem:[%s2340 + $0x4c] sm:$0xf]
      %v3839 = vld [vmem:[%s2340 + $0x50] sm:$0x1]
      %v3840 = vld [vmem:[%s2340 + $0x54] sm:$0xe]
      %v3841 = vld [vmem:[%s2340 + $0x58] sm:$0xf]
      %v3842 = vld [vmem:[%s2340 + $0x5c] sm:$0x1]
      %v3843 = vld [vmem:[%s2340 + $0x60] sm:$0xe]
      %v3844 = vld [vmem:[%s2340 + $0x64] sm:$0xf]
      %v3845 = vld [vmem:[%s2340 + $0x68] sm:$0x1]
      %v3846 = vld [vmem:[%s2340 + $0x6c] sm:$0xe]
      %v3847 = vld [vmem:[%s2340 + $0x70] sm:$0xf]
      %v3848 = vld [vmem:[%s2340 + $0x74] sm:$0x1]
      %v3849 = vld [vmem:[%s2340 + $0x78] sm:$0xe]
      %v3850 = vld [vmem:[%s2340 + $0x7c] sm:$0xf]
      %v3851 = vld [vmem:[%s2340 + $0x80] sm:$0x1]
      %v3852 = vld [vmem:[%s2340 + $0x84] sm:$0xe]
      %v3853 = vld [vmem:[%s2340 + $0x88] sm:$0xf]
      %v3854 = vld [vmem:[%s2340 + $0x8c] sm:$0x1]
      %v3855 = vld [vmem:[%s2340 + $0x90] sm:$0xe]
      %v3856 = vld [vmem:[%s2340 + $0x94] sm:$0xf]
      %v3857 = vld [vmem:[%s2340 + $0x98] sm:$0x1]
      %v3858 = vld [vmem:[%s2340 + $0x9c] sm:$0xe]
      %v3859 = vld [vmem:[%s2340 + $0xa0] sm:$0xf]
      %v3860 = vld [vmem:[%s2340 + $0xa4] sm:$0x1]
      %v3861 = vld [vmem:[%s2340 + $0xa8] sm:$0xe]
      %v3862 = vld [vmem:[%s2340 + $0xac] sm:$0xf]
      %v3863 = vld [vmem:[%s2340 + $0xb0] sm:$0x1]
      %v3864 = vld [vmem:[%s2340 + $0xb4] sm:$0xe]
      %v3865 = vld [vmem:[%s2340 + $0xb8] sm:$0xf]
      %v3866 = vld [vmem:[%s2340 + $0xbc] sm:$0x1]
      %v3915 = vrot.slane %v3819, 5
      %v3916 = vrot.slane %v3915, 4
      %v3917 = vrot.slane %v3820, 5
      %v3918 = vsel %vm1733, %v3916, %v3917
      %v3919 = vrot.slane %v3917, 4
      %v3920 = vrot.slane %v3821, 5
      %v3921 = vsel %vm1733, %v3919, %v3920
      %v3922 = vrot.slane %v3822, 5
      %v3923 = vrot.slane %v3922, 4
      %v3924 = vrot.slane %v3823, 5
      %v3925 = vsel %vm1733, %v3923, %v3924
      %v3926 = vrot.slane %v3924, 4
      %v3927 = vrot.slane %v3824, 5
      %v3928 = vsel %vm1733, %v3926, %v3927
      %v3929 = vrot.slane %v3825, 5
      %v3930 = vrot.slane %v3929, 4
      %v3931 = vrot.slane %v3826, 5
      %v3932 = vsel %vm1733, %v3930, %v3931
      %v3933 = vrot.slane %v3931, 4
      %v3934 = vrot.slane %v3827, 5
      %v3935 = vsel %vm1733, %v3933, %v3934
      %v3936 = vrot.slane %v3828, 5
      %v3937 = vrot.slane %v3936, 4
      %v3938 = vrot.slane %v3829, 5
      %v3939 = vsel %vm1733, %v3937, %v3938
      %v3940 = vrot.slane %v3938, 4
      %v3941 = vrot.slane %v3830, 5
      %v3942 = vsel %vm1733, %v3940, %v3941
      %v3943 = vrot.slane %v3831, 5
      %v3944 = vrot.slane %v3943, 4
      %v3945 = vrot.slane %v3832, 5
      %v3946 = vsel %vm1733, %v3944, %v3945
      %v3947 = vrot.slane %v3945, 4
      %v3948 = vrot.slane %v3833, 5
      %v3949 = vsel %vm1733, %v3947, %v3948
      %v3950 = vrot.slane %v3834, 5
      %v3951 = vrot.slane %v3950, 4
      %v3952 = vrot.slane %v3835, 5
      %v3953 = vsel %vm1733, %v3951, %v3952
      %v3954 = vrot.slane %v3952, 4
      %v3955 = vrot.slane %v3836, 5
      %v3956 = vsel %vm1733, %v3954, %v3955
      %v3957 = vrot.slane %v3837, 5
      %v3958 = vrot.slane %v3957, 4
      %v3959 = vrot.slane %v3838, 5
      %v3960 = vsel %vm1733, %v3958, %v3959
      %v3961 = vrot.slane %v3959, 4
      %v3962 = vrot.slane %v3839, 5
      %v3963 = vsel %vm1733, %v3961, %v3962
      %v3964 = vrot.slane %v3840, 5
      %v3965 = vrot.slane %v3964, 4
      %v3966 = vrot.slane %v3841, 5
      %v3967 = vsel %vm1733, %v3965, %v3966
      %v3968 = vrot.slane %v3966, 4
      %v3969 = vrot.slane %v3842, 5
      %v3970 = vsel %vm1733, %v3968, %v3969
      %v3971 = vrot.slane %v3843, 5
      %v3972 = vrot.slane %v3971, 4
      %v3973 = vrot.slane %v3844, 5
      %v3974 = vsel %vm1733, %v3972, %v3973
      %v3975 = vrot.slane %v3973, 4
      %v3976 = vrot.slane %v3845, 5
      %v3977 = vsel %vm1733, %v3975, %v3976
      %v3978 = vrot.slane %v3846, 5
      %v3979 = vrot.slane %v3978, 4
      %v3980 = vrot.slane %v3847, 5
      %v3981 = vsel %vm1733, %v3979, %v3980
      %v3982 = vrot.slane %v3980, 4
      %v3983 = vrot.slane %v3848, 5
      %v3984 = vsel %vm1733, %v3982, %v3983
      %v3985 = vrot.slane %v3849, 5
      %v3986 = vrot.slane %v3985, 4
      %v3987 = vrot.slane %v3850, 5
      %v3988 = vsel %vm1733, %v3986, %v3987
      %v3989 = vrot.slane %v3987, 4
      %v3990 = vrot.slane %v3851, 5
      %v3991 = vsel %vm1733, %v3989, %v3990
      %v3992 = vrot.slane %v3852, 5
      %v3993 = vrot.slane %v3992, 4
      %v3994 = vrot.slane %v3853, 5
      %v3995 = vsel %vm1733, %v3993, %v3994
      %v3996 = vrot.slane %v3994, 4
      %v3997 = vrot.slane %v3854, 5
      %v3998 = vsel %vm1733, %v3996, %v3997
      %v3999 = vrot.slane %v3855, 5
      %v4000 = vrot.slane %v3999, 4
      %v4001 = vrot.slane %v3856, 5
      %v4002 = vsel %vm1733, %v4000, %v4001
      %v4003 = vrot.slane %v4001, 4
      %v4004 = vrot.slane %v3857, 5
      %v4005 = vsel %vm1733, %v4003, %v4004
      %v4006 = vrot.slane %v3858, 5
      %v4007 = vrot.slane %v4006, 4
      %v4008 = vrot.slane %v3859, 5
      %v4009 = vsel %vm1733, %v4007, %v4008
      %v4010 = vrot.slane %v4008, 4
      %v4011 = vrot.slane %v3860, 5
      %v4012 = vsel %vm1733, %v4010, %v4011
      %v4013 = vrot.slane %v3861, 5
      %v4014 = vrot.slane %v4013, 4
      %v4015 = vrot.slane %v3862, 5
      %v4016 = vsel %vm1733, %v4014, %v4015
      %v4017 = vrot.slane %v4015, 4
      %v4018 = vrot.slane %v3863, 5
      %v4019 = vsel %vm1733, %v4017, %v4018
      %v4020 = vrot.slane %v3864, 5
      %v4021 = vrot.slane %v4020, 4
      %v4022 = vrot.slane %v3865, 5
      %v4023 = vsel %vm1733, %v4021, %v4022
      %v4024 = vrot.slane %v4022, 4
      %v4025 = vrot.slane %v3866, 5
      %v4026 = vsel %vm1733, %v4024, %v4025
      %s4027 = scalar_lea.vmem %s1, 160
      %v4028 = vld [vmem:[%s4027] sm:$0xff]
      %v4029 = vld [vmem:[%s4027 + $0x8] sm:$0xff]
      %v4030 = vld [vmem:[%s4027 + $0x10] sm:$0xff]
      %v4031 = vld [vmem:[%s4027 + $0x18] sm:$0xff]
      %v4032 = vunpack.c.l.b16 %v3918
      %v4033 = vunpack.c.l.b16 %v3921
      %v4034 = vunpack.c.l.b16 %v3925
      %v4035 = vunpack.c.l.b16 %v3928
      %v4036 = vunpack.c.l.b16 %v3932
      %v4037 = vunpack.c.l.b16 %v3935
      %v4038 = vunpack.c.l.b16 %v3939
      %v4039 = vunpack.c.l.b16 %v3942
      %v4040 = vunpack.c.l.b16 %v3946
      %v4041 = vunpack.c.l.b16 %v3949
      %v4042 = vunpack.c.l.b16 %v3953
      %v4043 = vunpack.c.l.b16 %v3956
      %v4044 = vunpack.c.l.b16 %v3960
      %v4045 = vunpack.c.l.b16 %v3963
      %v4046 = vunpack.c.l.b16 %v3967
      %v4047 = vunpack.c.l.b16 %v3970
      %v4048 = vunpack.c.l.b16 %v3974
      %v4049 = vunpack.c.l.b16 %v3977
      %v4050 = vunpack.c.l.b16 %v3981
      %v4051 = vunpack.c.l.b16 %v3984
      %v4052 = vunpack.c.l.b16 %v3988
      %v4053 = vunpack.c.l.b16 %v3991
      %v4054 = vunpack.c.l.b16 %v3995
      %v4055 = vunpack.c.l.b16 %v3998
      %v4056 = vunpack.c.l.b16 %v4002
      %v4057 = vunpack.c.l.b16 %v4005
      %v4058 = vunpack.c.l.b16 %v4009
      %v4059 = vunpack.c.l.b16 %v4012
      %v4060 = vunpack.c.l.b16 %v4016
      %v4061 = vunpack.c.l.b16 %v4019
      %v4062 = vunpack.c.l.b16 %v4023
      %v4063 = vunpack.c.l.b16 %v4026
      %v4064 = vpack.c.b16 %v4033, %v4032
      %v4065 = vpack.c.b16 %v4035, %v4034
      %v4066 = vpack.c.b16 %v4037, %v4036
      %v4067 = vpack.c.b16 %v4039, %v4038
      %v4068 = vpack.c.b16 %v4041, %v4040
      %v4069 = vpack.c.b16 %v4043, %v4042
      %v4070 = vpack.c.b16 %v4045, %v4044
      %v4071 = vpack.c.b16 %v4047, %v4046
      %v4072 = vpack.c.b16 %v4049, %v4048
      %v4073 = vpack.c.b16 %v4051, %v4050
      %v4074 = vpack.c.b16 %v4053, %v4052
      %v4075 = vpack.c.b16 %v4055, %v4054
      %v4076 = vpack.c.b16 %v4057, %v4056
      %v4077 = vpack.c.b16 %v4059, %v4058
      %v4078 = vpack.c.b16 %v4061, %v4060
      %v4079 = vpack.c.b16 %v4063, %v4062
      %v4084 = vunpack.c.l.b16 %v4028
      %v4085 = vunpack.c.h.b16 %v4028
      %v4086 = vunpack.c.l.b16 %v4029
      %v4087 = vunpack.c.h.b16 %v4029
      %v4088 = vunpack.c.l.b16 %v4030
      %v4089 = vunpack.c.h.b16 %v4030
      %v4090 = vunpack.c.l.b16 %v4031
      %v4091 = vunpack.c.h.b16 %v4031
      %v4092 = vpack.c.b16 %v4086, %v4084
      %v4093 = vpack.c.b16 %v4087, %v4085
      %v4094 = vpack.c.b16 %v4090, %v4088
      %v4095 = vpack.c.b16 %v4091, %v4089
      %v4101 = vsel %vm418, %v4064, 0
      %v4104 = vsel %vm418, %v4065, 0
      %v4107 = vsel %vm418, %v4066, 0
      %v4110 = vsel %vm418, %v4067, 0
      %v4113 = vsel %vm418, %v4068, 0
      %v4116 = vsel %vm418, %v4069, 0
      %v4119 = vsel %vm418, %v4070, 0
      %v4122 = vsel %vm418, %v4071, 0
      %v4125 = vsel %vm418, %v4072, 0
      %v4128 = vsel %vm418, %v4073, 0
      %v4131 = vsel %vm418, %v4074, 0
      %v4134 = vsel %vm418, %v4075, 0
      %v4137 = vsel %vm418, %v4076, 0
      %v4140 = vsel %vm418, %v4077, 0
      %v4143 = vsel %vm418, %v4078, 0
      %v4146 = vsel %vm418, %v4079, 0
      %4148 = vmatpush.bf16.msra.mxu0 0
      %4149 = vmatpush.bf16.msra.mxu0 0
      %4150 = vmatpush.bf16.msra.mxu0 0
      %4151 = vmatpush.bf16.msra.mxu0 0
      %4152 = vmatpush.bf16.msra.mxu0 0
      %4153 = vmatpush.bf16.msra.mxu0 0
      %4154 = vmatpush.bf16.msra.mxu0 %v4094
      %4155 = vmatpush.bf16.msra.mxu0 %v4092
      %4156 = vmatmul.bf16.gmra.mxu0 %v4101
      %v4157 = vpop.f32.mrf.mxu0
      %v4158 = vadd.f32 0.0, %v4157
      %v4159 = vpop.f32.mrf.mxu0
      %v4160 = vadd.f32 0.0, %v4159
      %4161 = vmatmul.bf16.gmra.mxu0 %v4104
      %v4162 = vpop.f32.mrf.mxu0
      %v4163 = vadd.f32 0.0, %v4162
      %v4164 = vpop.f32.mrf.mxu0
      %v4165 = vadd.f32 0.0, %v4164
      %4166 = vmatmul.bf16.gmra.mxu0 %v4107
      %v4167 = vpop.f32.mrf.mxu0
      %v4168 = vadd.f32 0.0, %v4167
      %v4169 = vpop.f32.mrf.mxu0
      %v4170 = vadd.f32 0.0, %v4169
      %4171 = vmatmul.bf16.gmra.mxu0 %v4110
      %v4172 = vpop.f32.mrf.mxu0
      %v4173 = vadd.f32 0.0, %v4172
      %v4174 = vpop.f32.mrf.mxu0
      %v4175 = vadd.f32 0.0, %v4174
      %4176 = vmatmul.bf16.gmra.mxu0 %v4113
      %v4177 = vpop.f32.mrf.mxu0
      %v4178 = vadd.f32 0.0, %v4177
      %v4179 = vpop.f32.mrf.mxu0
      %v4180 = vadd.f32 0.0, %v4179
      %4181 = vmatmul.bf16.gmra.mxu0 %v4116
      %v4182 = vpop.f32.mrf.mxu0
      %v4183 = vadd.f32 0.0, %v4182
      %v4184 = vpop.f32.mrf.mxu0
      %v4185 = vadd.f32 0.0, %v4184
      %4186 = vmatmul.bf16.gmra.mxu0 %v4119
      %v4187 = vpop.f32.mrf.mxu0
      %v4188 = vadd.f32 0.0, %v4187
      %v4189 = vpop.f32.mrf.mxu0
      %v4190 = vadd.f32 0.0, %v4189
      %4191 = vmatmul.bf16.gmra.mxu0 %v4122
      %v4192 = vpop.f32.mrf.mxu0
      %v4193 = vadd.f32 0.0, %v4192
      %v4194 = vpop.f32.mrf.mxu0
      %v4195 = vadd.f32 0.0, %v4194
      %4196 = vmatmul.bf16.gmra.mxu0 %v4125
      %v4197 = vpop.f32.mrf.mxu0
      %v4198 = vadd.f32 0.0, %v4197
      %v4199 = vpop.f32.mrf.mxu0
      %v4200 = vadd.f32 0.0, %v4199
      %4201 = vmatmul.bf16.gmra.mxu0 %v4128
      %v4202 = vpop.f32.mrf.mxu0
      %v4203 = vadd.f32 0.0, %v4202
      %v4204 = vpop.f32.mrf.mxu0
      %v4205 = vadd.f32 0.0, %v4204
      %4206 = vmatmul.bf16.gmra.mxu0 %v4131
      %v4207 = vpop.f32.mrf.mxu0
      %v4208 = vadd.f32 0.0, %v4207
      %v4209 = vpop.f32.mrf.mxu0
      %v4210 = vadd.f32 0.0, %v4209
      %4211 = vmatmul.bf16.gmra.mxu0 %v4134
      %v4212 = vpop.f32.mrf.mxu0
      %v4213 = vadd.f32 0.0, %v4212
      %v4214 = vpop.f32.mrf.mxu0
      %v4215 = vadd.f32 0.0, %v4214
      %4216 = vmatmul.bf16.gmra.mxu0 %v4137
      %v4217 = vpop.f32.mrf.mxu0
      %v4218 = vadd.f32 0.0, %v4217
      %v4219 = vpop.f32.mrf.mxu0
      %v4220 = vadd.f32 0.0, %v4219
      %4221 = vmatmul.bf16.gmra.mxu0 %v4140
      %v4222 = vpop.f32.mrf.mxu0
      %v4223 = vadd.f32 0.0, %v4222
      %v4224 = vpop.f32.mrf.mxu0
      %v4225 = vadd.f32 0.0, %v4224
      %4226 = vmatmul.bf16.gmra.mxu0 %v4143
      %v4227 = vpop.f32.mrf.mxu0
      %v4228 = vadd.f32 0.0, %v4227
      %v4229 = vpop.f32.mrf.mxu0
      %v4230 = vadd.f32 0.0, %v4229
      %4231 = vmatmul.bf16.gmra.mxu0 %v4146
      %v4232 = vpop.f32.mrf.mxu0
      %v4233 = vadd.f32 0.0, %v4232
      %v4234 = vpop.f32.mrf.mxu0
      %v4235 = vadd.f32 0.0, %v4234
      %4236 = vdwg.mxu0
      %4237 = vmatpush.bf16.msra.mxu0 0
      %4238 = vmatpush.bf16.msra.mxu0 0
      %4239 = vmatpush.bf16.msra.mxu0 0
      %4240 = vmatpush.bf16.msra.mxu0 0
      %4241 = vmatpush.bf16.msra.mxu0 0
      %4242 = vmatpush.bf16.msra.mxu0 0
      %4243 = vmatpush.bf16.msra.mxu0 %v4095
      %4244 = vmatpush.bf16.msra.mxu0 %v4093
      %4245 = vmatmul.bf16.gmra.mxu0 %v4101
      %v4246 = vpop.f32.mrf.mxu0
      %v4247 = vadd.f32 0.0, %v4246
      %v4248 = vpop.f32.mrf.mxu0
      %v4249 = vadd.f32 0.0, %v4248
      %4250 = vmatmul.bf16.gmra.mxu0 %v4104
      %v4251 = vpop.f32.mrf.mxu0
      %v4252 = vadd.f32 0.0, %v4251
      %v4253 = vpop.f32.mrf.mxu0
      %v4254 = vadd.f32 0.0, %v4253
      %4255 = vmatmul.bf16.gmra.mxu0 %v4107
      %v4256 = vpop.f32.mrf.mxu0
      %v4257 = vadd.f32 0.0, %v4256
      %v4258 = vpop.f32.mrf.mxu0
      %v4259 = vadd.f32 0.0, %v4258
      %4260 = vmatmul.bf16.gmra.mxu0 %v4110
      %v4261 = vpop.f32.mrf.mxu0
      %v4262 = vadd.f32 0.0, %v4261
      %v4263 = vpop.f32.mrf.mxu0
      %v4264 = vadd.f32 0.0, %v4263
      %4265 = vmatmul.bf16.gmra.mxu0 %v4113
      %v4266 = vpop.f32.mrf.mxu0
      %v4267 = vadd.f32 0.0, %v4266
      %v4268 = vpop.f32.mrf.mxu0
      %v4269 = vadd.f32 0.0, %v4268
      %4270 = vmatmul.bf16.gmra.mxu0 %v4116
      %v4271 = vpop.f32.mrf.mxu0
      %v4272 = vadd.f32 0.0, %v4271
      %v4273 = vpop.f32.mrf.mxu0
      %v4274 = vadd.f32 0.0, %v4273
      %4275 = vmatmul.bf16.gmra.mxu0 %v4119
      %v4276 = vpop.f32.mrf.mxu0
      %v4277 = vadd.f32 0.0, %v4276
      %v4278 = vpop.f32.mrf.mxu0
      %v4279 = vadd.f32 0.0, %v4278
      %4280 = vmatmul.bf16.gmra.mxu0 %v4122
      %v4281 = vpop.f32.mrf.mxu0
      %v4282 = vadd.f32 0.0, %v4281
      %v4283 = vpop.f32.mrf.mxu0
      %v4284 = vadd.f32 0.0, %v4283
      %4285 = vmatmul.bf16.gmra.mxu0 %v4125
      %v4286 = vpop.f32.mrf.mxu0
      %v4287 = vadd.f32 0.0, %v4286
      %v4288 = vpop.f32.mrf.mxu0
      %v4289 = vadd.f32 0.0, %v4288
      %4290 = vmatmul.bf16.gmra.mxu0 %v4128
      %v4291 = vpop.f32.mrf.mxu0
      %v4292 = vadd.f32 0.0, %v4291
      %v4293 = vpop.f32.mrf.mxu0
      %v4294 = vadd.f32 0.0, %v4293
      %4295 = vmatmul.bf16.gmra.mxu0 %v4131
      %v4296 = vpop.f32.mrf.mxu0
      %v4297 = vadd.f32 0.0, %v4296
      %v4298 = vpop.f32.mrf.mxu0
      %v4299 = vadd.f32 0.0, %v4298
      %4300 = vmatmul.bf16.gmra.mxu0 %v4134
      %v4301 = vpop.f32.mrf.mxu0
      %v4302 = vadd.f32 0.0, %v4301
      %v4303 = vpop.f32.mrf.mxu0
      %v4304 = vadd.f32 0.0, %v4303
      %4305 = vmatmul.bf16.gmra.mxu0 %v4137
      %v4306 = vpop.f32.mrf.mxu0
      %v4307 = vadd.f32 0.0, %v4306
      %v4308 = vpop.f32.mrf.mxu0
      %v4309 = vadd.f32 0.0, %v4308
      %4310 = vmatmul.bf16.gmra.mxu0 %v4140
      %v4311 = vpop.f32.mrf.mxu0
      %v4312 = vadd.f32 0.0, %v4311
      %v4313 = vpop.f32.mrf.mxu0
      %v4314 = vadd.f32 0.0, %v4313
      %4315 = vmatmul.bf16.gmra.mxu0 %v4143
      %v4316 = vpop.f32.mrf.mxu0
      %v4317 = vadd.f32 0.0, %v4316
      %v4318 = vpop.f32.mrf.mxu0
      %v4319 = vadd.f32 0.0, %v4318
      %4320 = vmatmul.bf16.gmra.mxu0 %v4146
      %v4321 = vpop.f32.mrf.mxu0
      %v4322 = vadd.f32 0.0, %v4321
      %v4323 = vpop.f32.mrf.mxu0
      %v4324 = vadd.f32 0.0, %v4323
      %4325 = vdwg.mxu0
      %v4326 = vld [vmem:[#allocation2] sm:$0xff]
      %v4327 = vld [vmem:[#allocation2 + $0x8] sm:$0xff]
      %v4328 = vld [vmem:[#allocation2 + $0x10] sm:$0xff]
      %v4329 = vld [vmem:[#allocation2 + $0x18] sm:$0xff]
      %v4330 = vld [vmem:[#allocation2 + $0x20] sm:$0xff]
      %v4331 = vld [vmem:[#allocation2 + $0x28] sm:$0xff]
      %v4332 = vld [vmem:[#allocation2 + $0x30] sm:$0xff]
      %v4333 = vld [vmem:[#allocation2 + $0x38] sm:$0xff]
      %v4334 = vld [vmem:[#allocation2 + $0x40] sm:$0xff]
      %v4335 = vld [vmem:[#allocation2 + $0x48] sm:$0xff]
      %v4336 = vld [vmem:[#allocation2 + $0x50] sm:$0xff]
      %v4337 = vld [vmem:[#allocation2 + $0x58] sm:$0xff]
      %v4338 = vld [vmem:[#allocation2 + $0x60] sm:$0xff]
      %v4339 = vld [vmem:[#allocation2 + $0x68] sm:$0xff]
      %v4340 = vld [vmem:[#allocation2 + $0x70] sm:$0xff]
      %v4341 = vld [vmem:[#allocation2 + $0x78] sm:$0xff]
      %v4342 = vld [vmem:[#allocation2 + $0x80] sm:$0xff]
      %v4343 = vld [vmem:[#allocation2 + $0x88] sm:$0xff]
      %v4344 = vld [vmem:[#allocation2 + $0x90] sm:$0xff]
      %v4345 = vld [vmem:[#allocation2 + $0x98] sm:$0xff]
      %v4346 = vld [vmem:[#allocation2 + $0xa0] sm:$0xff]
      %v4347 = vld [vmem:[#allocation2 + $0xa8] sm:$0xff]
      %v4348 = vld [vmem:[#allocation2 + $0xb0] sm:$0xff]
      %v4349 = vld [vmem:[#allocation2 + $0xb8] sm:$0xff]
      %v4350 = vld [vmem:[#allocation2 + $0xc0] sm:$0xff]
      %v4351 = vld [vmem:[#allocation2 + $0xc8] sm:$0xff]
      %v4352 = vld [vmem:[#allocation2 + $0xd0] sm:$0xff]
      %v4353 = vld [vmem:[#allocation2 + $0xd8] sm:$0xff]
      %v4354 = vld [vmem:[#allocation2 + $0xe0] sm:$0xff]
      %v4355 = vld [vmem:[#allocation2 + $0xe8] sm:$0xff]
      %v4356 = vld [vmem:[#allocation2 + $0xf0] sm:$0xff]
      %v4357 = vld [vmem:[#allocation2 + $0xf8] sm:$0xff]
      %v4358 = vld [vmem:[#allocation2 + $0x100] sm:$0xff]
      %v4359 = vld [vmem:[#allocation2 + $0x108] sm:$0xff]
      %v4360 = vld [vmem:[#allocation2 + $0x110] sm:$0xff]
      %v4361 = vld [vmem:[#allocation2 + $0x118] sm:$0xff]
      %v4362 = vld [vmem:[#allocation2 + $0x120] sm:$0xff]
      %v4363 = vld [vmem:[#allocation2 + $0x128] sm:$0xff]
      %v4364 = vld [vmem:[#allocation2 + $0x130] sm:$0xff]
      %v4365 = vld [vmem:[#allocation2 + $0x138] sm:$0xff]
      %v4366 = vld [vmem:[#allocation2 + $0x140] sm:$0xff]
      %v4367 = vld [vmem:[#allocation2 + $0x148] sm:$0xff]
      %v4368 = vld [vmem:[#allocation2 + $0x150] sm:$0xff]
      %v4369 = vld [vmem:[#allocation2 + $0x158] sm:$0xff]
      %v4370 = vld [vmem:[#allocation2 + $0x160] sm:$0xff]
      %v4371 = vld [vmem:[#allocation2 + $0x168] sm:$0xff]
      %v4372 = vld [vmem:[#allocation2 + $0x170] sm:$0xff]
      %v4373 = vld [vmem:[#allocation2 + $0x178] sm:$0xff]
      %v4374 = vld [vmem:[#allocation2 + $0x180] sm:$0xff]
      %v4375 = vld [vmem:[#allocation2 + $0x188] sm:$0xff]
      %v4376 = vld [vmem:[#allocation2 + $0x190] sm:$0xff]
      %v4377 = vld [vmem:[#allocation2 + $0x198] sm:$0xff]
      %v4378 = vld [vmem:[#allocation2 + $0x1a0] sm:$0xff]
      %v4379 = vld [vmem:[#allocation2 + $0x1a8] sm:$0xff]
      %v4380 = vld [vmem:[#allocation2 + $0x1b0] sm:$0xff]
      %v4381 = vld [vmem:[#allocation2 + $0x1b8] sm:$0xff]
      %v4382 = vld [vmem:[#allocation2 + $0x1c0] sm:$0xff]
      %v4383 = vld [vmem:[#allocation2 + $0x1c8] sm:$0xff]
      %v4384 = vld [vmem:[#allocation2 + $0x1d0] sm:$0xff]
      %v4385 = vld [vmem:[#allocation2 + $0x1d8] sm:$0xff]
      %v4386 = vld [vmem:[#allocation2 + $0x1e0] sm:$0xff]
      %v4387 = vld [vmem:[#allocation2 + $0x1e8] sm:$0xff]
      %v4388 = vld [vmem:[#allocation2 + $0x1f0] sm:$0xff]
      %v4389 = vld [vmem:[#allocation2 + $0x1f8] sm:$0xff]
      %v4390 = vadd.f32 %v4326, %v4158
      %v4391 = vadd.f32 %v4327, %v4247
      %v4392 = vadd.f32 %v4328, %v4160
      %v4393 = vadd.f32 %v4329, %v4249
      %v4394 = vadd.f32 %v4330, %v4163
      %v4395 = vadd.f32 %v4331, %v4252
      %v4396 = vadd.f32 %v4332, %v4165
      %v4397 = vadd.f32 %v4333, %v4254
      %v4398 = vadd.f32 %v4334, %v4168
      %v4399 = vadd.f32 %v4335, %v4257
      %v4400 = vadd.f32 %v4336, %v4170
      %v4401 = vadd.f32 %v4337, %v4259
      %v4402 = vadd.f32 %v4338, %v4173
      %v4403 = vadd.f32 %v4339, %v4262
      %v4404 = vadd.f32 %v4340, %v4175
      %v4405 = vadd.f32 %v4341, %v4264
      %v4406 = vadd.f32 %v4342, %v4178
      %v4407 = vadd.f32 %v4343, %v4267
      %v4408 = vadd.f32 %v4344, %v4180
      %v4409 = vadd.f32 %v4345, %v4269
      %v4410 = vadd.f32 %v4346, %v4183
      %v4411 = vadd.f32 %v4347, %v4272
      %v4412 = vadd.f32 %v4348, %v4185
      %v4413 = vadd.f32 %v4349, %v4274
      %v4414 = vadd.f32 %v4350, %v4188
      %v4415 = vadd.f32 %v4351, %v4277
      %v4416 = vadd.f32 %v4352, %v4190
      %v4417 = vadd.f32 %v4353, %v4279
      %v4418 = vadd.f32 %v4354, %v4193
      %v4419 = vadd.f32 %v4355, %v4282
      %v4420 = vadd.f32 %v4356, %v4195
      %v4421 = vadd.f32 %v4357, %v4284
      %v4422 = vadd.f32 %v4358, %v4198
      %v4423 = vadd.f32 %v4359, %v4287
      %v4424 = vadd.f32 %v4360, %v4200
      %v4425 = vadd.f32 %v4361, %v4289
      %v4426 = vadd.f32 %v4362, %v4203
      %v4427 = vadd.f32 %v4363, %v4292
      %v4428 = vadd.f32 %v4364, %v4205
      %v4429 = vadd.f32 %v4365, %v4294
      %v4430 = vadd.f32 %v4366, %v4208
      %v4431 = vadd.f32 %v4367, %v4297
      %v4432 = vadd.f32 %v4368, %v4210
      %v4433 = vadd.f32 %v4369, %v4299
      %v4434 = vadd.f32 %v4370, %v4213
      %v4435 = vadd.f32 %v4371, %v4302
      %v4436 = vadd.f32 %v4372, %v4215
      %v4437 = vadd.f32 %v4373, %v4304
      %v4438 = vadd.f32 %v4374, %v4218
      %v4439 = vadd.f32 %v4375, %v4307
      %v4440 = vadd.f32 %v4376, %v4220
      %v4441 = vadd.f32 %v4377, %v4309
      %v4442 = vadd.f32 %v4378, %v4223
      %v4443 = vadd.f32 %v4379, %v4312
      %v4444 = vadd.f32 %v4380, %v4225
      %v4445 = vadd.f32 %v4381, %v4314
      %v4446 = vadd.f32 %v4382, %v4228
      %v4447 = vadd.f32 %v4383, %v4317
      %v4448 = vadd.f32 %v4384, %v4230
      %v4449 = vadd.f32 %v4385, %v4319
      %v4450 = vadd.f32 %v4386, %v4233
      %v4451 = vadd.f32 %v4387, %v4322
      %v4452 = vadd.f32 %v4388, %v4235
      %v4453 = vadd.f32 %v4389, %v4324
      %4454 = vst [vmem:[#allocation2] sm:$0xff] %v4390
      %4455 = vst [vmem:[#allocation2 + $0x8] sm:$0xff] %v4391
      %4456 = vst [vmem:[#allocation2 + $0x10] sm:$0xff] %v4392
      %4457 = vst [vmem:[#allocation2 + $0x18] sm:$0xff] %v4393
      %4458 = vst [vmem:[#allocation2 + $0x20] sm:$0xff] %v4394
      %4459 = vst [vmem:[#allocation2 + $0x28] sm:$0xff] %v4395
      %4460 = vst [vmem:[#allocation2 + $0x30] sm:$0xff] %v4396
      %4461 = vst [vmem:[#allocation2 + $0x38] sm:$0xff] %v4397
      %4462 = vst [vmem:[#allocation2 + $0x40] sm:$0xff] %v4398
      %4463 = vst [vmem:[#allocation2 + $0x48] sm:$0xff] %v4399
      %4464 = vst [vmem:[#allocation2 + $0x50] sm:$0xff] %v4400
      %4465 = vst [vmem:[#allocation2 + $0x58] sm:$0xff] %v4401
      %4466 = vst [vmem:[#allocation2 + $0x60] sm:$0xff] %v4402
      %4467 = vst [vmem:[#allocation2 + $0x68] sm:$0xff] %v4403
      %4468 = vst [vmem:[#allocation2 + $0x70] sm:$0xff] %v4404
      %4469 = vst [vmem:[#allocation2 + $0x78] sm:$0xff] %v4405
      %4470 = vst [vmem:[#allocation2 + $0x80] sm:$0xff] %v4406
      %4471 = vst [vmem:[#allocation2 + $0x88] sm:$0xff] %v4407
      %4472 = vst [vmem:[#allocation2 + $0x90] sm:$0xff] %v4408
      %4473 = vst [vmem:[#allocation2 + $0x98] sm:$0xff] %v4409
      %4474 = vst [vmem:[#allocation2 + $0xa0] sm:$0xff] %v4410
      %4475 = vst [vmem:[#allocation2 + $0xa8] sm:$0xff] %v4411
      %4476 = vst [vmem:[#allocation2 + $0xb0] sm:$0xff] %v4412
      %4477 = vst [vmem:[#allocation2 + $0xb8] sm:$0xff] %v4413
      %4478 = vst [vmem:[#allocation2 + $0xc0] sm:$0xff] %v4414
      %4479 = vst [vmem:[#allocation2 + $0xc8] sm:$0xff] %v4415
      %4480 = vst [vmem:[#allocation2 + $0xd0] sm:$0xff] %v4416
      %4481 = vst [vmem:[#allocation2 + $0xd8] sm:$0xff] %v4417
      %4482 = vst [vmem:[#allocation2 + $0xe0] sm:$0xff] %v4418
      %4483 = vst [vmem:[#allocation2 + $0xe8] sm:$0xff] %v4419
      %4484 = vst [vmem:[#allocation2 + $0xf0] sm:$0xff] %v4420
      %4485 = vst [vmem:[#allocation2 + $0xf8] sm:$0xff] %v4421
      %4486 = vst [vmem:[#allocation2 + $0x100] sm:$0xff] %v4422
      %4487 = vst [vmem:[#allocation2 + $0x108] sm:$0xff] %v4423
      %4488 = vst [vmem:[#allocation2 + $0x110] sm:$0xff] %v4424
      %4489 = vst [vmem:[#allocation2 + $0x118] sm:$0xff] %v4425
      %4490 = vst [vmem:[#allocation2 + $0x120] sm:$0xff] %v4426
      %4491 = vst [vmem:[#allocation2 + $0x128] sm:$0xff] %v4427
      %4492 = vst [vmem:[#allocation2 + $0x130] sm:$0xff] %v4428
      %4493 = vst [vmem:[#allocation2 + $0x138] sm:$0xff] %v4429
      %4494 = vst [vmem:[#allocation2 + $0x140] sm:$0xff] %v4430
      %4495 = vst [vmem:[#allocation2 + $0x148] sm:$0xff] %v4431
      %4496 = vst [vmem:[#allocation2 + $0x150] sm:$0xff] %v4432
      %4497 = vst [vmem:[#allocation2 + $0x158] sm:$0xff] %v4433
      %4498 = vst [vmem:[#allocation2 + $0x160] sm:$0xff] %v4434
      %4499 = vst [vmem:[#allocation2 + $0x168] sm:$0xff] %v4435
      %4500 = vst [vmem:[#allocation2 + $0x170] sm:$0xff] %v4436
      %4501 = vst [vmem:[#allocation2 + $0x178] sm:$0xff] %v4437
      %4502 = vst [vmem:[#allocation2 + $0x180] sm:$0xff] %v4438
      %4503 = vst [vmem:[#allocation2 + $0x188] sm:$0xff] %v4439
      %4504 = vst [vmem:[#allocation2 + $0x190] sm:$0xff] %v4440
      %4505 = vst [vmem:[#allocation2 + $0x198] sm:$0xff] %v4441
      %4506 = vst [vmem:[#allocation2 + $0x1a0] sm:$0xff] %v4442
      %4507 = vst [vmem:[#allocation2 + $0x1a8] sm:$0xff] %v4443
      %4508 = vst [vmem:[#allocation2 + $0x1b0] sm:$0xff] %v4444
      %4509 = vst [vmem:[#allocation2 + $0x1b8] sm:$0xff] %v4445
      %4510 = vst [vmem:[#allocation2 + $0x1c0] sm:$0xff] %v4446
      %4511 = vst [vmem:[#allocation2 + $0x1c8] sm:$0xff] %v4447
      %4512 = vst [vmem:[#allocation2 + $0x1d0] sm:$0xff] %v4448
      %4513 = vst [vmem:[#allocation2 + $0x1d8] sm:$0xff] %v4449
      %4514 = vst [vmem:[#allocation2 + $0x1e0] sm:$0xff] %v4450
      %4515 = vst [vmem:[#allocation2 + $0x1e8] sm:$0xff] %v4451
      %4516 = vst [vmem:[#allocation2 + $0x1f0] sm:$0xff] %v4452
      %4517 = vst [vmem:[#allocation2 + $0x1f8] sm:$0xff] %v4453
      %s4518 = sadd.s32 %s278, 2
      %s4519 = smul.u32 %s4518, 3
      %s4520 = smul.addr %s4519, 4
      %s4521 = scalar_lea.vmem %s265, %s4520
      %v4522 = vld [vmem:[%s4521] sm:$0xf]
      %v4523 = vld [vmem:[%s4521 + $0x4] sm:$0xf]
      %v4524 = vld [vmem:[%s4521 + $0xc] sm:$0xf]
      %v4525 = vld [vmem:[%s4521 + $0x10] sm:$0xf]
      %v4526 = vld [vmem:[%s4521 + $0x18] sm:$0xf]
      %v4527 = vld [vmem:[%s4521 + $0x1c] sm:$0xf]
      %v4528 = vld [vmem:[%s4521 + $0x24] sm:$0xf]
      %v4529 = vld [vmem:[%s4521 + $0x28] sm:$0xf]
      %v4530 = vld [vmem:[%s4521 + $0x30] sm:$0xf]
      %v4531 = vld [vmem:[%s4521 + $0x34] sm:$0xf]
      %v4532 = vld [vmem:[%s4521 + $0x3c] sm:$0xf]
      %v4533 = vld [vmem:[%s4521 + $0x40] sm:$0xf]
      %v4534 = vld [vmem:[%s4521 + $0x48] sm:$0xf]
      %v4535 = vld [vmem:[%s4521 + $0x4c] sm:$0xf]
      %v4536 = vld [vmem:[%s4521 + $0x54] sm:$0xf]
      %v4537 = vld [vmem:[%s4521 + $0x58] sm:$0xf]
      %v4538 = vld [vmem:[%s4521 + $0x60] sm:$0xf]
      %v4539 = vld [vmem:[%s4521 + $0x64] sm:$0xf]
      %v4540 = vld [vmem:[%s4521 + $0x6c] sm:$0xf]
      %v4541 = vld [vmem:[%s4521 + $0x70] sm:$0xf]
      %v4542 = vld [vmem:[%s4521 + $0x78] sm:$0xf]
      %v4543 = vld [vmem:[%s4521 + $0x7c] sm:$0xf]
      %v4544 = vld [vmem:[%s4521 + $0x84] sm:$0xf]
      %v4545 = vld [vmem:[%s4521 + $0x88] sm:$0xf]
      %v4546 = vld [vmem:[%s4521 + $0x90] sm:$0xf]
      %v4547 = vld [vmem:[%s4521 + $0x94] sm:$0xf]
      %v4548 = vld [vmem:[%s4521 + $0x9c] sm:$0xf]
      %v4549 = vld [vmem:[%s4521 + $0xa0] sm:$0xf]
      %v4550 = vld [vmem:[%s4521 + $0xa8] sm:$0xf]
      %v4551 = vld [vmem:[%s4521 + $0xac] sm:$0xf]
      %v4552 = vld [vmem:[%s4521 + $0xb4] sm:$0xf]
      %v4553 = vld [vmem:[%s4521 + $0xb8] sm:$0xf]
      %s4554 = scalar_lea.vmem %s1, 192
      %v4555 = vld [vmem:[%s4554] sm:$0xff]
      %v4556 = vld [vmem:[%s4554 + $0x8] sm:$0xff]
      %v4557 = vld [vmem:[%s4554 + $0x10] sm:$0xff]
      %v4558 = vld [vmem:[%s4554 + $0x18] sm:$0xff]
      %v4591 = vunpack.c.l.b16 %v4522
      %v4592 = vunpack.c.l.b16 %v4523
      %v4593 = vunpack.c.l.b16 %v4524
      %v4594 = vunpack.c.l.b16 %v4525
      %v4595 = vunpack.c.l.b16 %v4526
      %v4596 = vunpack.c.l.b16 %v4527
      %v4597 = vunpack.c.l.b16 %v4528
      %v4598 = vunpack.c.l.b16 %v4529
      %v4599 = vunpack.c.l.b16 %v4530
      %v4600 = vunpack.c.l.b16 %v4531
      %v4601 = vunpack.c.l.b16 %v4532
      %v4602 = vunpack.c.l.b16 %v4533
      %v4603 = vunpack.c.l.b16 %v4534
      %v4604 = vunpack.c.l.b16 %v4535
      %v4605 = vunpack.c.l.b16 %v4536
      %v4606 = vunpack.c.l.b16 %v4537
      %v4607 = vunpack.c.l.b16 %v4538
      %v4608 = vunpack.c.l.b16 %v4539
      %v4609 = vunpack.c.l.b16 %v4540
      %v4610 = vunpack.c.l.b16 %v4541
      %v4611 = vunpack.c.l.b16 %v4542
      %v4612 = vunpack.c.l.b16 %v4543
      %v4613 = vunpack.c.l.b16 %v4544
      %v4614 = vunpack.c.l.b16 %v4545
      %v4615 = vunpack.c.l.b16 %v4546
      %v4616 = vunpack.c.l.b16 %v4547
      %v4617 = vunpack.c.l.b16 %v4548
      %v4618 = vunpack.c.l.b16 %v4549
      %v4619 = vunpack.c.l.b16 %v4550
      %v4620 = vunpack.c.l.b16 %v4551
      %v4621 = vunpack.c.l.b16 %v4552
      %v4622 = vunpack.c.l.b16 %v4553
      %v4623 = vpack.c.b16 %v4592, %v4591
      %v4624 = vpack.c.b16 %v4594, %v4593
      %v4625 = vpack.c.b16 %v4596, %v4595
      %v4626 = vpack.c.b16 %v4598, %v4597
      %v4627 = vpack.c.b16 %v4600, %v4599
      %v4628 = vpack.c.b16 %v4602, %v4601
      %v4629 = vpack.c.b16 %v4604, %v4603
      %v4630 = vpack.c.b16 %v4606, %v4605
      %v4631 = vpack.c.b16 %v4608, %v4607
      %v4632 = vpack.c.b16 %v4610, %v4609
      %v4633 = vpack.c.b16 %v4612, %v4611
      %v4634 = vpack.c.b16 %v4614, %v4613
      %v4635 = vpack.c.b16 %v4616, %v4615
      %v4636 = vpack.c.b16 %v4618, %v4617
      %v4637 = vpack.c.b16 %v4620, %v4619
      %v4638 = vpack.c.b16 %v4622, %v4621
      %v4643 = vunpack.c.l.b16 %v4555
      %v4644 = vunpack.c.h.b16 %v4555
      %v4645 = vunpack.c.l.b16 %v4556
      %v4646 = vunpack.c.h.b16 %v4556
      %v4647 = vunpack.c.l.b16 %v4557
      %v4648 = vunpack.c.h.b16 %v4557
      %v4649 = vunpack.c.l.b16 %v4558
      %v4650 = vunpack.c.h.b16 %v4558
      %v4651 = vpack.c.b16 %v4645, %v4643
      %v4652 = vpack.c.b16 %v4646, %v4644
      %v4653 = vpack.c.b16 %v4649, %v4647
      %v4654 = vpack.c.b16 %v4650, %v4648
      %v4660 = vsel %vm418, %v4623, 0
      %v4663 = vsel %vm418, %v4624, 0
      %v4666 = vsel %vm418, %v4625, 0
      %v4669 = vsel %vm418, %v4626, 0
      %v4672 = vsel %vm418, %v4627, 0
      %v4675 = vsel %vm418, %v4628, 0
      %v4678 = vsel %vm418, %v4629, 0
      %v4681 = vsel %vm418, %v4630, 0
      %v4684 = vsel %vm418, %v4631, 0
      %v4687 = vsel %vm418, %v4632, 0
      %v4690 = vsel %vm418, %v4633, 0
      %v4693 = vsel %vm418, %v4634, 0
      %v4696 = vsel %vm418, %v4635, 0
      %v4699 = vsel %vm418, %v4636, 0
      %v4702 = vsel %vm418, %v4637, 0
      %v4705 = vsel %vm418, %v4638, 0
      %4707 = vmatpush.bf16.msra.mxu0 0
      %4708 = vmatpush.bf16.msra.mxu0 0
      %4709 = vmatpush.bf16.msra.mxu0 0
      %4710 = vmatpush.bf16.msra.mxu0 0
      %4711 = vmatpush.bf16.msra.mxu0 0
      %4712 = vmatpush.bf16.msra.mxu0 0
      %4713 = vmatpush.bf16.msra.mxu0 %v4653
      %4714 = vmatpush.bf16.msra.mxu0 %v4651
      %4715 = vmatmul.bf16.gmra.mxu0 %v4660
      %v4716 = vpop.f32.mrf.mxu0
      %v4717 = vadd.f32 0.0, %v4716
      %v4718 = vpop.f32.mrf.mxu0
      %v4719 = vadd.f32 0.0, %v4718
      %4720 = vmatmul.bf16.gmra.mxu0 %v4663
      %v4721 = vpop.f32.mrf.mxu0
      %v4722 = vadd.f32 0.0, %v4721
      %v4723 = vpop.f32.mrf.mxu0
      %v4724 = vadd.f32 0.0, %v4723
      %4725 = vmatmul.bf16.gmra.mxu0 %v4666
      %v4726 = vpop.f32.mrf.mxu0
      %v4727 = vadd.f32 0.0, %v4726
      %v4728 = vpop.f32.mrf.mxu0
      %v4729 = vadd.f32 0.0, %v4728
      %4730 = vmatmul.bf16.gmra.mxu0 %v4669
      %v4731 = vpop.f32.mrf.mxu0
      %v4732 = vadd.f32 0.0, %v4731
      %v4733 = vpop.f32.mrf.mxu0
      %v4734 = vadd.f32 0.0, %v4733
      %4735 = vmatmul.bf16.gmra.mxu0 %v4672
      %v4736 = vpop.f32.mrf.mxu0
      %v4737 = vadd.f32 0.0, %v4736
      %v4738 = vpop.f32.mrf.mxu0
      %v4739 = vadd.f32 0.0, %v4738
      %4740 = vmatmul.bf16.gmra.mxu0 %v4675
      %v4741 = vpop.f32.mrf.mxu0
      %v4742 = vadd.f32 0.0, %v4741
      %v4743 = vpop.f32.mrf.mxu0
      %v4744 = vadd.f32 0.0, %v4743
      %4745 = vmatmul.bf16.gmra.mxu0 %v4678
      %v4746 = vpop.f32.mrf.mxu0
      %v4747 = vadd.f32 0.0, %v4746
      %v4748 = vpop.f32.mrf.mxu0
      %v4749 = vadd.f32 0.0, %v4748
      %4750 = vmatmul.bf16.gmra.mxu0 %v4681
      %v4751 = vpop.f32.mrf.mxu0
      %v4752 = vadd.f32 0.0, %v4751
      %v4753 = vpop.f32.mrf.mxu0
      %v4754 = vadd.f32 0.0, %v4753
      %4755 = vmatmul.bf16.gmra.mxu0 %v4684
      %v4756 = vpop.f32.mrf.mxu0
      %v4757 = vadd.f32 0.0, %v4756
      %v4758 = vpop.f32.mrf.mxu0
      %v4759 = vadd.f32 0.0, %v4758
      %4760 = vmatmul.bf16.gmra.mxu0 %v4687
      %v4761 = vpop.f32.mrf.mxu0
      %v4762 = vadd.f32 0.0, %v4761
      %v4763 = vpop.f32.mrf.mxu0
      %v4764 = vadd.f32 0.0, %v4763
      %4765 = vmatmul.bf16.gmra.mxu0 %v4690
      %v4766 = vpop.f32.mrf.mxu0
      %v4767 = vadd.f32 0.0, %v4766
      %v4768 = vpop.f32.mrf.mxu0
      %v4769 = vadd.f32 0.0, %v4768
      %4770 = vmatmul.bf16.gmra.mxu0 %v4693
      %v4771 = vpop.f32.mrf.mxu0
      %v4772 = vadd.f32 0.0, %v4771
      %v4773 = vpop.f32.mrf.mxu0
      %v4774 = vadd.f32 0.0, %v4773
      %4775 = vmatmul.bf16.gmra.mxu0 %v4696
      %v4776 = vpop.f32.mrf.mxu0
      %v4777 = vadd.f32 0.0, %v4776
      %v4778 = vpop.f32.mrf.mxu0
      %v4779 = vadd.f32 0.0, %v4778
      %4780 = vmatmul.bf16.gmra.mxu0 %v4699
      %v4781 = vpop.f32.mrf.mxu0
      %v4782 = vadd.f32 0.0, %v4781
      %v4783 = vpop.f32.mrf.mxu0
      %v4784 = vadd.f32 0.0, %v4783
      %4785 = vmatmul.bf16.gmra.mxu0 %v4702
      %v4786 = vpop.f32.mrf.mxu0
      %v4787 = vadd.f32 0.0, %v4786
      %v4788 = vpop.f32.mrf.mxu0
      %v4789 = vadd.f32 0.0, %v4788
      %4790 = vmatmul.bf16.gmra.mxu0 %v4705
      %v4791 = vpop.f32.mrf.mxu0
      %v4792 = vadd.f32 0.0, %v4791
      %v4793 = vpop.f32.mrf.mxu0
      %v4794 = vadd.f32 0.0, %v4793
      %4795 = vdwg.mxu0
      %4796 = vmatpush.bf16.msra.mxu0 0
      %4797 = vmatpush.bf16.msra.mxu0 0
      %4798 = vmatpush.bf16.msra.mxu0 0
      %4799 = vmatpush.bf16.msra.mxu0 0
      %4800 = vmatpush.bf16.msra.mxu0 0
      %4801 = vmatpush.bf16.msra.mxu0 0
      %4802 = vmatpush.bf16.msra.mxu0 %v4654
      %4803 = vmatpush.bf16.msra.mxu0 %v4652
      %4804 = vmatmul.bf16.gmra.mxu0 %v4660
      %v4805 = vpop.f32.mrf.mxu0
      %v4806 = vadd.f32 0.0, %v4805
      %v4807 = vpop.f32.mrf.mxu0
      %v4808 = vadd.f32 0.0, %v4807
      %4809 = vmatmul.bf16.gmra.mxu0 %v4663
      %v4810 = vpop.f32.mrf.mxu0
      %v4811 = vadd.f32 0.0, %v4810
      %v4812 = vpop.f32.mrf.mxu0
      %v4813 = vadd.f32 0.0, %v4812
      %4814 = vmatmul.bf16.gmra.mxu0 %v4666
      %v4815 = vpop.f32.mrf.mxu0
      %v4816 = vadd.f32 0.0, %v4815
      %v4817 = vpop.f32.mrf.mxu0
      %v4818 = vadd.f32 0.0, %v4817
      %4819 = vmatmul.bf16.gmra.mxu0 %v4669
      %v4820 = vpop.f32.mrf.mxu0
      %v4821 = vadd.f32 0.0, %v4820
      %v4822 = vpop.f32.mrf.mxu0
      %v4823 = vadd.f32 0.0, %v4822
      %4824 = vmatmul.bf16.gmra.mxu0 %v4672
      %v4825 = vpop.f32.mrf.mxu0
      %v4826 = vadd.f32 0.0, %v4825
      %v4827 = vpop.f32.mrf.mxu0
      %v4828 = vadd.f32 0.0, %v4827
      %4829 = vmatmul.bf16.gmra.mxu0 %v4675
      %v4830 = vpop.f32.mrf.mxu0
      %v4831 = vadd.f32 0.0, %v4830
      %v4832 = vpop.f32.mrf.mxu0
      %v4833 = vadd.f32 0.0, %v4832
      %4834 = vmatmul.bf16.gmra.mxu0 %v4678
      %v4835 = vpop.f32.mrf.mxu0
      %v4836 = vadd.f32 0.0, %v4835
      %v4837 = vpop.f32.mrf.mxu0
      %v4838 = vadd.f32 0.0, %v4837
      %4839 = vmatmul.bf16.gmra.mxu0 %v4681
      %v4840 = vpop.f32.mrf.mxu0
      %v4841 = vadd.f32 0.0, %v4840
      %v4842 = vpop.f32.mrf.mxu0
      %v4843 = vadd.f32 0.0, %v4842
      %4844 = vmatmul.bf16.gmra.mxu0 %v4684
      %v4845 = vpop.f32.mrf.mxu0
      %v4846 = vadd.f32 0.0, %v4845
      %v4847 = vpop.f32.mrf.mxu0
      %v4848 = vadd.f32 0.0, %v4847
      %4849 = vmatmul.bf16.gmra.mxu0 %v4687
      %v4850 = vpop.f32.mrf.mxu0
      %v4851 = vadd.f32 0.0, %v4850
      %v4852 = vpop.f32.mrf.mxu0
      %v4853 = vadd.f32 0.0, %v4852
      %4854 = vmatmul.bf16.gmra.mxu0 %v4690
      %v4855 = vpop.f32.mrf.mxu0
      %v4856 = vadd.f32 0.0, %v4855
      %v4857 = vpop.f32.mrf.mxu0
      %v4858 = vadd.f32 0.0, %v4857
      %4859 = vmatmul.bf16.gmra.mxu0 %v4693
      %v4860 = vpop.f32.mrf.mxu0
      %v4861 = vadd.f32 0.0, %v4860
      %v4862 = vpop.f32.mrf.mxu0
      %v4863 = vadd.f32 0.0, %v4862
      %4864 = vmatmul.bf16.gmra.mxu0 %v4696
      %v4865 = vpop.f32.mrf.mxu0
      %v4866 = vadd.f32 0.0, %v4865
      %v4867 = vpop.f32.mrf.mxu0
      %v4868 = vadd.f32 0.0, %v4867
      %4869 = vmatmul.bf16.gmra.mxu0 %v4699
      %v4870 = vpop.f32.mrf.mxu0
      %v4871 = vadd.f32 0.0, %v4870
      %v4872 = vpop.f32.mrf.mxu0
      %v4873 = vadd.f32 0.0, %v4872
      %4874 = vmatmul.bf16.gmra.mxu0 %v4702
      %v4875 = vpop.f32.mrf.mxu0
      %v4876 = vadd.f32 0.0, %v4875
      %v4877 = vpop.f32.mrf.mxu0
      %v4878 = vadd.f32 0.0, %v4877
      %4879 = vmatmul.bf16.gmra.mxu0 %v4705
      %v4880 = vpop.f32.mrf.mxu0
      %v4881 = vadd.f32 0.0, %v4880
      %v4882 = vpop.f32.mrf.mxu0
      %v4883 = vadd.f32 0.0, %v4882
      %4884 = vdwg.mxu0
      %v4885 = vld [vmem:[#allocation2] sm:$0xff]
      %v4886 = vld [vmem:[#allocation2 + $0x8] sm:$0xff]
      %v4887 = vld [vmem:[#allocation2 + $0x10] sm:$0xff]
      %v4888 = vld [vmem:[#allocation2 + $0x18] sm:$0xff]
      %v4889 = vld [vmem:[#allocation2 + $0x20] sm:$0xff]
      %v4890 = vld [vmem:[#allocation2 + $0x28] sm:$0xff]
      %v4891 = vld [vmem:[#allocation2 + $0x30] sm:$0xff]
      %v4892 = vld [vmem:[#allocation2 + $0x38] sm:$0xff]
      %v4893 = vld [vmem:[#allocation2 + $0x40] sm:$0xff]
      %v4894 = vld [vmem:[#allocation2 + $0x48] sm:$0xff]
      %v4895 = vld [vmem:[#allocation2 + $0x50] sm:$0xff]
      %v4896 = vld [vmem:[#allocation2 + $0x58] sm:$0xff]
      %v4897 = vld [vmem:[#allocation2 + $0x60] sm:$0xff]
      %v4898 = vld [vmem:[#allocation2 + $0x68] sm:$0xff]
      %v4899 = vld [vmem:[#allocation2 + $0x70] sm:$0xff]
      %v4900 = vld [vmem:[#allocation2 + $0x78] sm:$0xff]
      %v4901 = vld [vmem:[#allocation2 + $0x80] sm:$0xff]
      %v4902 = vld [vmem:[#allocation2 + $0x88] sm:$0xff]
      %v4903 = vld [vmem:[#allocation2 + $0x90] sm:$0xff]
      %v4904 = vld [vmem:[#allocation2 + $0x98] sm:$0xff]
      %v4905 = vld [vmem:[#allocation2 + $0xa0] sm:$0xff]
      %v4906 = vld [vmem:[#allocation2 + $0xa8] sm:$0xff]
      %v4907 = vld [vmem:[#allocation2 + $0xb0] sm:$0xff]
      %v4908 = vld [vmem:[#allocation2 + $0xb8] sm:$0xff]
      %v4909 = vld [vmem:[#allocation2 + $0xc0] sm:$0xff]
      %v4910 = vld [vmem:[#allocation2 + $0xc8] sm:$0xff]
      %v4911 = vld [vmem:[#allocation2 + $0xd0] sm:$0xff]
      %v4912 = vld [vmem:[#allocation2 + $0xd8] sm:$0xff]
      %v4913 = vld [vmem:[#allocation2 + $0xe0] sm:$0xff]
      %v4914 = vld [vmem:[#allocation2 + $0xe8] sm:$0xff]
      %v4915 = vld [vmem:[#allocation2 + $0xf0] sm:$0xff]
      %v4916 = vld [vmem:[#allocation2 + $0xf8] sm:$0xff]
      %v4917 = vld [vmem:[#allocation2 + $0x100] sm:$0xff]
      %v4918 = vld [vmem:[#allocation2 + $0x108] sm:$0xff]
      %v4919 = vld [vmem:[#allocation2 + $0x110] sm:$0xff]
      %v4920 = vld [vmem:[#allocation2 + $0x118] sm:$0xff]
      %v4921 = vld [vmem:[#allocation2 + $0x120] sm:$0xff]
      %v4922 = vld [vmem:[#allocation2 + $0x128] sm:$0xff]
      %v4923 = vld [vmem:[#allocation2 + $0x130] sm:$0xff]
      %v4924 = vld [vmem:[#allocation2 + $0x138] sm:$0xff]
      %v4925 = vld [vmem:[#allocation2 + $0x140] sm:$0xff]
      %v4926 = vld [vmem:[#allocation2 + $0x148] sm:$0xff]
      %v4927 = vld [vmem:[#allocation2 + $0x150] sm:$0xff]
      %v4928 = vld [vmem:[#allocation2 + $0x158] sm:$0xff]
      %v4929 = vld [vmem:[#allocation2 + $0x160] sm:$0xff]
      %v4930 = vld [vmem:[#allocation2 + $0x168] sm:$0xff]
      %v4931 = vld [vmem:[#allocation2 + $0x170] sm:$0xff]
      %v4932 = vld [vmem:[#allocation2 + $0x178] sm:$0xff]
      %v4933 = vld [vmem:[#allocation2 + $0x180] sm:$0xff]
      %v4934 = vld [vmem:[#allocation2 + $0x188] sm:$0xff]
      %v4935 = vld [vmem:[#allocation2 + $0x190] sm:$0xff]
      %v4936 = vld [vmem:[#allocation2 + $0x198] sm:$0xff]
      %v4937 = vld [vmem:[#allocation2 + $0x1a0] sm:$0xff]
      %v4938 = vld [vmem:[#allocation2 + $0x1a8] sm:$0xff]
      %v4939 = vld [vmem:[#allocation2 + $0x1b0] sm:$0xff]
      %v4940 = vld [vmem:[#allocation2 + $0x1b8] sm:$0xff]
      %v4941 = vld [vmem:[#allocation2 + $0x1c0] sm:$0xff]
      %v4942 = vld [vmem:[#allocation2 + $0x1c8] sm:$0xff]
      %v4943 = vld [vmem:[#allocation2 + $0x1d0] sm:$0xff]
      %v4944 = vld [vmem:[#allocation2 + $0x1d8] sm:$0xff]
      %v4945 = vld [vmem:[#allocation2 + $0x1e0] sm:$0xff]
      %v4946 = vld [vmem:[#allocation2 + $0x1e8] sm:$0xff]
      %v4947 = vld [vmem:[#allocation2 + $0x1f0] sm:$0xff]
      %v4948 = vld [vmem:[#allocation2 + $0x1f8] sm:$0xff]
      %v4949 = vadd.f32 %v4885, %v4717
      %v4950 = vadd.f32 %v4886, %v4806
      %v4951 = vadd.f32 %v4887, %v4719
      %v4952 = vadd.f32 %v4888, %v4808
      %v4953 = vadd.f32 %v4889, %v4722
      %v4954 = vadd.f32 %v4890, %v4811
      %v4955 = vadd.f32 %v4891, %v4724
      %v4956 = vadd.f32 %v4892, %v4813
      %v4957 = vadd.f32 %v4893, %v4727
      %v4958 = vadd.f32 %v4894, %v4816
      %v4959 = vadd.f32 %v4895, %v4729
      %v4960 = vadd.f32 %v4896, %v4818
      %v4961 = vadd.f32 %v4897, %v4732
      %v4962 = vadd.f32 %v4898, %v4821
      %v4963 = vadd.f32 %v4899, %v4734
      %v4964 = vadd.f32 %v4900, %v4823
      %v4965 = vadd.f32 %v4901, %v4737
      %v4966 = vadd.f32 %v4902, %v4826
      %v4967 = vadd.f32 %v4903, %v4739
      %v4968 = vadd.f32 %v4904, %v4828
      %v4969 = vadd.f32 %v4905, %v4742
      %v4970 = vadd.f32 %v4906, %v4831
      %v4971 = vadd.f32 %v4907, %v4744
      %v4972 = vadd.f32 %v4908, %v4833
      %v4973 = vadd.f32 %v4909, %v4747
      %v4974 = vadd.f32 %v4910, %v4836
      %v4975 = vadd.f32 %v4911, %v4749
      %v4976 = vadd.f32 %v4912, %v4838
      %v4977 = vadd.f32 %v4913, %v4752
      %v4978 = vadd.f32 %v4914, %v4841
      %v4979 = vadd.f32 %v4915, %v4754
      %v4980 = vadd.f32 %v4916, %v4843
      %v4981 = vadd.f32 %v4917, %v4757
      %v4982 = vadd.f32 %v4918, %v4846
      %v4983 = vadd.f32 %v4919, %v4759
      %v4984 = vadd.f32 %v4920, %v4848
      %v4985 = vadd.f32 %v4921, %v4762
      %v4986 = vadd.f32 %v4922, %v4851
      %v4987 = vadd.f32 %v4923, %v4764
      %v4988 = vadd.f32 %v4924, %v4853
      %v4989 = vadd.f32 %v4925, %v4767
      %v4990 = vadd.f32 %v4926, %v4856
      %v4991 = vadd.f32 %v4927, %v4769
      %v4992 = vadd.f32 %v4928, %v4858
      %v4993 = vadd.f32 %v4929, %v4772
      %v4994 = vadd.f32 %v4930, %v4861
      %v4995 = vadd.f32 %v4931, %v4774
      %v4996 = vadd.f32 %v4932, %v4863
      %v4997 = vadd.f32 %v4933, %v4777
      %v4998 = vadd.f32 %v4934, %v4866
      %v4999 = vadd.f32 %v4935, %v4779
      %v5000 = vadd.f32 %v4936, %v4868
      %v5001 = vadd.f32 %v4937, %v4782
      %v5002 = vadd.f32 %v4938, %v4871
      %v5003 = vadd.f32 %v4939, %v4784
      %v5004 = vadd.f32 %v4940, %v4873
      %v5005 = vadd.f32 %v4941, %v4787
      %v5006 = vadd.f32 %v4942, %v4876
      %v5007 = vadd.f32 %v4943, %v4789
      %v5008 = vadd.f32 %v4944, %v4878
      %v5009 = vadd.f32 %v4945, %v4792
      %v5010 = vadd.f32 %v4946, %v4881
      %v5011 = vadd.f32 %v4947, %v4794
      %v5012 = vadd.f32 %v4948, %v4883
      %5013 = vst [vmem:[#allocation2] sm:$0xff] %v4949
      %5014 = vst [vmem:[#allocation2 + $0x8] sm:$0xff] %v4950
      %5015 = vst [vmem:[#allocation2 + $0x10] sm:$0xff] %v4951
      %5016 = vst [vmem:[#allocation2 + $0x18] sm:$0xff] %v4952
      %5017 = vst [vmem:[#allocation2 + $0x20] sm:$0xff] %v4953
      %5018 = vst [vmem:[#allocation2 + $0x28] sm:$0xff] %v4954
      %5019 = vst [vmem:[#allocation2 + $0x30] sm:$0xff] %v4955
      %5020 = vst [vmem:[#allocation2 + $0x38] sm:$0xff] %v4956
      %5021 = vst [vmem:[#allocation2 + $0x40] sm:$0xff] %v4957
      %5022 = vst [vmem:[#allocation2 + $0x48] sm:$0xff] %v4958
      %5023 = vst [vmem:[#allocation2 + $0x50] sm:$0xff] %v4959
      %5024 = vst [vmem:[#allocation2 + $0x58] sm:$0xff] %v4960
      %5025 = vst [vmem:[#allocation2 + $0x60] sm:$0xff] %v4961
      %5026 = vst [vmem:[#allocation2 + $0x68] sm:$0xff] %v4962
      %5027 = vst [vmem:[#allocation2 + $0x70] sm:$0xff] %v4963
      %5028 = vst [vmem:[#allocation2 + $0x78] sm:$0xff] %v4964
      %5029 = vst [vmem:[#allocation2 + $0x80] sm:$0xff] %v4965
      %5030 = vst [vmem:[#allocation2 + $0x88] sm:$0xff] %v4966
      %5031 = vst [vmem:[#allocation2 + $0x90] sm:$0xff] %v4967
      %5032 = vst [vmem:[#allocation2 + $0x98] sm:$0xff] %v4968
      %5033 = vst [vmem:[#allocation2 + $0xa0] sm:$0xff] %v4969
      %5034 = vst [vmem:[#allocation2 + $0xa8] sm:$0xff] %v4970
      %5035 = vst [vmem:[#allocation2 + $0xb0] sm:$0xff] %v4971
      %5036 = vst [vmem:[#allocation2 + $0xb8] sm:$0xff] %v4972
      %5037 = vst [vmem:[#allocation2 + $0xc0] sm:$0xff] %v4973
      %5038 = vst [vmem:[#allocation2 + $0xc8] sm:$0xff] %v4974
      %5039 = vst [vmem:[#allocation2 + $0xd0] sm:$0xff] %v4975
      %5040 = vst [vmem:[#allocation2 + $0xd8] sm:$0xff] %v4976
      %5041 = vst [vmem:[#allocation2 + $0xe0] sm:$0xff] %v4977
      %5042 = vst [vmem:[#allocation2 + $0xe8] sm:$0xff] %v4978
      %5043 = vst [vmem:[#allocation2 + $0xf0] sm:$0xff] %v4979
      %5044 = vst [vmem:[#allocation2 + $0xf8] sm:$0xff] %v4980
      %5045 = vst [vmem:[#allocation2 + $0x100] sm:$0xff] %v4981
      %5046 = vst [vmem:[#allocation2 + $0x108] sm:$0xff] %v4982
      %5047 = vst [vmem:[#allocation2 + $0x110] sm:$0xff] %v4983
      %5048 = vst [vmem:[#allocation2 + $0x118] sm:$0xff] %v4984
      %5049 = vst [vmem:[#allocation2 + $0x120] sm:$0xff] %v4985
      %5050 = vst [vmem:[#allocation2 + $0x128] sm:$0xff] %v4986
      %5051 = vst [vmem:[#allocation2 + $0x130] sm:$0xff] %v4987
      %5052 = vst [vmem:[#allocation2 + $0x138] sm:$0xff] %v4988
      %5053 = vst [vmem:[#allocation2 + $0x140] sm:$0xff] %v4989
      %5054 = vst [vmem:[#allocation2 + $0x148] sm:$0xff] %v4990
      %5055 = vst [vmem:[#allocation2 + $0x150] sm:$0xff] %v4991
      %5056 = vst [vmem:[#allocation2 + $0x158] sm:$0xff] %v4992
      %5057 = vst [vmem:[#allocation2 + $0x160] sm:$0xff] %v4993
      %5058 = vst [vmem:[#allocation2 + $0x168] sm:$0xff] %v4994
      %5059 = vst [vmem:[#allocation2 + $0x170] sm:$0xff] %v4995
      %5060 = vst [vmem:[#allocation2 + $0x178] sm:$0xff] %v4996
      %5061 = vst [vmem:[#allocation2 + $0x180] sm:$0xff] %v4997
      %5062 = vst [vmem:[#allocation2 + $0x188] sm:$0xff] %v4998
      %5063 = vst [vmem:[#allocation2 + $0x190] sm:$0xff] %v4999
      %5064 = vst [vmem:[#allocation2 + $0x198] sm:$0xff] %v5000
      %5065 = vst [vmem:[#allocation2 + $0x1a0] sm:$0xff] %v5001
      %5066 = vst [vmem:[#allocation2 + $0x1a8] sm:$0xff] %v5002
      %5067 = vst [vmem:[#allocation2 + $0x1b0] sm:$0xff] %v5003
      %5068 = vst [vmem:[#allocation2 + $0x1b8] sm:$0xff] %v5004
      %5069 = vst [vmem:[#allocation2 + $0x1c0] sm:$0xff] %v5005
      %5070 = vst [vmem:[#allocation2 + $0x1c8] sm:$0xff] %v5006
      %5071 = vst [vmem:[#allocation2 + $0x1d0] sm:$0xff] %v5007
      %5072 = vst [vmem:[#allocation2 + $0x1d8] sm:$0xff] %v5008
      %5073 = vst [vmem:[#allocation2 + $0x1e0] sm:$0xff] %v5009
      %5074 = vst [vmem:[#allocation2 + $0x1e8] sm:$0xff] %v5010
      %5075 = vst [vmem:[#allocation2 + $0x1f0] sm:$0xff] %v5011
      %5076 = vst [vmem:[#allocation2 + $0x1f8] sm:$0xff] %v5012
      %v5077 = vld [vmem:[%s4521] sm:$0xf]
      %v5078 = vld [vmem:[%s4521 + $0x4] sm:$0xf]
      %v5079 = vld [vmem:[%s4521 + $0x8] sm:$0x1]
      %v5080 = vld [vmem:[%s4521 + $0xc] sm:$0xf]
      %v5081 = vld [vmem:[%s4521 + $0x10] sm:$0xf]
      %v5082 = vld [vmem:[%s4521 + $0x14] sm:$0x1]
      %v5083 = vld [vmem:[%s4521 + $0x18] sm:$0xf]
      %v5084 = vld [vmem:[%s4521 + $0x1c] sm:$0xf]
      %v5085 = vld [vmem:[%s4521 + $0x20] sm:$0x1]
      %v5086 = vld [vmem:[%s4521 + $0x24] sm:$0xf]
      %v5087 = vld [vmem:[%s4521 + $0x28] sm:$0xf]
      %v5088 = vld [vmem:[%s4521 + $0x2c] sm:$0x1]
      %v5089 = vld [vmem:[%s4521 + $0x30] sm:$0xf]
      %v5090 = vld [vmem:[%s4521 + $0x34] sm:$0xf]
      %v5091 = vld [vmem:[%s4521 + $0x38] sm:$0x1]
      %v5092 = vld [vmem:[%s4521 + $0x3c] sm:$0xf]
      %v5093 = vld [vmem:[%s4521 + $0x40] sm:$0xf]
      %v5094 = vld [vmem:[%s4521 + $0x44] sm:$0x1]
      %v5095 = vld [vmem:[%s4521 + $0x48] sm:$0xf]
      %v5096 = vld [vmem:[%s4521 + $0x4c] sm:$0xf]
      %v5097 = vld [vmem:[%s4521 + $0x50] sm:$0x1]
      %v5098 = vld [vmem:[%s4521 + $0x54] sm:$0xf]
      %v5099 = vld [vmem:[%s4521 + $0x58] sm:$0xf]
      %v5100 = vld [vmem:[%s4521 + $0x5c] sm:$0x1]
      %v5101 = vld [vmem:[%s4521 + $0x60] sm:$0xf]
      %v5102 = vld [vmem:[%s4521 + $0x64] sm:$0xf]
      %v5103 = vld [vmem:[%s4521 + $0x68] sm:$0x1]
      %v5104 = vld [vmem:[%s4521 + $0x6c] sm:$0xf]
      %v5105 = vld [vmem:[%s4521 + $0x70] sm:$0xf]
      %v5106 = vld [vmem:[%s4521 + $0x74] sm:$0x1]
      %v5107 = vld [vmem:[%s4521 + $0x78] sm:$0xf]
      %v5108 = vld [vmem:[%s4521 + $0x7c] sm:$0xf]
      %v5109 = vld [vmem:[%s4521 + $0x80] sm:$0x1]
      %v5110 = vld [vmem:[%s4521 + $0x84] sm:$0xf]
      %v5111 = vld [vmem:[%s4521 + $0x88] sm:$0xf]
      %v5112 = vld [vmem:[%s4521 + $0x8c] sm:$0x1]
      %v5113 = vld [vmem:[%s4521 + $0x90] sm:$0xf]
      %v5114 = vld [vmem:[%s4521 + $0x94] sm:$0xf]
      %v5115 = vld [vmem:[%s4521 + $0x98] sm:$0x1]
      %v5116 = vld [vmem:[%s4521 + $0x9c] sm:$0xf]
      %v5117 = vld [vmem:[%s4521 + $0xa0] sm:$0xf]
      %v5118 = vld [vmem:[%s4521 + $0xa4] sm:$0x1]
      %v5119 = vld [vmem:[%s4521 + $0xa8] sm:$0xf]
      %v5120 = vld [vmem:[%s4521 + $0xac] sm:$0xf]
      %v5121 = vld [vmem:[%s4521 + $0xb0] sm:$0x1]
      %v5122 = vld [vmem:[%s4521 + $0xb4] sm:$0xf]
      %v5123 = vld [vmem:[%s4521 + $0xb8] sm:$0xf]
      %v5124 = vld [vmem:[%s4521 + $0xbc] sm:$0x1]
      %v5126 = vshrl.u32 %v5077, 16
      %v5128 = vrot.slane %v5126, 4
      %v5129 = vshll.u32 %v5077, 16
      %v5131 = vrot.slane %v5129, 5
      %v5132 = vor.u32 %v5128, %v5131
      %v5133 = vrot.slane %v5132, 4
      %v5135 = vshll.u32 %v5078, 16
      %v5137 = vrot.slane %v5135, 5
      %v5138 = vsel %vm759, %v5133, %v5137
      %v5139 = vshrl.u32 %v5078, 16
      %v5141 = vrot.slane %v5139, 4
      %v5142 = vor.u32 %v5141, %v5137
      %v5143 = vrot.slane %v5142, 4
      %v5145 = vshll.u32 %v5079, 16
      %v5147 = vrot.slane %v5145, 5
      %v5148 = vsel %vm759, %v5143, %v5147
      %v5150 = vshrl.u32 %v5080, 16
      %v5152 = vrot.slane %v5150, 4
      %v5153 = vshll.u32 %v5080, 16
      %v5155 = vrot.slane %v5153, 5
      %v5156 = vor.u32 %v5152, %v5155
      %v5157 = vrot.slane %v5156, 4
      %v5159 = vshll.u32 %v5081, 16
      %v5161 = vrot.slane %v5159, 5
      %v5162 = vsel %vm759, %v5157, %v5161
      %v5163 = vshrl.u32 %v5081, 16
      %v5165 = vrot.slane %v5163, 4
      %v5166 = vor.u32 %v5165, %v5161
      %v5167 = vrot.slane %v5166, 4
      %v5169 = vshll.u32 %v5082, 16
      %v5171 = vrot.slane %v5169, 5
      %v5172 = vsel %vm759, %v5167, %v5171
      %v5174 = vshrl.u32 %v5083, 16
      %v5176 = vrot.slane %v5174, 4
      %v5177 = vshll.u32 %v5083, 16
      %v5179 = vrot.slane %v5177, 5
      %v5180 = vor.u32 %v5176, %v5179
      %v5181 = vrot.slane %v5180, 4
      %v5183 = vshll.u32 %v5084, 16
      %v5185 = vrot.slane %v5183, 5
      %v5186 = vsel %vm759, %v5181, %v5185
      %v5187 = vshrl.u32 %v5084, 16
      %v5189 = vrot.slane %v5187, 4
      %v5190 = vor.u32 %v5189, %v5185
      %v5191 = vrot.slane %v5190, 4
      %v5193 = vshll.u32 %v5085, 16
      %v5195 = vrot.slane %v5193, 5
      %v5196 = vsel %vm759, %v5191, %v5195
      %v5198 = vshrl.u32 %v5086, 16
      %v5200 = vrot.slane %v5198, 4
      %v5201 = vshll.u32 %v5086, 16
      %v5203 = vrot.slane %v5201, 5
      %v5204 = vor.u32 %v5200, %v5203
      %v5205 = vrot.slane %v5204, 4
      %v5207 = vshll.u32 %v5087, 16
      %v5209 = vrot.slane %v5207, 5
      %v5210 = vsel %vm759, %v5205, %v5209
      %v5211 = vshrl.u32 %v5087, 16
      %v5213 = vrot.slane %v5211, 4
      %v5214 = vor.u32 %v5213, %v5209
      %v5215 = vrot.slane %v5214, 4
      %v5217 = vshll.u32 %v5088, 16
      %v5219 = vrot.slane %v5217, 5
      %v5220 = vsel %vm759, %v5215, %v5219
      %v5222 = vshrl.u32 %v5089, 16
      %v5224 = vrot.slane %v5222, 4
      %v5225 = vshll.u32 %v5089, 16
      %v5227 = vrot.slane %v5225, 5
      %v5228 = vor.u32 %v5224, %v5227
      %v5229 = vrot.slane %v5228, 4
      %v5231 = vshll.u32 %v5090, 16
      %v5233 = vrot.slane %v5231, 5
      %v5234 = vsel %vm759, %v5229, %v5233
      %v5235 = vshrl.u32 %v5090, 16
      %v5237 = vrot.slane %v5235, 4
      %v5238 = vor.u32 %v5237, %v5233
      %v5239 = vrot.slane %v5238, 4
      %v5241 = vshll.u32 %v5091, 16
      %v5243 = vrot.slane %v5241, 5
      %v5244 = vsel %vm759, %v5239, %v5243
      %v5246 = vshrl.u32 %v5092, 16
      %v5248 = vrot.slane %v5246, 4
      %v5249 = vshll.u32 %v5092, 16
      %v5251 = vrot.slane %v5249, 5
      %v5252 = vor.u32 %v5248, %v5251
      %v5253 = vrot.slane %v5252, 4
      %v5255 = vshll.u32 %v5093, 16
      %v5257 = vrot.slane %v5255, 5
      %v5258 = vsel %vm759, %v5253, %v5257
      %v5259 = vshrl.u32 %v5093, 16
      %v5261 = vrot.slane %v5259, 4
      %v5262 = vor.u32 %v5261, %v5257
      %v5263 = vrot.slane %v5262, 4
      %v5265 = vshll.u32 %v5094, 16
      %v5267 = vrot.slane %v5265, 5
      %v5268 = vsel %vm759, %v5263, %v5267
      %v5270 = vshrl.u32 %v5095, 16
      %v5272 = vrot.slane %v5270, 4
      %v5273 = vshll.u32 %v5095, 16
      %v5275 = vrot.slane %v5273, 5
      %v5276 = vor.u32 %v5272, %v5275
      %v5277 = vrot.slane %v5276, 4
      %v5279 = vshll.u32 %v5096, 16
      %v5281 = vrot.slane %v5279, 5
      %v5282 = vsel %vm759, %v5277, %v5281
      %v5283 = vshrl.u32 %v5096, 16
      %v5285 = vrot.slane %v5283, 4
      %v5286 = vor.u32 %v5285, %v5281
      %v5287 = vrot.slane %v5286, 4
      %v5289 = vshll.u32 %v5097, 16
      %v5291 = vrot.slane %v5289, 5
      %v5292 = vsel %vm759, %v5287, %v5291
      %v5294 = vshrl.u32 %v5098, 16
      %v5296 = vrot.slane %v5294, 4
      %v5297 = vshll.u32 %v5098, 16
      %v5299 = vrot.slane %v5297, 5
      %v5300 = vor.u32 %v5296, %v5299
      %v5301 = vrot.slane %v5300, 4
      %v5303 = vshll.u32 %v5099, 16
      %v5305 = vrot.slane %v5303, 5
      %v5306 = vsel %vm759, %v5301, %v5305
      %v5307 = vshrl.u32 %v5099, 16
      %v5309 = vrot.slane %v5307, 4
      %v5310 = vor.u32 %v5309, %v5305
      %v5311 = vrot.slane %v5310, 4
      %v5313 = vshll.u32 %v5100, 16
      %v5315 = vrot.slane %v5313, 5
      %v5316 = vsel %vm759, %v5311, %v5315
      %v5318 = vshrl.u32 %v5101, 16
      %v5320 = vrot.slane %v5318, 4
      %v5321 = vshll.u32 %v5101, 16
      %v5323 = vrot.slane %v5321, 5
      %v5324 = vor.u32 %v5320, %v5323
      %v5325 = vrot.slane %v5324, 4
      %v5327 = vshll.u32 %v5102, 16
      %v5329 = vrot.slane %v5327, 5
      %v5330 = vsel %vm759, %v5325, %v5329
      %v5331 = vshrl.u32 %v5102, 16
      %v5333 = vrot.slane %v5331, 4
      %v5334 = vor.u32 %v5333, %v5329
      %v5335 = vrot.slane %v5334, 4
      %v5337 = vshll.u32 %v5103, 16
      %v5339 = vrot.slane %v5337, 5
      %v5340 = vsel %vm759, %v5335, %v5339
      %v5342 = vshrl.u32 %v5104, 16
      %v5344 = vrot.slane %v5342, 4
      %v5345 = vshll.u32 %v5104, 16
      %v5347 = vrot.slane %v5345, 5
      %v5348 = vor.u32 %v5344, %v5347
      %v5349 = vrot.slane %v5348, 4
      %v5351 = vshll.u32 %v5105, 16
      %v5353 = vrot.slane %v5351, 5
      %v5354 = vsel %vm759, %v5349, %v5353
      %v5355 = vshrl.u32 %v5105, 16
      %v5357 = vrot.slane %v5355, 4
      %v5358 = vor.u32 %v5357, %v5353
      %v5359 = vrot.slane %v5358, 4
      %v5361 = vshll.u32 %v5106, 16
      %v5363 = vrot.slane %v5361, 5
      %v5364 = vsel %vm759, %v5359, %v5363
      %v5366 = vshrl.u32 %v5107, 16
      %v5368 = vrot.slane %v5366, 4
      %v5369 = vshll.u32 %v5107, 16
      %v5371 = vrot.slane %v5369, 5
      %v5372 = vor.u32 %v5368, %v5371
      %v5373 = vrot.slane %v5372, 4
      %v5375 = vshll.u32 %v5108, 16
      %v5377 = vrot.slane %v5375, 5
      %v5378 = vsel %vm759, %v5373, %v5377
      %v5379 = vshrl.u32 %v5108, 16
      %v5381 = vrot.slane %v5379, 4
      %v5382 = vor.u32 %v5381, %v5377
      %v5383 = vrot.slane %v5382, 4
      %v5385 = vshll.u32 %v5109, 16
      %v5387 = vrot.slane %v5385, 5
      %v5388 = vsel %vm759, %v5383, %v5387
      %v5390 = vshrl.u32 %v5110, 16
      %v5392 = vrot.slane %v5390, 4
      %v5393 = vshll.u32 %v5110, 16
      %v5395 = vrot.slane %v5393, 5
      %v5396 = vor.u32 %v5392, %v5395
      %v5397 = vrot.slane %v5396, 4
      %v5399 = vshll.u32 %v5111, 16
      %v5401 = vrot.slane %v5399, 5
      %v5402 = vsel %vm759, %v5397, %v5401
      %v5403 = vshrl.u32 %v5111, 16
      %v5405 = vrot.slane %v5403, 4
      %v5406 = vor.u32 %v5405, %v5401
      %v5407 = vrot.slane %v5406, 4
      %v5409 = vshll.u32 %v5112, 16
      %v5411 = vrot.slane %v5409, 5
      %v5412 = vsel %vm759, %v5407, %v5411
      %v5414 = vshrl.u32 %v5113, 16
      %v5416 = vrot.slane %v5414, 4
      %v5417 = vshll.u32 %v5113, 16
      %v5419 = vrot.slane %v5417, 5
      %v5420 = vor.u32 %v5416, %v5419
      %v5421 = vrot.slane %v5420, 4
      %v5423 = vshll.u32 %v5114, 16
      %v5425 = vrot.slane %v5423, 5
      %v5426 = vsel %vm759, %v5421, %v5425
      %v5427 = vshrl.u32 %v5114, 16
      %v5429 = vrot.slane %v5427, 4
      %v5430 = vor.u32 %v5429, %v5425
      %v5431 = vrot.slane %v5430, 4
      %v5433 = vshll.u32 %v5115, 16
      %v5435 = vrot.slane %v5433, 5
      %v5436 = vsel %vm759, %v5431, %v5435
      %v5438 = vshrl.u32 %v5116, 16
      %v5440 = vrot.slane %v5438, 4
      %v5441 = vshll.u32 %v5116, 16
      %v5443 = vrot.slane %v5441, 5
      %v5444 = vor.u32 %v5440, %v5443
      %v5445 = vrot.slane %v5444, 4
      %v5447 = vshll.u32 %v5117, 16
      %v5449 = vrot.slane %v5447, 5
      %v5450 = vsel %vm759, %v5445, %v5449
      %v5451 = vshrl.u32 %v5117, 16
      %v5453 = vrot.slane %v5451, 4
      %v5454 = vor.u32 %v5453, %v5449
      %v5455 = vrot.slane %v5454, 4
      %v5457 = vshll.u32 %v5118, 16
      %v5459 = vrot.slane %v5457, 5
      %v5460 = vsel %vm759, %v5455, %v5459
      %v5462 = vshrl.u32 %v5119, 16
      %v5464 = vrot.slane %v5462, 4
      %v5465 = vshll.u32 %v5119, 16
      %v5467 = vrot.slane %v5465, 5
      %v5468 = vor.u32 %v5464, %v5467
      %v5469 = vrot.slane %v5468, 4
      %v5471 = vshll.u32 %v5120, 16
      %v5473 = vrot.slane %v5471, 5
      %v5474 = vsel %vm759, %v5469, %v5473
      %v5475 = vshrl.u32 %v5120, 16
      %v5477 = vrot.slane %v5475, 4
      %v5478 = vor.u32 %v5477, %v5473
      %v5479 = vrot.slane %v5478, 4
      %v5481 = vshll.u32 %v5121, 16
      %v5483 = vrot.slane %v5481, 5
      %v5484 = vsel %vm759, %v5479, %v5483
      %v5486 = vshrl.u32 %v5122, 16
      %v5488 = vrot.slane %v5486, 4
      %v5489 = vshll.u32 %v5122, 16
      %v5491 = vrot.slane %v5489, 5
      %v5492 = vor.u32 %v5488, %v5491
      %v5493 = vrot.slane %v5492, 4
      %v5495 = vshll.u32 %v5123, 16
      %v5497 = vrot.slane %v5495, 5
      %v5498 = vsel %vm759, %v5493, %v5497
      %v5499 = vshrl.u32 %v5123, 16
      %v5501 = vrot.slane %v5499, 4
      %v5502 = vor.u32 %v5501, %v5497
      %v5503 = vrot.slane %v5502, 4
      %v5505 = vshll.u32 %v5124, 16
      %v5507 = vrot.slane %v5505, 5
      %v5508 = vsel %vm759, %v5503, %v5507
      %s5509 = scalar_lea.vmem %s1, 224
      %v5510 = vld [vmem:[%s5509] sm:$0xff]
      %v5511 = vld [vmem:[%s5509 + $0x8] sm:$0xff]
      %v5512 = vld [vmem:[%s5509 + $0x10] sm:$0xff]
      %v5513 = vld [vmem:[%s5509 + $0x18] sm:$0xff]
      %v5514 = vunpack.c.l.b16 %v5138
      %v5515 = vunpack.c.l.b16 %v5148
      %v5516 = vunpack.c.l.b16 %v5162
      %v5517 = vunpack.c.l.b16 %v5172
      %v5518 = vunpack.c.l.b16 %v5186
      %v5519 = vunpack.c.l.b16 %v5196
      %v5520 = vunpack.c.l.b16 %v5210
      %v5521 = vunpack.c.l.b16 %v5220
      %v5522 = vunpack.c.l.b16 %v5234
      %v5523 = vunpack.c.l.b16 %v5244
      %v5524 = vunpack.c.l.b16 %v5258
      %v5525 = vunpack.c.l.b16 %v5268
      %v5526 = vunpack.c.l.b16 %v5282
      %v5527 = vunpack.c.l.b16 %v5292
      %v5528 = vunpack.c.l.b16 %v5306
      %v5529 = vunpack.c.l.b16 %v5316
      %v5530 = vunpack.c.l.b16 %v5330
      %v5531 = vunpack.c.l.b16 %v5340
      %v5532 = vunpack.c.l.b16 %v5354
      %v5533 = vunpack.c.l.b16 %v5364
      %v5534 = vunpack.c.l.b16 %v5378
      %v5535 = vunpack.c.l.b16 %v5388
      %v5536 = vunpack.c.l.b16 %v5402
      %v5537 = vunpack.c.l.b16 %v5412
      %v5538 = vunpack.c.l.b16 %v5426
      %v5539 = vunpack.c.l.b16 %v5436
      %v5540 = vunpack.c.l.b16 %v5450
      %v5541 = vunpack.c.l.b16 %v5460
      %v5542 = vunpack.c.l.b16 %v5474
      %v5543 = vunpack.c.l.b16 %v5484
      %v5544 = vunpack.c.l.b16 %v5498
      %v5545 = vunpack.c.l.b16 %v5508
      %v5546 = vpack.c.b16 %v5515, %v5514
      %v5547 = vpack.c.b16 %v5517, %v5516
      %v5548 = vpack.c.b16 %v5519, %v5518
      %v5549 = vpack.c.b16 %v5521, %v5520
      %v5550 = vpack.c.b16 %v5523, %v5522
      %v5551 = vpack.c.b16 %v5525, %v5524
      %v5552 = vpack.c.b16 %v5527, %v5526
      %v5553 = vpack.c.b16 %v5529, %v5528
      %v5554 = vpack.c.b16 %v5531, %v5530
      %v5555 = vpack.c.b16 %v5533, %v5532
      %v5556 = vpack.c.b16 %v5535, %v5534
      %v5557 = vpack.c.b16 %v5537, %v5536
      %v5558 = vpack.c.b16 %v5539, %v5538
      %v5559 = vpack.c.b16 %v5541, %v5540
      %v5560 = vpack.c.b16 %v5543, %v5542
      %v5561 = vpack.c.b16 %v5545, %v5544
      %v5566 = vunpack.c.l.b16 %v5510
      %v5567 = vunpack.c.h.b16 %v5510
      %v5568 = vunpack.c.l.b16 %v5511
      %v5569 = vunpack.c.h.b16 %v5511
      %v5570 = vunpack.c.l.b16 %v5512
      %v5571 = vunpack.c.h.b16 %v5512
      %v5572 = vunpack.c.l.b16 %v5513
      %v5573 = vunpack.c.h.b16 %v5513
      %v5574 = vpack.c.b16 %v5568, %v5566
      %v5575 = vpack.c.b16 %v5569, %v5567
      %v5576 = vpack.c.b16 %v5572, %v5570
      %v5577 = vpack.c.b16 %v5573, %v5571
      %v5583 = vsel %vm418, %v5546, 0
      %v5586 = vsel %vm418, %v5547, 0
      %v5589 = vsel %vm418, %v5548, 0
      %v5592 = vsel %vm418, %v5549, 0
      %v5595 = vsel %vm418, %v5550, 0
      %v5598 = vsel %vm418, %v5551, 0
      %v5601 = vsel %vm418, %v5552, 0
      %v5604 = vsel %vm418, %v5553, 0
      %v5607 = vsel %vm418, %v5554, 0
      %v5610 = vsel %vm418, %v5555, 0
      %v5613 = vsel %vm418, %v5556, 0
      %v5616 = vsel %vm418, %v5557, 0
      %v5619 = vsel %vm418, %v5558, 0
      %v5622 = vsel %vm418, %v5559, 0
      %v5625 = vsel %vm418, %v5560, 0
      %v5628 = vsel %vm418, %v5561, 0
      %5630 = vmatpush.bf16.msra.mxu0 0
      %5631 = vmatpush.bf16.msra.mxu0 0
      %5632 = vmatpush.bf16.msra.mxu0 0
      %5633 = vmatpush.bf16.msra.mxu0 0
      %5634 = vmatpush.bf16.msra.mxu0 0
      %5635 = vmatpush.bf16.msra.mxu0 0
      %5636 = vmatpush.bf16.msra.mxu0 %v5576
      %5637 = vmatpush.bf16.msra.mxu0 %v5574
      %5638 = vmatmul.bf16.gmra.mxu0 %v5583
      %v5639 = vpop.f32.mrf.mxu0
      %v5640 = vadd.f32 0.0, %v5639
      %v5641 = vpop.f32.mrf.mxu0
      %v5642 = vadd.f32 0.0, %v5641
      %5643 = vmatmul.bf16.gmra.mxu0 %v5586
      %v5644 = vpop.f32.mrf.mxu0
      %v5645 = vadd.f32 0.0, %v5644
      %v5646 = vpop.f32.mrf.mxu0
      %v5647 = vadd.f32 0.0, %v5646
      %5648 = vmatmul.bf16.gmra.mxu0 %v5589
      %v5649 = vpop.f32.mrf.mxu0
      %v5650 = vadd.f32 0.0, %v5649
      %v5651 = vpop.f32.mrf.mxu0
      %v5652 = vadd.f32 0.0, %v5651
      %5653 = vmatmul.bf16.gmra.mxu0 %v5592
      %v5654 = vpop.f32.mrf.mxu0
      %v5655 = vadd.f32 0.0, %v5654
      %v5656 = vpop.f32.mrf.mxu0
      %v5657 = vadd.f32 0.0, %v5656
      %5658 = vmatmul.bf16.gmra.mxu0 %v5595
      %v5659 = vpop.f32.mrf.mxu0
      %v5660 = vadd.f32 0.0, %v5659
      %v5661 = vpop.f32.mrf.mxu0
      %v5662 = vadd.f32 0.0, %v5661
      %5663 = vmatmul.bf16.gmra.mxu0 %v5598
      %v5664 = vpop.f32.mrf.mxu0
      %v5665 = vadd.f32 0.0, %v5664
      %v5666 = vpop.f32.mrf.mxu0
      %v5667 = vadd.f32 0.0, %v5666
      %5668 = vmatmul.bf16.gmra.mxu0 %v5601
      %v5669 = vpop.f32.mrf.mxu0
      %v5670 = vadd.f32 0.0, %v5669
      %v5671 = vpop.f32.mrf.mxu0
      %v5672 = vadd.f32 0.0, %v5671
      %5673 = vmatmul.bf16.gmra.mxu0 %v5604
      %v5674 = vpop.f32.mrf.mxu0
      %v5675 = vadd.f32 0.0, %v5674
      %v5676 = vpop.f32.mrf.mxu0
      %v5677 = vadd.f32 0.0, %v5676
      %5678 = vmatmul.bf16.gmra.mxu0 %v5607
      %v5679 = vpop.f32.mrf.mxu0
      %v5680 = vadd.f32 0.0, %v5679
      %v5681 = vpop.f32.mrf.mxu0
      %v5682 = vadd.f32 0.0, %v5681
      %5683 = vmatmul.bf16.gmra.mxu0 %v5610
      %v5684 = vpop.f32.mrf.mxu0
      %v5685 = vadd.f32 0.0, %v5684
      %v5686 = vpop.f32.mrf.mxu0
      %v5687 = vadd.f32 0.0, %v5686
      %5688 = vmatmul.bf16.gmra.mxu0 %v5613
      %v5689 = vpop.f32.mrf.mxu0
      %v5690 = vadd.f32 0.0, %v5689
      %v5691 = vpop.f32.mrf.mxu0
      %v5692 = vadd.f32 0.0, %v5691
      %5693 = vmatmul.bf16.gmra.mxu0 %v5616
      %v5694 = vpop.f32.mrf.mxu0
      %v5695 = vadd.f32 0.0, %v5694
      %v5696 = vpop.f32.mrf.mxu0
      %v5697 = vadd.f32 0.0, %v5696
      %5698 = vmatmul.bf16.gmra.mxu0 %v5619
      %v5699 = vpop.f32.mrf.mxu0
      %v5700 = vadd.f32 0.0, %v5699
      %v5701 = vpop.f32.mrf.mxu0
      %v5702 = vadd.f32 0.0, %v5701
      %5703 = vmatmul.bf16.gmra.mxu0 %v5622
      %v5704 = vpop.f32.mrf.mxu0
      %v5705 = vadd.f32 0.0, %v5704
      %v5706 = vpop.f32.mrf.mxu0
      %v5707 = vadd.f32 0.0, %v5706
      %5708 = vmatmul.bf16.gmra.mxu0 %v5625
      %v5709 = vpop.f32.mrf.mxu0
      %v5710 = vadd.f32 0.0, %v5709
      %v5711 = vpop.f32.mrf.mxu0
      %v5712 = vadd.f32 0.0, %v5711
      %5713 = vmatmul.bf16.gmra.mxu0 %v5628
      %v5714 = vpop.f32.mrf.mxu0
      %v5715 = vadd.f32 0.0, %v5714
      %v5716 = vpop.f32.mrf.mxu0
      %v5717 = vadd.f32 0.0, %v5716
      %5718 = vdwg.mxu0
      %5719 = vmatpush.bf16.msra.mxu0 0
      %5720 = vmatpush.bf16.msra.mxu0 0
      %5721 = vmatpush.bf16.msra.mxu0 0
      %5722 = vmatpush.bf16.msra.mxu0 0
      %5723 = vmatpush.bf16.msra.mxu0 0
      %5724 = vmatpush.bf16.msra.mxu0 0
      %5725 = vmatpush.bf16.msra.mxu0 %v5577
      %5726 = vmatpush.bf16.msra.mxu0 %v5575
      %5727 = vmatmul.bf16.gmra.mxu0 %v5583
      %v5728 = vpop.f32.mrf.mxu0
      %v5729 = vadd.f32 0.0, %v5728
      %v5730 = vpop.f32.mrf.mxu0
      %v5731 = vadd.f32 0.0, %v5730
      %5732 = vmatmul.bf16.gmra.mxu0 %v5586
      %v5733 = vpop.f32.mrf.mxu0
      %v5734 = vadd.f32 0.0, %v5733
      %v5735 = vpop.f32.mrf.mxu0
      %v5736 = vadd.f32 0.0, %v5735
      %5737 = vmatmul.bf16.gmra.mxu0 %v5589
      %v5738 = vpop.f32.mrf.mxu0
      %v5739 = vadd.f32 0.0, %v5738
      %v5740 = vpop.f32.mrf.mxu0
      %v5741 = vadd.f32 0.0, %v5740
      %5742 = vmatmul.bf16.gmra.mxu0 %v5592
      %v5743 = vpop.f32.mrf.mxu0
      %v5744 = vadd.f32 0.0, %v5743
      %v5745 = vpop.f32.mrf.mxu0
      %v5746 = vadd.f32 0.0, %v5745
      %5747 = vmatmul.bf16.gmra.mxu0 %v5595
      %v5748 = vpop.f32.mrf.mxu0
      %v5749 = vadd.f32 0.0, %v5748
      %v5750 = vpop.f32.mrf.mxu0
      %v5751 = vadd.f32 0.0, %v5750
      %5752 = vmatmul.bf16.gmra.mxu0 %v5598
      %v5753 = vpop.f32.mrf.mxu0
      %v5754 = vadd.f32 0.0, %v5753
      %v5755 = vpop.f32.mrf.mxu0
      %v5756 = vadd.f32 0.0, %v5755
      %5757 = vmatmul.bf16.gmra.mxu0 %v5601
      %v5758 = vpop.f32.mrf.mxu0
      %v5759 = vadd.f32 0.0, %v5758
      %v5760 = vpop.f32.mrf.mxu0
      %v5761 = vadd.f32 0.0, %v5760
      %5762 = vmatmul.bf16.gmra.mxu0 %v5604
      %v5763 = vpop.f32.mrf.mxu0
      %v5764 = vadd.f32 0.0, %v5763
      %v5765 = vpop.f32.mrf.mxu0
      %v5766 = vadd.f32 0.0, %v5765
      %5767 = vmatmul.bf16.gmra.mxu0 %v5607
      %v5768 = vpop.f32.mrf.mxu0
      %v5769 = vadd.f32 0.0, %v5768
      %v5770 = vpop.f32.mrf.mxu0
      %v5771 = vadd.f32 0.0, %v5770
      %5772 = vmatmul.bf16.gmra.mxu0 %v5610
      %v5773 = vpop.f32.mrf.mxu0
      %v5774 = vadd.f32 0.0, %v5773
      %v5775 = vpop.f32.mrf.mxu0
      %v5776 = vadd.f32 0.0, %v5775
      %5777 = vmatmul.bf16.gmra.mxu0 %v5613
      %v5778 = vpop.f32.mrf.mxu0
      %v5779 = vadd.f32 0.0, %v5778
      %v5780 = vpop.f32.mrf.mxu0
      %v5781 = vadd.f32 0.0, %v5780
      %5782 = vmatmul.bf16.gmra.mxu0 %v5616
      %v5783 = vpop.f32.mrf.mxu0
      %v5784 = vadd.f32 0.0, %v5783
      %v5785 = vpop.f32.mrf.mxu0
      %v5786 = vadd.f32 0.0, %v5785
      %5787 = vmatmul.bf16.gmra.mxu0 %v5619
      %v5788 = vpop.f32.mrf.mxu0
      %v5789 = vadd.f32 0.0, %v5788
      %v5790 = vpop.f32.mrf.mxu0
      %v5791 = vadd.f32 0.0, %v5790
      %5792 = vmatmul.bf16.gmra.mxu0 %v5622
      %v5793 = vpop.f32.mrf.mxu0
      %v5794 = vadd.f32 0.0, %v5793
      %v5795 = vpop.f32.mrf.mxu0
      %v5796 = vadd.f32 0.0, %v5795
      %5797 = vmatmul.bf16.gmra.mxu0 %v5625
      %v5798 = vpop.f32.mrf.mxu0
      %v5799 = vadd.f32 0.0, %v5798
      %v5800 = vpop.f32.mrf.mxu0
      %v5801 = vadd.f32 0.0, %v5800
      %5802 = vmatmul.bf16.gmra.mxu0 %v5628
      %v5803 = vpop.f32.mrf.mxu0
      %v5804 = vadd.f32 0.0, %v5803
      %v5805 = vpop.f32.mrf.mxu0
      %v5806 = vadd.f32 0.0, %v5805
      %5807 = vdwg.mxu0
      %v5808 = vld [vmem:[#allocation2] sm:$0xff]
      %v5809 = vld [vmem:[#allocation2 + $0x8] sm:$0xff]
      %v5810 = vld [vmem:[#allocation2 + $0x10] sm:$0xff]
      %v5811 = vld [vmem:[#allocation2 + $0x18] sm:$0xff]
      %v5812 = vld [vmem:[#allocation2 + $0x20] sm:$0xff]
      %v5813 = vld [vmem:[#allocation2 + $0x28] sm:$0xff]
      %v5814 = vld [vmem:[#allocation2 + $0x30] sm:$0xff]
      %v5815 = vld [vmem:[#allocation2 + $0x38] sm:$0xff]
      %v5816 = vld [vmem:[#allocation2 + $0x40] sm:$0xff]
      %v5817 = vld [vmem:[#allocation2 + $0x48] sm:$0xff]
      %v5818 = vld [vmem:[#allocation2 + $0x50] sm:$0xff]
      %v5819 = vld [vmem:[#allocation2 + $0x58] sm:$0xff]
      %v5820 = vld [vmem:[#allocation2 + $0x60] sm:$0xff]
      %v5821 = vld [vmem:[#allocation2 + $0x68] sm:$0xff]
      %v5822 = vld [vmem:[#allocation2 + $0x70] sm:$0xff]
      %v5823 = vld [vmem:[#allocation2 + $0x78] sm:$0xff]
      %v5824 = vld [vmem:[#allocation2 + $0x80] sm:$0xff]
      %v5825 = vld [vmem:[#allocation2 + $0x88] sm:$0xff]
      %v5826 = vld [vmem:[#allocation2 + $0x90] sm:$0xff]
      %v5827 = vld [vmem:[#allocation2 + $0x98] sm:$0xff]
      %v5828 = vld [vmem:[#allocation2 + $0xa0] sm:$0xff]
      %v5829 = vld [vmem:[#allocation2 + $0xa8] sm:$0xff]
      %v5830 = vld [vmem:[#allocation2 + $0xb0] sm:$0xff]
      %v5831 = vld [vmem:[#allocation2 + $0xb8] sm:$0xff]
      %v5832 = vld [vmem:[#allocation2 + $0xc0] sm:$0xff]
      %v5833 = vld [vmem:[#allocation2 + $0xc8] sm:$0xff]
      %v5834 = vld [vmem:[#allocation2 + $0xd0] sm:$0xff]
      %v5835 = vld [vmem:[#allocation2 + $0xd8] sm:$0xff]
      %v5836 = vld [vmem:[#allocation2 + $0xe0] sm:$0xff]
      %v5837 = vld [vmem:[#allocation2 + $0xe8] sm:$0xff]
      %v5838 = vld [vmem:[#allocation2 + $0xf0] sm:$0xff]
      %v5839 = vld [vmem:[#allocation2 + $0xf8] sm:$0xff]
      %v5840 = vld [vmem:[#allocation2 + $0x100] sm:$0xff]
      %v5841 = vld [vmem:[#allocation2 + $0x108] sm:$0xff]
      %v5842 = vld [vmem:[#allocation2 + $0x110] sm:$0xff]
      %v5843 = vld [vmem:[#allocation2 + $0x118] sm:$0xff]
      %v5844 = vld [vmem:[#allocation2 + $0x120] sm:$0xff]
      %v5845 = vld [vmem:[#allocation2 + $0x128] sm:$0xff]
      %v5846 = vld [vmem:[#allocation2 + $0x130] sm:$0xff]
      %v5847 = vld [vmem:[#allocation2 + $0x138] sm:$0xff]
      %v5848 = vld [vmem:[#allocation2 + $0x140] sm:$0xff]
      %v5849 = vld [vmem:[#allocation2 + $0x148] sm:$0xff]
      %v5850 = vld [vmem:[#allocation2 + $0x150] sm:$0xff]
      %v5851 = vld [vmem:[#allocation2 + $0x158] sm:$0xff]
      %v5852 = vld [vmem:[#allocation2 + $0x160] sm:$0xff]
      %v5853 = vld [vmem:[#allocation2 + $0x168] sm:$0xff]
      %v5854 = vld [vmem:[#allocation2 + $0x170] sm:$0xff]
      %v5855 = vld [vmem:[#allocation2 + $0x178] sm:$0xff]
      %v5856 = vld [vmem:[#allocation2 + $0x180] sm:$0xff]
      %v5857 = vld [vmem:[#allocation2 + $0x188] sm:$0xff]
      %v5858 = vld [vmem:[#allocation2 + $0x190] sm:$0xff]
      %v5859 = vld [vmem:[#allocation2 + $0x198] sm:$0xff]
      %v5860 = vld [vmem:[#allocation2 + $0x1a0] sm:$0xff]
      %v5861 = vld [vmem:[#allocation2 + $0x1a8] sm:$0xff]
      %v5862 = vld [vmem:[#allocation2 + $0x1b0] sm:$0xff]
      %v5863 = vld [vmem:[#allocation2 + $0x1b8] sm:$0xff]
      %v5864 = vld [vmem:[#allocation2 + $0x1c0] sm:$0xff]
      %v5865 = vld [vmem:[#allocation2 + $0x1c8] sm:$0xff]
      %v5866 = vld [vmem:[#allocation2 + $0x1d0] sm:$0xff]
      %v5867 = vld [vmem:[#allocation2 + $0x1d8] sm:$0xff]
      %v5868 = vld [vmem:[#allocation2 + $0x1e0] sm:$0xff]
      %v5869 = vld [vmem:[#allocation2 + $0x1e8] sm:$0xff]
      %v5870 = vld [vmem:[#allocation2 + $0x1f0] sm:$0xff]
      %v5871 = vld [vmem:[#allocation2 + $0x1f8] sm:$0xff]
      %v5872 = vadd.f32 %v5808, %v5640
      %v5873 = vadd.f32 %v5809, %v5729
      %v5874 = vadd.f32 %v5810, %v5642
      %v5875 = vadd.f32 %v5811, %v5731
      %v5876 = vadd.f32 %v5812, %v5645
      %v5877 = vadd.f32 %v5813, %v5734
      %v5878 = vadd.f32 %v5814, %v5647
      %v5879 = vadd.f32 %v5815, %v5736
      %v5880 = vadd.f32 %v5816, %v5650
      %v5881 = vadd.f32 %v5817, %v5739
      %v5882 = vadd.f32 %v5818, %v5652
      %v5883 = vadd.f32 %v5819, %v5741
      %v5884 = vadd.f32 %v5820, %v5655
      %v5885 = vadd.f32 %v5821, %v5744
      %v5886 = vadd.f32 %v5822, %v5657
      %v5887 = vadd.f32 %v5823, %v5746
      %v5888 = vadd.f32 %v5824, %v5660
      %v5889 = vadd.f32 %v5825, %v5749
      %v5890 = vadd.f32 %v5826, %v5662
      %v5891 = vadd.f32 %v5827, %v5751
      %v5892 = vadd.f32 %v5828, %v5665
      %v5893 = vadd.f32 %v5829, %v5754
      %v5894 = vadd.f32 %v5830, %v5667
      %v5895 = vadd.f32 %v5831, %v5756
      %v5896 = vadd.f32 %v5832, %v5670
      %v5897 = vadd.f32 %v5833, %v5759
      %v5898 = vadd.f32 %v5834, %v5672
      %v5899 = vadd.f32 %v5835, %v5761
      %v5900 = vadd.f32 %v5836, %v5675
      %v5901 = vadd.f32 %v5837, %v5764
      %v5902 = vadd.f32 %v5838, %v5677
      %v5903 = vadd.f32 %v5839, %v5766
      %v5904 = vadd.f32 %v5840, %v5680
      %v5905 = vadd.f32 %v5841, %v5769
      %v5906 = vadd.f32 %v5842, %v5682
      %v5907 = vadd.f32 %v5843, %v5771
      %v5908 = vadd.f32 %v5844, %v5685
      %v5909 = vadd.f32 %v5845, %v5774
      %v5910 = vadd.f32 %v5846, %v5687
      %v5911 = vadd.f32 %v5847, %v5776
      %v5912 = vadd.f32 %v5848, %v5690
      %v5913 = vadd.f32 %v5849, %v5779
      %v5914 = vadd.f32 %v5850, %v5692
      %v5915 = vadd.f32 %v5851, %v5781
      %v5916 = vadd.f32 %v5852, %v5695
      %v5917 = vadd.f32 %v5853, %v5784
      %v5918 = vadd.f32 %v5854, %v5697
      %v5919 = vadd.f32 %v5855, %v5786
      %v5920 = vadd.f32 %v5856, %v5700
      %v5921 = vadd.f32 %v5857, %v5789
      %v5922 = vadd.f32 %v5858, %v5702
      %v5923 = vadd.f32 %v5859, %v5791
      %v5924 = vadd.f32 %v5860, %v5705
      %v5925 = vadd.f32 %v5861, %v5794
      %v5926 = vadd.f32 %v5862, %v5707
      %v5927 = vadd.f32 %v5863, %v5796
      %v5928 = vadd.f32 %v5864, %v5710
      %v5929 = vadd.f32 %v5865, %v5799
      %v5930 = vadd.f32 %v5866, %v5712
      %v5931 = vadd.f32 %v5867, %v5801
      %v5932 = vadd.f32 %v5868, %v5715
      %v5933 = vadd.f32 %v5869, %v5804
      %v5934 = vadd.f32 %v5870, %v5717
      %v5935 = vadd.f32 %v5871, %v5806
      %5936 = vst [vmem:[#allocation2] sm:$0xff] %v5872
      %5937 = vst [vmem:[#allocation2 + $0x8] sm:$0xff] %v5873
      %5938 = vst [vmem:[#allocation2 + $0x10] sm:$0xff] %v5874
      %5939 = vst [vmem:[#allocation2 + $0x18] sm:$0xff] %v5875
      %5940 = vst [vmem:[#allocation2 + $0x20] sm:$0xff] %v5876
      %5941 = vst [vmem:[#allocation2 + $0x28] sm:$0xff] %v5877
      %5942 = vst [vmem:[#allocation2 + $0x30] sm:$0xff] %v5878
      %5943 = vst [vmem:[#allocation2 + $0x38] sm:$0xff] %v5879
      %5944 = vst [vmem:[#allocation2 + $0x40] sm:$0xff] %v5880
      %5945 = vst [vmem:[#allocation2 + $0x48] sm:$0xff] %v5881
      %5946 = vst [vmem:[#allocation2 + $0x50] sm:$0xff] %v5882
      %5947 = vst [vmem:[#allocation2 + $0x58] sm:$0xff] %v5883
      %5948 = vst [vmem:[#allocation2 + $0x60] sm:$0xff] %v5884
      %5949 = vst [vmem:[#allocation2 + $0x68] sm:$0xff] %v5885
      %5950 = vst [vmem:[#allocation2 + $0x70] sm:$0xff] %v5886
      %5951 = vst [vmem:[#allocation2 + $0x78] sm:$0xff] %v5887
      %5952 = vst [vmem:[#allocation2 + $0x80] sm:$0xff] %v5888
      %5953 = vst [vmem:[#allocation2 + $0x88] sm:$0xff] %v5889
      %5954 = vst [vmem:[#allocation2 + $0x90] sm:$0xff] %v5890
      %5955 = vst [vmem:[#allocation2 + $0x98] sm:$0xff] %v5891
      %5956 = vst [vmem:[#allocation2 + $0xa0] sm:$0xff] %v5892
      %5957 = vst [vmem:[#allocation2 + $0xa8] sm:$0xff] %v5893
      %5958 = vst [vmem:[#allocation2 + $0xb0] sm:$0xff] %v5894
      %5959 = vst [vmem:[#allocation2 + $0xb8] sm:$0xff] %v5895
      %5960 = vst [vmem:[#allocation2 + $0xc0] sm:$0xff] %v5896
      %5961 = vst [vmem:[#allocation2 + $0xc8] sm:$0xff] %v5897
      %5962 = vst [vmem:[#allocation2 + $0xd0] sm:$0xff] %v5898
      %5963 = vst [vmem:[#allocation2 + $0xd8] sm:$0xff] %v5899
      %5964 = vst [vmem:[#allocation2 + $0xe0] sm:$0xff] %v5900
      %5965 = vst [vmem:[#allocation2 + $0xe8] sm:$0xff] %v5901
      %5966 = vst [vmem:[#allocation2 + $0xf0] sm:$0xff] %v5902
      %5967 = vst [vmem:[#allocation2 + $0xf8] sm:$0xff] %v5903
      %5968 = vst [vmem:[#allocation2 + $0x100] sm:$0xff] %v5904
      %5969 = vst [vmem:[#allocation2 + $0x108] sm:$0xff] %v5905
      %5970 = vst [vmem:[#allocation2 + $0x110] sm:$0xff] %v5906
      %5971 = vst [vmem:[#allocation2 + $0x118] sm:$0xff] %v5907
      %5972 = vst [vmem:[#allocation2 + $0x120] sm:$0xff] %v5908
      %5973 = vst [vmem:[#allocation2 + $0x128] sm:$0xff] %v5909
      %5974 = vst [vmem:[#allocation2 + $0x130] sm:$0xff] %v5910
      %5975 = vst [vmem:[#allocation2 + $0x138] sm:$0xff] %v5911
      %5976 = vst [vmem:[#allocation2 + $0x140] sm:$0xff] %v5912
      %5977 = vst [vmem:[#allocation2 + $0x148] sm:$0xff] %v5913
      %5978 = vst [vmem:[#allocation2 + $0x150] sm:$0xff] %v5914
      %5979 = vst [vmem:[#allocation2 + $0x158] sm:$0xff] %v5915
      %5980 = vst [vmem:[#allocation2 + $0x160] sm:$0xff] %v5916
      %5981 = vst [vmem:[#allocation2 + $0x168] sm:$0xff] %v5917
      %5982 = vst [vmem:[#allocation2 + $0x170] sm:$0xff] %v5918
      %5983 = vst [vmem:[#allocation2 + $0x178] sm:$0xff] %v5919
      %5984 = vst [vmem:[#allocation2 + $0x180] sm:$0xff] %v5920
      %5985 = vst [vmem:[#allocation2 + $0x188] sm:$0xff] %v5921
      %5986 = vst [vmem:[#allocation2 + $0x190] sm:$0xff] %v5922
      %5987 = vst [vmem:[#allocation2 + $0x198] sm:$0xff] %v5923
      %5988 = vst [vmem:[#allocation2 + $0x1a0] sm:$0xff] %v5924
      %5989 = vst [vmem:[#allocation2 + $0x1a8] sm:$0xff] %v5925
      %5990 = vst [vmem:[#allocation2 + $0x1b0] sm:$0xff] %v5926
      %5991 = vst [vmem:[#allocation2 + $0x1b8] sm:$0xff] %v5927
      %5992 = vst [vmem:[#allocation2 + $0x1c0] sm:$0xff] %v5928
      %5993 = vst [vmem:[#allocation2 + $0x1c8] sm:$0xff] %v5929
      %5994 = vst [vmem:[#allocation2 + $0x1d0] sm:$0xff] %v5930
      %5995 = vst [vmem:[#allocation2 + $0x1d8] sm:$0xff] %v5931
      %5996 = vst [vmem:[#allocation2 + $0x1e0] sm:$0xff] %v5932
      %5997 = vst [vmem:[#allocation2 + $0x1e8] sm:$0xff] %v5933
      %5998 = vst [vmem:[#allocation2 + $0x1f0] sm:$0xff] %v5934
      %5999 = vst [vmem:[#allocation2 + $0x1f8] sm:$0xff] %v5935
      %v6000 = vld [vmem:[%s4521] sm:$0xe]
      %v6001 = vld [vmem:[%s4521 + $0x4] sm:$0xf]
      %v6002 = vld [vmem:[%s4521 + $0x8] sm:$0x1]
      %v6003 = vld [vmem:[%s4521 + $0xc] sm:$0xe]
      %v6004 = vld [vmem:[%s4521 + $0x10] sm:$0xf]
      %v6005 = vld [vmem:[%s4521 + $0x14] sm:$0x1]
      %v6006 = vld [vmem:[%s4521 + $0x18] sm:$0xe]
      %v6007 = vld [vmem:[%s4521 + $0x1c] sm:$0xf]
      %v6008 = vld [vmem:[%s4521 + $0x20] sm:$0x1]
      %v6009 = vld [vmem:[%s4521 + $0x24] sm:$0xe]
      %v6010 = vld [vmem:[%s4521 + $0x28] sm:$0xf]
      %v6011 = vld [vmem:[%s4521 + $0x2c] sm:$0x1]
      %v6012 = vld [vmem:[%s4521 + $0x30] sm:$0xe]
      %v6013 = vld [vmem:[%s4521 + $0x34] sm:$0xf]
      %v6014 = vld [vmem:[%s4521 + $0x38] sm:$0x1]
      %v6015 = vld [vmem:[%s4521 + $0x3c] sm:$0xe]
      %v6016 = vld [vmem:[%s4521 + $0x40] sm:$0xf]
      %v6017 = vld [vmem:[%s4521 + $0x44] sm:$0x1]
      %v6018 = vld [vmem:[%s4521 + $0x48] sm:$0xe]
      %v6019 = vld [vmem:[%s4521 + $0x4c] sm:$0xf]
      %v6020 = vld [vmem:[%s4521 + $0x50] sm:$0x1]
      %v6021 = vld [vmem:[%s4521 + $0x54] sm:$0xe]
      %v6022 = vld [vmem:[%s4521 + $0x58] sm:$0xf]
      %v6023 = vld [vmem:[%s4521 + $0x5c] sm:$0x1]
      %v6024 = vld [vmem:[%s4521 + $0x60] sm:$0xe]
      %v6025 = vld [vmem:[%s4521 + $0x64] sm:$0xf]
      %v6026 = vld [vmem:[%s4521 + $0x68] sm:$0x1]
      %v6027 = vld [vmem:[%s4521 + $0x6c] sm:$0xe]
      %v6028 = vld [vmem:[%s4521 + $0x70] sm:$0xf]
      %v6029 = vld [vmem:[%s4521 + $0x74] sm:$0x1]
      %v6030 = vld [vmem:[%s4521 + $0x78] sm:$0xe]
      %v6031 = vld [vmem:[%s4521 + $0x7c] sm:$0xf]
      %v6032 = vld [vmem:[%s4521 + $0x80] sm:$0x1]
      %v6033 = vld [vmem:[%s4521 + $0x84] sm:$0xe]
      %v6034 = vld [vmem:[%s4521 + $0x88] sm:$0xf]
      %v6035 = vld [vmem:[%s4521 + $0x8c] sm:$0x1]
      %v6036 = vld [vmem:[%s4521 + $0x90] sm:$0xe]
      %v6037 = vld [vmem:[%s4521 + $0x94] sm:$0xf]
      %v6038 = vld [vmem:[%s4521 + $0x98] sm:$0x1]
      %v6039 = vld [vmem:[%s4521 + $0x9c] sm:$0xe]
      %v6040 = vld [vmem:[%s4521 + $0xa0] sm:$0xf]
      %v6041 = vld [vmem:[%s4521 + $0xa4] sm:$0x1]
      %v6042 = vld [vmem:[%s4521 + $0xa8] sm:$0xe]
      %v6043 = vld [vmem:[%s4521 + $0xac] sm:$0xf]
      %v6044 = vld [vmem:[%s4521 + $0xb0] sm:$0x1]
      %v6045 = vld [vmem:[%s4521 + $0xb4] sm:$0xe]
      %v6046 = vld [vmem:[%s4521 + $0xb8] sm:$0xf]
      %v6047 = vld [vmem:[%s4521 + $0xbc] sm:$0x1]
      %v6096 = vrot.slane %v6000, 5
      %v6097 = vrot.slane %v6096, 4
      %v6098 = vrot.slane %v6001, 5
      %v6099 = vsel %vm1733, %v6097, %v6098
      %v6100 = vrot.slane %v6098, 4
      %v6101 = vrot.slane %v6002, 5
      %v6102 = vsel %vm1733, %v6100, %v6101
      %v6103 = vrot.slane %v6003, 5
      %v6104 = vrot.slane %v6103, 4
      %v6105 = vrot.slane %v6004, 5
      %v6106 = vsel %vm1733, %v6104, %v6105
      %v6107 = vrot.slane %v6105, 4
      %v6108 = vrot.slane %v6005, 5
      %v6109 = vsel %vm1733, %v6107, %v6108
      %v6110 = vrot.slane %v6006, 5
      %v6111 = vrot.slane %v6110, 4
      %v6112 = vrot.slane %v6007, 5
      %v6113 = vsel %vm1733, %v6111, %v6112
      %v6114 = vrot.slane %v6112, 4
      %v6115 = vrot.slane %v6008, 5
      %v6116 = vsel %vm1733, %v6114, %v6115
      %v6117 = vrot.slane %v6009, 5
      %v6118 = vrot.slane %v6117, 4
      %v6119 = vrot.slane %v6010, 5
      %v6120 = vsel %vm1733, %v6118, %v6119
      %v6121 = vrot.slane %v6119, 4
      %v6122 = vrot.slane %v6011, 5
      %v6123 = vsel %vm1733, %v6121, %v6122
      %v6124 = vrot.slane %v6012, 5
      %v6125 = vrot.slane %v6124, 4
      %v6126 = vrot.slane %v6013, 5
      %v6127 = vsel %vm1733, %v6125, %v6126
      %v6128 = vrot.slane %v6126, 4
      %v6129 = vrot.slane %v6014, 5
      %v6130 = vsel %vm1733, %v6128, %v6129
      %v6131 = vrot.slane %v6015, 5
      %v6132 = vrot.slane %v6131, 4
      %v6133 = vrot.slane %v6016, 5
      %v6134 = vsel %vm1733, %v6132, %v6133
      %v6135 = vrot.slane %v6133, 4
      %v6136 = vrot.slane %v6017, 5
      %v6137 = vsel %vm1733, %v6135, %v6136
      %v6138 = vrot.slane %v6018, 5
      %v6139 = vrot.slane %v6138, 4
      %v6140 = vrot.slane %v6019, 5
      %v6141 = vsel %vm1733, %v6139, %v6140
      %v6142 = vrot.slane %v6140, 4
      %v6143 = vrot.slane %v6020, 5
      %v6144 = vsel %vm1733, %v6142, %v6143
      %v6145 = vrot.slane %v6021, 5
      %v6146 = vrot.slane %v6145, 4
      %v6147 = vrot.slane %v6022, 5
      %v6148 = vsel %vm1733, %v6146, %v6147
      %v6149 = vrot.slane %v6147, 4
      %v6150 = vrot.slane %v6023, 5
      %v6151 = vsel %vm1733, %v6149, %v6150
      %v6152 = vrot.slane %v6024, 5
      %v6153 = vrot.slane %v6152, 4
      %v6154 = vrot.slane %v6025, 5
      %v6155 = vsel %vm1733, %v6153, %v6154
      %v6156 = vrot.slane %v6154, 4
      %v6157 = vrot.slane %v6026, 5
      %v6158 = vsel %vm1733, %v6156, %v6157
      %v6159 = vrot.slane %v6027, 5
      %v6160 = vrot.slane %v6159, 4
      %v6161 = vrot.slane %v6028, 5
      %v6162 = vsel %vm1733, %v6160, %v6161
      %v6163 = vrot.slane %v6161, 4
      %v6164 = vrot.slane %v6029, 5
      %v6165 = vsel %vm1733, %v6163, %v6164
      %v6166 = vrot.slane %v6030, 5
      %v6167 = vrot.slane %v6166, 4
      %v6168 = vrot.slane %v6031, 5
      %v6169 = vsel %vm1733, %v6167, %v6168
      %v6170 = vrot.slane %v6168, 4
      %v6171 = vrot.slane %v6032, 5
      %v6172 = vsel %vm1733, %v6170, %v6171
      %v6173 = vrot.slane %v6033, 5
      %v6174 = vrot.slane %v6173, 4
      %v6175 = vrot.slane %v6034, 5
      %v6176 = vsel %vm1733, %v6174, %v6175
      %v6177 = vrot.slane %v6175, 4
      %v6178 = vrot.slane %v6035, 5
      %v6179 = vsel %vm1733, %v6177, %v6178
      %v6180 = vrot.slane %v6036, 5
      %v6181 = vrot.slane %v6180, 4
      %v6182 = vrot.slane %v6037, 5
      %v6183 = vsel %vm1733, %v6181, %v6182
      %v6184 = vrot.slane %v6182, 4
      %v6185 = vrot.slane %v6038, 5
      %v6186 = vsel %vm1733, %v6184, %v6185
      %v6187 = vrot.slane %v6039, 5
      %v6188 = vrot.slane %v6187, 4
      %v6189 = vrot.slane %v6040, 5
      %v6190 = vsel %vm1733, %v6188, %v6189
      %v6191 = vrot.slane %v6189, 4
      %v6192 = vrot.slane %v6041, 5
      %v6193 = vsel %vm1733, %v6191, %v6192
      %v6194 = vrot.slane %v6042, 5
      %v6195 = vrot.slane %v6194, 4
      %v6196 = vrot.slane %v6043, 5
      %v6197 = vsel %vm1733, %v6195, %v6196
      %v6198 = vrot.slane %v6196, 4
      %v6199 = vrot.slane %v6044, 5
      %v6200 = vsel %vm1733, %v6198, %v6199
      %v6201 = vrot.slane %v6045, 5
      %v6202 = vrot.slane %v6201, 4
      %v6203 = vrot.slane %v6046, 5
      %v6204 = vsel %vm1733, %v6202, %v6203
      %v6205 = vrot.slane %v6203, 4
      %v6206 = vrot.slane %v6047, 5
      %v6207 = vsel %vm1733, %v6205, %v6206
      %s6208 = scalar_lea.vmem %s1, 256
      %v6209 = vld [vmem:[%s6208] sm:$0xff]
      %v6210 = vld [vmem:[%s6208 + $0x8] sm:$0xff]
      %v6211 = vld [vmem:[%s6208 + $0x10] sm:$0xff]
      %v6212 = vld [vmem:[%s6208 + $0x18] sm:$0xff]
      %v6213 = vunpack.c.l.b16 %v6099
      %v6214 = vunpack.c.l.b16 %v6102
      %v6215 = vunpack.c.l.b16 %v6106
      %v6216 = vunpack.c.l.b16 %v6109
      %v6217 = vunpack.c.l.b16 %v6113
      %v6218 = vunpack.c.l.b16 %v6116
      %v6219 = vunpack.c.l.b16 %v6120
      %v6220 = vunpack.c.l.b16 %v6123
      %v6221 = vunpack.c.l.b16 %v6127
      %v6222 = vunpack.c.l.b16 %v6130
      %v6223 = vunpack.c.l.b16 %v6134
      %v6224 = vunpack.c.l.b16 %v6137
      %v6225 = vunpack.c.l.b16 %v6141
      %v6226 = vunpack.c.l.b16 %v6144
      %v6227 = vunpack.c.l.b16 %v6148
      %v6228 = vunpack.c.l.b16 %v6151
      %v6229 = vunpack.c.l.b16 %v6155
      %v6230 = vunpack.c.l.b16 %v6158
      %v6231 = vunpack.c.l.b16 %v6162
      %v6232 = vunpack.c.l.b16 %v6165
      %v6233 = vunpack.c.l.b16 %v6169
      %v6234 = vunpack.c.l.b16 %v6172
      %v6235 = vunpack.c.l.b16 %v6176
      %v6236 = vunpack.c.l.b16 %v6179
      %v6237 = vunpack.c.l.b16 %v6183
      %v6238 = vunpack.c.l.b16 %v6186
      %v6239 = vunpack.c.l.b16 %v6190
      %v6240 = vunpack.c.l.b16 %v6193
      %v6241 = vunpack.c.l.b16 %v6197
      %v6242 = vunpack.c.l.b16 %v6200
      %v6243 = vunpack.c.l.b16 %v6204
      %v6244 = vunpack.c.l.b16 %v6207
      %v6245 = vpack.c.b16 %v6214, %v6213
      %v6246 = vpack.c.b16 %v6216, %v6215
      %v6247 = vpack.c.b16 %v6218, %v6217
      %v6248 = vpack.c.b16 %v6220, %v6219
      %v6249 = vpack.c.b16 %v6222, %v6221
      %v6250 = vpack.c.b16 %v6224, %v6223
      %v6251 = vpack.c.b16 %v6226, %v6225
      %v6252 = vpack.c.b16 %v6228, %v6227
      %v6253 = vpack.c.b16 %v6230, %v6229
      %v6254 = vpack.c.b16 %v6232, %v6231
      %v6255 = vpack.c.b16 %v6234, %v6233
      %v6256 = vpack.c.b16 %v6236, %v6235
      %v6257 = vpack.c.b16 %v6238, %v6237
      %v6258 = vpack.c.b16 %v6240, %v6239
      %v6259 = vpack.c.b16 %v6242, %v6241
      %v6260 = vpack.c.b16 %v6244, %v6243
      %v6265 = vunpack.c.l.b16 %v6209
      %v6266 = vunpack.c.h.b16 %v6209
      %v6267 = vunpack.c.l.b16 %v6210
      %v6268 = vunpack.c.h.b16 %v6210
      %v6269 = vunpack.c.l.b16 %v6211
      %v6270 = vunpack.c.h.b16 %v6211
      %v6271 = vunpack.c.l.b16 %v6212
      %v6272 = vunpack.c.h.b16 %v6212
      %v6273 = vpack.c.b16 %v6267, %v6265
      %v6274 = vpack.c.b16 %v6268, %v6266
      %v6275 = vpack.c.b16 %v6271, %v6269
      %v6276 = vpack.c.b16 %v6272, %v6270
      %v6282 = vsel %vm418, %v6245, 0
      %v6285 = vsel %vm418, %v6246, 0
      %v6288 = vsel %vm418, %v6247, 0
      %v6291 = vsel %vm418, %v6248, 0
      %v6294 = vsel %vm418, %v6249, 0
      %v6297 = vsel %vm418, %v6250, 0
      %v6300 = vsel %vm418, %v6251, 0
      %v6303 = vsel %vm418, %v6252, 0
      %v6306 = vsel %vm418, %v6253, 0
      %v6309 = vsel %vm418, %v6254, 0
      %v6312 = vsel %vm418, %v6255, 0
      %v6315 = vsel %vm418, %v6256, 0
      %v6318 = vsel %vm418, %v6257, 0
      %v6321 = vsel %vm418, %v6258, 0
      %v6324 = vsel %vm418, %v6259, 0
      %v6327 = vsel %vm418, %v6260, 0
      %6329 = vmatpush.bf16.msra.mxu0 0
      %6330 = vmatpush.bf16.msra.mxu0 0
      %6331 = vmatpush.bf16.msra.mxu0 0
      %6332 = vmatpush.bf16.msra.mxu0 0
      %6333 = vmatpush.bf16.msra.mxu0 0
      %6334 = vmatpush.bf16.msra.mxu0 0
      %6335 = vmatpush.bf16.msra.mxu0 %v6275
      %6336 = vmatpush.bf16.msra.mxu0 %v6273
      %6337 = vmatmul.bf16.gmra.mxu0 %v6282
      %v6338 = vpop.f32.mrf.mxu0
      %v6339 = vadd.f32 0.0, %v6338
      %v6340 = vpop.f32.mrf.mxu0
      %v6341 = vadd.f32 0.0, %v6340
      %6342 = vmatmul.bf16.gmra.mxu0 %v6285
      %v6343 = vpop.f32.mrf.mxu0
      %v6344 = vadd.f32 0.0, %v6343
      %v6345 = vpop.f32.mrf.mxu0
      %v6346 = vadd.f32 0.0, %v6345
      %6347 = vmatmul.bf16.gmra.mxu0 %v6288
      %v6348 = vpop.f32.mrf.mxu0
      %v6349 = vadd.f32 0.0, %v6348
      %v6350 = vpop.f32.mrf.mxu0
      %v6351 = vadd.f32 0.0, %v6350
      %6352 = vmatmul.bf16.gmra.mxu0 %v6291
      %v6353 = vpop.f32.mrf.mxu0
      %v6354 = vadd.f32 0.0, %v6353
      %v6355 = vpop.f32.mrf.mxu0
      %v6356 = vadd.f32 0.0, %v6355
      %6357 = vmatmul.bf16.gmra.mxu0 %v6294
      %v6358 = vpop.f32.mrf.mxu0
      %v6359 = vadd.f32 0.0, %v6358
      %v6360 = vpop.f32.mrf.mxu0
      %v6361 = vadd.f32 0.0, %v6360
      %6362 = vmatmul.bf16.gmra.mxu0 %v6297
      %v6363 = vpop.f32.mrf.mxu0
      %v6364 = vadd.f32 0.0, %v6363
      %v6365 = vpop.f32.mrf.mxu0
      %v6366 = vadd.f32 0.0, %v6365
      %6367 = vmatmul.bf16.gmra.mxu0 %v6300
      %v6368 = vpop.f32.mrf.mxu0
      %v6369 = vadd.f32 0.0, %v6368
      %v6370 = vpop.f32.mrf.mxu0
      %v6371 = vadd.f32 0.0, %v6370
      %6372 = vmatmul.bf16.gmra.mxu0 %v6303
      %v6373 = vpop.f32.mrf.mxu0
      %v6374 = vadd.f32 0.0, %v6373
      %v6375 = vpop.f32.mrf.mxu0
      %v6376 = vadd.f32 0.0, %v6375
      %6377 = vmatmul.bf16.gmra.mxu0 %v6306
      %v6378 = vpop.f32.mrf.mxu0
      %v6379 = vadd.f32 0.0, %v6378
      %v6380 = vpop.f32.mrf.mxu0
      %v6381 = vadd.f32 0.0, %v6380
      %6382 = vmatmul.bf16.gmra.mxu0 %v6309
      %v6383 = vpop.f32.mrf.mxu0
      %v6384 = vadd.f32 0.0, %v6383
      %v6385 = vpop.f32.mrf.mxu0
      %v6386 = vadd.f32 0.0, %v6385
      %6387 = vmatmul.bf16.gmra.mxu0 %v6312
      %v6388 = vpop.f32.mrf.mxu0
      %v6389 = vadd.f32 0.0, %v6388
      %v6390 = vpop.f32.mrf.mxu0
      %v6391 = vadd.f32 0.0, %v6390
      %6392 = vmatmul.bf16.gmra.mxu0 %v6315
      %v6393 = vpop.f32.mrf.mxu0
      %v6394 = vadd.f32 0.0, %v6393
      %v6395 = vpop.f32.mrf.mxu0
      %v6396 = vadd.f32 0.0, %v6395
      %6397 = vmatmul.bf16.gmra.mxu0 %v6318
      %v6398 = vpop.f32.mrf.mxu0
      %v6399 = vadd.f32 0.0, %v6398
      %v6400 = vpop.f32.mrf.mxu0
      %v6401 = vadd.f32 0.0, %v6400
      %6402 = vmatmul.bf16.gmra.mxu0 %v6321
      %v6403 = vpop.f32.mrf.mxu0
      %v6404 = vadd.f32 0.0, %v6403
      %v6405 = vpop.f32.mrf.mxu0
      %v6406 = vadd.f32 0.0, %v6405
      %6407 = vmatmul.bf16.gmra.mxu0 %v6324
      %v6408 = vpop.f32.mrf.mxu0
      %v6409 = vadd.f32 0.0, %v6408
      %v6410 = vpop.f32.mrf.mxu0
      %v6411 = vadd.f32 0.0, %v6410
      %6412 = vmatmul.bf16.gmra.mxu0 %v6327
      %v6413 = vpop.f32.mrf.mxu0
      %v6414 = vadd.f32 0.0, %v6413
      %v6415 = vpop.f32.mrf.mxu0
      %v6416 = vadd.f32 0.0, %v6415
      %6417 = vdwg.mxu0
      %6418 = vmatpush.bf16.msra.mxu0 0
      %6419 = vmatpush.bf16.msra.mxu0 0
      %6420 = vmatpush.bf16.msra.mxu0 0
      %6421 = vmatpush.bf16.msra.mxu0 0
      %6422 = vmatpush.bf16.msra.mxu0 0
      %6423 = vmatpush.bf16.msra.mxu0 0
      %6424 = vmatpush.bf16.msra.mxu0 %v6276
      %6425 = vmatpush.bf16.msra.mxu0 %v6274
      %6426 = vmatmul.bf16.gmra.mxu0 %v6282
      %v6427 = vpop.f32.mrf.mxu0
      %v6428 = vadd.f32 0.0, %v6427
      %v6429 = vpop.f32.mrf.mxu0
      %v6430 = vadd.f32 0.0, %v6429
      %6431 = vmatmul.bf16.gmra.mxu0 %v6285
      %v6432 = vpop.f32.mrf.mxu0
      %v6433 = vadd.f32 0.0, %v6432
      %v6434 = vpop.f32.mrf.mxu0
      %v6435 = vadd.f32 0.0, %v6434
      %6436 = vmatmul.bf16.gmra.mxu0 %v6288
      %v6437 = vpop.f32.mrf.mxu0
      %v6438 = vadd.f32 0.0, %v6437
      %v6439 = vpop.f32.mrf.mxu0
      %v6440 = vadd.f32 0.0, %v6439
      %6441 = vmatmul.bf16.gmra.mxu0 %v6291
      %v6442 = vpop.f32.mrf.mxu0
      %v6443 = vadd.f32 0.0, %v6442
      %v6444 = vpop.f32.mrf.mxu0
      %v6445 = vadd.f32 0.0, %v6444
      %6446 = vmatmul.bf16.gmra.mxu0 %v6294
      %v6447 = vpop.f32.mrf.mxu0
      %v6448 = vadd.f32 0.0, %v6447
      %v6449 = vpop.f32.mrf.mxu0
      %v6450 = vadd.f32 0.0, %v6449
      %6451 = vmatmul.bf16.gmra.mxu0 %v6297
      %v6452 = vpop.f32.mrf.mxu0
      %v6453 = vadd.f32 0.0, %v6452
      %v6454 = vpop.f32.mrf.mxu0
      %v6455 = vadd.f32 0.0, %v6454
      %6456 = vmatmul.bf16.gmra.mxu0 %v6300
      %v6457 = vpop.f32.mrf.mxu0
      %v6458 = vadd.f32 0.0, %v6457
      %v6459 = vpop.f32.mrf.mxu0
      %v6460 = vadd.f32 0.0, %v6459
      %6461 = vmatmul.bf16.gmra.mxu0 %v6303
      %v6462 = vpop.f32.mrf.mxu0
      %v6463 = vadd.f32 0.0, %v6462
      %v6464 = vpop.f32.mrf.mxu0
      %v6465 = vadd.f32 0.0, %v6464
      %6466 = vmatmul.bf16.gmra.mxu0 %v6306
      %v6467 = vpop.f32.mrf.mxu0
      %v6468 = vadd.f32 0.0, %v6467
      %v6469 = vpop.f32.mrf.mxu0
      %v6470 = vadd.f32 0.0, %v6469
      %6471 = vmatmul.bf16.gmra.mxu0 %v6309
      %v6472 = vpop.f32.mrf.mxu0
      %v6473 = vadd.f32 0.0, %v6472
      %v6474 = vpop.f32.mrf.mxu0
      %v6475 = vadd.f32 0.0, %v6474
      %6476 = vmatmul.bf16.gmra.mxu0 %v6312
      %v6477 = vpop.f32.mrf.mxu0
      %v6478 = vadd.f32 0.0, %v6477
      %v6479 = vpop.f32.mrf.mxu0
      %v6480 = vadd.f32 0.0, %v6479
      %6481 = vmatmul.bf16.gmra.mxu0 %v6315
      %v6482 = vpop.f32.mrf.mxu0
      %v6483 = vadd.f32 0.0, %v6482
      %v6484 = vpop.f32.mrf.mxu0
      %v6485 = vadd.f32 0.0, %v6484
      %6486 = vmatmul.bf16.gmra.mxu0 %v6318
      %v6487 = vpop.f32.mrf.mxu0
      %v6488 = vadd.f32 0.0, %v6487
      %v6489 = vpop.f32.mrf.mxu0
      %v6490 = vadd.f32 0.0, %v6489
      %6491 = vmatmul.bf16.gmra.mxu0 %v6321
      %v6492 = vpop.f32.mrf.mxu0
      %v6493 = vadd.f32 0.0, %v6492
      %v6494 = vpop.f32.mrf.mxu0
      %v6495 = vadd.f32 0.0, %v6494
      %6496 = vmatmul.bf16.gmra.mxu0 %v6324
      %v6497 = vpop.f32.mrf.mxu0
      %v6498 = vadd.f32 0.0, %v6497
      %v6499 = vpop.f32.mrf.mxu0
      %v6500 = vadd.f32 0.0, %v6499
      %6501 = vmatmul.bf16.gmra.mxu0 %v6327
      %v6502 = vpop.f32.mrf.mxu0
      %v6503 = vadd.f32 0.0, %v6502
      %v6504 = vpop.f32.mrf.mxu0
      %v6505 = vadd.f32 0.0, %v6504
      %6506 = vdwg.mxu0
      %v6507 = vld [vmem:[#allocation2] sm:$0xff]
      %v6508 = vld [vmem:[#allocation2 + $0x8] sm:$0xff]
      %v6509 = vld [vmem:[#allocation2 + $0x10] sm:$0xff]
      %v6510 = vld [vmem:[#allocation2 + $0x18] sm:$0xff]
      %v6511 = vld [vmem:[#allocation2 + $0x20] sm:$0xff]
      %v6512 = vld [vmem:[#allocation2 + $0x28] sm:$0xff]
      %v6513 = vld [vmem:[#allocation2 + $0x30] sm:$0xff]
      %v6514 = vld [vmem:[#allocation2 + $0x38] sm:$0xff]
      %v6515 = vld [vmem:[#allocation2 + $0x40] sm:$0xff]
      %v6516 = vld [vmem:[#allocation2 + $0x48] sm:$0xff]
      %v6517 = vld [vmem:[#allocation2 + $0x50] sm:$0xff]
      %v6518 = vld [vmem:[#allocation2 + $0x58] sm:$0xff]
      %v6519 = vld [vmem:[#allocation2 + $0x60] sm:$0xff]
      %v6520 = vld [vmem:[#allocation2 + $0x68] sm:$0xff]
      %v6521 = vld [vmem:[#allocation2 + $0x70] sm:$0xff]
      %v6522 = vld [vmem:[#allocation2 + $0x78] sm:$0xff]
      %v6523 = vld [vmem:[#allocation2 + $0x80] sm:$0xff]
      %v6524 = vld [vmem:[#allocation2 + $0x88] sm:$0xff]
      %v6525 = vld [vmem:[#allocation2 + $0x90] sm:$0xff]
      %v6526 = vld [vmem:[#allocation2 + $0x98] sm:$0xff]
      %v6527 = vld [vmem:[#allocation2 + $0xa0] sm:$0xff]
      %v6528 = vld [vmem:[#allocation2 + $0xa8] sm:$0xff]
      %v6529 = vld [vmem:[#allocation2 + $0xb0] sm:$0xff]
      %v6530 = vld [vmem:[#allocation2 + $0xb8] sm:$0xff]
      %v6531 = vld [vmem:[#allocation2 + $0xc0] sm:$0xff]
      %v6532 = vld [vmem:[#allocation2 + $0xc8] sm:$0xff]
      %v6533 = vld [vmem:[#allocation2 + $0xd0] sm:$0xff]
      %v6534 = vld [vmem:[#allocation2 + $0xd8] sm:$0xff]
      %v6535 = vld [vmem:[#allocation2 + $0xe0] sm:$0xff]
      %v6536 = vld [vmem:[#allocation2 + $0xe8] sm:$0xff]
      %v6537 = vld [vmem:[#allocation2 + $0xf0] sm:$0xff]
      %v6538 = vld [vmem:[#allocation2 + $0xf8] sm:$0xff]
      %v6539 = vld [vmem:[#allocation2 + $0x100] sm:$0xff]
      %v6540 = vld [vmem:[#allocation2 + $0x108] sm:$0xff]
      %v6541 = vld [vmem:[#allocation2 + $0x110] sm:$0xff]
      %v6542 = vld [vmem:[#allocation2 + $0x118] sm:$0xff]
      %v6543 = vld [vmem:[#allocation2 + $0x120] sm:$0xff]
      %v6544 = vld [vmem:[#allocation2 + $0x128] sm:$0xff]
      %v6545 = vld [vmem:[#allocation2 + $0x130] sm:$0xff]
      %v6546 = vld [vmem:[#allocation2 + $0x138] sm:$0xff]
      %v6547 = vld [vmem:[#allocation2 + $0x140] sm:$0xff]
      %v6548 = vld [vmem:[#allocation2 + $0x148] sm:$0xff]
      %v6549 = vld [vmem:[#allocation2 + $0x150] sm:$0xff]
      %v6550 = vld [vmem:[#allocation2 + $0x158] sm:$0xff]
      %v6551 = vld [vmem:[#allocation2 + $0x160] sm:$0xff]
      %v6552 = vld [vmem:[#allocation2 + $0x168] sm:$0xff]
      %v6553 = vld [vmem:[#allocation2 + $0x170] sm:$0xff]
      %v6554 = vld [vmem:[#allocation2 + $0x178] sm:$0xff]
      %v6555 = vld [vmem:[#allocation2 + $0x180] sm:$0xff]
      %v6556 = vld [vmem:[#allocation2 + $0x188] sm:$0xff]
      %v6557 = vld [vmem:[#allocation2 + $0x190] sm:$0xff]
      %v6558 = vld [vmem:[#allocation2 + $0x198] sm:$0xff]
      %v6559 = vld [vmem:[#allocation2 + $0x1a0] sm:$0xff]
      %v6560 = vld [vmem:[#allocation2 + $0x1a8] sm:$0xff]
      %v6561 = vld [vmem:[#allocation2 + $0x1b0] sm:$0xff]
      %v6562 = vld [vmem:[#allocation2 + $0x1b8] sm:$0xff]
      %v6563 = vld [vmem:[#allocation2 + $0x1c0] sm:$0xff]
      %v6564 = vld [vmem:[#allocation2 + $0x1c8] sm:$0xff]
      %v6565 = vld [vmem:[#allocation2 + $0x1d0] sm:$0xff]
      %v6566 = vld [vmem:[#allocation2 + $0x1d8] sm:$0xff]
      %v6567 = vld [vmem:[#allocation2 + $0x1e0] sm:$0xff]
      %v6568 = vld [vmem:[#allocation2 + $0x1e8] sm:$0xff]
      %v6569 = vld [vmem:[#allocation2 + $0x1f0] sm:$0xff]
      %v6570 = vld [vmem:[#allocation2 + $0x1f8] sm:$0xff]
      %v6571 = vadd.f32 %v6507, %v6339
      %v6572 = vadd.f32 %v6508, %v6428
      %v6573 = vadd.f32 %v6509, %v6341
      %v6574 = vadd.f32 %v6510, %v6430
      %v6575 = vadd.f32 %v6511, %v6344
      %v6576 = vadd.f32 %v6512, %v6433
      %v6577 = vadd.f32 %v6513, %v6346
      %v6578 = vadd.f32 %v6514, %v6435
      %v6579 = vadd.f32 %v6515, %v6349
      %v6580 = vadd.f32 %v6516, %v6438
      %v6581 = vadd.f32 %v6517, %v6351
      %v6582 = vadd.f32 %v6518, %v6440
      %v6583 = vadd.f32 %v6519, %v6354
      %v6584 = vadd.f32 %v6520, %v6443
      %v6585 = vadd.f32 %v6521, %v6356
      %v6586 = vadd.f32 %v6522, %v6445
      %v6587 = vadd.f32 %v6523, %v6359
      %v6588 = vadd.f32 %v6524, %v6448
      %v6589 = vadd.f32 %v6525, %v6361
      %v6590 = vadd.f32 %v6526, %v6450
      %v6591 = vadd.f32 %v6527, %v6364
      %v6592 = vadd.f32 %v6528, %v6453
      %v6593 = vadd.f32 %v6529, %v6366
      %v6594 = vadd.f32 %v6530, %v6455
      %v6595 = vadd.f32 %v6531, %v6369
      %v6596 = vadd.f32 %v6532, %v6458
      %v6597 = vadd.f32 %v6533, %v6371
      %v6598 = vadd.f32 %v6534, %v6460
      %v6599 = vadd.f32 %v6535, %v6374
      %v6600 = vadd.f32 %v6536, %v6463
      %v6601 = vadd.f32 %v6537, %v6376
      %v6602 = vadd.f32 %v6538, %v6465
      %v6603 = vadd.f32 %v6539, %v6379
      %v6604 = vadd.f32 %v6540, %v6468
      %v6605 = vadd.f32 %v6541, %v6381
      %v6606 = vadd.f32 %v6542, %v6470
      %v6607 = vadd.f32 %v6543, %v6384
      %v6608 = vadd.f32 %v6544, %v6473
      %v6609 = vadd.f32 %v6545, %v6386
      %v6610 = vadd.f32 %v6546, %v6475
      %v6611 = vadd.f32 %v6547, %v6389
      %v6612 = vadd.f32 %v6548, %v6478
      %v6613 = vadd.f32 %v6549, %v6391
      %v6614 = vadd.f32 %v6550, %v6480
      %v6615 = vadd.f32 %v6551, %v6394
      %v6616 = vadd.f32 %v6552, %v6483
      %v6617 = vadd.f32 %v6553, %v6396
      %v6618 = vadd.f32 %v6554, %v6485
      %v6619 = vadd.f32 %v6555, %v6399
      %v6620 = vadd.f32 %v6556, %v6488
      %v6621 = vadd.f32 %v6557, %v6401
      %v6622 = vadd.f32 %v6558, %v6490
      %v6623 = vadd.f32 %v6559, %v6404
      %v6624 = vadd.f32 %v6560, %v6493
      %v6625 = vadd.f32 %v6561, %v6406
      %v6626 = vadd.f32 %v6562, %v6495
      %v6627 = vadd.f32 %v6563, %v6409
      %v6628 = vadd.f32 %v6564, %v6498
      %v6629 = vadd.f32 %v6565, %v6411
      %v6630 = vadd.f32 %v6566, %v6500
      %v6631 = vadd.f32 %v6567, %v6414
      %v6632 = vadd.f32 %v6568, %v6503
      %v6633 = vadd.f32 %v6569, %v6416
      %v6634 = vadd.f32 %v6570, %v6505
      %6635 = vst [vmem:[#allocation2] sm:$0xff] %v6571
      %6636 = vst [vmem:[#allocation2 + $0x8] sm:$0xff] %v6572
      %6637 = vst [vmem:[#allocation2 + $0x10] sm:$0xff] %v6573
      %6638 = vst [vmem:[#allocation2 + $0x18] sm:$0xff] %v6574
      %6639 = vst [vmem:[#allocation2 + $0x20] sm:$0xff] %v6575
      %6640 = vst [vmem:[#allocation2 + $0x28] sm:$0xff] %v6576
      %6641 = vst [vmem:[#allocation2 + $0x30] sm:$0xff] %v6577
      %6642 = vst [vmem:[#allocation2 + $0x38] sm:$0xff] %v6578
      %6643 = vst [vmem:[#allocation2 + $0x40] sm:$0xff] %v6579
      %6644 = vst [vmem:[#allocation2 + $0x48] sm:$0xff] %v6580
      %6645 = vst [vmem:[#allocation2 + $0x50] sm:$0xff] %v6581
      %6646 = vst [vmem:[#allocation2 + $0x58] sm:$0xff] %v6582
      %6647 = vst [vmem:[#allocation2 + $0x60] sm:$0xff] %v6583
      %6648 = vst [vmem:[#allocation2 + $0x68] sm:$0xff] %v6584
      %6649 = vst [vmem:[#allocation2 + $0x70] sm:$0xff] %v6585
      %6650 = vst [vmem:[#allocation2 + $0x78] sm:$0xff] %v6586
      %6651 = vst [vmem:[#allocation2 + $0x80] sm:$0xff] %v6587
      %6652 = vst [vmem:[#allocation2 + $0x88] sm:$0xff] %v6588
      %6653 = vst [vmem:[#allocation2 + $0x90] sm:$0xff] %v6589
      %6654 = vst [vmem:[#allocation2 + $0x98] sm:$0xff] %v6590
      %6655 = vst [vmem:[#allocation2 + $0xa0] sm:$0xff] %v6591
      %6656 = vst [vmem:[#allocation2 + $0xa8] sm:$0xff] %v6592
      %6657 = vst [vmem:[#allocation2 + $0xb0] sm:$0xff] %v6593
      %6658 = vst [vmem:[#allocation2 + $0xb8] sm:$0xff] %v6594
      %6659 = vst [vmem:[#allocation2 + $0xc0] sm:$0xff] %v6595
      %6660 = vst [vmem:[#allocation2 + $0xc8] sm:$0xff] %v6596
      %6661 = vst [vmem:[#allocation2 + $0xd0] sm:$0xff] %v6597
      %6662 = vst [vmem:[#allocation2 + $0xd8] sm:$0xff] %v6598
      %6663 = vst [vmem:[#allocation2 + $0xe0] sm:$0xff] %v6599
      %6664 = vst [vmem:[#allocation2 + $0xe8] sm:$0xff] %v6600
      %6665 = vst [vmem:[#allocation2 + $0xf0] sm:$0xff] %v6601
      %6666 = vst [vmem:[#allocation2 + $0xf8] sm:$0xff] %v6602
      %6667 = vst [vmem:[#allocation2 + $0x100] sm:$0xff] %v6603
      %6668 = vst [vmem:[#allocation2 + $0x108] sm:$0xff] %v6604
      %6669 = vst [vmem:[#allocation2 + $0x110] sm:$0xff] %v6605
      %6670 = vst [vmem:[#allocation2 + $0x118] sm:$0xff] %v6606
      %6671 = vst [vmem:[#allocation2 + $0x120] sm:$0xff] %v6607
      %6672 = vst [vmem:[#allocation2 + $0x128] sm:$0xff] %v6608
      %6673 = vst [vmem:[#allocation2 + $0x130] sm:$0xff] %v6609
      %6674 = vst [vmem:[#allocation2 + $0x138] sm:$0xff] %v6610
      %6675 = vst [vmem:[#allocation2 + $0x140] sm:$0xff] %v6611
      %6676 = vst [vmem:[#allocation2 + $0x148] sm:$0xff] %v6612
      %6677 = vst [vmem:[#allocation2 + $0x150] sm:$0xff] %v6613
      %6678 = vst [vmem:[#allocation2 + $0x158] sm:$0xff] %v6614
      %6679 = vst [vmem:[#allocation2 + $0x160] sm:$0xff] %v6615
      %6680 = vst [vmem:[#allocation2 + $0x168] sm:$0xff] %v6616
      %6681 = vst [vmem:[#allocation2 + $0x170] sm:$0xff] %v6617
      %6682 = vst [vmem:[#allocation2 + $0x178] sm:$0xff] %v6618
      %6683 = vst [vmem:[#allocation2 + $0x180] sm:$0xff] %v6619
      %6684 = vst [vmem:[#allocation2 + $0x188] sm:$0xff] %v6620
      %6685 = vst [vmem:[#allocation2 + $0x190] sm:$0xff] %v6621
      %6686 = vst [vmem:[#allocation2 + $0x198] sm:$0xff] %v6622
      %6687 = vst [vmem:[#allocation2 + $0x1a0] sm:$0xff] %v6623
      %6688 = vst [vmem:[#allocation2 + $0x1a8] sm:$0xff] %v6624
      %6689 = vst [vmem:[#allocation2 + $0x1b0] sm:$0xff] %v6625
      %6690 = vst [vmem:[#allocation2 + $0x1b8] sm:$0xff] %v6626
      %6691 = vst [vmem:[#allocation2 + $0x1c0] sm:$0xff] %v6627
      %6692 = vst [vmem:[#allocation2 + $0x1c8] sm:$0xff] %v6628
      %6693 = vst [vmem:[#allocation2 + $0x1d0] sm:$0xff] %v6629
      %6694 = vst [vmem:[#allocation2 + $0x1d8] sm:$0xff] %v6630
      %6695 = vst [vmem:[#allocation2 + $0x1e0] sm:$0xff] %v6631
      %6696 = vst [vmem:[#allocation2 + $0x1e8] sm:$0xff] %v6632
      %6697 = vst [vmem:[#allocation2 + $0x1f0] sm:$0xff] %v6633
      %6698 = vst [vmem:[#allocation2 + $0x1f8] sm:$0xff] %v6634
      %v6699 = vld [vmem:[#allocation2] sm:$0xff]
      %v6700 = vld [vmem:[#allocation2 + $0x8] sm:$0xff]
      %v6701 = vld [vmem:[#allocation2 + $0x10] sm:$0xff]
      %v6702 = vld [vmem:[#allocation2 + $0x18] sm:$0xff]
      %v6703 = vld [vmem:[#allocation2 + $0x20] sm:$0xff]
      %v6704 = vld [vmem:[#allocation2 + $0x28] sm:$0xff]
      %v6705 = vld [vmem:[#allocation2 + $0x30] sm:$0xff]
      %v6706 = vld [vmem:[#allocation2 + $0x38] sm:$0xff]
      %v6707 = vld [vmem:[#allocation2 + $0x40] sm:$0xff]
      %v6708 = vld [vmem:[#allocation2 + $0x48] sm:$0xff]
      %v6709 = vld [vmem:[#allocation2 + $0x50] sm:$0xff]
      %v6710 = vld [vmem:[#allocation2 + $0x58] sm:$0xff]
      %v6711 = vld [vmem:[#allocation2 + $0x60] sm:$0xff]
      %v6712 = vld [vmem:[#allocation2 + $0x68] sm:$0xff]
      %v6713 = vld [vmem:[#allocation2 + $0x70] sm:$0xff]
      %v6714 = vld [vmem:[#allocation2 + $0x78] sm:$0xff]
      %v6715 = vld [vmem:[#allocation2 + $0x80] sm:$0xff]
      %v6716 = vld [vmem:[#allocation2 + $0x88] sm:$0xff]
      %v6717 = vld [vmem:[#allocation2 + $0x90] sm:$0xff]
      %v6718 = vld [vmem:[#allocation2 + $0x98] sm:$0xff]
      %v6719 = vld [vmem:[#allocation2 + $0xa0] sm:$0xff]
      %v6720 = vld [vmem:[#allocation2 + $0xa8] sm:$0xff]
      %v6721 = vld [vmem:[#allocation2 + $0xb0] sm:$0xff]
      %v6722 = vld [vmem:[#allocation2 + $0xb8] sm:$0xff]
      %v6723 = vld [vmem:[#allocation2 + $0xc0] sm:$0xff]
      %v6724 = vld [vmem:[#allocation2 + $0xc8] sm:$0xff]
      %v6725 = vld [vmem:[#allocation2 + $0xd0] sm:$0xff]
      %v6726 = vld [vmem:[#allocation2 + $0xd8] sm:$0xff]
      %v6727 = vld [vmem:[#allocation2 + $0xe0] sm:$0xff]
      %v6728 = vld [vmem:[#allocation2 + $0xe8] sm:$0xff]
      %v6729 = vld [vmem:[#allocation2 + $0xf0] sm:$0xff]
      %v6730 = vld [vmem:[#allocation2 + $0xf8] sm:$0xff]
      %v6731 = vld [vmem:[#allocation2 + $0x100] sm:$0xff]
      %v6732 = vld [vmem:[#allocation2 + $0x108] sm:$0xff]
      %v6733 = vld [vmem:[#allocation2 + $0x110] sm:$0xff]
      %v6734 = vld [vmem:[#allocation2 + $0x118] sm:$0xff]
      %v6735 = vld [vmem:[#allocation2 + $0x120] sm:$0xff]
      %v6736 = vld [vmem:[#allocation2 + $0x128] sm:$0xff]
      %v6737 = vld [vmem:[#allocation2 + $0x130] sm:$0xff]
      %v6738 = vld [vmem:[#allocation2 + $0x138] sm:$0xff]
      %v6739 = vld [vmem:[#allocation2 + $0x140] sm:$0xff]
      %v6740 = vld [vmem:[#allocation2 + $0x148] sm:$0xff]
      %v6741 = vld [vmem:[#allocation2 + $0x150] sm:$0xff]
      %v6742 = vld [vmem:[#allocation2 + $0x158] sm:$0xff]
      %v6743 = vld [vmem:[#allocation2 + $0x160] sm:$0xff]
      %v6744 = vld [vmem:[#allocation2 + $0x168] sm:$0xff]
      %v6745 = vld [vmem:[#allocation2 + $0x170] sm:$0xff]
      %v6746 = vld [vmem:[#allocation2 + $0x178] sm:$0xff]
      %v6747 = vld [vmem:[#allocation2 + $0x180] sm:$0xff]
      %v6748 = vld [vmem:[#allocation2 + $0x188] sm:$0xff]
      %v6749 = vld [vmem:[#allocation2 + $0x190] sm:$0xff]
      %v6750 = vld [vmem:[#allocation2 + $0x198] sm:$0xff]
      %v6751 = vld [vmem:[#allocation2 + $0x1a0] sm:$0xff]
      %v6752 = vld [vmem:[#allocation2 + $0x1a8] sm:$0xff]
      %v6753 = vld [vmem:[#allocation2 + $0x1b0] sm:$0xff]
      %v6754 = vld [vmem:[#allocation2 + $0x1b8] sm:$0xff]
      %v6755 = vld [vmem:[#allocation2 + $0x1c0] sm:$0xff]
      %v6756 = vld [vmem:[#allocation2 + $0x1c8] sm:$0xff]
      %v6757 = vld [vmem:[#allocation2 + $0x1d0] sm:$0xff]
      %v6758 = vld [vmem:[#allocation2 + $0x1d8] sm:$0xff]
      %v6759 = vld [vmem:[#allocation2 + $0x1e0] sm:$0xff]
      %v6760 = vld [vmem:[#allocation2 + $0x1e8] sm:$0xff]
      %v6761 = vld [vmem:[#allocation2 + $0x1f0] sm:$0xff]
      %v6762 = vld [vmem:[#allocation2 + $0x1f8] sm:$0xff]
      %v6763 = vld [vmem:[%s2] sm:$0x3]
      %v6765 = vperm.slane %v6763, 0
      %v6766 = vperm.slane %v6763, 1
      %v6769 = vmul.f32 %v6699, %v6765
      %v6770 = vmul.f32 %v6700, %v6766
      %v6771 = vmul.f32 %v6701, %v6765
      %v6772 = vmul.f32 %v6702, %v6766
      %v6773 = vmul.f32 %v6703, %v6765
      %v6774 = vmul.f32 %v6704, %v6766
      %v6775 = vmul.f32 %v6705, %v6765
      %v6776 = vmul.f32 %v6706, %v6766
      %v6777 = vmul.f32 %v6707, %v6765
      %v6778 = vmul.f32 %v6708, %v6766
      %v6779 = vmul.f32 %v6709, %v6765
      %v6780 = vmul.f32 %v6710, %v6766
      %v6781 = vmul.f32 %v6711, %v6765
      %v6782 = vmul.f32 %v6712, %v6766
      %v6783 = vmul.f32 %v6713, %v6765
      %v6784 = vmul.f32 %v6714, %v6766
      %v6785 = vmul.f32 %v6715, %v6765
      %v6786 = vmul.f32 %v6716, %v6766
      %v6787 = vmul.f32 %v6717, %v6765
      %v6788 = vmul.f32 %v6718, %v6766
      %v6789 = vmul.f32 %v6719, %v6765
      %v6790 = vmul.f32 %v6720, %v6766
      %v6791 = vmul.f32 %v6721, %v6765
      %v6792 = vmul.f32 %v6722, %v6766
      %v6793 = vmul.f32 %v6723, %v6765
      %v6794 = vmul.f32 %v6724, %v6766
      %v6795 = vmul.f32 %v6725, %v6765
      %v6796 = vmul.f32 %v6726, %v6766
      %v6797 = vmul.f32 %v6727, %v6765
      %v6798 = vmul.f32 %v6728, %v6766
      %v6799 = vmul.f32 %v6729, %v6765
      %v6800 = vmul.f32 %v6730, %v6766
      %v6801 = vmul.f32 %v6731, %v6765
      %v6802 = vmul.f32 %v6732, %v6766
      %v6803 = vmul.f32 %v6733, %v6765
      %v6804 = vmul.f32 %v6734, %v6766
      %v6805 = vmul.f32 %v6735, %v6765
      %v6806 = vmul.f32 %v6736, %v6766
      %v6807 = vmul.f32 %v6737, %v6765
      %v6808 = vmul.f32 %v6738, %v6766
      %v6809 = vmul.f32 %v6739, %v6765
      %v6810 = vmul.f32 %v6740, %v6766
      %v6811 = vmul.f32 %v6741, %v6765
      %v6812 = vmul.f32 %v6742, %v6766
      %v6813 = vmul.f32 %v6743, %v6765
      %v6814 = vmul.f32 %v6744, %v6766
      %v6815 = vmul.f32 %v6745, %v6765
      %v6816 = vmul.f32 %v6746, %v6766
      %v6817 = vmul.f32 %v6747, %v6765
      %v6818 = vmul.f32 %v6748, %v6766
      %v6819 = vmul.f32 %v6749, %v6765
      %v6820 = vmul.f32 %v6750, %v6766
      %v6821 = vmul.f32 %v6751, %v6765
      %v6822 = vmul.f32 %v6752, %v6766
      %v6823 = vmul.f32 %v6753, %v6765
      %v6824 = vmul.f32 %v6754, %v6766
      %v6825 = vmul.f32 %v6755, %v6765
      %v6826 = vmul.f32 %v6756, %v6766
      %v6827 = vmul.f32 %v6757, %v6765
      %v6828 = vmul.f32 %v6758, %v6766
      %v6829 = vmul.f32 %v6759, %v6765
      %v6830 = vmul.f32 %v6760, %v6766
      %v6831 = vmul.f32 %v6761, %v6765
      %v6832 = vmul.f32 %v6762, %v6766
      %v6833 = vld [vmem:[%s3] sm:$0x3]
      %v6835 = vperm.slane %v6833, 0
      %v6836 = vperm.slane %v6833, 1
      %v6839 = vadd.f32 %v6769, %v6835
      %v6840 = vadd.f32 %v6770, %v6836
      %v6841 = vadd.f32 %v6771, %v6835
      %v6842 = vadd.f32 %v6772, %v6836
      %v6843 = vadd.f32 %v6773, %v6835
      %v6844 = vadd.f32 %v6774, %v6836
      %v6845 = vadd.f32 %v6775, %v6835
      %v6846 = vadd.f32 %v6776, %v6836
      %v6847 = vadd.f32 %v6777, %v6835
      %v6848 = vadd.f32 %v6778, %v6836
      %v6849 = vadd.f32 %v6779, %v6835
      %v6850 = vadd.f32 %v6780, %v6836
      %v6851 = vadd.f32 %v6781, %v6835
      %v6852 = vadd.f32 %v6782, %v6836
      %v6853 = vadd.f32 %v6783, %v6835
      %v6854 = vadd.f32 %v6784, %v6836
      %v6855 = vadd.f32 %v6785, %v6835
      %v6856 = vadd.f32 %v6786, %v6836
      %v6857 = vadd.f32 %v6787, %v6835
      %v6858 = vadd.f32 %v6788, %v6836
      %v6859 = vadd.f32 %v6789, %v6835
      %v6860 = vadd.f32 %v6790, %v6836
      %v6861 = vadd.f32 %v6791, %v6835
      %v6862 = vadd.f32 %v6792, %v6836
      %v6863 = vadd.f32 %v6793, %v6835
      %v6864 = vadd.f32 %v6794, %v6836
      %v6865 = vadd.f32 %v6795, %v6835
      %v6866 = vadd.f32 %v6796, %v6836
      %v6867 = vadd.f32 %v6797, %v6835
      %v6868 = vadd.f32 %v6798, %v6836
      %v6869 = vadd.f32 %v6799, %v6835
      %v6870 = vadd.f32 %v6800, %v6836
      %v6871 = vadd.f32 %v6801, %v6835
      %v6872 = vadd.f32 %v6802, %v6836
      %v6873 = vadd.f32 %v6803, %v6835
      %v6874 = vadd.f32 %v6804, %v6836
      %v6875 = vadd.f32 %v6805, %v6835
      %v6876 = vadd.f32 %v6806, %v6836
      %v6877 = vadd.f32 %v6807, %v6835
      %v6878 = vadd.f32 %v6808, %v6836
      %v6879 = vadd.f32 %v6809, %v6835
      %v6880 = vadd.f32 %v6810, %v6836
      %v6881 = vadd.f32 %v6811, %v6835
      %v6882 = vadd.f32 %v6812, %v6836
      %v6883 = vadd.f32 %v6813, %v6835
      %v6884 = vadd.f32 %v6814, %v6836
      %v6885 = vadd.f32 %v6815, %v6835
      %v6886 = vadd.f32 %v6816, %v6836
      %v6887 = vadd.f32 %v6817, %v6835
      %v6888 = vadd.f32 %v6818, %v6836
      %v6889 = vadd.f32 %v6819, %v6835
      %v6890 = vadd.f32 %v6820, %v6836
      %v6891 = vadd.f32 %v6821, %v6835
      %v6892 = vadd.f32 %v6822, %v6836
      %v6893 = vadd.f32 %v6823, %v6835
      %v6894 = vadd.f32 %v6824, %v6836
      %v6895 = vadd.f32 %v6825, %v6835
      %v6896 = vadd.f32 %v6826, %v6836
      %v6897 = vadd.f32 %v6827, %v6835
      %v6898 = vadd.f32 %v6828, %v6836
      %v6899 = vadd.f32 %v6829, %v6835
      %v6900 = vadd.f32 %v6830, %v6836
      %v6901 = vadd.f32 %v6831, %v6835
      %v6902 = vadd.f32 %v6832, %v6836
      %v6903 = vmax.f32 %v6839, 0.0
      %v6904 = vmax.f32 %v6840, 0.0
      %v6905 = vmax.f32 %v6841, 0.0
      %v6906 = vmax.f32 %v6842, 0.0
      %v6907 = vmax.f32 %v6843, 0.0
      %v6908 = vmax.f32 %v6844, 0.0
      %v6909 = vmax.f32 %v6845, 0.0
      %v6910 = vmax.f32 %v6846, 0.0
      %v6911 = vmax.f32 %v6847, 0.0
      %v6912 = vmax.f32 %v6848, 0.0
      %v6913 = vmax.f32 %v6849, 0.0
      %v6914 = vmax.f32 %v6850, 0.0
      %v6915 = vmax.f32 %v6851, 0.0
      %v6916 = vmax.f32 %v6852, 0.0
      %v6917 = vmax.f32 %v6853, 0.0
      %v6918 = vmax.f32 %v6854, 0.0
      %v6919 = vmax.f32 %v6855, 0.0
      %v6920 = vmax.f32 %v6856, 0.0
      %v6921 = vmax.f32 %v6857, 0.0
      %v6922 = vmax.f32 %v6858, 0.0
      %v6923 = vmax.f32 %v6859, 0.0
      %v6924 = vmax.f32 %v6860, 0.0
      %v6925 = vmax.f32 %v6861, 0.0
      %v6926 = vmax.f32 %v6862, 0.0
      %v6927 = vmax.f32 %v6863, 0.0
      %v6928 = vmax.f32 %v6864, 0.0
      %v6929 = vmax.f32 %v6865, 0.0
      %v6930 = vmax.f32 %v6866, 0.0
      %v6931 = vmax.f32 %v6867, 0.0
      %v6932 = vmax.f32 %v6868, 0.0
      %v6933 = vmax.f32 %v6869, 0.0
      %v6934 = vmax.f32 %v6870, 0.0
      %v6935 = vmax.f32 %v6871, 0.0
      %v6936 = vmax.f32 %v6872, 0.0
      %v6937 = vmax.f32 %v6873, 0.0
      %v6938 = vmax.f32 %v6874, 0.0
      %v6939 = vmax.f32 %v6875, 0.0
      %v6940 = vmax.f32 %v6876, 0.0
      %v6941 = vmax.f32 %v6877, 0.0
      %v6942 = vmax.f32 %v6878, 0.0
      %v6943 = vmax.f32 %v6879, 0.0
      %v6944 = vmax.f32 %v6880, 0.0
      %v6945 = vmax.f32 %v6881, 0.0
      %v6946 = vmax.f32 %v6882, 0.0
      %v6947 = vmax.f32 %v6883, 0.0
      %v6948 = vmax.f32 %v6884, 0.0
      %v6949 = vmax.f32 %v6885, 0.0
      %v6950 = vmax.f32 %v6886, 0.0
      %v6951 = vmax.f32 %v6887, 0.0
      %v6952 = vmax.f32 %v6888, 0.0
      %v6953 = vmax.f32 %v6889, 0.0
      %v6954 = vmax.f32 %v6890, 0.0
      %v6955 = vmax.f32 %v6891, 0.0
      %v6956 = vmax.f32 %v6892, 0.0
      %v6957 = vmax.f32 %v6893, 0.0
      %v6958 = vmax.f32 %v6894, 0.0
      %v6959 = vmax.f32 %v6895, 0.0
      %v6960 = vmax.f32 %v6896, 0.0
      %v6961 = vmax.f32 %v6897, 0.0
      %v6962 = vmax.f32 %v6898, 0.0
      %v6963 = vmax.f32 %v6899, 0.0
      %v6964 = vmax.f32 %v6900, 0.0
      %v6965 = vmax.f32 %v6901, 0.0
      %v6966 = vmax.f32 %v6902, 0.0
      %v6967 = vpack.c.bf16 %v6905, %v6903
      %v6968 = vpack.c.bf16 %v6906, %v6904
      %v6969 = vpack.c.bf16 %v6909, %v6907
      %v6970 = vpack.c.bf16 %v6910, %v6908
      %v6971 = vpack.c.bf16 %v6913, %v6911
      %v6972 = vpack.c.bf16 %v6914, %v6912
      %v6973 = vpack.c.bf16 %v6917, %v6915
      %v6974 = vpack.c.bf16 %v6918, %v6916
      %v6975 = vpack.c.bf16 %v6921, %v6919
      %v6976 = vpack.c.bf16 %v6922, %v6920
      %v6977 = vpack.c.bf16 %v6925, %v6923
      %v6978 = vpack.c.bf16 %v6926, %v6924
      %v6979 = vpack.c.bf16 %v6929, %v6927
      %v6980 = vpack.c.bf16 %v6930, %v6928
      %v6981 = vpack.c.bf16 %v6933, %v6931
      %v6982 = vpack.c.bf16 %v6934, %v6932
      %v6983 = vpack.c.bf16 %v6937, %v6935
      %v6984 = vpack.c.bf16 %v6938, %v6936
      %v6985 = vpack.c.bf16 %v6941, %v6939
      %v6986 = vpack.c.bf16 %v6942, %v6940
      %v6987 = vpack.c.bf16 %v6945, %v6943
      %v6988 = vpack.c.bf16 %v6946, %v6944
      %v6989 = vpack.c.bf16 %v6949, %v6947
      %v6990 = vpack.c.bf16 %v6950, %v6948
      %v6991 = vpack.c.bf16 %v6953, %v6951
      %v6992 = vpack.c.bf16 %v6954, %v6952
      %v6993 = vpack.c.bf16 %v6957, %v6955
      %v6994 = vpack.c.bf16 %v6958, %v6956
      %v6995 = vpack.c.bf16 %v6961, %v6959
      %v6996 = vpack.c.bf16 %v6962, %v6960
      %v6997 = vpack.c.bf16 %v6965, %v6963
      %v6998 = vpack.c.bf16 %v6966, %v6964
      %v6999 = vld [vmem:[%s4] sm:$0xf]
      %v7000 = vld [vmem:[%s4 + $0x4] sm:$0xf]
      %v7001 = vld [vmem:[%s4 + $0x8] sm:$0xf]
      %v7002 = vld [vmem:[%s4 + $0xc] sm:$0xf]
      %v7003 = vld [vmem:[%s4 + $0x10] sm:$0xf]
      %v7004 = vld [vmem:[%s4 + $0x14] sm:$0xf]
      %v7005 = vld [vmem:[%s4 + $0x18] sm:$0xf]
      %v7006 = vld [vmem:[%s4 + $0x1c] sm:$0xf]
      %v7007 = vld [vmem:[%s4 + $0x20] sm:$0xf]
      %v7008 = vld [vmem:[%s4 + $0x24] sm:$0xf]
      %v7009 = vld [vmem:[%s4 + $0x28] sm:$0xf]
      %v7010 = vld [vmem:[%s4 + $0x2c] sm:$0xf]
      %v7011 = vld [vmem:[%s4 + $0x30] sm:$0xf]
      %v7012 = vld [vmem:[%s4 + $0x34] sm:$0xf]
      %v7013 = vld [vmem:[%s4 + $0x38] sm:$0xf]
      %v7014 = vld [vmem:[%s4 + $0x3c] sm:$0xf]
      %v7015 = vld [vmem:[%s4 + $0x40] sm:$0xf]
      %v7016 = vld [vmem:[%s4 + $0x44] sm:$0xf]
      %v7017 = vld [vmem:[%s4 + $0x48] sm:$0xf]
      %v7018 = vld [vmem:[%s4 + $0x4c] sm:$0xf]
      %v7019 = vld [vmem:[%s4 + $0x50] sm:$0xf]
      %v7020 = vld [vmem:[%s4 + $0x54] sm:$0xf]
      %v7021 = vld [vmem:[%s4 + $0x58] sm:$0xf]
      %v7022 = vld [vmem:[%s4 + $0x5c] sm:$0xf]
      %v7023 = vld [vmem:[%s4 + $0x60] sm:$0xf]
      %v7024 = vld [vmem:[%s4 + $0x64] sm:$0xf]
      %v7025 = vld [vmem:[%s4 + $0x68] sm:$0xf]
      %v7026 = vld [vmem:[%s4 + $0x6c] sm:$0xf]
      %v7027 = vld [vmem:[%s4 + $0x70] sm:$0xf]
      %v7028 = vld [vmem:[%s4 + $0x74] sm:$0xf]
      %v7029 = vld [vmem:[%s4 + $0x78] sm:$0xf]
      %v7030 = vld [vmem:[%s4 + $0x7c] sm:$0xf]
      %v7031 = vld [vmem:[%s5] sm:$0x1]
      %v7033 = vperm.slane %v7031, 0
      %v7067 = vunpack.c.l.b16 %v6999
      %v7068 = vunpack.c.l.b16 %v7000
      %v7069 = vunpack.c.l.b16 %v7001
      %v7070 = vunpack.c.l.b16 %v7002
      %v7071 = vunpack.c.l.b16 %v7003
      %v7072 = vunpack.c.l.b16 %v7004
      %v7073 = vunpack.c.l.b16 %v7005
      %v7074 = vunpack.c.l.b16 %v7006
      %v7075 = vunpack.c.l.b16 %v7007
      %v7076 = vunpack.c.l.b16 %v7008
      %v7077 = vunpack.c.l.b16 %v7009
      %v7078 = vunpack.c.l.b16 %v7010
      %v7079 = vunpack.c.l.b16 %v7011
      %v7080 = vunpack.c.l.b16 %v7012
      %v7081 = vunpack.c.l.b16 %v7013
      %v7082 = vunpack.c.l.b16 %v7014
      %v7083 = vunpack.c.l.b16 %v7015
      %v7084 = vunpack.c.l.b16 %v7016
      %v7085 = vunpack.c.l.b16 %v7017
      %v7086 = vunpack.c.l.b16 %v7018
      %v7087 = vunpack.c.l.b16 %v7019
      %v7088 = vunpack.c.l.b16 %v7020
      %v7089 = vunpack.c.l.b16 %v7021
      %v7090 = vunpack.c.l.b16 %v7022
      %v7091 = vunpack.c.l.b16 %v7023
      %v7092 = vunpack.c.l.b16 %v7024
      %v7093 = vunpack.c.l.b16 %v7025
      %v7094 = vunpack.c.l.b16 %v7026
      %v7095 = vunpack.c.l.b16 %v7027
      %v7096 = vunpack.c.l.b16 %v7028
      %v7097 = vunpack.c.l.b16 %v7029
      %v7098 = vunpack.c.l.b16 %v7030
      %v7099 = vpack.c.b16 %v7068, %v7067
      %v7100 = vpack.c.b16 %v7070, %v7069
      %v7101 = vpack.c.b16 %v7072, %v7071
      %v7102 = vpack.c.b16 %v7074, %v7073
      %v7103 = vpack.c.b16 %v7076, %v7075
      %v7104 = vpack.c.b16 %v7078, %v7077
      %v7105 = vpack.c.b16 %v7080, %v7079
      %v7106 = vpack.c.b16 %v7082, %v7081
      %v7107 = vpack.c.b16 %v7084, %v7083
      %v7108 = vpack.c.b16 %v7086, %v7085
      %v7109 = vpack.c.b16 %v7088, %v7087
      %v7110 = vpack.c.b16 %v7090, %v7089
      %v7111 = vpack.c.b16 %v7092, %v7091
      %v7112 = vpack.c.b16 %v7094, %v7093
      %v7113 = vpack.c.b16 %v7096, %v7095
      %v7114 = vpack.c.b16 %v7098, %v7097
      %7131 = vmatpush.bf16.msra.mxu0 %v7106
      %7132 = vmatpush.bf16.msra.mxu0 %v7105
      %7133 = vmatpush.bf16.msra.mxu0 %v7104
      %7134 = vmatpush.bf16.msra.mxu0 %v7103
      %7135 = vmatpush.bf16.msra.mxu0 %v7102
      %7136 = vmatpush.bf16.msra.mxu0 %v7101
      %7137 = vmatpush.bf16.msra.mxu0 %v7100
      %7138 = vmatpush.bf16.msra.mxu0 %v7099
      %7139 = vmatmul.bf16.gmra.mxu0 %v6967
      %v7140 = vpop.f32.mrf.mxu0
      %v7141 = vadd.f32 %v7033, %v7140
      %v7142 = vpop.f32.mrf.mxu0
      %v7143 = vadd.f32 %v7033, %v7142
      %7144 = vmatmul.bf16.gmra.mxu0 %v6969
      %v7145 = vpop.f32.mrf.mxu0
      %v7146 = vadd.f32 %v7033, %v7145
      %v7147 = vpop.f32.mrf.mxu0
      %v7148 = vadd.f32 %v7033, %v7147
      %7149 = vmatmul.bf16.gmra.mxu0 %v6971
      %v7150 = vpop.f32.mrf.mxu0
      %v7151 = vadd.f32 %v7033, %v7150
      %v7152 = vpop.f32.mrf.mxu0
      %v7153 = vadd.f32 %v7033, %v7152
      %7154 = vmatmul.bf16.gmra.mxu0 %v6973
      %v7155 = vpop.f32.mrf.mxu0
      %v7156 = vadd.f32 %v7033, %v7155
      %v7157 = vpop.f32.mrf.mxu0
      %v7158 = vadd.f32 %v7033, %v7157
      %7159 = vmatmul.bf16.gmra.mxu0 %v6975
      %v7160 = vpop.f32.mrf.mxu0
      %v7161 = vadd.f32 %v7033, %v7160
      %v7162 = vpop.f32.mrf.mxu0
      %v7163 = vadd.f32 %v7033, %v7162
      %7164 = vmatmul.bf16.gmra.mxu0 %v6977
      %v7165 = vpop.f32.mrf.mxu0
      %v7166 = vadd.f32 %v7033, %v7165
      %v7167 = vpop.f32.mrf.mxu0
      %v7168 = vadd.f32 %v7033, %v7167
      %7169 = vmatmul.bf16.gmra.mxu0 %v6979
      %v7170 = vpop.f32.mrf.mxu0
      %v7171 = vadd.f32 %v7033, %v7170
      %v7172 = vpop.f32.mrf.mxu0
      %v7173 = vadd.f32 %v7033, %v7172
      %7174 = vmatmul.bf16.gmra.mxu0 %v6981
      %v7175 = vpop.f32.mrf.mxu0
      %v7176 = vadd.f32 %v7033, %v7175
      %v7177 = vpop.f32.mrf.mxu0
      %v7178 = vadd.f32 %v7033, %v7177
      %7179 = vmatmul.bf16.gmra.mxu0 %v6983
      %v7180 = vpop.f32.mrf.mxu0
      %v7181 = vadd.f32 %v7033, %v7180
      %v7182 = vpop.f32.mrf.mxu0
      %v7183 = vadd.f32 %v7033, %v7182
      %7184 = vmatmul.bf16.gmra.mxu0 %v6985
      %v7185 = vpop.f32.mrf.mxu0
      %v7186 = vadd.f32 %v7033, %v7185
      %v7187 = vpop.f32.mrf.mxu0
      %v7188 = vadd.f32 %v7033, %v7187
      %7189 = vmatmul.bf16.gmra.mxu0 %v6987
      %v7190 = vpop.f32.mrf.mxu0
      %v7191 = vadd.f32 %v7033, %v7190
      %v7192 = vpop.f32.mrf.mxu0
      %v7193 = vadd.f32 %v7033, %v7192
      %7194 = vmatmul.bf16.gmra.mxu0 %v6989
      %v7195 = vpop.f32.mrf.mxu0
      %v7196 = vadd.f32 %v7033, %v7195
      %v7197 = vpop.f32.mrf.mxu0
      %v7198 = vadd.f32 %v7033, %v7197
      %7199 = vmatmul.bf16.gmra.mxu0 %v6991
      %v7200 = vpop.f32.mrf.mxu0
      %v7201 = vadd.f32 %v7033, %v7200
      %v7202 = vpop.f32.mrf.mxu0
      %v7203 = vadd.f32 %v7033, %v7202
      %7204 = vmatmul.bf16.gmra.mxu0 %v6993
      %v7205 = vpop.f32.mrf.mxu0
      %v7206 = vadd.f32 %v7033, %v7205
      %v7207 = vpop.f32.mrf.mxu0
      %v7208 = vadd.f32 %v7033, %v7207
      %7209 = vmatmul.bf16.gmra.mxu0 %v6995
      %v7210 = vpop.f32.mrf.mxu0
      %v7211 = vadd.f32 %v7033, %v7210
      %v7212 = vpop.f32.mrf.mxu0
      %v7213 = vadd.f32 %v7033, %v7212
      %7214 = vmatmul.bf16.gmra.mxu0 %v6997
      %v7215 = vpop.f32.mrf.mxu0
      %v7216 = vadd.f32 %v7033, %v7215
      %v7217 = vpop.f32.mrf.mxu0
      %v7218 = vadd.f32 %v7033, %v7217
      %7219 = vdwg.mxu0
      %7220 = vmatpush.bf16.msra.mxu0 %v7114
      %7221 = vmatpush.bf16.msra.mxu0 %v7113
      %7222 = vmatpush.bf16.msra.mxu0 %v7112
      %7223 = vmatpush.bf16.msra.mxu0 %v7111
      %7224 = vmatpush.bf16.msra.mxu0 %v7110
      %7225 = vmatpush.bf16.msra.mxu0 %v7109
      %7226 = vmatpush.bf16.msra.mxu0 %v7108
      %7227 = vmatpush.bf16.msra.mxu0 %v7107
      %7228 = vmatmul.bf16.gmra.mxu0 %v6968
      %v7229 = vpop.f32.mrf.mxu0
      %v7230 = vadd.f32 %v7141, %v7229
      %v7231 = vpop.f32.mrf.mxu0
      %v7232 = vadd.f32 %v7143, %v7231
      %7233 = vmatmul.bf16.gmra.mxu0 %v6970
      %v7234 = vpop.f32.mrf.mxu0
      %v7235 = vadd.f32 %v7146, %v7234
      %v7236 = vpop.f32.mrf.mxu0
      %v7237 = vadd.f32 %v7148, %v7236
      %7238 = vmatmul.bf16.gmra.mxu0 %v6972
      %v7239 = vpop.f32.mrf.mxu0
      %v7240 = vadd.f32 %v7151, %v7239
      %v7241 = vpop.f32.mrf.mxu0
      %v7242 = vadd.f32 %v7153, %v7241
      %7243 = vmatmul.bf16.gmra.mxu0 %v6974
      %v7244 = vpop.f32.mrf.mxu0
      %v7245 = vadd.f32 %v7156, %v7244
      %v7246 = vpop.f32.mrf.mxu0
      %v7247 = vadd.f32 %v7158, %v7246
      %7248 = vmatmul.bf16.gmra.mxu0 %v6976
      %v7249 = vpop.f32.mrf.mxu0
      %v7250 = vadd.f32 %v7161, %v7249
      %v7251 = vpop.f32.mrf.mxu0
      %v7252 = vadd.f32 %v7163, %v7251
      %7253 = vmatmul.bf16.gmra.mxu0 %v6978
      %v7254 = vpop.f32.mrf.mxu0
      %v7255 = vadd.f32 %v7166, %v7254
      %v7256 = vpop.f32.mrf.mxu0
      %v7257 = vadd.f32 %v7168, %v7256
      %7258 = vmatmul.bf16.gmra.mxu0 %v6980
      %v7259 = vpop.f32.mrf.mxu0
      %v7260 = vadd.f32 %v7171, %v7259
      %v7261 = vpop.f32.mrf.mxu0
      %v7262 = vadd.f32 %v7173, %v7261
      %7263 = vmatmul.bf16.gmra.mxu0 %v6982
      %v7264 = vpop.f32.mrf.mxu0
      %v7265 = vadd.f32 %v7176, %v7264
      %v7266 = vpop.f32.mrf.mxu0
      %v7267 = vadd.f32 %v7178, %v7266
      %7268 = vmatmul.bf16.gmra.mxu0 %v6984
      %v7269 = vpop.f32.mrf.mxu0
      %v7270 = vadd.f32 %v7181, %v7269
      %v7271 = vpop.f32.mrf.mxu0
      %v7272 = vadd.f32 %v7183, %v7271
      %7273 = vmatmul.bf16.gmra.mxu0 %v6986
      %v7274 = vpop.f32.mrf.mxu0
      %v7275 = vadd.f32 %v7186, %v7274
      %v7276 = vpop.f32.mrf.mxu0
      %v7277 = vadd.f32 %v7188, %v7276
      %7278 = vmatmul.bf16.gmra.mxu0 %v6988
      %v7279 = vpop.f32.mrf.mxu0
      %v7280 = vadd.f32 %v7191, %v7279
      %v7281 = vpop.f32.mrf.mxu0
      %v7282 = vadd.f32 %v7193, %v7281
      %7283 = vmatmul.bf16.gmra.mxu0 %v6990
      %v7284 = vpop.f32.mrf.mxu0
      %v7285 = vadd.f32 %v7196, %v7284
      %v7286 = vpop.f32.mrf.mxu0
      %v7287 = vadd.f32 %v7198, %v7286
      %7288 = vmatmul.bf16.gmra.mxu0 %v6992
      %v7289 = vpop.f32.mrf.mxu0
      %v7290 = vadd.f32 %v7201, %v7289
      %v7291 = vpop.f32.mrf.mxu0
      %v7292 = vadd.f32 %v7203, %v7291
      %7293 = vmatmul.bf16.gmra.mxu0 %v6994
      %v7294 = vpop.f32.mrf.mxu0
      %v7295 = vadd.f32 %v7206, %v7294
      %v7296 = vpop.f32.mrf.mxu0
      %v7297 = vadd.f32 %v7208, %v7296
      %7298 = vmatmul.bf16.gmra.mxu0 %v6996
      %v7299 = vpop.f32.mrf.mxu0
      %v7300 = vadd.f32 %v7211, %v7299
      %v7301 = vpop.f32.mrf.mxu0
      %v7302 = vadd.f32 %v7213, %v7301
      %7303 = vmatmul.bf16.gmra.mxu0 %v6998
      %v7304 = vpop.f32.mrf.mxu0
      %v7305 = vadd.f32 %v7216, %v7304
      %v7306 = vpop.f32.mrf.mxu0
      %v7307 = vadd.f32 %v7218, %v7306
      %7308 = vdwg.mxu0
      %7309 = vst [vmem:[%s275] sm:$0xff] %v7230
      %7310 = vst [vmem:[%s275 + $0x8] sm:$0xff] %v7232
      %7311 = vst [vmem:[%s275 + $0x10] sm:$0xff] %v7235
      %7312 = vst [vmem:[%s275 + $0x18] sm:$0xff] %v7237
      %7313 = vst [vmem:[%s275 + $0x20] sm:$0xff] %v7240
      %7314 = vst [vmem:[%s275 + $0x28] sm:$0xff] %v7242
      %7315 = vst [vmem:[%s275 + $0x30] sm:$0xff] %v7245
      %7316 = vst [vmem:[%s275 + $0x38] sm:$0xff] %v7247
      %7317 = vst [vmem:[%s275 + $0x40] sm:$0xff] %v7250
      %7318 = vst [vmem:[%s275 + $0x48] sm:$0xff] %v7252
      %7319 = vst [vmem:[%s275 + $0x50] sm:$0xff] %v7255
      %7320 = vst [vmem:[%s275 + $0x58] sm:$0xff] %v7257
      %7321 = vst [vmem:[%s275 + $0x60] sm:$0xff] %v7260
      %7322 = vst [vmem:[%s275 + $0x68] sm:$0xff] %v7262
      %7323 = vst [vmem:[%s275 + $0x70] sm:$0xff] %v7265
      %7324 = vst [vmem:[%s275 + $0x78] sm:$0xff] %v7267
      %7325 = vst [vmem:[%s275 + $0x80] sm:$0xff] %v7270
      %7326 = vst [vmem:[%s275 + $0x88] sm:$0xff] %v7272
      %7327 = vst [vmem:[%s275 + $0x90] sm:$0xff] %v7275
      %7328 = vst [vmem:[%s275 + $0x98] sm:$0xff] %v7277
      %7329 = vst [vmem:[%s275 + $0xa0] sm:$0xff] %v7280
      %7330 = vst [vmem:[%s275 + $0xa8] sm:$0xff] %v7282
      %7331 = vst [vmem:[%s275 + $0xb0] sm:$0xff] %v7285
      %7332 = vst [vmem:[%s275 + $0xb8] sm:$0xff] %v7287
      %7333 = vst [vmem:[%s275 + $0xc0] sm:$0xff] %v7290
      %7334 = vst [vmem:[%s275 + $0xc8] sm:$0xff] %v7292
      %7335 = vst [vmem:[%s275 + $0xd0] sm:$0xff] %v7295
      %7336 = vst [vmem:[%s275 + $0xd8] sm:$0xff] %v7297
      %7337 = vst [vmem:[%s275 + $0xe0] sm:$0xff] %v7300
      %7338 = vst [vmem:[%s275 + $0xe8] sm:$0xff] %v7302
      %7339 = vst [vmem:[%s275 + $0xf0] sm:$0xff] %v7305
      %7340 = vst [vmem:[%s275 + $0xf8] sm:$0xff] %v7307
      %s7341 = smul.u32 16, %s22
      %p7342 = scmp.lt.s32.totalorder %s21, 1
      %s7343 = scalar_select %p7342, %s21, 1
      %p7344 = scmp.lt.s32.totalorder %s7341, 15
      %s7345 = scalar_select %p7344, %s7341, 15
      %s7346 = smul.addr %s7345, 2
      %s7347 = smul.addr %s7343, 32
      %s7348 = sadd.s32 %s7346, %s7347
      %s7349 = smul.addr %s7348, 8
      %s7350 = scalar_lea.vmem %s6, %s7349
      // Predicated region
      $region45: #{auxiliary_psp_forward.2} parent=43 // pred_check
        %p7351 = pneg %p180
      $region46: #{auxiliary_psp_forward.2} parent=43 // pred_check_branch
        %7353 = sbr.rel (%p7351) target = $region48
      $region47: #{auxiliary_psp_forward.2} parent=43 // pred_region
        %s7354 = smul.u32 16, %s22
      $region48: #{auxiliary_psp_forward.2} parent=43 // pred_fallthru
        _
    $region44: #{auxiliary_psp_forward.2} parent=5 // pred_fallthru
      _
    %p7355 = scmp.le.s32.totalorder 2, %s12
    // Predicated region
    $region49: #{auxiliary_psp_forward.2} parent=5 // pred_check
      %p7356 = pneg %p7355
    $region50: #{auxiliary_psp_forward.2} parent=5 // pred_check_branch
      %7358 = sbr.rel (%p7356) target = $region52
    $region51: #{auxiliary_psp_forward.2} parent=5 // pred_region
      %s7359 = ssub.s32 %s12, 2
      // Predicated region
      $region53: #{auxiliary_psp_forward.2} parent=51 // pred_check
        %p7360 = pneg %p186
      $region54: #{auxiliary_psp_forward.2} parent=51 // pred_check_branch
        %7362 = sbr.rel (%p7360) target = $region56
      $region55: #{auxiliary_psp_forward.2} parent=51 // pred_region
        %s7363 = smul.u32 16, %s24
        %p7364 = scmp.lt.s32.totalorder %s23, 1
        %s7365 = scalar_select %p7364, %s23, 1
        %p7366 = scmp.lt.s32.totalorder %s7363, 15
        %s7367 = scalar_select %p7366, %s7363, 15
        %s7368 = smul.addr %s7367, 2
        %s7369 = smul.addr %s7365, 32
        %s7370 = sadd.s32 %s7368, %s7369
        %s7371 = smul.addr %s7370, 8
        %s7372 = scalar_lea.vmem %s6, %s7371
      $region56: #{auxiliary_psp_forward.2} parent=51 // pred_fallthru
        _
    $region52: #{auxiliary_psp_forward.2} parent=5 // pred_fallthru
      _
  $region6: #{auxiliary_psp_forward.2} parent=0 // loop_footer
    %s16 = sadd.s32 1, %s12
  $region7: #{auxiliary_psp_forward.2} parent=0 // loop_footer_branch
    %11 = sbr.rel target = $region3
  $region8: #{auxiliary_psp_forward.2} parent=0 // loop_exit
    _

</llo_original>
